<compile_context>
chip_gen: v7x
topology: tpu7x:2x2x1
jax: 0.10.0
libtpu: 0.0.40
codegen_flags: <defaults>
</compile_context>

<pallas_src>
import numpy as np
import jax
import jax.numpy as jnp
from jax.experimental import pallas as pl
from jax.experimental.pallas import tpu as pltpu

EMB = 768            # bert_emb_dim
HID = 1024           # lstm_hidden_size
FNN_H = 400          # logical hidden of the final MLP
FNN_HP = 512         # lane-padded (zero-padded) hidden of the final MLP
U = 8                # timesteps per grid step (static unroll) == time bucket


def _vmem_capacity_bytes():
    try:
        cap = getattr(pltpu.get_tpu_info(), "vmem_capacity_bytes", None)
        if cap:
            return int(cap)
    except Exception:
        pass
    return 64 << 20   # conservative (v7x-sized) fallback


def _bf16_activations_ok():
    """bf16 EUP exists on v6e / v7x; keep f32 activations elsewhere."""
    try:
        kind = jax.devices()[0].device_kind.lower()
    except Exception:
        return False
    return any(s in kind for s in ("v6", "v7", "tpu7"))


_VMEM_CAP = _vmem_capacity_bytes()
_BIG_VMEM = _VMEM_CAP >= (100 << 20)          # v5e/v6e (128 MiB) vs v7x (64 MiB)
VMEM_LIMIT = (100 << 20) if _BIG_VMEM else (48 << 20)
_TM_MAX = 1024 if _BIG_VMEM else 512
_BF16_ACT = _bf16_activations_ok()


def proj_kernel(x_ref, wih_ref, b_ref, gx_ref):
    """(TM, EMB) bf16 @ (EMB, 4H) bf16 + (1, 4H) f32 -> (TM, 4H) bf16."""
    gx_ref[...] = (jnp.dot(x_ref[...], wih_ref[...],
                           preferred_element_type=jnp.float32)
                   + b_ref[...]).astype(jnp.bfloat16)


def make_lstm_head_kernel(bf16_act):
    """One grid step = U LSTM timesteps (recurrent part only); the masked FNN
    head runs at the last time step of each batch tile."""

    def kernel(gx_ref, whh_ref, len_ref, mask_ref,
               w1_ref, b1_ref, w2_ref, b2_ref,
               out_ref, h_scr, c_scr):
        t_idx = pl.program_id(1)
        n_unroll = gx_ref.shape[0]

        @pl.when(t_idx == 0)
        def _init():
            h_scr[...] = jnp.zeros_like(h_scr)
            c_scr[...] = jnp.zeros_like(c_scr)

        for u in range(n_unroll):          # static unroll for LLO visibility
            t = t_idx * n_unroll + u
            h_b = h_scr[...]               # bf16, fed straight to the MXU

            def pre_act(g):                # per-gate dot + bf16 gx upcast
                acc = jnp.dot(h_b, whh_ref[:, g * HID:(g + 1) * HID],
                              preferred_element_type=jnp.float32)
                return acc + gx_ref[u, :, g * HID:(g + 1) * HID].astype(jnp.float32)

            if bf16_act:                   # v6e/v7x: bf16 EUP, c update in f32
                i_g = jax.nn.sigmoid(pre_act(0).astype(jnp.bfloat16))
                f_g = jax.nn.sigmoid(pre_act(1).astype(jnp.bfloat16))
                g_g = jnp.tanh(pre_act(2).astype(jnp.bfloat16))
                o_g = jax.nn.sigmoid(pre_act(3).astype(jnp.bfloat16))
                c_new = f_g * c_scr[...] + i_g * g_g                   # f32
                h_new = o_g * jnp.tanh(c_new.astype(jnp.bfloat16))     # bf16
            else:                          # v5e / unknown: all-f32 activations
                i_g = jax.nn.sigmoid(pre_act(0))
                f_g = jax.nn.sigmoid(pre_act(1))
                g_g = jnp.tanh(pre_act(2))
                o_g = jax.nn.sigmoid(pre_act(3))
                c_new = f_g * c_scr[...] + i_g * g_g
                h_new = (o_g * jnp.tanh(c_new)).astype(jnp.bfloat16)

            valid = t < len_ref[...]       # (BT, 1) packed-sequence gate
            h_scr[...] = jnp.where(valid, h_new, h_scr[...])
            c_scr[...] = jnp.where(valid, c_new, c_scr[...])

        @pl.when(t_idx == pl.num_programs(1) - 1)
        def _head():
            # output[:, -1, :] == h_{L_max-1} masked by (length == L_max)
            feat = (h_scr[...] * mask_ref[...]).astype(jnp.bfloat16)
            z1 = jnp.dot(feat, w1_ref[...],
                         preferred_element_type=jnp.float32) + b1_ref[...]
            z1 = jnp.maximum(z1, 0.0)      # ReLU; Dropout == identity (eval)
            z2 = jnp.dot(z1.astype(jnp.bfloat16), w2_ref[...],
                         preferred_element_type=jnp.float32) + b2_ref[...]
            out_ref[...] = jax.nn.sigmoid(z2)

    return kernel


def init_params(key):
    """PyTorch-style uniform(-1/sqrt(fan)) init; returns (kernel_params, raw).
    Kernel params are pre-transposed, MXU operands bf16, FNN hidden zero-padded
    400 -> 512.  `raw` keeps the f32 weights for the pure-JAX reference."""
    ks = jax.random.split(key, 8)
    s_lstm = 1.0 / np.sqrt(HID)
    s_l1 = 1.0 / np.sqrt(HID)
    s_l2 = 1.0 / np.sqrt(FNN_H)

    wih = jax.random.uniform(ks[0], (4 * HID, EMB), jnp.float32, -s_lstm, s_lstm)
    whh = jax.random.uniform(ks[1], (4 * HID, HID), jnp.float32, -s_lstm, s_lstm)
    bih = jax.random.uniform(ks[2], (4 * HID,), jnp.float32, -s_lstm, s_lstm)
    bhh = jax.random.uniform(ks[3], (4 * HID,), jnp.float32, -s_lstm, s_lstm)

    w1 = jax.random.uniform(ks[4], (FNN_H, HID), jnp.float32, -s_l1, s_l1)
    b1 = jax.random.uniform(ks[5], (FNN_H,), jnp.float32, -s_l1, s_l1)
    w2 = jax.random.uniform(ks[6], (1, FNN_H), jnp.float32, -s_l2, s_l2)
    b2 = jax.random.uniform(ks[7], (1,), jnp.float32, -s_l2, s_l2)

    pad = FNN_HP - FNN_H
    w1_t = jnp.pad(jnp.transpose(w1), ((0, 0), (0, pad)))             # (HID, 512)
    b1_p = jnp.pad(b1, (0, pad)).reshape(1, FNN_HP)                   # (1, 512)
    w2_t = jnp.pad(jnp.transpose(w2), ((0, pad), (0, 0)))             # (512, 1)

    kernel_params = dict(
        wih_t=jnp.transpose(wih).astype(jnp.bfloat16),                # (EMB, 4H)
        whh_t=jnp.transpose(whh).astype(jnp.bfloat16),                # (HID, 4H)
        b_lstm=(bih + bhh).reshape(1, 4 * HID),                       # (1, 4H) f32
        w1_t=w1_t.astype(jnp.bfloat16),
        b1=b1_p,                                                      # f32
        w2_t=w2_t.astype(jnp.bfloat16),
        b2=b2.reshape(1, 1),                                          # f32
    )
    raw = dict(wih=wih, whh=whh, bih=bih, bhh=bhh, w1=w1, b1=b1, w2=w2, b2=b2)
    return kernel_params, raw


def semantic_score(batch_doc_encodes, batch_doc_sent_nums, params):
    """batch_doc_encodes: (B, T, 768) f32; batch_doc_sent_nums: host ints (B,)."""
    lengths = np.asarray(batch_doc_sent_nums).astype(np.int32)
    B = batch_doc_encodes.shape[0]
    l_max = int(lengths.max())

    # bucket the packed max length to a multiple of U (one compile per bucket),
    # pad batch to sublane granularity.
    t_b = ((l_max + U - 1) // U) * U
    b_p = ((B + 7) // 8) * 8

    x = jnp.transpose(batch_doc_encodes[:, :l_max, :], (1, 0, 2))     # (l_max,B,E)
    x = jnp.pad(x, ((0, t_b - l_max), (0, b_p - B), (0, 0)))
    x = x.astype(jnp.bfloat16)                                        # (t_b,b_p,E)

    len_col = np.zeros((b_p, 1), np.int32)
    len_col[:B, 0] = lengths
    mask = np.zeros((b_p, 1), np.float32)
    mask[:B, 0] = (lengths == l_max).astype(np.float32)
    len_col = jnp.asarray(len_col)
    mask = jnp.asarray(mask)

    # ---- pass 1: hoisted input projection -> bf16 gates_x ------------------
    rows = t_b * b_p                                   # multiple of 64
    tm = next(c for c in (1024, 512, 256, 128, 64, 8)
              if c <= _TM_MAX and rows % c == 0)
    gates_x = pl.pallas_call(
        proj_kernel,
        out_shape=jax.ShapeDtypeStruct((rows, 4 * HID), jnp.bfloat16),
        grid=(rows // tm,),
        in_specs=[pl.BlockSpec((tm, EMB), lambda i: (i, 0)),
                  pl.BlockSpec((EMB, 4 * HID), lambda i: (0, 0)),
                  pl.BlockSpec((1, 4 * HID), lambda i: (0, 0))],
        out_specs=pl.BlockSpec((tm, 4 * HID), lambda i: (i, 0)),
        compiler_params=pltpu.CompilerParams(
            dimension_semantics=("parallel",),
            vmem_limit_bytes=VMEM_LIMIT),
    )(x.reshape(rows, EMB), params["wih_t"], params["b_lstm"])
    gates_x = gates_x.reshape(t_b, b_p, 4 * HID)

    # ---- pass 2: recurrence (per-gate h @ W_hh) + masked FNN head ----------
    # batch tile: >= 2 tiles when possible so the "parallel" axis can shard
    # across the two v7x TensorCores (and shrinks per-step VMEM everywhere).
    if b_p <= 8:
        bt = b_p
    else:
        bt = next(c for c in (64, 32, 16, 8) if b_p % c == 0 and b_p // c >= 2)

    out = pl.pallas_call(
        make_lstm_head_kernel(_BF16_ACT),
        out_shape=jax.ShapeDtypeStruct((b_p, 1), jnp.float32),
        grid=(b_p // bt, t_b // U),
        in_specs=[
            pl.BlockSpec((U, bt, 4 * HID), lambda b, t: (t, b, 0)),   # gates_x
            pl.BlockSpec((HID, 4 * HID), lambda b, t: (0, 0)),        # W_hh^T
            pl.BlockSpec((bt, 1), lambda b, t: (b, 0)),               # lengths
            pl.BlockSpec((bt, 1), lambda b, t: (b, 0)),               # mask
            pl.BlockSpec((HID, FNN_HP), lambda b, t: (0, 0)),         # W1^T
            pl.BlockSpec((1, FNN_HP), lambda b, t: (0, 0)),           # b1
            pl.BlockSpec((FNN_HP, 1), lambda b, t: (0, 0)),           # W2^T
            pl.BlockSpec((1, 1), lambda b, t: (0, 0)),                # b2
        ],
        out_specs=pl.BlockSpec((bt, 1), lambda b, t: (b, 0)),
        scratch_shapes=[pltpu.VMEM((bt, HID), jnp.bfloat16),          # h (bf16)
                        pltpu.VMEM((bt, HID), jnp.float32)],          # c (f32)
        compiler_params=pltpu.CompilerParams(
            dimension_semantics=("parallel", "arbitrary"),
            vmem_limit_bytes=VMEM_LIMIT),
    )(gates_x, params["whh_t"], len_col, mask,
      params["w1_t"], params["b1"], params["w2_t"], params["b2"])

    return out[:B, 0]   # logits.squeeze(-1) -> (B,)


def semantic_score_ref(batch_doc_encodes, batch_doc_sent_nums, raw):
    """Pure-JAX f32 reference mirroring the PyTorch module (eval mode)."""
    lengths = np.asarray(batch_doc_sent_nums).astype(np.int32)
    B = batch_doc_encodes.shape[0]
    l_max = int(lengths.max())
    x = batch_doc_encodes.astype(jnp.float32)
    lens = jnp.asarray(lengths)[:, None]                              # (B, 1)

    h = jnp.zeros((B, HID), jnp.float32)
    c = jnp.zeros((B, HID), jnp.float32)
    for t in range(l_max):
        gates = (x[:, t, :] @ raw["wih"].T + raw["bih"]
                 + h @ raw["whh"].T + raw["bhh"])
        i_g = jax.nn.sigmoid(gates[:, 0 * HID:1 * HID])
        f_g = jax.nn.sigmoid(gates[:, 1 * HID:2 * HID])
        g_g = jnp.tanh(gates[:, 2 * HID:3 * HID])
        o_g = jax.nn.sigmoid(gates[:, 3 * HID:4 * HID])
        c_new = f_g * c + i_g * g_g
        h_new = o_g * jnp.tanh(c_new)
        valid = t < lens
        h = jnp.where(valid, h_new, h)
        c = jnp.where(valid, c_new, c)

    feat = h * (lens == l_max).astype(jnp.float32)    # == output[:, -1, :]
    z1 = jnp.maximum(feat @ raw["w1"].T + raw["b1"], 0.0)
    z2 = z1 @ raw["w2"].T + raw["b2"]
    return jax.nn.sigmoid(z2)[:, 0]


if __name__ == "__main__":
    key = jax.random.PRNGKey(0)
    k_x, k_p = jax.random.split(key)

    B, T = 2, 8
    batch_doc_encodes = jax.random.normal(k_x, (B, T, EMB), jnp.float32)
    batch_doc_sent_nums = np.array([8, 5], dtype=np.int32)

    params, raw = init_params(k_p)
    scores = semantic_score(batch_doc_encodes, batch_doc_sent_nums, params)
    jax.block_until_ready(scores)

    assert scores.shape == (B,)
    assert bool(jnp.all(jnp.isfinite(scores)))

    # tolerance check against a pure-JAX f32 reference (bf16 drift is bounded)
    ref = semantic_score_ref(batch_doc_encodes, batch_doc_sent_nums, raw)
    jax.block_until_ready(ref)
    max_err = float(jnp.max(jnp.abs(scores - ref)))
    assert max_err < 5e-2, f"kernel vs f32 reference mismatch: {max_err}"

    print("KERNEL_OK")
</pallas_src>

<mosaic_0001>
module attributes {stable_mosaic.version = 11 : i64} {
  func.func @proj_kernel(%arg0: i32, %arg1: memref<64x768xbf16, #tpu.memory_space<vmem>>, %arg2: memref<768x4096xbf16, #tpu.memory_space<vmem>>, %arg3: memref<1x4096xf32, #tpu.memory_space<vmem>>, %arg4: memref<64x4096xbf16, #tpu.memory_space<vmem>>) attributes {dimension_semantics = [#tpu.dimension_semantics<parallel>], iteration_bounds = array<i64: 1>, scalar_prefetch = 0 : i64, scratch_operands = 0 : i64, tpu.core_type = #tpu.core_type<tc>, window_params = [{transform_indices = @transform_0, window_bounds = array<i64: 64, 768>}, {pipeline_mode = #tpu.pipeline_mode<synchronous>, transform_indices = @transform_1, window_bounds = array<i64: 768, 4096>}, {pipeline_mode = #tpu.pipeline_mode<synchronous>, transform_indices = @transform_2, window_bounds = array<i64: 1, 4096>}, {transform_indices = @transform_3, window_bounds = array<i64: 64, 4096>}]} {
    %c0 = arith.constant 0 : index
    %c0_0 = arith.constant 0 : index
    %0 = vector.load %arg1[%c0, %c0_0] : memref<64x768xbf16, #tpu.memory_space<vmem>>, vector<64x768xbf16>
    %c0_1 = arith.constant 0 : index
    %c0_2 = arith.constant 0 : index
    %1 = vector.load %arg2[%c0_1, %c0_2] : memref<768x4096xbf16, #tpu.memory_space<vmem>>, vector<768x4096xbf16>
    %cst = arith.constant dense<0.000000e+00> : vector<64x4096xf32>
    %2 = tpu.matmul %0, %1, %cst {dimension_numbers = #tpu.dot_dimension_numbers<[1], [0], [0], [1], [0, 0, 1, 1], [], []>} : vector<64x768xbf16>, vector<768x4096xbf16>, vector<64x4096xf32> -> vector<64x4096xf32>
    %c0_3 = arith.constant 0 : index
    %c0_4 = arith.constant 0 : index
    %3 = vector.load %arg3[%c0_3, %c0_4] : memref<1x4096xf32, #tpu.memory_space<vmem>>, vector<1x4096xf32>
    %4 = vector.broadcast %3 : vector<1x4096xf32> to vector<64x4096xf32>
    %5 = arith.addf %2, %4 : vector<64x4096xf32>
    %6 = arith.truncf %5 : vector<64x4096xf32> to vector<64x4096xbf16>
    %c0_5 = arith.constant 0 : index
    %c0_6 = arith.constant 0 : index
    %7 = vector.load %arg4[%c0_5, %c0_6] : memref<64x4096xbf16, #tpu.memory_space<vmem>>, vector<64x4096xbf16>
    tpu.vector_store %arg4[%c0_5, %c0_6], %6 {strides = array<i32>} : memref<64x4096xbf16, #tpu.memory_space<vmem>>, vector<64x4096xbf16>,
    return
  }
  func.func @transform_0(%arg0: i32) -> (i32, i32) {
    %c0_i32 = arith.constant 0 : i32
    %c0_i32_0 = arith.constant 0 : i32
    return %arg0, %c0_i32 : i32, i32
  }
  func.func @transform_1(%arg0: i32) -> (i32, i32) {
    %c0_i32 = arith.constant 0 : i32
    %c0_i32_0 = arith.constant 0 : i32
    %c0_i32_1 = arith.constant 0 : i32
    return %c0_i32, %c0_i32_0 : i32, i32
  }
  func.func @transform_2(%arg0: i32) -> (i32, i32) {
    %c0_i32 = arith.constant 0 : i32
    %c0_i32_0 = arith.constant 0 : i32
    %c0_i32_1 = arith.constant 0 : i32
    return %c0_i32, %c0_i32_0 : i32, i32
  }
  func.func @transform_3(%arg0: i32) -> (i32, i32) {
    %c0_i32 = arith.constant 0 : i32
    %c0_i32_0 = arith.constant 0 : i32
    return %arg0, %c0_i32 : i32, i32
  }
}

</mosaic_0001>

<llo_original>
// kernel: tpu_custom_call.1
$region0: #{tpu_custom_call.1}
  #allocation0 [shape = 'u32[]', space=smem, size = 0x4, offset = 0x4, fixed_abs, tag = 'smem constant byte address 0x4 - core index']
  #allocation1 [shape = 'u32[144,128]{1,0:T(1,128)}', space=vmem, size = 0x12000, scoped, tag = 'internal scratch']
  %s0 = inlined_call_operand.hbm [shape: bf16[64,768], index: 0, kind: input, shape index: {}]
  %s1 = inlined_call_operand.hbm [shape: bf16[768,4096], index: 1, kind: input, shape index: {}]
  %s2 = inlined_call_operand.hbm [shape: f32[1,4096], index: 2, kind: input, shape index: {}]
  %s3 = inlined_call_operand.hbm [shape: bf16[64,4096], index: 3, kind: output, shape index: {}]
  %s4 = sld [smem:[#allocation0]]
  $region34: #{tpu_custom_call.1} parent=0
    _
  %s6 = ssub.s32 1, %s4
  %s7 = scalar_select 0, %s6, %s4
  $region1: #{tpu_custom_call.1} parent=0
    #allocation2 [shape = 'u8[98304]{0}', space=vmem, size = 0x18000, scoped, tag = 'input window, operand 0, single buffered']
    #allocation3 [shape = 's32[1]{0}', space=sflag, size = 0x4, scoped, tag = 'scoped memory for tpu_custom_call.1']
    #allocation4 [shape = 's32[1]{0}', space=sflag, size = 0x4, scoped, tag = 'scoped memory for tpu_custom_call.1']
    #allocation5 [shape = 'u8[6291456]{0}', space=vmem, size = 0x600000, scoped, tag = 'input window, operand 1, single buffered']
    #allocation6 [shape = 's32[1]{0}', space=sflag, size = 0x4, scoped, tag = 'scoped memory for tpu_custom_call.1']
    #allocation7 [shape = 'u8[16384]{0}', space=vmem, size = 0x4000, scoped, tag = 'input window, operand 2, single buffered']
    #allocation8 [shape = 'u8[524288]{0}', space=vmem, size = 0x80000, scoped, tag = 'output window, operand 0, single buffered']
    %8 = vsyncpa [#allocation3], 0
    %9 = vsyncpa [#allocation6], 0
    %10 = vsyncpa [#allocation4], 0
    // Predicated region
    $region2: #{tpu_custom_call.1} parent=1 // pred_check
      _
    $region3: #{tpu_custom_call.1} parent=1 // pred_check_branch
      %12 = sbr.rel (0) target = $region5
    $region4: #{tpu_custom_call.1} parent=1 // pred_region
      %s14 = ssub.s32 3072, 3072
      %15 = vsyncadd [#allocation3], %s14
      %s16 = sshll.u32 [#allocation2], 4
      %s17 = int_to_ptr.vmem [resolvable:$true] %s16
      %22 = dma.hbm_to_vmem [thread:$0]  %s0, 3072, %s17, [#allocation3], 384, 384, 24
    $region5: #{tpu_custom_call.1} parent=1 // pred_fallthru
      _
    // Predicated region
    $region6: #{tpu_custom_call.1} parent=1 // pred_check
      _
    $region7: #{tpu_custom_call.1} parent=1 // pred_check_branch
      %24 = sbr.rel (0) target = $region9
    $region8: #{tpu_custom_call.1} parent=1 // pred_region
      %s26 = ssub.s32 196608, 196608
      %27 = vsyncadd [#allocation6], %s26
      %s28 = sshll.u32 [#allocation5], 4
      %s29 = int_to_ptr.vmem [resolvable:$true] %s28
      %34 = dma.hbm_to_vmem [thread:$0]  %s1, 196608, %s29, [#allocation6], 2048, 2048, 128
    $region9: #{tpu_custom_call.1} parent=1 // pred_fallthru
      _
    // Predicated region
    $region10: #{tpu_custom_call.1} parent=1 // pred_check
      _
    $region11: #{tpu_custom_call.1} parent=1 // pred_check_branch
      %36 = sbr.rel (0) target = $region13
    $region12: #{tpu_custom_call.1} parent=1 // pred_region
      %s38 = ssub.s32 512, 512
      %39 = vsyncadd [#allocation6], %s38
      %s41 = sshll.u32 [#allocation7], 4
      %s42 = int_to_ptr.vmem [resolvable:$true] %s41
      %44 = dma.hbm_to_vmem [thread:$0]  %s2, 512, %s42, [#allocation6]
    $region13: #{tpu_custom_call.1} parent=1 // pred_fallthru
      _
    // Predicated region
    $region14: #{tpu_custom_call.1} parent=1 // pred_check
      _
    $region15: #{tpu_custom_call.1} parent=1 // pred_check_branch
      %46 = sbr.rel (0) target = $region17
    $region16: #{tpu_custom_call.1} parent=1 // pred_region
      %47 = dma.done [#allocation3], 3072
    $region17: #{tpu_custom_call.1} parent=1 // pred_fallthru
      _
    // Predicated region
    $region18: #{tpu_custom_call.1} parent=1 // pred_check
      _
    $region19: #{tpu_custom_call.1} parent=1 // pred_check_branch
      %49 = sbr.rel (0) target = $region21
    $region20: #{tpu_custom_call.1} parent=1 // pred_region
      %50 = dma.done [#allocation6], 196608
    $region21: #{tpu_custom_call.1} parent=1 // pred_fallthru
      _
    // Predicated region
    $region22: #{tpu_custom_call.1} parent=1 // pred_check
      _
    $region23: #{tpu_custom_call.1} parent=1 // pred_check_branch
      %52 = sbr.rel (0) target = $region25
    $region24: #{tpu_custom_call.1} parent=1 // pred_region
      %53 = dma.done [#allocation6], 512
    $region25: #{tpu_custom_call.1} parent=1 // pred_fallthru
      _
    %v54 = vld [vmem:[#allocation2] sm:$0xff]
    %v55 = vld [vmem:[#allocation2 + $0x8] sm:$0xff]
    %v56 = vld [vmem:[#allocation2 + $0x10] sm:$0xff]
    %v57 = vld [vmem:[#allocation2 + $0x18] sm:$0xff]
    %v58 = vld [vmem:[#allocation2 + $0x20] sm:$0xff]
    %v59 = vld [vmem:[#allocation2 + $0x28] sm:$0xff]
    %v60 = vld [vmem:[#allocation2 + $0x30] sm:$0xff]
    %v61 = vld [vmem:[#allocation2 + $0x38] sm:$0xff]
    %v62 = vld [vmem:[#allocation2 + $0x40] sm:$0xff]
    %v63 = vld [vmem:[#allocation2 + $0x48] sm:$0xff]
    %v64 = vld [vmem:[#allocation2 + $0x50] sm:$0xff]
    %v65 = vld [vmem:[#allocation2 + $0x58] sm:$0xff]
    %v66 = vld [vmem:[#allocation2 + $0x60] sm:$0xff]
    %v67 = vld [vmem:[#allocation2 + $0x68] sm:$0xff]
    %v68 = vld [vmem:[#allocation2 + $0x70] sm:$0xff]
    %v69 = vld [vmem:[#allocation2 + $0x78] sm:$0xff]
    %v70 = vld [vmem:[#allocation2 + $0x80] sm:$0xff]
    %v71 = vld [vmem:[#allocation2 + $0x88] sm:$0xff]
    %v72 = vld [vmem:[#allocation2 + $0x90] sm:$0xff]
    %v73 = vld [vmem:[#allocation2 + $0x98] sm:$0xff]
    %v74 = vld [vmem:[#allocation2 + $0xa0] sm:$0xff]
    %v75 = vld [vmem:[#allocation2 + $0xa8] sm:$0xff]
    %v76 = vld [vmem:[#allocation2 + $0xb0] sm:$0xff]
    %v77 = vld [vmem:[#allocation2 + $0xb8] sm:$0xff]
    %v78 = vld [vmem:[#allocation5] sm:$0xff]
    %v79 = vld [vmem:[#allocation5 + $0x8] sm:$0xff]
    %v80 = vld [vmem:[#allocation5 + $0x10] sm:$0xff]
    %v81 = vld [vmem:[#allocation5 + $0x18] sm:$0xff]
    %v82 = vld [vmem:[#allocation5 + $0x20] sm:$0xff]
    %v83 = vld [vmem:[#allocation5 + $0x28] sm:$0xff]
    %v84 = vld [vmem:[#allocation5 + $0x30] sm:$0xff]
    %v85 = vld [vmem:[#allocation5 + $0x38] sm:$0xff]
    %v86 = vld [vmem:[#allocation5 + $0x40] sm:$0xff]
    %v87 = vld [vmem:[#allocation5 + $0x48] sm:$0xff]
    %v88 = vld [vmem:[#allocation5 + $0x50] sm:$0xff]
    %v89 = vld [vmem:[#allocation5 + $0x58] sm:$0xff]
    %v90 = vld [vmem:[#allocation5 + $0x60] sm:$0xff]
    %v91 = vld [vmem:[#allocation5 + $0x68] sm:$0xff]
    %v92 = vld [vmem:[#allocation5 + $0x70] sm:$0xff]
    %v93 = vld [vmem:[#allocation5 + $0x78] sm:$0xff]
    %v94 = vld [vmem:[#allocation5 + $0x80] sm:$0xff]
    %v95 = vld [vmem:[#allocation5 + $0x88] sm:$0xff]
    %v96 = vld [vmem:[#allocation5 + $0x90] sm:$0xff]
    %v97 = vld [vmem:[#allocation5 + $0x98] sm:$0xff]
    %v98 = vld [vmem:[#allocation5 + $0xa0] sm:$0xff]
    %v99 = vld [vmem:[#allocation5 + $0xa8] sm:$0xff]
    %v100 = vld [vmem:[#allocation5 + $0xb0] sm:$0xff]
    %v101 = vld [vmem:[#allocation5 + $0xb8] sm:$0xff]
    %v102 = vld [vmem:[#allocation5 + $0xc0] sm:$0xff]
    %v103 = vld [vmem:[#allocation5 + $0xc8] sm:$0xff]
    %v104 = vld [vmem:[#allocation5 + $0xd0] sm:$0xff]
    %v105 = vld [vmem:[#allocation5 + $0xd8] sm:$0xff]
    %v106 = vld [vmem:[#allocation5 + $0xe0] sm:$0xff]
    %v107 = vld [vmem:[#allocation5 + $0xe8] sm:$0xff]
    %v108 = vld [vmem:[#allocation5 + $0xf0] sm:$0xff]
    %v109 = vld [vmem:[#allocation5 + $0xf8] sm:$0xff]
    %v110 = vld [vmem:[#allocation5 + $0x100] sm:$0xff]
    %v111 = vld [vmem:[#allocation5 + $0x108] sm:$0xff]
    %v112 = vld [vmem:[#allocation5 + $0x110] sm:$0xff]
    %v113 = vld [vmem:[#allocation5 + $0x118] sm:$0xff]
    %v114 = vld [vmem:[#allocation5 + $0x120] sm:$0xff]
    %v115 = vld [vmem:[#allocation5 + $0x128] sm:$0xff]
    %v116 = vld [vmem:[#allocation5 + $0x130] sm:$0xff]
    %v117 = vld [vmem:[#allocation5 + $0x138] sm:$0xff]
    %v118 = vld [vmem:[#allocation5 + $0x140] sm:$0xff]
    %v119 = vld [vmem:[#allocation5 + $0x148] sm:$0xff]
    %v120 = vld [vmem:[#allocation5 + $0x150] sm:$0xff]
    %v121 = vld [vmem:[#allocation5 + $0x158] sm:$0xff]
    %v122 = vld [vmem:[#allocation5 + $0x160] sm:$0xff]
    %v123 = vld [vmem:[#allocation5 + $0x168] sm:$0xff]
    %v124 = vld [vmem:[#allocation5 + $0x170] sm:$0xff]
    %v125 = vld [vmem:[#allocation5 + $0x178] sm:$0xff]
    %v126 = vld [vmem:[#allocation5 + $0x180] sm:$0xff]
    %v127 = vld [vmem:[#allocation5 + $0x188] sm:$0xff]
    %v128 = vld [vmem:[#allocation5 + $0x190] sm:$0xff]
    %v129 = vld [vmem:[#allocation5 + $0x198] sm:$0xff]
    %v130 = vld [vmem:[#allocation5 + $0x1a0] sm:$0xff]
    %v131 = vld [vmem:[#allocation5 + $0x1a8] sm:$0xff]
    %v132 = vld [vmem:[#allocation5 + $0x1b0] sm:$0xff]
    %v133 = vld [vmem:[#allocation5 + $0x1b8] sm:$0xff]
    %v134 = vld [vmem:[#allocation5 + $0x1c0] sm:$0xff]
    %v135 = vld [vmem:[#allocation5 + $0x1c8] sm:$0xff]
    %v136 = vld [vmem:[#allocation5 + $0x1d0] sm:$0xff]
    %v137 = vld [vmem:[#allocation5 + $0x1d8] sm:$0xff]
    %v138 = vld [vmem:[#allocation5 + $0x1e0] sm:$0xff]
    %v139 = vld [vmem:[#allocation5 + $0x1e8] sm:$0xff]
    %v140 = vld [vmem:[#allocation5 + $0x1f0] sm:$0xff]
    %v141 = vld [vmem:[#allocation5 + $0x1f8] sm:$0xff]
    %v142 = vld [vmem:[#allocation5 + $0x200] sm:$0xff]
    %v143 = vld [vmem:[#allocation5 + $0x208] sm:$0xff]
    %v144 = vld [vmem:[#allocation5 + $0x210] sm:$0xff]
    %v145 = vld [vmem:[#allocation5 + $0x218] sm:$0xff]
    %v146 = vld [vmem:[#allocation5 + $0x220] sm:$0xff]
    %v147 = vld [vmem:[#allocation5 + $0x228] sm:$0xff]
    %v148 = vld [vmem:[#allocation5 + $0x230] sm:$0xff]
    %v149 = vld [vmem:[#allocation5 + $0x238] sm:$0xff]
    %v150 = vld [vmem:[#allocation5 + $0x240] sm:$0xff]
    %v151 = vld [vmem:[#allocation5 + $0x248] sm:$0xff]
    %v152 = vld [vmem:[#allocation5 + $0x250] sm:$0xff]
    %v153 = vld [vmem:[#allocation5 + $0x258] sm:$0xff]
    %v154 = vld [vmem:[#allocation5 + $0x260] sm:$0xff]
    %v155 = vld [vmem:[#allocation5 + $0x268] sm:$0xff]
    %v156 = vld [vmem:[#allocation5 + $0x270] sm:$0xff]
    %v157 = vld [vmem:[#allocation5 + $0x278] sm:$0xff]
    %v158 = vld [vmem:[#allocation5 + $0x280] sm:$0xff]
    %v159 = vld [vmem:[#allocation5 + $0x288] sm:$0xff]
    %v160 = vld [vmem:[#allocation5 + $0x290] sm:$0xff]
    %v161 = vld [vmem:[#allocation5 + $0x298] sm:$0xff]
    %v162 = vld [vmem:[#allocation5 + $0x2a0] sm:$0xff]
    %v163 = vld [vmem:[#allocation5 + $0x2a8] sm:$0xff]
    %v164 = vld [vmem:[#allocation5 + $0x2b0] sm:$0xff]
    %v165 = vld [vmem:[#allocation5 + $0x2b8] sm:$0xff]
    %v166 = vld [vmem:[#allocation5 + $0x2c0] sm:$0xff]
    %v167 = vld [vmem:[#allocation5 + $0x2c8] sm:$0xff]
    %v168 = vld [vmem:[#allocation5 + $0x2d0] sm:$0xff]
    %v169 = vld [vmem:[#allocation5 + $0x2d8] sm:$0xff]
    %v170 = vld [vmem:[#allocation5 + $0x2e0] sm:$0xff]
    %v171 = vld [vmem:[#allocation5 + $0x2e8] sm:$0xff]
    %v172 = vld [vmem:[#allocation5 + $0x2f0] sm:$0xff]
    %v173 = vld [vmem:[#allocation5 + $0x2f8] sm:$0xff]
    %v174 = vld [vmem:[#allocation5 + $0x300] sm:$0xff]
    %v175 = vld [vmem:[#allocation5 + $0x308] sm:$0xff]
    %v176 = vld [vmem:[#allocation5 + $0x310] sm:$0xff]
    %v177 = vld [vmem:[#allocation5 + $0x318] sm:$0xff]
    %v178 = vld [vmem:[#allocation5 + $0x320] sm:$0xff]
    %v179 = vld [vmem:[#allocation5 + $0x328] sm:$0xff]
    %v180 = vld [vmem:[#allocation5 + $0x330] sm:$0xff]
    %v181 = vld [vmem:[#allocation5 + $0x338] sm:$0xff]
    %v182 = vld [vmem:[#allocation5 + $0x340] sm:$0xff]
    %v183 = vld [vmem:[#allocation5 + $0x348] sm:$0xff]
    %v184 = vld [vmem:[#allocation5 + $0x350] sm:$0xff]
    %v185 = vld [vmem:[#allocation5 + $0x358] sm:$0xff]
    %v186 = vld [vmem:[#allocation5 + $0x360] sm:$0xff]
    %v187 = vld [vmem:[#allocation5 + $0x368] sm:$0xff]
    %v188 = vld [vmem:[#allocation5 + $0x370] sm:$0xff]
    %v189 = vld [vmem:[#allocation5 + $0x378] sm:$0xff]
    %v190 = vld [vmem:[#allocation5 + $0x380] sm:$0xff]
    %v191 = vld [vmem:[#allocation5 + $0x388] sm:$0xff]
    %v192 = vld [vmem:[#allocation5 + $0x390] sm:$0xff]
    %v193 = vld [vmem:[#allocation5 + $0x398] sm:$0xff]
    %v194 = vld [vmem:[#allocation5 + $0x3a0] sm:$0xff]
    %v195 = vld [vmem:[#allocation5 + $0x3a8] sm:$0xff]
    %v196 = vld [vmem:[#allocation5 + $0x3b0] sm:$0xff]
    %v197 = vld [vmem:[#allocation5 + $0x3b8] sm:$0xff]
    %v198 = vld [vmem:[#allocation5 + $0x3c0] sm:$0xff]
    %v199 = vld [vmem:[#allocation5 + $0x3c8] sm:$0xff]
    %v200 = vld [vmem:[#allocation5 + $0x3d0] sm:$0xff]
    %v201 = vld [vmem:[#allocation5 + $0x3d8] sm:$0xff]
    %v202 = vld [vmem:[#allocation5 + $0x3e0] sm:$0xff]
    %v203 = vld [vmem:[#allocation5 + $0x3e8] sm:$0xff]
    %v204 = vld [vmem:[#allocation5 + $0x3f0] sm:$0xff]
    %v205 = vld [vmem:[#allocation5 + $0x3f8] sm:$0xff]
    %v206 = vld [vmem:[#allocation5 + $0x400] sm:$0xff]
    %v207 = vld [vmem:[#allocation5 + $0x408] sm:$0xff]
    %v208 = vld [vmem:[#allocation5 + $0x410] sm:$0xff]
    %v209 = vld [vmem:[#allocation5 + $0x418] sm:$0xff]
    %v210 = vld [vmem:[#allocation5 + $0x420] sm:$0xff]
    %v211 = vld [vmem:[#allocation5 + $0x428] sm:$0xff]
    %v212 = vld [vmem:[#allocation5 + $0x430] sm:$0xff]
    %v213 = vld [vmem:[#allocation5 + $0x438] sm:$0xff]
    %v214 = vld [vmem:[#allocation5 + $0x440] sm:$0xff]
    %v215 = vld [vmem:[#allocation5 + $0x448] sm:$0xff]
    %v216 = vld [vmem:[#allocation5 + $0x450] sm:$0xff]
    %v217 = vld [vmem:[#allocation5 + $0x458] sm:$0xff]
    %v218 = vld [vmem:[#allocation5 + $0x460] sm:$0xff]
    %v219 = vld [vmem:[#allocation5 + $0x468] sm:$0xff]
    %v220 = vld [vmem:[#allocation5 + $0x470] sm:$0xff]
    %v221 = vld [vmem:[#allocation5 + $0x478] sm:$0xff]
    %v222 = vld [vmem:[#allocation5 + $0x480] sm:$0xff]
    %v223 = vld [vmem:[#allocation5 + $0x488] sm:$0xff]
    %v224 = vld [vmem:[#allocation5 + $0x490] sm:$0xff]
    %v225 = vld [vmem:[#allocation5 + $0x498] sm:$0xff]
    %v226 = vld [vmem:[#allocation5 + $0x4a0] sm:$0xff]
    %v227 = vld [vmem:[#allocation5 + $0x4a8] sm:$0xff]
    %v228 = vld [vmem:[#allocation5 + $0x4b0] sm:$0xff]
    %v229 = vld [vmem:[#allocation5 + $0x4b8] sm:$0xff]
    %v230 = vld [vmem:[#allocation5 + $0x4c0] sm:$0xff]
    %v231 = vld [vmem:[#allocation5 + $0x4c8] sm:$0xff]
    %v232 = vld [vmem:[#allocation5 + $0x4d0] sm:$0xff]
    %v233 = vld [vmem:[#allocation5 + $0x4d8] sm:$0xff]
    %v234 = vld [vmem:[#allocation5 + $0x4e0] sm:$0xff]
    %v235 = vld [vmem:[#allocation5 + $0x4e8] sm:$0xff]
    %v236 = vld [vmem:[#allocation5 + $0x4f0] sm:$0xff]
    %v237 = vld [vmem:[#allocation5 + $0x4f8] sm:$0xff]
    %v238 = vld [vmem:[#allocation5 + $0x500] sm:$0xff]
    %v239 = vld [vmem:[#allocation5 + $0x508] sm:$0xff]
    %v240 = vld [vmem:[#allocation5 + $0x510] sm:$0xff]
    %v241 = vld [vmem:[#allocation5 + $0x518] sm:$0xff]
    %v242 = vld [vmem:[#allocation5 + $0x520] sm:$0xff]
    %v243 = vld [vmem:[#allocation5 + $0x528] sm:$0xff]
    %v244 = vld [vmem:[#allocation5 + $0x530] sm:$0xff]
    %v245 = vld [vmem:[#allocation5 + $0x538] sm:$0xff]
    %v246 = vld [vmem:[#allocation5 + $0x540] sm:$0xff]
    %v247 = vld [vmem:[#allocation5 + $0x548] sm:$0xff]
    %v248 = vld [vmem:[#allocation5 + $0x550] sm:$0xff]
    %v249 = vld [vmem:[#allocation5 + $0x558] sm:$0xff]
    %v250 = vld [vmem:[#allocation5 + $0x560] sm:$0xff]
    %v251 = vld [vmem:[#allocation5 + $0x568] sm:$0xff]
    %v252 = vld [vmem:[#allocation5 + $0x570] sm:$0xff]
    %v253 = vld [vmem:[#allocation5 + $0x578] sm:$0xff]
    %v254 = vld [vmem:[#allocation5 + $0x580] sm:$0xff]
    %v255 = vld [vmem:[#allocation5 + $0x588] sm:$0xff]
    %v256 = vld [vmem:[#allocation5 + $0x590] sm:$0xff]
    %v257 = vld [vmem:[#allocation5 + $0x598] sm:$0xff]
    %v258 = vld [vmem:[#allocation5 + $0x5a0] sm:$0xff]
    %v259 = vld [vmem:[#allocation5 + $0x5a8] sm:$0xff]
    %v260 = vld [vmem:[#allocation5 + $0x5b0] sm:$0xff]
    %v261 = vld [vmem:[#allocation5 + $0x5b8] sm:$0xff]
    %v262 = vld [vmem:[#allocation5 + $0x5c0] sm:$0xff]
    %v263 = vld [vmem:[#allocation5 + $0x5c8] sm:$0xff]
    %v264 = vld [vmem:[#allocation5 + $0x5d0] sm:$0xff]
    %v265 = vld [vmem:[#allocation5 + $0x5d8] sm:$0xff]
    %v266 = vld [vmem:[#allocation5 + $0x5e0] sm:$0xff]
    %v267 = vld [vmem:[#allocation5 + $0x5e8] sm:$0xff]
    %v268 = vld [vmem:[#allocation5 + $0x5f0] sm:$0xff]
    %v269 = vld [vmem:[#allocation5 + $0x5f8] sm:$0xff]
    %v270 = vld [vmem:[#allocation5 + $0x600] sm:$0xff]
    %v271 = vld [vmem:[#allocation5 + $0x608] sm:$0xff]
    %v272 = vld [vmem:[#allocation5 + $0x610] sm:$0xff]
    %v273 = vld [vmem:[#allocation5 + $0x618] sm:$0xff]
    %v274 = vld [vmem:[#allocation5 + $0x620] sm:$0xff]
    %v275 = vld [vmem:[#allocation5 + $0x628] sm:$0xff]
    %v276 = vld [vmem:[#allocation5 + $0x630] sm:$0xff]
    %v277 = vld [vmem:[#allocation5 + $0x638] sm:$0xff]
    %v278 = vld [vmem:[#allocation5 + $0x640] sm:$0xff]
    %v279 = vld [vmem:[#allocation5 + $0x648] sm:$0xff]
    %v280 = vld [vmem:[#allocation5 + $0x650] sm:$0xff]
    %v281 = vld [vmem:[#allocation5 + $0x658] sm:$0xff]
    %v282 = vld [vmem:[#allocation5 + $0x660] sm:$0xff]
    %v283 = vld [vmem:[#allocation5 + $0x668] sm:$0xff]
    %v284 = vld [vmem:[#allocation5 + $0x670] sm:$0xff]
    %v285 = vld [vmem:[#allocation5 + $0x678] sm:$0xff]
    %v286 = vld [vmem:[#allocation5 + $0x680] sm:$0xff]
    %v287 = vld [vmem:[#allocation5 + $0x688] sm:$0xff]
    %v288 = vld [vmem:[#allocation5 + $0x690] sm:$0xff]
    %v289 = vld [vmem:[#allocation5 + $0x698] sm:$0xff]
    %v290 = vld [vmem:[#allocation5 + $0x6a0] sm:$0xff]
    %v291 = vld [vmem:[#allocation5 + $0x6a8] sm:$0xff]
    %v292 = vld [vmem:[#allocation5 + $0x6b0] sm:$0xff]
    %v293 = vld [vmem:[#allocation5 + $0x6b8] sm:$0xff]
    %v294 = vld [vmem:[#allocation5 + $0x6c0] sm:$0xff]
    %v295 = vld [vmem:[#allocation5 + $0x6c8] sm:$0xff]
    %v296 = vld [vmem:[#allocation5 + $0x6d0] sm:$0xff]
    %v297 = vld [vmem:[#allocation5 + $0x6d8] sm:$0xff]
    %v298 = vld [vmem:[#allocation5 + $0x6e0] sm:$0xff]
    %v299 = vld [vmem:[#allocation5 + $0x6e8] sm:$0xff]
    %v300 = vld [vmem:[#allocation5 + $0x6f0] sm:$0xff]
    %v301 = vld [vmem:[#allocation5 + $0x6f8] sm:$0xff]
    %v302 = vld [vmem:[#allocation5 + $0x700] sm:$0xff]
    %v303 = vld [vmem:[#allocation5 + $0x708] sm:$0xff]
    %v304 = vld [vmem:[#allocation5 + $0x710] sm:$0xff]
    %v305 = vld [vmem:[#allocation5 + $0x718] sm:$0xff]
    %v306 = vld [vmem:[#allocation5 + $0x720] sm:$0xff]
    %v307 = vld [vmem:[#allocation5 + $0x728] sm:$0xff]
    %v308 = vld [vmem:[#allocation5 + $0x730] sm:$0xff]
    %v309 = vld [vmem:[#allocation5 + $0x738] sm:$0xff]
    %v310 = vld [vmem:[#allocation5 + $0x740] sm:$0xff]
    %v311 = vld [vmem:[#allocation5 + $0x748] sm:$0xff]
    %v312 = vld [vmem:[#allocation5 + $0x750] sm:$0xff]
    %v313 = vld [vmem:[#allocation5 + $0x758] sm:$0xff]
    %v314 = vld [vmem:[#allocation5 + $0x760] sm:$0xff]
    %v315 = vld [vmem:[#allocation5 + $0x768] sm:$0xff]
    %v316 = vld [vmem:[#allocation5 + $0x770] sm:$0xff]
    %v317 = vld [vmem:[#allocation5 + $0x778] sm:$0xff]
    %v318 = vld [vmem:[#allocation5 + $0x780] sm:$0xff]
    %v319 = vld [vmem:[#allocation5 + $0x788] sm:$0xff]
    %v320 = vld [vmem:[#allocation5 + $0x790] sm:$0xff]
    %v321 = vld [vmem:[#allocation5 + $0x798] sm:$0xff]
    %v322 = vld [vmem:[#allocation5 + $0x7a0] sm:$0xff]
    %v323 = vld [vmem:[#allocation5 + $0x7a8] sm:$0xff]
    %v324 = vld [vmem:[#allocation5 + $0x7b0] sm:$0xff]
    %v325 = vld [vmem:[#allocation5 + $0x7b8] sm:$0xff]
    %v326 = vld [vmem:[#allocation5 + $0x7c0] sm:$0xff]
    %v327 = vld [vmem:[#allocation5 + $0x7c8] sm:$0xff]
    %v328 = vld [vmem:[#allocation5 + $0x7d0] sm:$0xff]
    %v329 = vld [vmem:[#allocation5 + $0x7d8] sm:$0xff]
    %v330 = vld [vmem:[#allocation5 + $0x7e0] sm:$0xff]
    %v331 = vld [vmem:[#allocation5 + $0x7e8] sm:$0xff]
    %v332 = vld [vmem:[#allocation5 + $0x7f0] sm:$0xff]
    %v333 = vld [vmem:[#allocation5 + $0x7f8] sm:$0xff]
    %v334 = vld [vmem:[#allocation5 + $0x800] sm:$0xff]
    %v335 = vld [vmem:[#allocation5 + $0x808] sm:$0xff]
    %v336 = vld [vmem:[#allocation5 + $0x810] sm:$0xff]
    %v337 = vld [vmem:[#allocation5 + $0x818] sm:$0xff]
    %v338 = vld [vmem:[#allocation5 + $0x820] sm:$0xff]
    %v339 = vld [vmem:[#allocation5 + $0x828] sm:$0xff]
    %v340 = vld [vmem:[#allocation5 + $0x830] sm:$0xff]
    %v341 = vld [vmem:[#allocation5 + $0x838] sm:$0xff]
    %v342 = vld [vmem:[#allocation5 + $0x840] sm:$0xff]
    %v343 = vld [vmem:[#allocation5 + $0x848] sm:$0xff]
    %v344 = vld [vmem:[#allocation5 + $0x850] sm:$0xff]
    %v345 = vld [vmem:[#allocation5 + $0x858] sm:$0xff]
    %v346 = vld [vmem:[#allocation5 + $0x860] sm:$0xff]
    %v347 = vld [vmem:[#allocation5 + $0x868] sm:$0xff]
    %v348 = vld [vmem:[#allocation5 + $0x870] sm:$0xff]
    %v349 = vld [vmem:[#allocation5 + $0x878] sm:$0xff]
    %v350 = vld [vmem:[#allocation5 + $0x880] sm:$0xff]
    %v351 = vld [vmem:[#allocation5 + $0x888] sm:$0xff]
    %v352 = vld [vmem:[#allocation5 + $0x890] sm:$0xff]
    %v353 = vld [vmem:[#allocation5 + $0x898] sm:$0xff]
    %v354 = vld [vmem:[#allocation5 + $0x8a0] sm:$0xff]
    %v355 = vld [vmem:[#allocation5 + $0x8a8] sm:$0xff]
    %v356 = vld [vmem:[#allocation5 + $0x8b0] sm:$0xff]
    %v357 = vld [vmem:[#allocation5 + $0x8b8] sm:$0xff]
    %v358 = vld [vmem:[#allocation5 + $0x8c0] sm:$0xff]
    %v359 = vld [vmem:[#allocation5 + $0x8c8] sm:$0xff]
    %v360 = vld [vmem:[#allocation5 + $0x8d0] sm:$0xff]
    %v361 = vld [vmem:[#allocation5 + $0x8d8] sm:$0xff]
    %v362 = vld [vmem:[#allocation5 + $0x8e0] sm:$0xff]
    %v363 = vld [vmem:[#allocation5 + $0x8e8] sm:$0xff]
    %v364 = vld [vmem:[#allocation5 + $0x8f0] sm:$0xff]
    %v365 = vld [vmem:[#allocation5 + $0x8f8] sm:$0xff]
    %v366 = vld [vmem:[#allocation5 + $0x900] sm:$0xff]
    %v367 = vld [vmem:[#allocation5 + $0x908] sm:$0xff]
    %v368 = vld [vmem:[#allocation5 + $0x910] sm:$0xff]
    %v369 = vld [vmem:[#allocation5 + $0x918] sm:$0xff]
    %v370 = vld [vmem:[#allocation5 + $0x920] sm:$0xff]
    %v371 = vld [vmem:[#allocation5 + $0x928] sm:$0xff]
    %v372 = vld [vmem:[#allocation5 + $0x930] sm:$0xff]
    %v373 = vld [vmem:[#allocation5 + $0x938] sm:$0xff]
    %v374 = vld [vmem:[#allocation5 + $0x940] sm:$0xff]
    %v375 = vld [vmem:[#allocation5 + $0x948] sm:$0xff]
    %v376 = vld [vmem:[#allocation5 + $0x950] sm:$0xff]
    %v377 = vld [vmem:[#allocation5 + $0x958] sm:$0xff]
    %v378 = vld [vmem:[#allocation5 + $0x960] sm:$0xff]
    %v379 = vld [vmem:[#allocation5 + $0x968] sm:$0xff]
    %v380 = vld [vmem:[#allocation5 + $0x970] sm:$0xff]
    %v381 = vld [vmem:[#allocation5 + $0x978] sm:$0xff]
    %v382 = vld [vmem:[#allocation5 + $0x980] sm:$0xff]
    %v383 = vld [vmem:[#allocation5 + $0x988] sm:$0xff]
    %v384 = vld [vmem:[#allocation5 + $0x990] sm:$0xff]
    %v385 = vld [vmem:[#allocation5 + $0x998] sm:$0xff]
    %v386 = vld [vmem:[#allocation5 + $0x9a0] sm:$0xff]
    %v387 = vld [vmem:[#allocation5 + $0x9a8] sm:$0xff]
    %v388 = vld [vmem:[#allocation5 + $0x9b0] sm:$0xff]
    %v389 = vld [vmem:[#allocation5 + $0x9b8] sm:$0xff]
    %v390 = vld [vmem:[#allocation5 + $0x9c0] sm:$0xff]
    %v391 = vld [vmem:[#allocation5 + $0x9c8] sm:$0xff]
    %v392 = vld [vmem:[#allocation5 + $0x9d0] sm:$0xff]
    %v393 = vld [vmem:[#allocation5 + $0x9d8] sm:$0xff]
    %v394 = vld [vmem:[#allocation5 + $0x9e0] sm:$0xff]
    %v395 = vld [vmem:[#allocation5 + $0x9e8] sm:$0xff]
    %v396 = vld [vmem:[#allocation5 + $0x9f0] sm:$0xff]
    %v397 = vld [vmem:[#allocation5 + $0x9f8] sm:$0xff]
    %v398 = vld [vmem:[#allocation5 + $0xa00] sm:$0xff]
    %v399 = vld [vmem:[#allocation5 + $0xa08] sm:$0xff]
    %v400 = vld [vmem:[#allocation5 + $0xa10] sm:$0xff]
    %v401 = vld [vmem:[#allocation5 + $0xa18] sm:$0xff]
    %v402 = vld [vmem:[#allocation5 + $0xa20] sm:$0xff]
    %v403 = vld [vmem:[#allocation5 + $0xa28] sm:$0xff]
    %v404 = vld [vmem:[#allocation5 + $0xa30] sm:$0xff]
    %v405 = vld [vmem:[#allocation5 + $0xa38] sm:$0xff]
    %v406 = vld [vmem:[#allocation5 + $0xa40] sm:$0xff]
    %v407 = vld [vmem:[#allocation5 + $0xa48] sm:$0xff]
    %v408 = vld [vmem:[#allocation5 + $0xa50] sm:$0xff]
    %v409 = vld [vmem:[#allocation5 + $0xa58] sm:$0xff]
    %v410 = vld [vmem:[#allocation5 + $0xa60] sm:$0xff]
    %v411 = vld [vmem:[#allocation5 + $0xa68] sm:$0xff]
    %v412 = vld [vmem:[#allocation5 + $0xa70] sm:$0xff]
    %v413 = vld [vmem:[#allocation5 + $0xa78] sm:$0xff]
    %v414 = vld [vmem:[#allocation5 + $0xa80] sm:$0xff]
    %v415 = vld [vmem:[#allocation5 + $0xa88] sm:$0xff]
    %v416 = vld [vmem:[#allocation5 + $0xa90] sm:$0xff]
    %v417 = vld [vmem:[#allocation5 + $0xa98] sm:$0xff]
    %v418 = vld [vmem:[#allocation5 + $0xaa0] sm:$0xff]
    %v419 = vld [vmem:[#allocation5 + $0xaa8] sm:$0xff]
    %v420 = vld [vmem:[#allocation5 + $0xab0] sm:$0xff]
    %v421 = vld [vmem:[#allocation5 + $0xab8] sm:$0xff]
    %v422 = vld [vmem:[#allocation5 + $0xac0] sm:$0xff]
    %v423 = vld [vmem:[#allocation5 + $0xac8] sm:$0xff]
    %v424 = vld [vmem:[#allocation5 + $0xad0] sm:$0xff]
    %v425 = vld [vmem:[#allocation5 + $0xad8] sm:$0xff]
    %v426 = vld [vmem:[#allocation5 + $0xae0] sm:$0xff]
    %v427 = vld [vmem:[#allocation5 + $0xae8] sm:$0xff]
    %v428 = vld [vmem:[#allocation5 + $0xaf0] sm:$0xff]
    %v429 = vld [vmem:[#allocation5 + $0xaf8] sm:$0xff]
    %v430 = vld [vmem:[#allocation5 + $0xb00] sm:$0xff]
    %v431 = vld [vmem:[#allocation5 + $0xb08] sm:$0xff]
    %v432 = vld [vmem:[#allocation5 + $0xb10] sm:$0xff]
    %v433 = vld [vmem:[#allocation5 + $0xb18] sm:$0xff]
    %v434 = vld [vmem:[#allocation5 + $0xb20] sm:$0xff]
    %v435 = vld [vmem:[#allocation5 + $0xb28] sm:$0xff]
    %v436 = vld [vmem:[#allocation5 + $0xb30] sm:$0xff]
    %v437 = vld [vmem:[#allocation5 + $0xb38] sm:$0xff]
    %v438 = vld [vmem:[#allocation5 + $0xb40] sm:$0xff]
    %v439 = vld [vmem:[#allocation5 + $0xb48] sm:$0xff]
    %v440 = vld [vmem:[#allocation5 + $0xb50] sm:$0xff]
    %v441 = vld [vmem:[#allocation5 + $0xb58] sm:$0xff]
    %v442 = vld [vmem:[#allocation5 + $0xb60] sm:$0xff]
    %v443 = vld [vmem:[#allocation5 + $0xb68] sm:$0xff]
    %v444 = vld [vmem:[#allocation5 + $0xb70] sm:$0xff]
    %v445 = vld [vmem:[#allocation5 + $0xb78] sm:$0xff]
    %v446 = vld [vmem:[#allocation5 + $0xb80] sm:$0xff]
    %v447 = vld [vmem:[#allocation5 + $0xb88] sm:$0xff]
    %v448 = vld [vmem:[#allocation5 + $0xb90] sm:$0xff]
    %v449 = vld [vmem:[#allocation5 + $0xb98] sm:$0xff]
    %v450 = vld [vmem:[#allocation5 + $0xba0] sm:$0xff]
    %v451 = vld [vmem:[#allocation5 + $0xba8] sm:$0xff]
    %v452 = vld [vmem:[#allocation5 + $0xbb0] sm:$0xff]
    %v453 = vld [vmem:[#allocation5 + $0xbb8] sm:$0xff]
    %v454 = vld [vmem:[#allocation5 + $0xbc0] sm:$0xff]
    %v455 = vld [vmem:[#allocation5 + $0xbc8] sm:$0xff]
    %v456 = vld [vmem:[#allocation5 + $0xbd0] sm:$0xff]
    %v457 = vld [vmem:[#allocation5 + $0xbd8] sm:$0xff]
    %v458 = vld [vmem:[#allocation5 + $0xbe0] sm:$0xff]
    %v459 = vld [vmem:[#allocation5 + $0xbe8] sm:$0xff]
    %v460 = vld [vmem:[#allocation5 + $0xbf0] sm:$0xff]
    %v461 = vld [vmem:[#allocation5 + $0xbf8] sm:$0xff]
    %v462 = vld [vmem:[#allocation5 + $0xc00] sm:$0xff]
    %v463 = vld [vmem:[#allocation5 + $0xc08] sm:$0xff]
    %v464 = vld [vmem:[#allocation5 + $0xc10] sm:$0xff]
    %v465 = vld [vmem:[#allocation5 + $0xc18] sm:$0xff]
    %v466 = vld [vmem:[#allocation5 + $0xc20] sm:$0xff]
    %v467 = vld [vmem:[#allocation5 + $0xc28] sm:$0xff]
    %v468 = vld [vmem:[#allocation5 + $0xc30] sm:$0xff]
    %v469 = vld [vmem:[#allocation5 + $0xc38] sm:$0xff]
    %v470 = vld [vmem:[#allocation5 + $0xc40] sm:$0xff]
    %v471 = vld [vmem:[#allocation5 + $0xc48] sm:$0xff]
    %v472 = vld [vmem:[#allocation5 + $0xc50] sm:$0xff]
    %v473 = vld [vmem:[#allocation5 + $0xc58] sm:$0xff]
    %v474 = vld [vmem:[#allocation5 + $0xc60] sm:$0xff]
    %v475 = vld [vmem:[#allocation5 + $0xc68] sm:$0xff]
    %v476 = vld [vmem:[#allocation5 + $0xc70] sm:$0xff]
    %v477 = vld [vmem:[#allocation5 + $0xc78] sm:$0xff]
    %v478 = vld [vmem:[#allocation5 + $0xc80] sm:$0xff]
    %v479 = vld [vmem:[#allocation5 + $0xc88] sm:$0xff]
    %v480 = vld [vmem:[#allocation5 + $0xc90] sm:$0xff]
    %v481 = vld [vmem:[#allocation5 + $0xc98] sm:$0xff]
    %v482 = vld [vmem:[#allocation5 + $0xca0] sm:$0xff]
    %v483 = vld [vmem:[#allocation5 + $0xca8] sm:$0xff]
    %v484 = vld [vmem:[#allocation5 + $0xcb0] sm:$0xff]
    %v485 = vld [vmem:[#allocation5 + $0xcb8] sm:$0xff]
    %v486 = vld [vmem:[#allocation5 + $0xcc0] sm:$0xff]
    %v487 = vld [vmem:[#allocation5 + $0xcc8] sm:$0xff]
    %v488 = vld [vmem:[#allocation5 + $0xcd0] sm:$0xff]
    %v489 = vld [vmem:[#allocation5 + $0xcd8] sm:$0xff]
    %v490 = vld [vmem:[#allocation5 + $0xce0] sm:$0xff]
    %v491 = vld [vmem:[#allocation5 + $0xce8] sm:$0xff]
    %v492 = vld [vmem:[#allocation5 + $0xcf0] sm:$0xff]
    %v493 = vld [vmem:[#allocation5 + $0xcf8] sm:$0xff]
    %v494 = vld [vmem:[#allocation5 + $0xd00] sm:$0xff]
    %v495 = vld [vmem:[#allocation5 + $0xd08] sm:$0xff]
    %v496 = vld [vmem:[#allocation5 + $0xd10] sm:$0xff]
    %v497 = vld [vmem:[#allocation5 + $0xd18] sm:$0xff]
    %v498 = vld [vmem:[#allocation5 + $0xd20] sm:$0xff]
    %v499 = vld [vmem:[#allocation5 + $0xd28] sm:$0xff]
    %v500 = vld [vmem:[#allocation5 + $0xd30] sm:$0xff]
    %v501 = vld [vmem:[#allocation5 + $0xd38] sm:$0xff]
    %v502 = vld [vmem:[#allocation5 + $0xd40] sm:$0xff]
    %v503 = vld [vmem:[#allocation5 + $0xd48] sm:$0xff]
    %v504 = vld [vmem:[#allocation5 + $0xd50] sm:$0xff]
    %v505 = vld [vmem:[#allocation5 + $0xd58] sm:$0xff]
    %v506 = vld [vmem:[#allocation5 + $0xd60] sm:$0xff]
    %v507 = vld [vmem:[#allocation5 + $0xd68] sm:$0xff]
    %v508 = vld [vmem:[#allocation5 + $0xd70] sm:$0xff]
    %v509 = vld [vmem:[#allocation5 + $0xd78] sm:$0xff]
    %v510 = vld [vmem:[#allocation5 + $0xd80] sm:$0xff]
    %v511 = vld [vmem:[#allocation5 + $0xd88] sm:$0xff]
    %v512 = vld [vmem:[#allocation5 + $0xd90] sm:$0xff]
    %v513 = vld [vmem:[#allocation5 + $0xd98] sm:$0xff]
    %v514 = vld [vmem:[#allocation5 + $0xda0] sm:$0xff]
    %v515 = vld [vmem:[#allocation5 + $0xda8] sm:$0xff]
    %v516 = vld [vmem:[#allocation5 + $0xdb0] sm:$0xff]
    %v517 = vld [vmem:[#allocation5 + $0xdb8] sm:$0xff]
    %v518 = vld [vmem:[#allocation5 + $0xdc0] sm:$0xff]
    %v519 = vld [vmem:[#allocation5 + $0xdc8] sm:$0xff]
    %v520 = vld [vmem:[#allocation5 + $0xdd0] sm:$0xff]
    %v521 = vld [vmem:[#allocation5 + $0xdd8] sm:$0xff]
    %v522 = vld [vmem:[#allocation5 + $0xde0] sm:$0xff]
    %v523 = vld [vmem:[#allocation5 + $0xde8] sm:$0xff]
    %v524 = vld [vmem:[#allocation5 + $0xdf0] sm:$0xff]
    %v525 = vld [vmem:[#allocation5 + $0xdf8] sm:$0xff]
    %v526 = vld [vmem:[#allocation5 + $0xe00] sm:$0xff]
    %v527 = vld [vmem:[#allocation5 + $0xe08] sm:$0xff]
    %v528 = vld [vmem:[#allocation5 + $0xe10] sm:$0xff]
    %v529 = vld [vmem:[#allocation5 + $0xe18] sm:$0xff]
    %v530 = vld [vmem:[#allocation5 + $0xe20] sm:$0xff]
    %v531 = vld [vmem:[#allocation5 + $0xe28] sm:$0xff]
    %v532 = vld [vmem:[#allocation5 + $0xe30] sm:$0xff]
    %v533 = vld [vmem:[#allocation5 + $0xe38] sm:$0xff]
    %v534 = vld [vmem:[#allocation5 + $0xe40] sm:$0xff]
    %v535 = vld [vmem:[#allocation5 + $0xe48] sm:$0xff]
    %v536 = vld [vmem:[#allocation5 + $0xe50] sm:$0xff]
    %v537 = vld [vmem:[#allocation5 + $0xe58] sm:$0xff]
    %v538 = vld [vmem:[#allocation5 + $0xe60] sm:$0xff]
    %v539 = vld [vmem:[#allocation5 + $0xe68] sm:$0xff]
    %v540 = vld [vmem:[#allocation5 + $0xe70] sm:$0xff]
    %v541 = vld [vmem:[#allocation5 + $0xe78] sm:$0xff]
    %v542 = vld [vmem:[#allocation5 + $0xe80] sm:$0xff]
    %v543 = vld [vmem:[#allocation5 + $0xe88] sm:$0xff]
    %v544 = vld [vmem:[#allocation5 + $0xe90] sm:$0xff]
    %v545 = vld [vmem:[#allocation5 + $0xe98] sm:$0xff]
    %v546 = vld [vmem:[#allocation5 + $0xea0] sm:$0xff]
    %v547 = vld [vmem:[#allocation5 + $0xea8] sm:$0xff]
    %v548 = vld [vmem:[#allocation5 + $0xeb0] sm:$0xff]
    %v549 = vld [vmem:[#allocation5 + $0xeb8] sm:$0xff]
    %v550 = vld [vmem:[#allocation5 + $0xec0] sm:$0xff]
    %v551 = vld [vmem:[#allocation5 + $0xec8] sm:$0xff]
    %v552 = vld [vmem:[#allocation5 + $0xed0] sm:$0xff]
    %v553 = vld [vmem:[#allocation5 + $0xed8] sm:$0xff]
    %v554 = vld [vmem:[#allocation5 + $0xee0] sm:$0xff]
    %v555 = vld [vmem:[#allocation5 + $0xee8] sm:$0xff]
    %v556 = vld [vmem:[#allocation5 + $0xef0] sm:$0xff]
    %v557 = vld [vmem:[#allocation5 + $0xef8] sm:$0xff]
    %v558 = vld [vmem:[#allocation5 + $0xf00] sm:$0xff]
    %v559 = vld [vmem:[#allocation5 + $0xf08] sm:$0xff]
    %v560 = vld [vmem:[#allocation5 + $0xf10] sm:$0xff]
    %v561 = vld [vmem:[#allocation5 + $0xf18] sm:$0xff]
    %v562 = vld [vmem:[#allocation5 + $0xf20] sm:$0xff]
    %v563 = vld [vmem:[#allocation5 + $0xf28] sm:$0xff]
    %v564 = vld [vmem:[#allocation5 + $0xf30] sm:$0xff]
    %v565 = vld [vmem:[#allocation5 + $0xf38] sm:$0xff]
    %v566 = vld [vmem:[#allocation5 + $0xf40] sm:$0xff]
    %v567 = vld [vmem:[#allocation5 + $0xf48] sm:$0xff]
    %v568 = vld [vmem:[#allocation5 + $0xf50] sm:$0xff]
    %v569 = vld [vmem:[#allocation5 + $0xf58] sm:$0xff]
    %v570 = vld [vmem:[#allocation5 + $0xf60] sm:$0xff]
    %v571 = vld [vmem:[#allocation5 + $0xf68] sm:$0xff]
    %v572 = vld [vmem:[#allocation5 + $0xf70] sm:$0xff]
    %v573 = vld [vmem:[#allocation5 + $0xf78] sm:$0xff]
    %v574 = vld [vmem:[#allocation5 + $0xf80] sm:$0xff]
    %v575 = vld [vmem:[#allocation5 + $0xf88] sm:$0xff]
    %v576 = vld [vmem:[#allocation5 + $0xf90] sm:$0xff]
    %v577 = vld [vmem:[#allocation5 + $0xf98] sm:$0xff]
    %v578 = vld [vmem:[#allocation5 + $0xfa0] sm:$0xff]
    %v579 = vld [vmem:[#allocation5 + $0xfa8] sm:$0xff]
    %v580 = vld [vmem:[#allocation5 + $0xfb0] sm:$0xff]
    %v581 = vld [vmem:[#allocation5 + $0xfb8] sm:$0xff]
    %v582 = vld [vmem:[#allocation5 + $0xfc0] sm:$0xff]
    %v583 = vld [vmem:[#allocation5 + $0xfc8] sm:$0xff]
    %v584 = vld [vmem:[#allocation5 + $0xfd0] sm:$0xff]
    %v585 = vld [vmem:[#allocation5 + $0xfd8] sm:$0xff]
    %v586 = vld [vmem:[#allocation5 + $0xfe0] sm:$0xff]
    %v587 = vld [vmem:[#allocation5 + $0xfe8] sm:$0xff]
    %v588 = vld [vmem:[#allocation5 + $0xff0] sm:$0xff]
    %v589 = vld [vmem:[#allocation5 + $0xff8] sm:$0xff]
    %v590 = vld [vmem:[#allocation5 + $0x1000] sm:$0xff]
    %v591 = vld [vmem:[#allocation5 + $0x1008] sm:$0xff]
    %v592 = vld [vmem:[#allocation5 + $0x1010] sm:$0xff]
    %v593 = vld [vmem:[#allocation5 + $0x1018] sm:$0xff]
    %v594 = vld [vmem:[#allocation5 + $0x1020] sm:$0xff]
    %v595 = vld [vmem:[#allocation5 + $0x1028] sm:$0xff]
    %v596 = vld [vmem:[#allocation5 + $0x1030] sm:$0xff]
    %v597 = vld [vmem:[#allocation5 + $0x1038] sm:$0xff]
    %v598 = vld [vmem:[#allocation5 + $0x1040] sm:$0xff]
    %v599 = vld [vmem:[#allocation5 + $0x1048] sm:$0xff]
    %v600 = vld [vmem:[#allocation5 + $0x1050] sm:$0xff]
    %v601 = vld [vmem:[#allocation5 + $0x1058] sm:$0xff]
    %v602 = vld [vmem:[#allocation5 + $0x1060] sm:$0xff]
    %v603 = vld [vmem:[#allocation5 + $0x1068] sm:$0xff]
    %v604 = vld [vmem:[#allocation5 + $0x1070] sm:$0xff]
    %v605 = vld [vmem:[#allocation5 + $0x1078] sm:$0xff]
    %v606 = vld [vmem:[#allocation5 + $0x1080] sm:$0xff]
    %v607 = vld [vmem:[#allocation5 + $0x1088] sm:$0xff]
    %v608 = vld [vmem:[#allocation5 + $0x1090] sm:$0xff]
    %v609 = vld [vmem:[#allocation5 + $0x1098] sm:$0xff]
    %v610 = vld [vmem:[#allocation5 + $0x10a0] sm:$0xff]
    %v611 = vld [vmem:[#allocation5 + $0x10a8] sm:$0xff]
    %v612 = vld [vmem:[#allocation5 + $0x10b0] sm:$0xff]
    %v613 = vld [vmem:[#allocation5 + $0x10b8] sm:$0xff]
    %v614 = vld [vmem:[#allocation5 + $0x10c0] sm:$0xff]
    %v615 = vld [vmem:[#allocation5 + $0x10c8] sm:$0xff]
    %v616 = vld [vmem:[#allocation5 + $0x10d0] sm:$0xff]
    %v617 = vld [vmem:[#allocation5 + $0x10d8] sm:$0xff]
    %v618 = vld [vmem:[#allocation5 + $0x10e0] sm:$0xff]
    %v619 = vld [vmem:[#allocation5 + $0x10e8] sm:$0xff]
    %v620 = vld [vmem:[#allocation5 + $0x10f0] sm:$0xff]
    %v621 = vld [vmem:[#allocation5 + $0x10f8] sm:$0xff]
    %v622 = vld [vmem:[#allocation5 + $0x1100] sm:$0xff]
    %v623 = vld [vmem:[#allocation5 + $0x1108] sm:$0xff]
    %v624 = vld [vmem:[#allocation5 + $0x1110] sm:$0xff]
    %v625 = vld [vmem:[#allocation5 + $0x1118] sm:$0xff]
    %v626 = vld [vmem:[#allocation5 + $0x1120] sm:$0xff]
    %v627 = vld [vmem:[#allocation5 + $0x1128] sm:$0xff]
    %v628 = vld [vmem:[#allocation5 + $0x1130] sm:$0xff]
    %v629 = vld [vmem:[#allocation5 + $0x1138] sm:$0xff]
    %v630 = vld [vmem:[#allocation5 + $0x1140] sm:$0xff]
    %v631 = vld [vmem:[#allocation5 + $0x1148] sm:$0xff]
    %v632 = vld [vmem:[#allocation5 + $0x1150] sm:$0xff]
    %v633 = vld [vmem:[#allocation5 + $0x1158] sm:$0xff]
    %v634 = vld [vmem:[#allocation5 + $0x1160] sm:$0xff]
    %v635 = vld [vmem:[#allocation5 + $0x1168] sm:$0xff]
    %v636 = vld [vmem:[#allocation5 + $0x1170] sm:$0xff]
    %v637 = vld [vmem:[#allocation5 + $0x1178] sm:$0xff]
    %v638 = vld [vmem:[#allocation5 + $0x1180] sm:$0xff]
    %v639 = vld [vmem:[#allocation5 + $0x1188] sm:$0xff]
    %v640 = vld [vmem:[#allocation5 + $0x1190] sm:$0xff]
    %v641 = vld [vmem:[#allocation5 + $0x1198] sm:$0xff]
    %v642 = vld [vmem:[#allocation5 + $0x11a0] sm:$0xff]
    %v643 = vld [vmem:[#allocation5 + $0x11a8] sm:$0xff]
    %v644 = vld [vmem:[#allocation5 + $0x11b0] sm:$0xff]
    %v645 = vld [vmem:[#allocation5 + $0x11b8] sm:$0xff]
    %v646 = vld [vmem:[#allocation5 + $0x11c0] sm:$0xff]
    %v647 = vld [vmem:[#allocation5 + $0x11c8] sm:$0xff]
    %v648 = vld [vmem:[#allocation5 + $0x11d0] sm:$0xff]
    %v649 = vld [vmem:[#allocation5 + $0x11d8] sm:$0xff]
    %v650 = vld [vmem:[#allocation5 + $0x11e0] sm:$0xff]
    %v651 = vld [vmem:[#allocation5 + $0x11e8] sm:$0xff]
    %v652 = vld [vmem:[#allocation5 + $0x11f0] sm:$0xff]
    %v653 = vld [vmem:[#allocation5 + $0x11f8] sm:$0xff]
    %v654 = vld [vmem:[#allocation5 + $0x1200] sm:$0xff]
    %v655 = vld [vmem:[#allocation5 + $0x1208] sm:$0xff]
    %v656 = vld [vmem:[#allocation5 + $0x1210] sm:$0xff]
    %v657 = vld [vmem:[#allocation5 + $0x1218] sm:$0xff]
    %v658 = vld [vmem:[#allocation5 + $0x1220] sm:$0xff]
    %v659 = vld [vmem:[#allocation5 + $0x1228] sm:$0xff]
    %v660 = vld [vmem:[#allocation5 + $0x1230] sm:$0xff]
    %v661 = vld [vmem:[#allocation5 + $0x1238] sm:$0xff]
    %v662 = vld [vmem:[#allocation5 + $0x1240] sm:$0xff]
    %v663 = vld [vmem:[#allocation5 + $0x1248] sm:$0xff]
    %v664 = vld [vmem:[#allocation5 + $0x1250] sm:$0xff]
    %v665 = vld [vmem:[#allocation5 + $0x1258] sm:$0xff]
    %v666 = vld [vmem:[#allocation5 + $0x1260] sm:$0xff]
    %v667 = vld [vmem:[#allocation5 + $0x1268] sm:$0xff]
    %v668 = vld [vmem:[#allocation5 + $0x1270] sm:$0xff]
    %v669 = vld [vmem:[#allocation5 + $0x1278] sm:$0xff]
    %v670 = vld [vmem:[#allocation5 + $0x1280] sm:$0xff]
    %v671 = vld [vmem:[#allocation5 + $0x1288] sm:$0xff]
    %v672 = vld [vmem:[#allocation5 + $0x1290] sm:$0xff]
    %v673 = vld [vmem:[#allocation5 + $0x1298] sm:$0xff]
    %v674 = vld [vmem:[#allocation5 + $0x12a0] sm:$0xff]
    %v675 = vld [vmem:[#allocation5 + $0x12a8] sm:$0xff]
    %v676 = vld [vmem:[#allocation5 + $0x12b0] sm:$0xff]
    %v677 = vld [vmem:[#allocation5 + $0x12b8] sm:$0xff]
    %v678 = vld [vmem:[#allocation5 + $0x12c0] sm:$0xff]
    %v679 = vld [vmem:[#allocation5 + $0x12c8] sm:$0xff]
    %v680 = vld [vmem:[#allocation5 + $0x12d0] sm:$0xff]
    %v681 = vld [vmem:[#allocation5 + $0x12d8] sm:$0xff]
    %v682 = vld [vmem:[#allocation5 + $0x12e0] sm:$0xff]
    %v683 = vld [vmem:[#allocation5 + $0x12e8] sm:$0xff]
    %v684 = vld [vmem:[#allocation5 + $0x12f0] sm:$0xff]
    %v685 = vld [vmem:[#allocation5 + $0x12f8] sm:$0xff]
    %v686 = vld [vmem:[#allocation5 + $0x1300] sm:$0xff]
    %v687 = vld [vmem:[#allocation5 + $0x1308] sm:$0xff]
    %v688 = vld [vmem:[#allocation5 + $0x1310] sm:$0xff]
    %v689 = vld [vmem:[#allocation5 + $0x1318] sm:$0xff]
    %v690 = vld [vmem:[#allocation5 + $0x1320] sm:$0xff]
    %v691 = vld [vmem:[#allocation5 + $0x1328] sm:$0xff]
    %v692 = vld [vmem:[#allocation5 + $0x1330] sm:$0xff]
    %v693 = vld [vmem:[#allocation5 + $0x1338] sm:$0xff]
    %v694 = vld [vmem:[#allocation5 + $0x1340] sm:$0xff]
    %v695 = vld [vmem:[#allocation5 + $0x1348] sm:$0xff]
    %v696 = vld [vmem:[#allocation5 + $0x1350] sm:$0xff]
    %v697 = vld [vmem:[#allocation5 + $0x1358] sm:$0xff]
    %v698 = vld [vmem:[#allocation5 + $0x1360] sm:$0xff]
    %v699 = vld [vmem:[#allocation5 + $0x1368] sm:$0xff]
    %v700 = vld [vmem:[#allocation5 + $0x1370] sm:$0xff]
    %v701 = vld [vmem:[#allocation5 + $0x1378] sm:$0xff]
    %v702 = vld [vmem:[#allocation5 + $0x1380] sm:$0xff]
    %v703 = vld [vmem:[#allocation5 + $0x1388] sm:$0xff]
    %v704 = vld [vmem:[#allocation5 + $0x1390] sm:$0xff]
    %v705 = vld [vmem:[#allocation5 + $0x1398] sm:$0xff]
    %v706 = vld [vmem:[#allocation5 + $0x13a0] sm:$0xff]
    %v707 = vld [vmem:[#allocation5 + $0x13a8] sm:$0xff]
    %v708 = vld [vmem:[#allocation5 + $0x13b0] sm:$0xff]
    %v709 = vld [vmem:[#allocation5 + $0x13b8] sm:$0xff]
    %v710 = vld [vmem:[#allocation5 + $0x13c0] sm:$0xff]
    %v711 = vld [vmem:[#allocation5 + $0x13c8] sm:$0xff]
    %v712 = vld [vmem:[#allocation5 + $0x13d0] sm:$0xff]
    %v713 = vld [vmem:[#allocation5 + $0x13d8] sm:$0xff]
    %v714 = vld [vmem:[#allocation5 + $0x13e0] sm:$0xff]
    %v715 = vld [vmem:[#allocation5 + $0x13e8] sm:$0xff]
    %v716 = vld [vmem:[#allocation5 + $0x13f0] sm:$0xff]
    %v717 = vld [vmem:[#allocation5 + $0x13f8] sm:$0xff]
    %v718 = vld [vmem:[#allocation5 + $0x1400] sm:$0xff]
    %v719 = vld [vmem:[#allocation5 + $0x1408] sm:$0xff]
    %v720 = vld [vmem:[#allocation5 + $0x1410] sm:$0xff]
    %v721 = vld [vmem:[#allocation5 + $0x1418] sm:$0xff]
    %v722 = vld [vmem:[#allocation5 + $0x1420] sm:$0xff]
    %v723 = vld [vmem:[#allocation5 + $0x1428] sm:$0xff]
    %v724 = vld [vmem:[#allocation5 + $0x1430] sm:$0xff]
    %v725 = vld [vmem:[#allocation5 + $0x1438] sm:$0xff]
    %v726 = vld [vmem:[#allocation5 + $0x1440] sm:$0xff]
    %v727 = vld [vmem:[#allocation5 + $0x1448] sm:$0xff]
    %v728 = vld [vmem:[#allocation5 + $0x1450] sm:$0xff]
    %v729 = vld [vmem:[#allocation5 + $0x1458] sm:$0xff]
    %v730 = vld [vmem:[#allocation5 + $0x1460] sm:$0xff]
    %v731 = vld [vmem:[#allocation5 + $0x1468] sm:$0xff]
    %v732 = vld [vmem:[#allocation5 + $0x1470] sm:$0xff]
    %v733 = vld [vmem:[#allocation5 + $0x1478] sm:$0xff]
    %v734 = vld [vmem:[#allocation5 + $0x1480] sm:$0xff]
    %v735 = vld [vmem:[#allocation5 + $0x1488] sm:$0xff]
    %v736 = vld [vmem:[#allocation5 + $0x1490] sm:$0xff]
    %v737 = vld [vmem:[#allocation5 + $0x1498] sm:$0xff]
    %v738 = vld [vmem:[#allocation5 + $0x14a0] sm:$0xff]
    %v739 = vld [vmem:[#allocation5 + $0x14a8] sm:$0xff]
    %v740 = vld [vmem:[#allocation5 + $0x14b0] sm:$0xff]
    %v741 = vld [vmem:[#allocation5 + $0x14b8] sm:$0xff]
    %v742 = vld [vmem:[#allocation5 + $0x14c0] sm:$0xff]
    %v743 = vld [vmem:[#allocation5 + $0x14c8] sm:$0xff]
    %v744 = vld [vmem:[#allocation5 + $0x14d0] sm:$0xff]
    %v745 = vld [vmem:[#allocation5 + $0x14d8] sm:$0xff]
    %v746 = vld [vmem:[#allocation5 + $0x14e0] sm:$0xff]
    %v747 = vld [vmem:[#allocation5 + $0x14e8] sm:$0xff]
    %v748 = vld [vmem:[#allocation5 + $0x14f0] sm:$0xff]
    %v749 = vld [vmem:[#allocation5 + $0x14f8] sm:$0xff]
    %v750 = vld [vmem:[#allocation5 + $0x1500] sm:$0xff]
    %v751 = vld [vmem:[#allocation5 + $0x1508] sm:$0xff]
    %v752 = vld [vmem:[#allocation5 + $0x1510] sm:$0xff]
    %v753 = vld [vmem:[#allocation5 + $0x1518] sm:$0xff]
    %v754 = vld [vmem:[#allocation5 + $0x1520] sm:$0xff]
    %v755 = vld [vmem:[#allocation5 + $0x1528] sm:$0xff]
    %v756 = vld [vmem:[#allocation5 + $0x1530] sm:$0xff]
    %v757 = vld [vmem:[#allocation5 + $0x1538] sm:$0xff]
    %v758 = vld [vmem:[#allocation5 + $0x1540] sm:$0xff]
    %v759 = vld [vmem:[#allocation5 + $0x1548] sm:$0xff]
    %v760 = vld [vmem:[#allocation5 + $0x1550] sm:$0xff]
    %v761 = vld [vmem:[#allocation5 + $0x1558] sm:$0xff]
    %v762 = vld [vmem:[#allocation5 + $0x1560] sm:$0xff]
    %v763 = vld [vmem:[#allocation5 + $0x1568] sm:$0xff]
    %v764 = vld [vmem:[#allocation5 + $0x1570] sm:$0xff]
    %v765 = vld [vmem:[#allocation5 + $0x1578] sm:$0xff]
    %v766 = vld [vmem:[#allocation5 + $0x1580] sm:$0xff]
    %v767 = vld [vmem:[#allocation5 + $0x1588] sm:$0xff]
    %v768 = vld [vmem:[#allocation5 + $0x1590] sm:$0xff]
    %v769 = vld [vmem:[#allocation5 + $0x1598] sm:$0xff]
    %v770 = vld [vmem:[#allocation5 + $0x15a0] sm:$0xff]
    %v771 = vld [vmem:[#allocation5 + $0x15a8] sm:$0xff]
    %v772 = vld [vmem:[#allocation5 + $0x15b0] sm:$0xff]
    %v773 = vld [vmem:[#allocation5 + $0x15b8] sm:$0xff]
    %v774 = vld [vmem:[#allocation5 + $0x15c0] sm:$0xff]
    %v775 = vld [vmem:[#allocation5 + $0x15c8] sm:$0xff]
    %v776 = vld [vmem:[#allocation5 + $0x15d0] sm:$0xff]
    %v777 = vld [vmem:[#allocation5 + $0x15d8] sm:$0xff]
    %v778 = vld [vmem:[#allocation5 + $0x15e0] sm:$0xff]
    %v779 = vld [vmem:[#allocation5 + $0x15e8] sm:$0xff]
    %v780 = vld [vmem:[#allocation5 + $0x15f0] sm:$0xff]
    %v781 = vld [vmem:[#allocation5 + $0x15f8] sm:$0xff]
    %v782 = vld [vmem:[#allocation5 + $0x1600] sm:$0xff]
    %v783 = vld [vmem:[#allocation5 + $0x1608] sm:$0xff]
    %v784 = vld [vmem:[#allocation5 + $0x1610] sm:$0xff]
    %v785 = vld [vmem:[#allocation5 + $0x1618] sm:$0xff]
    %v786 = vld [vmem:[#allocation5 + $0x1620] sm:$0xff]
    %v787 = vld [vmem:[#allocation5 + $0x1628] sm:$0xff]
    %v788 = vld [vmem:[#allocation5 + $0x1630] sm:$0xff]
    %v789 = vld [vmem:[#allocation5 + $0x1638] sm:$0xff]
    %v790 = vld [vmem:[#allocation5 + $0x1640] sm:$0xff]
    %v791 = vld [vmem:[#allocation5 + $0x1648] sm:$0xff]
    %v792 = vld [vmem:[#allocation5 + $0x1650] sm:$0xff]
    %v793 = vld [vmem:[#allocation5 + $0x1658] sm:$0xff]
    %v794 = vld [vmem:[#allocation5 + $0x1660] sm:$0xff]
    %v795 = vld [vmem:[#allocation5 + $0x1668] sm:$0xff]
    %v796 = vld [vmem:[#allocation5 + $0x1670] sm:$0xff]
    %v797 = vld [vmem:[#allocation5 + $0x1678] sm:$0xff]
    %v798 = vld [vmem:[#allocation5 + $0x1680] sm:$0xff]
    %v799 = vld [vmem:[#allocation5 + $0x1688] sm:$0xff]
    %v800 = vld [vmem:[#allocation5 + $0x1690] sm:$0xff]
    %v801 = vld [vmem:[#allocation5 + $0x1698] sm:$0xff]
    %v802 = vld [vmem:[#allocation5 + $0x16a0] sm:$0xff]
    %v803 = vld [vmem:[#allocation5 + $0x16a8] sm:$0xff]
    %v804 = vld [vmem:[#allocation5 + $0x16b0] sm:$0xff]
    %v805 = vld [vmem:[#allocation5 + $0x16b8] sm:$0xff]
    %v806 = vld [vmem:[#allocation5 + $0x16c0] sm:$0xff]
    %v807 = vld [vmem:[#allocation5 + $0x16c8] sm:$0xff]
    %v808 = vld [vmem:[#allocation5 + $0x16d0] sm:$0xff]
    %v809 = vld [vmem:[#allocation5 + $0x16d8] sm:$0xff]
    %v810 = vld [vmem:[#allocation5 + $0x16e0] sm:$0xff]
    %v811 = vld [vmem:[#allocation5 + $0x16e8] sm:$0xff]
    %v812 = vld [vmem:[#allocation5 + $0x16f0] sm:$0xff]
    %v813 = vld [vmem:[#allocation5 + $0x16f8] sm:$0xff]
    %v814 = vld [vmem:[#allocation5 + $0x1700] sm:$0xff]
    %v815 = vld [vmem:[#allocation5 + $0x1708] sm:$0xff]
    %v816 = vld [vmem:[#allocation5 + $0x1710] sm:$0xff]
    %v817 = vld [vmem:[#allocation5 + $0x1718] sm:$0xff]
    %v818 = vld [vmem:[#allocation5 + $0x1720] sm:$0xff]
    %v819 = vld [vmem:[#allocation5 + $0x1728] sm:$0xff]
    %v820 = vld [vmem:[#allocation5 + $0x1730] sm:$0xff]
    %v821 = vld [vmem:[#allocation5 + $0x1738] sm:$0xff]
    %v822 = vld [vmem:[#allocation5 + $0x1740] sm:$0xff]
    %v823 = vld [vmem:[#allocation5 + $0x1748] sm:$0xff]
    %v824 = vld [vmem:[#allocation5 + $0x1750] sm:$0xff]
    %v825 = vld [vmem:[#allocation5 + $0x1758] sm:$0xff]
    %v826 = vld [vmem:[#allocation5 + $0x1760] sm:$0xff]
    %v827 = vld [vmem:[#allocation5 + $0x1768] sm:$0xff]
    %v828 = vld [vmem:[#allocation5 + $0x1770] sm:$0xff]
    %v829 = vld [vmem:[#allocation5 + $0x1778] sm:$0xff]
    %v830 = vld [vmem:[#allocation5 + $0x1780] sm:$0xff]
    %v831 = vld [vmem:[#allocation5 + $0x1788] sm:$0xff]
    %v832 = vld [vmem:[#allocation5 + $0x1790] sm:$0xff]
    %v833 = vld [vmem:[#allocation5 + $0x1798] sm:$0xff]
    %v834 = vld [vmem:[#allocation5 + $0x17a0] sm:$0xff]
    %v835 = vld [vmem:[#allocation5 + $0x17a8] sm:$0xff]
    %v836 = vld [vmem:[#allocation5 + $0x17b0] sm:$0xff]
    %v837 = vld [vmem:[#allocation5 + $0x17b8] sm:$0xff]
    %v838 = vld [vmem:[#allocation5 + $0x17c0] sm:$0xff]
    %v839 = vld [vmem:[#allocation5 + $0x17c8] sm:$0xff]
    %v840 = vld [vmem:[#allocation5 + $0x17d0] sm:$0xff]
    %v841 = vld [vmem:[#allocation5 + $0x17d8] sm:$0xff]
    %v842 = vld [vmem:[#allocation5 + $0x17e0] sm:$0xff]
    %v843 = vld [vmem:[#allocation5 + $0x17e8] sm:$0xff]
    %v844 = vld [vmem:[#allocation5 + $0x17f0] sm:$0xff]
    %v845 = vld [vmem:[#allocation5 + $0x17f8] sm:$0xff]
    %v846 = vld [vmem:[#allocation5 + $0x1800] sm:$0xff]
    %v847 = vld [vmem:[#allocation5 + $0x1808] sm:$0xff]
    %v848 = vld [vmem:[#allocation5 + $0x1810] sm:$0xff]
    %v849 = vld [vmem:[#allocation5 + $0x1818] sm:$0xff]
    %v850 = vld [vmem:[#allocation5 + $0x1820] sm:$0xff]
    %v851 = vld [vmem:[#allocation5 + $0x1828] sm:$0xff]
    %v852 = vld [vmem:[#allocation5 + $0x1830] sm:$0xff]
    %v853 = vld [vmem:[#allocation5 + $0x1838] sm:$0xff]
    %v854 = vld [vmem:[#allocation5 + $0x1840] sm:$0xff]
    %v855 = vld [vmem:[#allocation5 + $0x1848] sm:$0xff]
    %v856 = vld [vmem:[#allocation5 + $0x1850] sm:$0xff]
    %v857 = vld [vmem:[#allocation5 + $0x1858] sm:$0xff]
    %v858 = vld [vmem:[#allocation5 + $0x1860] sm:$0xff]
    %v859 = vld [vmem:[#allocation5 + $0x1868] sm:$0xff]
    %v860 = vld [vmem:[#allocation5 + $0x1870] sm:$0xff]
    %v861 = vld [vmem:[#allocation5 + $0x1878] sm:$0xff]
    %v862 = vld [vmem:[#allocation5 + $0x1880] sm:$0xff]
    %v863 = vld [vmem:[#allocation5 + $0x1888] sm:$0xff]
    %v864 = vld [vmem:[#allocation5 + $0x1890] sm:$0xff]
    %v865 = vld [vmem:[#allocation5 + $0x1898] sm:$0xff]
    %v866 = vld [vmem:[#allocation5 + $0x18a0] sm:$0xff]
    %v867 = vld [vmem:[#allocation5 + $0x18a8] sm:$0xff]
    %v868 = vld [vmem:[#allocation5 + $0x18b0] sm:$0xff]
    %v869 = vld [vmem:[#allocation5 + $0x18b8] sm:$0xff]
    %v870 = vld [vmem:[#allocation5 + $0x18c0] sm:$0xff]
    %v871 = vld [vmem:[#allocation5 + $0x18c8] sm:$0xff]
    %v872 = vld [vmem:[#allocation5 + $0x18d0] sm:$0xff]
    %v873 = vld [vmem:[#allocation5 + $0x18d8] sm:$0xff]
    %v874 = vld [vmem:[#allocation5 + $0x18e0] sm:$0xff]
    %v875 = vld [vmem:[#allocation5 + $0x18e8] sm:$0xff]
    %v876 = vld [vmem:[#allocation5 + $0x18f0] sm:$0xff]
    %v877 = vld [vmem:[#allocation5 + $0x18f8] sm:$0xff]
    %v878 = vld [vmem:[#allocation5 + $0x1900] sm:$0xff]
    %v879 = vld [vmem:[#allocation5 + $0x1908] sm:$0xff]
    %v880 = vld [vmem:[#allocation5 + $0x1910] sm:$0xff]
    %v881 = vld [vmem:[#allocation5 + $0x1918] sm:$0xff]
    %v882 = vld [vmem:[#allocation5 + $0x1920] sm:$0xff]
    %v883 = vld [vmem:[#allocation5 + $0x1928] sm:$0xff]
    %v884 = vld [vmem:[#allocation5 + $0x1930] sm:$0xff]
    %v885 = vld [vmem:[#allocation5 + $0x1938] sm:$0xff]
    %v886 = vld [vmem:[#allocation5 + $0x1940] sm:$0xff]
    %v887 = vld [vmem:[#allocation5 + $0x1948] sm:$0xff]
    %v888 = vld [vmem:[#allocation5 + $0x1950] sm:$0xff]
    %v889 = vld [vmem:[#allocation5 + $0x1958] sm:$0xff]
    %v890 = vld [vmem:[#allocation5 + $0x1960] sm:$0xff]
    %v891 = vld [vmem:[#allocation5 + $0x1968] sm:$0xff]
    %v892 = vld [vmem:[#allocation5 + $0x1970] sm:$0xff]
    %v893 = vld [vmem:[#allocation5 + $0x1978] sm:$0xff]
    %v894 = vld [vmem:[#allocation5 + $0x1980] sm:$0xff]
    %v895 = vld [vmem:[#allocation5 + $0x1988] sm:$0xff]
    %v896 = vld [vmem:[#allocation5 + $0x1990] sm:$0xff]
    %v897 = vld [vmem:[#allocation5 + $0x1998] sm:$0xff]
    %v898 = vld [vmem:[#allocation5 + $0x19a0] sm:$0xff]
    %v899 = vld [vmem:[#allocation5 + $0x19a8] sm:$0xff]
    %v900 = vld [vmem:[#allocation5 + $0x19b0] sm:$0xff]
    %v901 = vld [vmem:[#allocation5 + $0x19b8] sm:$0xff]
    %v902 = vld [vmem:[#allocation5 + $0x19c0] sm:$0xff]
    %v903 = vld [vmem:[#allocation5 + $0x19c8] sm:$0xff]
    %v904 = vld [vmem:[#allocation5 + $0x19d0] sm:$0xff]
    %v905 = vld [vmem:[#allocation5 + $0x19d8] sm:$0xff]
    %v906 = vld [vmem:[#allocation5 + $0x19e0] sm:$0xff]
    %v907 = vld [vmem:[#allocation5 + $0x19e8] sm:$0xff]
    %v908 = vld [vmem:[#allocation5 + $0x19f0] sm:$0xff]
    %v909 = vld [vmem:[#allocation5 + $0x19f8] sm:$0xff]
    %v910 = vld [vmem:[#allocation5 + $0x1a00] sm:$0xff]
    %v911 = vld [vmem:[#allocation5 + $0x1a08] sm:$0xff]
    %v912 = vld [vmem:[#allocation5 + $0x1a10] sm:$0xff]
    %v913 = vld [vmem:[#allocation5 + $0x1a18] sm:$0xff]
    %v914 = vld [vmem:[#allocation5 + $0x1a20] sm:$0xff]
    %v915 = vld [vmem:[#allocation5 + $0x1a28] sm:$0xff]
    %v916 = vld [vmem:[#allocation5 + $0x1a30] sm:$0xff]
    %v917 = vld [vmem:[#allocation5 + $0x1a38] sm:$0xff]
    %v918 = vld [vmem:[#allocation5 + $0x1a40] sm:$0xff]
    %v919 = vld [vmem:[#allocation5 + $0x1a48] sm:$0xff]
    %v920 = vld [vmem:[#allocation5 + $0x1a50] sm:$0xff]
    %v921 = vld [vmem:[#allocation5 + $0x1a58] sm:$0xff]
    %v922 = vld [vmem:[#allocation5 + $0x1a60] sm:$0xff]
    %v923 = vld [vmem:[#allocation5 + $0x1a68] sm:$0xff]
    %v924 = vld [vmem:[#allocation5 + $0x1a70] sm:$0xff]
    %v925 = vld [vmem:[#allocation5 + $0x1a78] sm:$0xff]
    %v926 = vld [vmem:[#allocation5 + $0x1a80] sm:$0xff]
    %v927 = vld [vmem:[#allocation5 + $0x1a88] sm:$0xff]
    %v928 = vld [vmem:[#allocation5 + $0x1a90] sm:$0xff]
    %v929 = vld [vmem:[#allocation5 + $0x1a98] sm:$0xff]
    %v930 = vld [vmem:[#allocation5 + $0x1aa0] sm:$0xff]
    %v931 = vld [vmem:[#allocation5 + $0x1aa8] sm:$0xff]
    %v932 = vld [vmem:[#allocation5 + $0x1ab0] sm:$0xff]
    %v933 = vld [vmem:[#allocation5 + $0x1ab8] sm:$0xff]
    %v934 = vld [vmem:[#allocation5 + $0x1ac0] sm:$0xff]
    %v935 = vld [vmem:[#allocation5 + $0x1ac8] sm:$0xff]
    %v936 = vld [vmem:[#allocation5 + $0x1ad0] sm:$0xff]
    %v937 = vld [vmem:[#allocation5 + $0x1ad8] sm:$0xff]
    %v938 = vld [vmem:[#allocation5 + $0x1ae0] sm:$0xff]
    %v939 = vld [vmem:[#allocation5 + $0x1ae8] sm:$0xff]
    %v940 = vld [vmem:[#allocation5 + $0x1af0] sm:$0xff]
    %v941 = vld [vmem:[#allocation5 + $0x1af8] sm:$0xff]
    %v942 = vld [vmem:[#allocation5 + $0x1b00] sm:$0xff]
    %v943 = vld [vmem:[#allocation5 + $0x1b08] sm:$0xff]
    %v944 = vld [vmem:[#allocation5 + $0x1b10] sm:$0xff]
    %v945 = vld [vmem:[#allocation5 + $0x1b18] sm:$0xff]
    %v946 = vld [vmem:[#allocation5 + $0x1b20] sm:$0xff]
    %v947 = vld [vmem:[#allocation5 + $0x1b28] sm:$0xff]
    %v948 = vld [vmem:[#allocation5 + $0x1b30] sm:$0xff]
    %v949 = vld [vmem:[#allocation5 + $0x1b38] sm:$0xff]
    %v950 = vld [vmem:[#allocation5 + $0x1b40] sm:$0xff]
    %v951 = vld [vmem:[#allocation5 + $0x1b48] sm:$0xff]
    %v952 = vld [vmem:[#allocation5 + $0x1b50] sm:$0xff]
    %v953 = vld [vmem:[#allocation5 + $0x1b58] sm:$0xff]
    %v954 = vld [vmem:[#allocation5 + $0x1b60] sm:$0xff]
    %v955 = vld [vmem:[#allocation5 + $0x1b68] sm:$0xff]
    %v956 = vld [vmem:[#allocation5 + $0x1b70] sm:$0xff]
    %v957 = vld [vmem:[#allocation5 + $0x1b78] sm:$0xff]
    %v958 = vld [vmem:[#allocation5 + $0x1b80] sm:$0xff]
    %v959 = vld [vmem:[#allocation5 + $0x1b88] sm:$0xff]
    %v960 = vld [vmem:[#allocation5 + $0x1b90] sm:$0xff]
    %v961 = vld [vmem:[#allocation5 + $0x1b98] sm:$0xff]
    %v962 = vld [vmem:[#allocation5 + $0x1ba0] sm:$0xff]
    %v963 = vld [vmem:[#allocation5 + $0x1ba8] sm:$0xff]
    %v964 = vld [vmem:[#allocation5 + $0x1bb0] sm:$0xff]
    %v965 = vld [vmem:[#allocation5 + $0x1bb8] sm:$0xff]
    %v966 = vld [vmem:[#allocation5 + $0x1bc0] sm:$0xff]
    %v967 = vld [vmem:[#allocation5 + $0x1bc8] sm:$0xff]
    %v968 = vld [vmem:[#allocation5 + $0x1bd0] sm:$0xff]
    %v969 = vld [vmem:[#allocation5 + $0x1bd8] sm:$0xff]
    %v970 = vld [vmem:[#allocation5 + $0x1be0] sm:$0xff]
    %v971 = vld [vmem:[#allocation5 + $0x1be8] sm:$0xff]
    %v972 = vld [vmem:[#allocation5 + $0x1bf0] sm:$0xff]
    %v973 = vld [vmem:[#allocation5 + $0x1bf8] sm:$0xff]
    %v974 = vld [vmem:[#allocation5 + $0x1c00] sm:$0xff]
    %v975 = vld [vmem:[#allocation5 + $0x1c08] sm:$0xff]
    %v976 = vld [vmem:[#allocation5 + $0x1c10] sm:$0xff]
    %v977 = vld [vmem:[#allocation5 + $0x1c18] sm:$0xff]
    %v978 = vld [vmem:[#allocation5 + $0x1c20] sm:$0xff]
    %v979 = vld [vmem:[#allocation5 + $0x1c28] sm:$0xff]
    %v980 = vld [vmem:[#allocation5 + $0x1c30] sm:$0xff]
    %v981 = vld [vmem:[#allocation5 + $0x1c38] sm:$0xff]
    %v982 = vld [vmem:[#allocation5 + $0x1c40] sm:$0xff]
    %v983 = vld [vmem:[#allocation5 + $0x1c48] sm:$0xff]
    %v984 = vld [vmem:[#allocation5 + $0x1c50] sm:$0xff]
    %v985 = vld [vmem:[#allocation5 + $0x1c58] sm:$0xff]
    %v986 = vld [vmem:[#allocation5 + $0x1c60] sm:$0xff]
    %v987 = vld [vmem:[#allocation5 + $0x1c68] sm:$0xff]
    %v988 = vld [vmem:[#allocation5 + $0x1c70] sm:$0xff]
    %v989 = vld [vmem:[#allocation5 + $0x1c78] sm:$0xff]
    %v990 = vld [vmem:[#allocation5 + $0x1c80] sm:$0xff]
    %v991 = vld [vmem:[#allocation5 + $0x1c88] sm:$0xff]
    %v992 = vld [vmem:[#allocation5 + $0x1c90] sm:$0xff]
    %v993 = vld [vmem:[#allocation5 + $0x1c98] sm:$0xff]
    %v994 = vld [vmem:[#allocation5 + $0x1ca0] sm:$0xff]
    %v995 = vld [vmem:[#allocation5 + $0x1ca8] sm:$0xff]
    %v996 = vld [vmem:[#allocation5 + $0x1cb0] sm:$0xff]
    %v997 = vld [vmem:[#allocation5 + $0x1cb8] sm:$0xff]
    %v998 = vld [vmem:[#allocation5 + $0x1cc0] sm:$0xff]
    %v999 = vld [vmem:[#allocation5 + $0x1cc8] sm:$0xff]
    %v1000 = vld [vmem:[#allocation5 + $0x1cd0] sm:$0xff]
    %v1001 = vld [vmem:[#allocation5 + $0x1cd8] sm:$0xff]
    %v1002 = vld [vmem:[#allocation5 + $0x1ce0] sm:$0xff]
    %v1003 = vld [vmem:[#allocation5 + $0x1ce8] sm:$0xff]
    %v1004 = vld [vmem:[#allocation5 + $0x1cf0] sm:$0xff]
    %v1005 = vld [vmem:[#allocation5 + $0x1cf8] sm:$0xff]
    %v1006 = vld [vmem:[#allocation5 + $0x1d00] sm:$0xff]
    %v1007 = vld [vmem:[#allocation5 + $0x1d08] sm:$0xff]
    %v1008 = vld [vmem:[#allocation5 + $0x1d10] sm:$0xff]
    %v1009 = vld [vmem:[#allocation5 + $0x1d18] sm:$0xff]
    %v1010 = vld [vmem:[#allocation5 + $0x1d20] sm:$0xff]
    %v1011 = vld [vmem:[#allocation5 + $0x1d28] sm:$0xff]
    %v1012 = vld [vmem:[#allocation5 + $0x1d30] sm:$0xff]
    %v1013 = vld [vmem:[#allocation5 + $0x1d38] sm:$0xff]
    %v1014 = vld [vmem:[#allocation5 + $0x1d40] sm:$0xff]
    %v1015 = vld [vmem:[#allocation5 + $0x1d48] sm:$0xff]
    %v1016 = vld [vmem:[#allocation5 + $0x1d50] sm:$0xff]
    %v1017 = vld [vmem:[#allocation5 + $0x1d58] sm:$0xff]
    %v1018 = vld [vmem:[#allocation5 + $0x1d60] sm:$0xff]
    %v1019 = vld [vmem:[#allocation5 + $0x1d68] sm:$0xff]
    %v1020 = vld [vmem:[#allocation5 + $0x1d70] sm:$0xff]
    %v1021 = vld [vmem:[#allocation5 + $0x1d78] sm:$0xff]
    %v1022 = vld [vmem:[#allocation5 + $0x1d80] sm:$0xff]
    %v1023 = vld [vmem:[#allocation5 + $0x1d88] sm:$0xff]
    %v1024 = vld [vmem:[#allocation5 + $0x1d90] sm:$0xff]
    %v1025 = vld [vmem:[#allocation5 + $0x1d98] sm:$0xff]
    %v1026 = vld [vmem:[#allocation5 + $0x1da0] sm:$0xff]
    %v1027 = vld [vmem:[#allocation5 + $0x1da8] sm:$0xff]
    %v1028 = vld [vmem:[#allocation5 + $0x1db0] sm:$0xff]
    %v1029 = vld [vmem:[#allocation5 + $0x1db8] sm:$0xff]
    %v1030 = vld [vmem:[#allocation5 + $0x1dc0] sm:$0xff]
    %v1031 = vld [vmem:[#allocation5 + $0x1dc8] sm:$0xff]
    %v1032 = vld [vmem:[#allocation5 + $0x1dd0] sm:$0xff]
    %v1033 = vld [vmem:[#allocation5 + $0x1dd8] sm:$0xff]
    %v1034 = vld [vmem:[#allocation5 + $0x1de0] sm:$0xff]
    %v1035 = vld [vmem:[#allocation5 + $0x1de8] sm:$0xff]
    %v1036 = vld [vmem:[#allocation5 + $0x1df0] sm:$0xff]
    %v1037 = vld [vmem:[#allocation5 + $0x1df8] sm:$0xff]
    %v1038 = vld [vmem:[#allocation5 + $0x1e00] sm:$0xff]
    %v1039 = vld [vmem:[#allocation5 + $0x1e08] sm:$0xff]
    %v1040 = vld [vmem:[#allocation5 + $0x1e10] sm:$0xff]
    %v1041 = vld [vmem:[#allocation5 + $0x1e18] sm:$0xff]
    %v1042 = vld [vmem:[#allocation5 + $0x1e20] sm:$0xff]
    %v1043 = vld [vmem:[#allocation5 + $0x1e28] sm:$0xff]
    %v1044 = vld [vmem:[#allocation5 + $0x1e30] sm:$0xff]
    %v1045 = vld [vmem:[#allocation5 + $0x1e38] sm:$0xff]
    %v1046 = vld [vmem:[#allocation5 + $0x1e40] sm:$0xff]
    %v1047 = vld [vmem:[#allocation5 + $0x1e48] sm:$0xff]
    %v1048 = vld [vmem:[#allocation5 + $0x1e50] sm:$0xff]
    %v1049 = vld [vmem:[#allocation5 + $0x1e58] sm:$0xff]
    %v1050 = vld [vmem:[#allocation5 + $0x1e60] sm:$0xff]
    %v1051 = vld [vmem:[#allocation5 + $0x1e68] sm:$0xff]
    %v1052 = vld [vmem:[#allocation5 + $0x1e70] sm:$0xff]
    %v1053 = vld [vmem:[#allocation5 + $0x1e78] sm:$0xff]
    %v1054 = vld [vmem:[#allocation5 + $0x1e80] sm:$0xff]
    %v1055 = vld [vmem:[#allocation5 + $0x1e88] sm:$0xff]
    %v1056 = vld [vmem:[#allocation5 + $0x1e90] sm:$0xff]
    %v1057 = vld [vmem:[#allocation5 + $0x1e98] sm:$0xff]
    %v1058 = vld [vmem:[#allocation5 + $0x1ea0] sm:$0xff]
    %v1059 = vld [vmem:[#allocation5 + $0x1ea8] sm:$0xff]
    %v1060 = vld [vmem:[#allocation5 + $0x1eb0] sm:$0xff]
    %v1061 = vld [vmem:[#allocation5 + $0x1eb8] sm:$0xff]
    %v1062 = vld [vmem:[#allocation5 + $0x1ec0] sm:$0xff]
    %v1063 = vld [vmem:[#allocation5 + $0x1ec8] sm:$0xff]
    %v1064 = vld [vmem:[#allocation5 + $0x1ed0] sm:$0xff]
    %v1065 = vld [vmem:[#allocation5 + $0x1ed8] sm:$0xff]
    %v1066 = vld [vmem:[#allocation5 + $0x1ee0] sm:$0xff]
    %v1067 = vld [vmem:[#allocation5 + $0x1ee8] sm:$0xff]
    %v1068 = vld [vmem:[#allocation5 + $0x1ef0] sm:$0xff]
    %v1069 = vld [vmem:[#allocation5 + $0x1ef8] sm:$0xff]
    %v1070 = vld [vmem:[#allocation5 + $0x1f00] sm:$0xff]
    %v1071 = vld [vmem:[#allocation5 + $0x1f08] sm:$0xff]
    %v1072 = vld [vmem:[#allocation5 + $0x1f10] sm:$0xff]
    %v1073 = vld [vmem:[#allocation5 + $0x1f18] sm:$0xff]
    %v1074 = vld [vmem:[#allocation5 + $0x1f20] sm:$0xff]
    %v1075 = vld [vmem:[#allocation5 + $0x1f28] sm:$0xff]
    %v1076 = vld [vmem:[#allocation5 + $0x1f30] sm:$0xff]
    %v1077 = vld [vmem:[#allocation5 + $0x1f38] sm:$0xff]
    %v1078 = vld [vmem:[#allocation5 + $0x1f40] sm:$0xff]
    %v1079 = vld [vmem:[#allocation5 + $0x1f48] sm:$0xff]
    %v1080 = vld [vmem:[#allocation5 + $0x1f50] sm:$0xff]
    %v1081 = vld [vmem:[#allocation5 + $0x1f58] sm:$0xff]
    %v1082 = vld [vmem:[#allocation5 + $0x1f60] sm:$0xff]
    %v1083 = vld [vmem:[#allocation5 + $0x1f68] sm:$0xff]
    %v1084 = vld [vmem:[#allocation5 + $0x1f70] sm:$0xff]
    %v1085 = vld [vmem:[#allocation5 + $0x1f78] sm:$0xff]
    %v1086 = vld [vmem:[#allocation5 + $0x1f80] sm:$0xff]
    %v1087 = vld [vmem:[#allocation5 + $0x1f88] sm:$0xff]
    %v1088 = vld [vmem:[#allocation5 + $0x1f90] sm:$0xff]
    %v1089 = vld [vmem:[#allocation5 + $0x1f98] sm:$0xff]
    %v1090 = vld [vmem:[#allocation5 + $0x1fa0] sm:$0xff]
    %v1091 = vld [vmem:[#allocation5 + $0x1fa8] sm:$0xff]
    %v1092 = vld [vmem:[#allocation5 + $0x1fb0] sm:$0xff]
    %v1093 = vld [vmem:[#allocation5 + $0x1fb8] sm:$0xff]
    %v1094 = vld [vmem:[#allocation5 + $0x1fc0] sm:$0xff]
    %v1095 = vld [vmem:[#allocation5 + $0x1fc8] sm:$0xff]
    %v1096 = vld [vmem:[#allocation5 + $0x1fd0] sm:$0xff]
    %v1097 = vld [vmem:[#allocation5 + $0x1fd8] sm:$0xff]
    %v1098 = vld [vmem:[#allocation5 + $0x1fe0] sm:$0xff]
    %v1099 = vld [vmem:[#allocation5 + $0x1fe8] sm:$0xff]
    %v1100 = vld [vmem:[#allocation5 + $0x1ff0] sm:$0xff]
    %v1101 = vld [vmem:[#allocation5 + $0x1ff8] sm:$0xff]
    %v1102 = vld [vmem:[#allocation5 + $0x2000] sm:$0xff]
    %v1103 = vld [vmem:[#allocation5 + $0x2008] sm:$0xff]
    %v1104 = vld [vmem:[#allocation5 + $0x2010] sm:$0xff]
    %v1105 = vld [vmem:[#allocation5 + $0x2018] sm:$0xff]
    %v1106 = vld [vmem:[#allocation5 + $0x2020] sm:$0xff]
    %v1107 = vld [vmem:[#allocation5 + $0x2028] sm:$0xff]
    %v1108 = vld [vmem:[#allocation5 + $0x2030] sm:$0xff]
    %v1109 = vld [vmem:[#allocation5 + $0x2038] sm:$0xff]
    %v1110 = vld [vmem:[#allocation5 + $0x2040] sm:$0xff]
    %v1111 = vld [vmem:[#allocation5 + $0x2048] sm:$0xff]
    %v1112 = vld [vmem:[#allocation5 + $0x2050] sm:$0xff]
    %v1113 = vld [vmem:[#allocation5 + $0x2058] sm:$0xff]
    %v1114 = vld [vmem:[#allocation5 + $0x2060] sm:$0xff]
    %v1115 = vld [vmem:[#allocation5 + $0x2068] sm:$0xff]
    %v1116 = vld [vmem:[#allocation5 + $0x2070] sm:$0xff]
    %v1117 = vld [vmem:[#allocation5 + $0x2078] sm:$0xff]
    %v1118 = vld [vmem:[#allocation5 + $0x2080] sm:$0xff]
    %v1119 = vld [vmem:[#allocation5 + $0x2088] sm:$0xff]
    %v1120 = vld [vmem:[#allocation5 + $0x2090] sm:$0xff]
    %v1121 = vld [vmem:[#allocation5 + $0x2098] sm:$0xff]
    %v1122 = vld [vmem:[#allocation5 + $0x20a0] sm:$0xff]
    %v1123 = vld [vmem:[#allocation5 + $0x20a8] sm:$0xff]
    %v1124 = vld [vmem:[#allocation5 + $0x20b0] sm:$0xff]
    %v1125 = vld [vmem:[#allocation5 + $0x20b8] sm:$0xff]
    %v1126 = vld [vmem:[#allocation5 + $0x20c0] sm:$0xff]
    %v1127 = vld [vmem:[#allocation5 + $0x20c8] sm:$0xff]
    %v1128 = vld [vmem:[#allocation5 + $0x20d0] sm:$0xff]
    %v1129 = vld [vmem:[#allocation5 + $0x20d8] sm:$0xff]
    %v1130 = vld [vmem:[#allocation5 + $0x20e0] sm:$0xff]
    %v1131 = vld [vmem:[#allocation5 + $0x20e8] sm:$0xff]
    %v1132 = vld [vmem:[#allocation5 + $0x20f0] sm:$0xff]
    %v1133 = vld [vmem:[#allocation5 + $0x20f8] sm:$0xff]
    %v1134 = vld [vmem:[#allocation5 + $0x2100] sm:$0xff]
    %v1135 = vld [vmem:[#allocation5 + $0x2108] sm:$0xff]
    %v1136 = vld [vmem:[#allocation5 + $0x2110] sm:$0xff]
    %v1137 = vld [vmem:[#allocation5 + $0x2118] sm:$0xff]
    %v1138 = vld [vmem:[#allocation5 + $0x2120] sm:$0xff]
    %v1139 = vld [vmem:[#allocation5 + $0x2128] sm:$0xff]
    %v1140 = vld [vmem:[#allocation5 + $0x2130] sm:$0xff]
    %v1141 = vld [vmem:[#allocation5 + $0x2138] sm:$0xff]
    %v1142 = vld [vmem:[#allocation5 + $0x2140] sm:$0xff]
    %v1143 = vld [vmem:[#allocation5 + $0x2148] sm:$0xff]
    %v1144 = vld [vmem:[#allocation5 + $0x2150] sm:$0xff]
    %v1145 = vld [vmem:[#allocation5 + $0x2158] sm:$0xff]
    %v1146 = vld [vmem:[#allocation5 + $0x2160] sm:$0xff]
    %v1147 = vld [vmem:[#allocation5 + $0x2168] sm:$0xff]
    %v1148 = vld [vmem:[#allocation5 + $0x2170] sm:$0xff]
    %v1149 = vld [vmem:[#allocation5 + $0x2178] sm:$0xff]
    %v1150 = vld [vmem:[#allocation5 + $0x2180] sm:$0xff]
    %v1151 = vld [vmem:[#allocation5 + $0x2188] sm:$0xff]
    %v1152 = vld [vmem:[#allocation5 + $0x2190] sm:$0xff]
    %v1153 = vld [vmem:[#allocation5 + $0x2198] sm:$0xff]
    %v1154 = vld [vmem:[#allocation5 + $0x21a0] sm:$0xff]
    %v1155 = vld [vmem:[#allocation5 + $0x21a8] sm:$0xff]
    %v1156 = vld [vmem:[#allocation5 + $0x21b0] sm:$0xff]
    %v1157 = vld [vmem:[#allocation5 + $0x21b8] sm:$0xff]
    %v1158 = vld [vmem:[#allocation5 + $0x21c0] sm:$0xff]
    %v1159 = vld [vmem:[#allocation5 + $0x21c8] sm:$0xff]
    %v1160 = vld [vmem:[#allocation5 + $0x21d0] sm:$0xff]
    %v1161 = vld [vmem:[#allocation5 + $0x21d8] sm:$0xff]
    %v1162 = vld [vmem:[#allocation5 + $0x21e0] sm:$0xff]
    %v1163 = vld [vmem:[#allocation5 + $0x21e8] sm:$0xff]
    %v1164 = vld [vmem:[#allocation5 + $0x21f0] sm:$0xff]
    %v1165 = vld [vmem:[#allocation5 + $0x21f8] sm:$0xff]
    %v1166 = vld [vmem:[#allocation5 + $0x2200] sm:$0xff]
    %v1167 = vld [vmem:[#allocation5 + $0x2208] sm:$0xff]
    %v1168 = vld [vmem:[#allocation5 + $0x2210] sm:$0xff]
    %v1169 = vld [vmem:[#allocation5 + $0x2218] sm:$0xff]
    %v1170 = vld [vmem:[#allocation5 + $0x2220] sm:$0xff]
    %v1171 = vld [vmem:[#allocation5 + $0x2228] sm:$0xff]
    %v1172 = vld [vmem:[#allocation5 + $0x2230] sm:$0xff]
    %v1173 = vld [vmem:[#allocation5 + $0x2238] sm:$0xff]
    %v1174 = vld [vmem:[#allocation5 + $0x2240] sm:$0xff]
    %v1175 = vld [vmem:[#allocation5 + $0x2248] sm:$0xff]
    %v1176 = vld [vmem:[#allocation5 + $0x2250] sm:$0xff]
    %v1177 = vld [vmem:[#allocation5 + $0x2258] sm:$0xff]
    %v1178 = vld [vmem:[#allocation5 + $0x2260] sm:$0xff]
    %v1179 = vld [vmem:[#allocation5 + $0x2268] sm:$0xff]
    %v1180 = vld [vmem:[#allocation5 + $0x2270] sm:$0xff]
    %v1181 = vld [vmem:[#allocation5 + $0x2278] sm:$0xff]
    %v1182 = vld [vmem:[#allocation5 + $0x2280] sm:$0xff]
    %v1183 = vld [vmem:[#allocation5 + $0x2288] sm:$0xff]
    %v1184 = vld [vmem:[#allocation5 + $0x2290] sm:$0xff]
    %v1185 = vld [vmem:[#allocation5 + $0x2298] sm:$0xff]
    %v1186 = vld [vmem:[#allocation5 + $0x22a0] sm:$0xff]
    %v1187 = vld [vmem:[#allocation5 + $0x22a8] sm:$0xff]
    %v1188 = vld [vmem:[#allocation5 + $0x22b0] sm:$0xff]
    %v1189 = vld [vmem:[#allocation5 + $0x22b8] sm:$0xff]
    %v1190 = vld [vmem:[#allocation5 + $0x22c0] sm:$0xff]
    %v1191 = vld [vmem:[#allocation5 + $0x22c8] sm:$0xff]
    %v1192 = vld [vmem:[#allocation5 + $0x22d0] sm:$0xff]
    %v1193 = vld [vmem:[#allocation5 + $0x22d8] sm:$0xff]
    %v1194 = vld [vmem:[#allocation5 + $0x22e0] sm:$0xff]
    %v1195 = vld [vmem:[#allocation5 + $0x22e8] sm:$0xff]
    %v1196 = vld [vmem:[#allocation5 + $0x22f0] sm:$0xff]
    %v1197 = vld [vmem:[#allocation5 + $0x22f8] sm:$0xff]
    %v1198 = vld [vmem:[#allocation5 + $0x2300] sm:$0xff]
    %v1199 = vld [vmem:[#allocation5 + $0x2308] sm:$0xff]
    %v1200 = vld [vmem:[#allocation5 + $0x2310] sm:$0xff]
    %v1201 = vld [vmem:[#allocation5 + $0x2318] sm:$0xff]
    %v1202 = vld [vmem:[#allocation5 + $0x2320] sm:$0xff]
    %v1203 = vld [vmem:[#allocation5 + $0x2328] sm:$0xff]
    %v1204 = vld [vmem:[#allocation5 + $0x2330] sm:$0xff]
    %v1205 = vld [vmem:[#allocation5 + $0x2338] sm:$0xff]
    %v1206 = vld [vmem:[#allocation5 + $0x2340] sm:$0xff]
    %v1207 = vld [vmem:[#allocation5 + $0x2348] sm:$0xff]
    %v1208 = vld [vmem:[#allocation5 + $0x2350] sm:$0xff]
    %v1209 = vld [vmem:[#allocation5 + $0x2358] sm:$0xff]
    %v1210 = vld [vmem:[#allocation5 + $0x2360] sm:$0xff]
    %v1211 = vld [vmem:[#allocation5 + $0x2368] sm:$0xff]
    %v1212 = vld [vmem:[#allocation5 + $0x2370] sm:$0xff]
    %v1213 = vld [vmem:[#allocation5 + $0x2378] sm:$0xff]
    %v1214 = vld [vmem:[#allocation5 + $0x2380] sm:$0xff]
    %v1215 = vld [vmem:[#allocation5 + $0x2388] sm:$0xff]
    %v1216 = vld [vmem:[#allocation5 + $0x2390] sm:$0xff]
    %v1217 = vld [vmem:[#allocation5 + $0x2398] sm:$0xff]
    %v1218 = vld [vmem:[#allocation5 + $0x23a0] sm:$0xff]
    %v1219 = vld [vmem:[#allocation5 + $0x23a8] sm:$0xff]
    %v1220 = vld [vmem:[#allocation5 + $0x23b0] sm:$0xff]
    %v1221 = vld [vmem:[#allocation5 + $0x23b8] sm:$0xff]
    %v1222 = vld [vmem:[#allocation5 + $0x23c0] sm:$0xff]
    %v1223 = vld [vmem:[#allocation5 + $0x23c8] sm:$0xff]
    %v1224 = vld [vmem:[#allocation5 + $0x23d0] sm:$0xff]
    %v1225 = vld [vmem:[#allocation5 + $0x23d8] sm:$0xff]
    %v1226 = vld [vmem:[#allocation5 + $0x23e0] sm:$0xff]
    %v1227 = vld [vmem:[#allocation5 + $0x23e8] sm:$0xff]
    %v1228 = vld [vmem:[#allocation5 + $0x23f0] sm:$0xff]
    %v1229 = vld [vmem:[#allocation5 + $0x23f8] sm:$0xff]
    %v1230 = vld [vmem:[#allocation5 + $0x2400] sm:$0xff]
    %v1231 = vld [vmem:[#allocation5 + $0x2408] sm:$0xff]
    %v1232 = vld [vmem:[#allocation5 + $0x2410] sm:$0xff]
    %v1233 = vld [vmem:[#allocation5 + $0x2418] sm:$0xff]
    %v1234 = vld [vmem:[#allocation5 + $0x2420] sm:$0xff]
    %v1235 = vld [vmem:[#allocation5 + $0x2428] sm:$0xff]
    %v1236 = vld [vmem:[#allocation5 + $0x2430] sm:$0xff]
    %v1237 = vld [vmem:[#allocation5 + $0x2438] sm:$0xff]
    %v1238 = vld [vmem:[#allocation5 + $0x2440] sm:$0xff]
    %v1239 = vld [vmem:[#allocation5 + $0x2448] sm:$0xff]
    %v1240 = vld [vmem:[#allocation5 + $0x2450] sm:$0xff]
    %v1241 = vld [vmem:[#allocation5 + $0x2458] sm:$0xff]
    %v1242 = vld [vmem:[#allocation5 + $0x2460] sm:$0xff]
    %v1243 = vld [vmem:[#allocation5 + $0x2468] sm:$0xff]
    %v1244 = vld [vmem:[#allocation5 + $0x2470] sm:$0xff]
    %v1245 = vld [vmem:[#allocation5 + $0x2478] sm:$0xff]
    %v1246 = vld [vmem:[#allocation5 + $0x2480] sm:$0xff]
    %v1247 = vld [vmem:[#allocation5 + $0x2488] sm:$0xff]
    %v1248 = vld [vmem:[#allocation5 + $0x2490] sm:$0xff]
    %v1249 = vld [vmem:[#allocation5 + $0x2498] sm:$0xff]
    %v1250 = vld [vmem:[#allocation5 + $0x24a0] sm:$0xff]
    %v1251 = vld [vmem:[#allocation5 + $0x24a8] sm:$0xff]
    %v1252 = vld [vmem:[#allocation5 + $0x24b0] sm:$0xff]
    %v1253 = vld [vmem:[#allocation5 + $0x24b8] sm:$0xff]
    %v1254 = vld [vmem:[#allocation5 + $0x24c0] sm:$0xff]
    %v1255 = vld [vmem:[#allocation5 + $0x24c8] sm:$0xff]
    %v1256 = vld [vmem:[#allocation5 + $0x24d0] sm:$0xff]
    %v1257 = vld [vmem:[#allocation5 + $0x24d8] sm:$0xff]
    %v1258 = vld [vmem:[#allocation5 + $0x24e0] sm:$0xff]
    %v1259 = vld [vmem:[#allocation5 + $0x24e8] sm:$0xff]
    %v1260 = vld [vmem:[#allocation5 + $0x24f0] sm:$0xff]
    %v1261 = vld [vmem:[#allocation5 + $0x24f8] sm:$0xff]
    %v1262 = vld [vmem:[#allocation5 + $0x2500] sm:$0xff]
    %v1263 = vld [vmem:[#allocation5 + $0x2508] sm:$0xff]
    %v1264 = vld [vmem:[#allocation5 + $0x2510] sm:$0xff]
    %v1265 = vld [vmem:[#allocation5 + $0x2518] sm:$0xff]
    %v1266 = vld [vmem:[#allocation5 + $0x2520] sm:$0xff]
    %v1267 = vld [vmem:[#allocation5 + $0x2528] sm:$0xff]
    %v1268 = vld [vmem:[#allocation5 + $0x2530] sm:$0xff]
    %v1269 = vld [vmem:[#allocation5 + $0x2538] sm:$0xff]
    %v1270 = vld [vmem:[#allocation5 + $0x2540] sm:$0xff]
    %v1271 = vld [vmem:[#allocation5 + $0x2548] sm:$0xff]
    %v1272 = vld [vmem:[#allocation5 + $0x2550] sm:$0xff]
    %v1273 = vld [vmem:[#allocation5 + $0x2558] sm:$0xff]
    %v1274 = vld [vmem:[#allocation5 + $0x2560] sm:$0xff]
    %v1275 = vld [vmem:[#allocation5 + $0x2568] sm:$0xff]
    %v1276 = vld [vmem:[#allocation5 + $0x2570] sm:$0xff]
    %v1277 = vld [vmem:[#allocation5 + $0x2578] sm:$0xff]
    %v1278 = vld [vmem:[#allocation5 + $0x2580] sm:$0xff]
    %v1279 = vld [vmem:[#allocation5 + $0x2588] sm:$0xff]
    %v1280 = vld [vmem:[#allocation5 + $0x2590] sm:$0xff]
    %v1281 = vld [vmem:[#allocation5 + $0x2598] sm:$0xff]
    %v1282 = vld [vmem:[#allocation5 + $0x25a0] sm:$0xff]
    %v1283 = vld [vmem:[#allocation5 + $0x25a8] sm:$0xff]
    %v1284 = vld [vmem:[#allocation5 + $0x25b0] sm:$0xff]
    %v1285 = vld [vmem:[#allocation5 + $0x25b8] sm:$0xff]
    %v1286 = vld [vmem:[#allocation5 + $0x25c0] sm:$0xff]
    %v1287 = vld [vmem:[#allocation5 + $0x25c8] sm:$0xff]
    %v1288 = vld [vmem:[#allocation5 + $0x25d0] sm:$0xff]
    %v1289 = vld [vmem:[#allocation5 + $0x25d8] sm:$0xff]
    %v1290 = vld [vmem:[#allocation5 + $0x25e0] sm:$0xff]
    %v1291 = vld [vmem:[#allocation5 + $0x25e8] sm:$0xff]
    %v1292 = vld [vmem:[#allocation5 + $0x25f0] sm:$0xff]
    %v1293 = vld [vmem:[#allocation5 + $0x25f8] sm:$0xff]
    %v1294 = vld [vmem:[#allocation5 + $0x2600] sm:$0xff]
    %v1295 = vld [vmem:[#allocation5 + $0x2608] sm:$0xff]
    %v1296 = vld [vmem:[#allocation5 + $0x2610] sm:$0xff]
    %v1297 = vld [vmem:[#allocation5 + $0x2618] sm:$0xff]
    %v1298 = vld [vmem:[#allocation5 + $0x2620] sm:$0xff]
    %v1299 = vld [vmem:[#allocation5 + $0x2628] sm:$0xff]
    %v1300 = vld [vmem:[#allocation5 + $0x2630] sm:$0xff]
    %v1301 = vld [vmem:[#allocation5 + $0x2638] sm:$0xff]
    %v1302 = vld [vmem:[#allocation5 + $0x2640] sm:$0xff]
    %v1303 = vld [vmem:[#allocation5 + $0x2648] sm:$0xff]
    %v1304 = vld [vmem:[#allocation5 + $0x2650] sm:$0xff]
    %v1305 = vld [vmem:[#allocation5 + $0x2658] sm:$0xff]
    %v1306 = vld [vmem:[#allocation5 + $0x2660] sm:$0xff]
    %v1307 = vld [vmem:[#allocation5 + $0x2668] sm:$0xff]
    %v1308 = vld [vmem:[#allocation5 + $0x2670] sm:$0xff]
    %v1309 = vld [vmem:[#allocation5 + $0x2678] sm:$0xff]
    %v1310 = vld [vmem:[#allocation5 + $0x2680] sm:$0xff]
    %v1311 = vld [vmem:[#allocation5 + $0x2688] sm:$0xff]
    %v1312 = vld [vmem:[#allocation5 + $0x2690] sm:$0xff]
    %v1313 = vld [vmem:[#allocation5 + $0x2698] sm:$0xff]
    %v1314 = vld [vmem:[#allocation5 + $0x26a0] sm:$0xff]
    %v1315 = vld [vmem:[#allocation5 + $0x26a8] sm:$0xff]
    %v1316 = vld [vmem:[#allocation5 + $0x26b0] sm:$0xff]
    %v1317 = vld [vmem:[#allocation5 + $0x26b8] sm:$0xff]
    %v1318 = vld [vmem:[#allocation5 + $0x26c0] sm:$0xff]
    %v1319 = vld [vmem:[#allocation5 + $0x26c8] sm:$0xff]
    %v1320 = vld [vmem:[#allocation5 + $0x26d0] sm:$0xff]
    %v1321 = vld [vmem:[#allocation5 + $0x26d8] sm:$0xff]
    %v1322 = vld [vmem:[#allocation5 + $0x26e0] sm:$0xff]
    %v1323 = vld [vmem:[#allocation5 + $0x26e8] sm:$0xff]
    %v1324 = vld [vmem:[#allocation5 + $0x26f0] sm:$0xff]
    %v1325 = vld [vmem:[#allocation5 + $0x26f8] sm:$0xff]
    %v1326 = vld [vmem:[#allocation5 + $0x2700] sm:$0xff]
    %v1327 = vld [vmem:[#allocation5 + $0x2708] sm:$0xff]
    %v1328 = vld [vmem:[#allocation5 + $0x2710] sm:$0xff]
    %v1329 = vld [vmem:[#allocation5 + $0x2718] sm:$0xff]
    %v1330 = vld [vmem:[#allocation5 + $0x2720] sm:$0xff]
    %v1331 = vld [vmem:[#allocation5 + $0x2728] sm:$0xff]
    %v1332 = vld [vmem:[#allocation5 + $0x2730] sm:$0xff]
    %v1333 = vld [vmem:[#allocation5 + $0x2738] sm:$0xff]
    %v1334 = vld [vmem:[#allocation5 + $0x2740] sm:$0xff]
    %v1335 = vld [vmem:[#allocation5 + $0x2748] sm:$0xff]
    %v1336 = vld [vmem:[#allocation5 + $0x2750] sm:$0xff]
    %v1337 = vld [vmem:[#allocation5 + $0x2758] sm:$0xff]
    %v1338 = vld [vmem:[#allocation5 + $0x2760] sm:$0xff]
    %v1339 = vld [vmem:[#allocation5 + $0x2768] sm:$0xff]
    %v1340 = vld [vmem:[#allocation5 + $0x2770] sm:$0xff]
    %v1341 = vld [vmem:[#allocation5 + $0x2778] sm:$0xff]
    %v1342 = vld [vmem:[#allocation5 + $0x2780] sm:$0xff]
    %v1343 = vld [vmem:[#allocation5 + $0x2788] sm:$0xff]
    %v1344 = vld [vmem:[#allocation5 + $0x2790] sm:$0xff]
    %v1345 = vld [vmem:[#allocation5 + $0x2798] sm:$0xff]
    %v1346 = vld [vmem:[#allocation5 + $0x27a0] sm:$0xff]
    %v1347 = vld [vmem:[#allocation5 + $0x27a8] sm:$0xff]
    %v1348 = vld [vmem:[#allocation5 + $0x27b0] sm:$0xff]
    %v1349 = vld [vmem:[#allocation5 + $0x27b8] sm:$0xff]
    %v1350 = vld [vmem:[#allocation5 + $0x27c0] sm:$0xff]
    %v1351 = vld [vmem:[#allocation5 + $0x27c8] sm:$0xff]
    %v1352 = vld [vmem:[#allocation5 + $0x27d0] sm:$0xff]
    %v1353 = vld [vmem:[#allocation5 + $0x27d8] sm:$0xff]
    %v1354 = vld [vmem:[#allocation5 + $0x27e0] sm:$0xff]
    %v1355 = vld [vmem:[#allocation5 + $0x27e8] sm:$0xff]
    %v1356 = vld [vmem:[#allocation5 + $0x27f0] sm:$0xff]
    %v1357 = vld [vmem:[#allocation5 + $0x27f8] sm:$0xff]
    %v1358 = vld [vmem:[#allocation5 + $0x2800] sm:$0xff]
    %v1359 = vld [vmem:[#allocation5 + $0x2808] sm:$0xff]
    %v1360 = vld [vmem:[#allocation5 + $0x2810] sm:$0xff]
    %v1361 = vld [vmem:[#allocation5 + $0x2818] sm:$0xff]
    %v1362 = vld [vmem:[#allocation5 + $0x2820] sm:$0xff]
    %v1363 = vld [vmem:[#allocation5 + $0x2828] sm:$0xff]
    %v1364 = vld [vmem:[#allocation5 + $0x2830] sm:$0xff]
    %v1365 = vld [vmem:[#allocation5 + $0x2838] sm:$0xff]
    %v1366 = vld [vmem:[#allocation5 + $0x2840] sm:$0xff]
    %v1367 = vld [vmem:[#allocation5 + $0x2848] sm:$0xff]
    %v1368 = vld [vmem:[#allocation5 + $0x2850] sm:$0xff]
    %v1369 = vld [vmem:[#allocation5 + $0x2858] sm:$0xff]
    %v1370 = vld [vmem:[#allocation5 + $0x2860] sm:$0xff]
    %v1371 = vld [vmem:[#allocation5 + $0x2868] sm:$0xff]
    %v1372 = vld [vmem:[#allocation5 + $0x2870] sm:$0xff]
    %v1373 = vld [vmem:[#allocation5 + $0x2878] sm:$0xff]
    %v1374 = vld [vmem:[#allocation5 + $0x2880] sm:$0xff]
    %v1375 = vld [vmem:[#allocation5 + $0x2888] sm:$0xff]
    %v1376 = vld [vmem:[#allocation5 + $0x2890] sm:$0xff]
    %v1377 = vld [vmem:[#allocation5 + $0x2898] sm:$0xff]
    %v1378 = vld [vmem:[#allocation5 + $0x28a0] sm:$0xff]
    %v1379 = vld [vmem:[#allocation5 + $0x28a8] sm:$0xff]
    %v1380 = vld [vmem:[#allocation5 + $0x28b0] sm:$0xff]
    %v1381 = vld [vmem:[#allocation5 + $0x28b8] sm:$0xff]
    %v1382 = vld [vmem:[#allocation5 + $0x28c0] sm:$0xff]
    %v1383 = vld [vmem:[#allocation5 + $0x28c8] sm:$0xff]
    %v1384 = vld [vmem:[#allocation5 + $0x28d0] sm:$0xff]
    %v1385 = vld [vmem:[#allocation5 + $0x28d8] sm:$0xff]
    %v1386 = vld [vmem:[#allocation5 + $0x28e0] sm:$0xff]
    %v1387 = vld [vmem:[#allocation5 + $0x28e8] sm:$0xff]
    %v1388 = vld [vmem:[#allocation5 + $0x28f0] sm:$0xff]
    %v1389 = vld [vmem:[#allocation5 + $0x28f8] sm:$0xff]
    %v1390 = vld [vmem:[#allocation5 + $0x2900] sm:$0xff]
    %v1391 = vld [vmem:[#allocation5 + $0x2908] sm:$0xff]
    %v1392 = vld [vmem:[#allocation5 + $0x2910] sm:$0xff]
    %v1393 = vld [vmem:[#allocation5 + $0x2918] sm:$0xff]
    %v1394 = vld [vmem:[#allocation5 + $0x2920] sm:$0xff]
    %v1395 = vld [vmem:[#allocation5 + $0x2928] sm:$0xff]
    %v1396 = vld [vmem:[#allocation5 + $0x2930] sm:$0xff]
    %v1397 = vld [vmem:[#allocation5 + $0x2938] sm:$0xff]
    %v1398 = vld [vmem:[#allocation5 + $0x2940] sm:$0xff]
    %v1399 = vld [vmem:[#allocation5 + $0x2948] sm:$0xff]
    %v1400 = vld [vmem:[#allocation5 + $0x2950] sm:$0xff]
    %v1401 = vld [vmem:[#allocation5 + $0x2958] sm:$0xff]
    %v1402 = vld [vmem:[#allocation5 + $0x2960] sm:$0xff]
    %v1403 = vld [vmem:[#allocation5 + $0x2968] sm:$0xff]
    %v1404 = vld [vmem:[#allocation5 + $0x2970] sm:$0xff]
    %v1405 = vld [vmem:[#allocation5 + $0x2978] sm:$0xff]
    %v1406 = vld [vmem:[#allocation5 + $0x2980] sm:$0xff]
    %v1407 = vld [vmem:[#allocation5 + $0x2988] sm:$0xff]
    %v1408 = vld [vmem:[#allocation5 + $0x2990] sm:$0xff]
    %v1409 = vld [vmem:[#allocation5 + $0x2998] sm:$0xff]
    %v1410 = vld [vmem:[#allocation5 + $0x29a0] sm:$0xff]
    %v1411 = vld [vmem:[#allocation5 + $0x29a8] sm:$0xff]
    %v1412 = vld [vmem:[#allocation5 + $0x29b0] sm:$0xff]
    %v1413 = vld [vmem:[#allocation5 + $0x29b8] sm:$0xff]
    %v1414 = vld [vmem:[#allocation5 + $0x29c0] sm:$0xff]
    %v1415 = vld [vmem:[#allocation5 + $0x29c8] sm:$0xff]
    %v1416 = vld [vmem:[#allocation5 + $0x29d0] sm:$0xff]
    %v1417 = vld [vmem:[#allocation5 + $0x29d8] sm:$0xff]
    %v1418 = vld [vmem:[#allocation5 + $0x29e0] sm:$0xff]
    %v1419 = vld [vmem:[#allocation5 + $0x29e8] sm:$0xff]
    %v1420 = vld [vmem:[#allocation5 + $0x29f0] sm:$0xff]
    %v1421 = vld [vmem:[#allocation5 + $0x29f8] sm:$0xff]
    %v1422 = vld [vmem:[#allocation5 + $0x2a00] sm:$0xff]
    %v1423 = vld [vmem:[#allocation5 + $0x2a08] sm:$0xff]
    %v1424 = vld [vmem:[#allocation5 + $0x2a10] sm:$0xff]
    %v1425 = vld [vmem:[#allocation5 + $0x2a18] sm:$0xff]
    %v1426 = vld [vmem:[#allocation5 + $0x2a20] sm:$0xff]
    %v1427 = vld [vmem:[#allocation5 + $0x2a28] sm:$0xff]
    %v1428 = vld [vmem:[#allocation5 + $0x2a30] sm:$0xff]
    %v1429 = vld [vmem:[#allocation5 + $0x2a38] sm:$0xff]
    %v1430 = vld [vmem:[#allocation5 + $0x2a40] sm:$0xff]
    %v1431 = vld [vmem:[#allocation5 + $0x2a48] sm:$0xff]
    %v1432 = vld [vmem:[#allocation5 + $0x2a50] sm:$0xff]
    %v1433 = vld [vmem:[#allocation5 + $0x2a58] sm:$0xff]
    %v1434 = vld [vmem:[#allocation5 + $0x2a60] sm:$0xff]
    %v1435 = vld [vmem:[#allocation5 + $0x2a68] sm:$0xff]
    %v1436 = vld [vmem:[#allocation5 + $0x2a70] sm:$0xff]
    %v1437 = vld [vmem:[#allocation5 + $0x2a78] sm:$0xff]
    %v1438 = vld [vmem:[#allocation5 + $0x2a80] sm:$0xff]
    %v1439 = vld [vmem:[#allocation5 + $0x2a88] sm:$0xff]
    %v1440 = vld [vmem:[#allocation5 + $0x2a90] sm:$0xff]
    %v1441 = vld [vmem:[#allocation5 + $0x2a98] sm:$0xff]
    %v1442 = vld [vmem:[#allocation5 + $0x2aa0] sm:$0xff]
    %v1443 = vld [vmem:[#allocation5 + $0x2aa8] sm:$0xff]
    %v1444 = vld [vmem:[#allocation5 + $0x2ab0] sm:$0xff]
    %v1445 = vld [vmem:[#allocation5 + $0x2ab8] sm:$0xff]
    %v1446 = vld [vmem:[#allocation5 + $0x2ac0] sm:$0xff]
    %v1447 = vld [vmem:[#allocation5 + $0x2ac8] sm:$0xff]
    %v1448 = vld [vmem:[#allocation5 + $0x2ad0] sm:$0xff]
    %v1449 = vld [vmem:[#allocation5 + $0x2ad8] sm:$0xff]
    %v1450 = vld [vmem:[#allocation5 + $0x2ae0] sm:$0xff]
    %v1451 = vld [vmem:[#allocation5 + $0x2ae8] sm:$0xff]
    %v1452 = vld [vmem:[#allocation5 + $0x2af0] sm:$0xff]
    %v1453 = vld [vmem:[#allocation5 + $0x2af8] sm:$0xff]
    %v1454 = vld [vmem:[#allocation5 + $0x2b00] sm:$0xff]
    %v1455 = vld [vmem:[#allocation5 + $0x2b08] sm:$0xff]
    %v1456 = vld [vmem:[#allocation5 + $0x2b10] sm:$0xff]
    %v1457 = vld [vmem:[#allocation5 + $0x2b18] sm:$0xff]
    %v1458 = vld [vmem:[#allocation5 + $0x2b20] sm:$0xff]
    %v1459 = vld [vmem:[#allocation5 + $0x2b28] sm:$0xff]
    %v1460 = vld [vmem:[#allocation5 + $0x2b30] sm:$0xff]
    %v1461 = vld [vmem:[#allocation5 + $0x2b38] sm:$0xff]
    %v1462 = vld [vmem:[#allocation5 + $0x2b40] sm:$0xff]
    %v1463 = vld [vmem:[#allocation5 + $0x2b48] sm:$0xff]
    %v1464 = vld [vmem:[#allocation5 + $0x2b50] sm:$0xff]
    %v1465 = vld [vmem:[#allocation5 + $0x2b58] sm:$0xff]
    %v1466 = vld [vmem:[#allocation5 + $0x2b60] sm:$0xff]
    %v1467 = vld [vmem:[#allocation5 + $0x2b68] sm:$0xff]
    %v1468 = vld [vmem:[#allocation5 + $0x2b70] sm:$0xff]
    %v1469 = vld [vmem:[#allocation5 + $0x2b78] sm:$0xff]
    %v1470 = vld [vmem:[#allocation5 + $0x2b80] sm:$0xff]
    %v1471 = vld [vmem:[#allocation5 + $0x2b88] sm:$0xff]
    %v1472 = vld [vmem:[#allocation5 + $0x2b90] sm:$0xff]
    %v1473 = vld [vmem:[#allocation5 + $0x2b98] sm:$0xff]
    %v1474 = vld [vmem:[#allocation5 + $0x2ba0] sm:$0xff]
    %v1475 = vld [vmem:[#allocation5 + $0x2ba8] sm:$0xff]
    %v1476 = vld [vmem:[#allocation5 + $0x2bb0] sm:$0xff]
    %v1477 = vld [vmem:[#allocation5 + $0x2bb8] sm:$0xff]
    %v1478 = vld [vmem:[#allocation5 + $0x2bc0] sm:$0xff]
    %v1479 = vld [vmem:[#allocation5 + $0x2bc8] sm:$0xff]
    %v1480 = vld [vmem:[#allocation5 + $0x2bd0] sm:$0xff]
    %v1481 = vld [vmem:[#allocation5 + $0x2bd8] sm:$0xff]
    %v1482 = vld [vmem:[#allocation5 + $0x2be0] sm:$0xff]
    %v1483 = vld [vmem:[#allocation5 + $0x2be8] sm:$0xff]
    %v1484 = vld [vmem:[#allocation5 + $0x2bf0] sm:$0xff]
    %v1485 = vld [vmem:[#allocation5 + $0x2bf8] sm:$0xff]
    %v1486 = vld [vmem:[#allocation5 + $0x2c00] sm:$0xff]
    %v1487 = vld [vmem:[#allocation5 + $0x2c08] sm:$0xff]
    %v1488 = vld [vmem:[#allocation5 + $0x2c10] sm:$0xff]
    %v1489 = vld [vmem:[#allocation5 + $0x2c18] sm:$0xff]
    %v1490 = vld [vmem:[#allocation5 + $0x2c20] sm:$0xff]
    %v1491 = vld [vmem:[#allocation5 + $0x2c28] sm:$0xff]
    %v1492 = vld [vmem:[#allocation5 + $0x2c30] sm:$0xff]
    %v1493 = vld [vmem:[#allocation5 + $0x2c38] sm:$0xff]
    %v1494 = vld [vmem:[#allocation5 + $0x2c40] sm:$0xff]
    %v1495 = vld [vmem:[#allocation5 + $0x2c48] sm:$0xff]
    %v1496 = vld [vmem:[#allocation5 + $0x2c50] sm:$0xff]
    %v1497 = vld [vmem:[#allocation5 + $0x2c58] sm:$0xff]
    %v1498 = vld [vmem:[#allocation5 + $0x2c60] sm:$0xff]
    %v1499 = vld [vmem:[#allocation5 + $0x2c68] sm:$0xff]
    %v1500 = vld [vmem:[#allocation5 + $0x2c70] sm:$0xff]
    %v1501 = vld [vmem:[#allocation5 + $0x2c78] sm:$0xff]
    %v1502 = vld [vmem:[#allocation5 + $0x2c80] sm:$0xff]
    %v1503 = vld [vmem:[#allocation5 + $0x2c88] sm:$0xff]
    %v1504 = vld [vmem:[#allocation5 + $0x2c90] sm:$0xff]
    %v1505 = vld [vmem:[#allocation5 + $0x2c98] sm:$0xff]
    %v1506 = vld [vmem:[#allocation5 + $0x2ca0] sm:$0xff]
    %v1507 = vld [vmem:[#allocation5 + $0x2ca8] sm:$0xff]
    %v1508 = vld [vmem:[#allocation5 + $0x2cb0] sm:$0xff]
    %v1509 = vld [vmem:[#allocation5 + $0x2cb8] sm:$0xff]
    %v1510 = vld [vmem:[#allocation5 + $0x2cc0] sm:$0xff]
    %v1511 = vld [vmem:[#allocation5 + $0x2cc8] sm:$0xff]
    %v1512 = vld [vmem:[#allocation5 + $0x2cd0] sm:$0xff]
    %v1513 = vld [vmem:[#allocation5 + $0x2cd8] sm:$0xff]
    %v1514 = vld [vmem:[#allocation5 + $0x2ce0] sm:$0xff]
    %v1515 = vld [vmem:[#allocation5 + $0x2ce8] sm:$0xff]
    %v1516 = vld [vmem:[#allocation5 + $0x2cf0] sm:$0xff]
    %v1517 = vld [vmem:[#allocation5 + $0x2cf8] sm:$0xff]
    %v1518 = vld [vmem:[#allocation5 + $0x2d00] sm:$0xff]
    %v1519 = vld [vmem:[#allocation5 + $0x2d08] sm:$0xff]
    %v1520 = vld [vmem:[#allocation5 + $0x2d10] sm:$0xff]
    %v1521 = vld [vmem:[#allocation5 + $0x2d18] sm:$0xff]
    %v1522 = vld [vmem:[#allocation5 + $0x2d20] sm:$0xff]
    %v1523 = vld [vmem:[#allocation5 + $0x2d28] sm:$0xff]
    %v1524 = vld [vmem:[#allocation5 + $0x2d30] sm:$0xff]
    %v1525 = vld [vmem:[#allocation5 + $0x2d38] sm:$0xff]
    %v1526 = vld [vmem:[#allocation5 + $0x2d40] sm:$0xff]
    %v1527 = vld [vmem:[#allocation5 + $0x2d48] sm:$0xff]
    %v1528 = vld [vmem:[#allocation5 + $0x2d50] sm:$0xff]
    %v1529 = vld [vmem:[#allocation5 + $0x2d58] sm:$0xff]
    %v1530 = vld [vmem:[#allocation5 + $0x2d60] sm:$0xff]
    %v1531 = vld [vmem:[#allocation5 + $0x2d68] sm:$0xff]
    %v1532 = vld [vmem:[#allocation5 + $0x2d70] sm:$0xff]
    %v1533 = vld [vmem:[#allocation5 + $0x2d78] sm:$0xff]
    %v1534 = vld [vmem:[#allocation5 + $0x2d80] sm:$0xff]
    %v1535 = vld [vmem:[#allocation5 + $0x2d88] sm:$0xff]
    %v1536 = vld [vmem:[#allocation5 + $0x2d90] sm:$0xff]
    %v1537 = vld [vmem:[#allocation5 + $0x2d98] sm:$0xff]
    %v1538 = vld [vmem:[#allocation5 + $0x2da0] sm:$0xff]
    %v1539 = vld [vmem:[#allocation5 + $0x2da8] sm:$0xff]
    %v1540 = vld [vmem:[#allocation5 + $0x2db0] sm:$0xff]
    %v1541 = vld [vmem:[#allocation5 + $0x2db8] sm:$0xff]
    %v1542 = vld [vmem:[#allocation5 + $0x2dc0] sm:$0xff]
    %v1543 = vld [vmem:[#allocation5 + $0x2dc8] sm:$0xff]
    %v1544 = vld [vmem:[#allocation5 + $0x2dd0] sm:$0xff]
    %v1545 = vld [vmem:[#allocation5 + $0x2dd8] sm:$0xff]
    %v1546 = vld [vmem:[#allocation5 + $0x2de0] sm:$0xff]
    %v1547 = vld [vmem:[#allocation5 + $0x2de8] sm:$0xff]
    %v1548 = vld [vmem:[#allocation5 + $0x2df0] sm:$0xff]
    %v1549 = vld [vmem:[#allocation5 + $0x2df8] sm:$0xff]
    %v1550 = vld [vmem:[#allocation5 + $0x2e00] sm:$0xff]
    %v1551 = vld [vmem:[#allocation5 + $0x2e08] sm:$0xff]
    %v1552 = vld [vmem:[#allocation5 + $0x2e10] sm:$0xff]
    %v1553 = vld [vmem:[#allocation5 + $0x2e18] sm:$0xff]
    %v1554 = vld [vmem:[#allocation5 + $0x2e20] sm:$0xff]
    %v1555 = vld [vmem:[#allocation5 + $0x2e28] sm:$0xff]
    %v1556 = vld [vmem:[#allocation5 + $0x2e30] sm:$0xff]
    %v1557 = vld [vmem:[#allocation5 + $0x2e38] sm:$0xff]
    %v1558 = vld [vmem:[#allocation5 + $0x2e40] sm:$0xff]
    %v1559 = vld [vmem:[#allocation5 + $0x2e48] sm:$0xff]
    %v1560 = vld [vmem:[#allocation5 + $0x2e50] sm:$0xff]
    %v1561 = vld [vmem:[#allocation5 + $0x2e58] sm:$0xff]
    %v1562 = vld [vmem:[#allocation5 + $0x2e60] sm:$0xff]
    %v1563 = vld [vmem:[#allocation5 + $0x2e68] sm:$0xff]
    %v1564 = vld [vmem:[#allocation5 + $0x2e70] sm:$0xff]
    %v1565 = vld [vmem:[#allocation5 + $0x2e78] sm:$0xff]
    %v1566 = vld [vmem:[#allocation5 + $0x2e80] sm:$0xff]
    %v1567 = vld [vmem:[#allocation5 + $0x2e88] sm:$0xff]
    %v1568 = vld [vmem:[#allocation5 + $0x2e90] sm:$0xff]
    %v1569 = vld [vmem:[#allocation5 + $0x2e98] sm:$0xff]
    %v1570 = vld [vmem:[#allocation5 + $0x2ea0] sm:$0xff]
    %v1571 = vld [vmem:[#allocation5 + $0x2ea8] sm:$0xff]
    %v1572 = vld [vmem:[#allocation5 + $0x2eb0] sm:$0xff]
    %v1573 = vld [vmem:[#allocation5 + $0x2eb8] sm:$0xff]
    %v1574 = vld [vmem:[#allocation5 + $0x2ec0] sm:$0xff]
    %v1575 = vld [vmem:[#allocation5 + $0x2ec8] sm:$0xff]
    %v1576 = vld [vmem:[#allocation5 + $0x2ed0] sm:$0xff]
    %v1577 = vld [vmem:[#allocation5 + $0x2ed8] sm:$0xff]
    %v1578 = vld [vmem:[#allocation5 + $0x2ee0] sm:$0xff]
    %v1579 = vld [vmem:[#allocation5 + $0x2ee8] sm:$0xff]
    %v1580 = vld [vmem:[#allocation5 + $0x2ef0] sm:$0xff]
    %v1581 = vld [vmem:[#allocation5 + $0x2ef8] sm:$0xff]
    %v1582 = vld [vmem:[#allocation5 + $0x2f00] sm:$0xff]
    %v1583 = vld [vmem:[#allocation5 + $0x2f08] sm:$0xff]
    %v1584 = vld [vmem:[#allocation5 + $0x2f10] sm:$0xff]
    %v1585 = vld [vmem:[#allocation5 + $0x2f18] sm:$0xff]
    %v1586 = vld [vmem:[#allocation5 + $0x2f20] sm:$0xff]
    %v1587 = vld [vmem:[#allocation5 + $0x2f28] sm:$0xff]
    %v1588 = vld [vmem:[#allocation5 + $0x2f30] sm:$0xff]
    %v1589 = vld [vmem:[#allocation5 + $0x2f38] sm:$0xff]
    %v1590 = vld [vmem:[#allocation5 + $0x2f40] sm:$0xff]
    %v1591 = vld [vmem:[#allocation5 + $0x2f48] sm:$0xff]
    %v1592 = vld [vmem:[#allocation5 + $0x2f50] sm:$0xff]
    %v1593 = vld [vmem:[#allocation5 + $0x2f58] sm:$0xff]
    %v1594 = vld [vmem:[#allocation5 + $0x2f60] sm:$0xff]
    %v1595 = vld [vmem:[#allocation5 + $0x2f68] sm:$0xff]
    %v1596 = vld [vmem:[#allocation5 + $0x2f70] sm:$0xff]
    %v1597 = vld [vmem:[#allocation5 + $0x2f78] sm:$0xff]
    %v1598 = vld [vmem:[#allocation5 + $0x2f80] sm:$0xff]
    %v1599 = vld [vmem:[#allocation5 + $0x2f88] sm:$0xff]
    %v1600 = vld [vmem:[#allocation5 + $0x2f90] sm:$0xff]
    %v1601 = vld [vmem:[#allocation5 + $0x2f98] sm:$0xff]
    %v1602 = vld [vmem:[#allocation5 + $0x2fa0] sm:$0xff]
    %v1603 = vld [vmem:[#allocation5 + $0x2fa8] sm:$0xff]
    %v1604 = vld [vmem:[#allocation5 + $0x2fb0] sm:$0xff]
    %v1605 = vld [vmem:[#allocation5 + $0x2fb8] sm:$0xff]
    %v1606 = vld [vmem:[#allocation5 + $0x2fc0] sm:$0xff]
    %v1607 = vld [vmem:[#allocation5 + $0x2fc8] sm:$0xff]
    %v1608 = vld [vmem:[#allocation5 + $0x2fd0] sm:$0xff]
    %v1609 = vld [vmem:[#allocation5 + $0x2fd8] sm:$0xff]
    %v1610 = vld [vmem:[#allocation5 + $0x2fe0] sm:$0xff]
    %v1611 = vld [vmem:[#allocation5 + $0x2fe8] sm:$0xff]
    %v1612 = vld [vmem:[#allocation5 + $0x2ff0] sm:$0xff]
    %v1613 = vld [vmem:[#allocation5 + $0x2ff8] sm:$0xff]
    %v1614 = vld [vmem:[#allocation7] sm:$0xff]
    %v1615 = vld [vmem:[#allocation7 + $0x8] sm:$0xff]
    %v1616 = vld [vmem:[#allocation7 + $0x10] sm:$0xff]
    %v1617 = vld [vmem:[#allocation7 + $0x18] sm:$0xff]
    %v1622 = vlaneseq
    %v1623 = vshrl.u32 %v1622, 7
    %v1624 = vsub.s32 0, %v1623
    %v1625 = vrot.slane %v1614, %v1624
    %v1626 = vlaneseq
    %v1627 = vshrl.u32 %v1626, 7
    %v1628 = vsub.s32 1, %v1627
    %v1629 = vrot.slane %v1614, %v1628
    %v1630 = vlaneseq
    %v1631 = vshrl.u32 %v1630, 7
    %v1632 = vsub.s32 2, %v1631
    %v1633 = vrot.slane %v1614, %v1632
    %v1634 = vlaneseq
    %v1635 = vshrl.u32 %v1634, 7
    %v1636 = vsub.s32 3, %v1635
    %v1637 = vrot.slane %v1614, %v1636
    %v1638 = vlaneseq
    %v1639 = vshrl.u32 %v1638, 7
    %v1640 = vsub.s32 4, %v1639
    %v1641 = vrot.slane %v1614, %v1640
    %v1642 = vlaneseq
    %v1643 = vshrl.u32 %v1642, 7
    %v1644 = vsub.s32 5, %v1643
    %v1645 = vrot.slane %v1614, %v1644
    %v1646 = vlaneseq
    %v1647 = vshrl.u32 %v1646, 7
    %v1648 = vsub.s32 6, %v1647
    %v1649 = vrot.slane %v1614, %v1648
    %v1650 = vlaneseq
    %v1651 = vshrl.u32 %v1650, 7
    %v1652 = vsub.s32 7, %v1651
    %v1653 = vrot.slane %v1614, %v1652
    %v1654 = vlaneseq
    %v1655 = vshrl.u32 %v1654, 7
    %v1656 = vsub.s32 0, %v1655
    %v1657 = vrot.slane %v1615, %v1656
    %v1658 = vlaneseq
    %v1659 = vshrl.u32 %v1658, 7
    %v1660 = vsub.s32 1, %v1659
    %v1661 = vrot.slane %v1615, %v1660
    %v1662 = vlaneseq
    %v1663 = vshrl.u32 %v1662, 7
    %v1664 = vsub.s32 2, %v1663
    %v1665 = vrot.slane %v1615, %v1664
    %v1666 = vlaneseq
    %v1667 = vshrl.u32 %v1666, 7
    %v1668 = vsub.s32 3, %v1667
    %v1669 = vrot.slane %v1615, %v1668
    %v1670 = vlaneseq
    %v1671 = vshrl.u32 %v1670, 7
    %v1672 = vsub.s32 4, %v1671
    %v1673 = vrot.slane %v1615, %v1672
    %v1674 = vlaneseq
    %v1675 = vshrl.u32 %v1674, 7
    %v1676 = vsub.s32 5, %v1675
    %v1677 = vrot.slane %v1615, %v1676
    %v1678 = vlaneseq
    %v1679 = vshrl.u32 %v1678, 7
    %v1680 = vsub.s32 6, %v1679
    %v1681 = vrot.slane %v1615, %v1680
    %v1682 = vlaneseq
    %v1683 = vshrl.u32 %v1682, 7
    %v1684 = vsub.s32 7, %v1683
    %v1685 = vrot.slane %v1615, %v1684
    %v1686 = vlaneseq
    %v1687 = vshrl.u32 %v1686, 7
    %v1688 = vsub.s32 0, %v1687
    %v1689 = vrot.slane %v1616, %v1688
    %v1690 = vlaneseq
    %v1691 = vshrl.u32 %v1690, 7
    %v1692 = vsub.s32 1, %v1691
    %v1693 = vrot.slane %v1616, %v1692
    %v1694 = vlaneseq
    %v1695 = vshrl.u32 %v1694, 7
    %v1696 = vsub.s32 2, %v1695
    %v1697 = vrot.slane %v1616, %v1696
    %v1698 = vlaneseq
    %v1699 = vshrl.u32 %v1698, 7
    %v1700 = vsub.s32 3, %v1699
    %v1701 = vrot.slane %v1616, %v1700
    %v1702 = vlaneseq
    %v1703 = vshrl.u32 %v1702, 7
    %v1704 = vsub.s32 4, %v1703
    %v1705 = vrot.slane %v1616, %v1704
    %v1706 = vlaneseq
    %v1707 = vshrl.u32 %v1706, 7
    %v1708 = vsub.s32 5, %v1707
    %v1709 = vrot.slane %v1616, %v1708
    %v1710 = vlaneseq
    %v1711 = vshrl.u32 %v1710, 7
    %v1712 = vsub.s32 6, %v1711
    %v1713 = vrot.slane %v1616, %v1712
    %v1714 = vlaneseq
    %v1715 = vshrl.u32 %v1714, 7
    %v1716 = vsub.s32 7, %v1715
    %v1717 = vrot.slane %v1616, %v1716
    %v1718 = vlaneseq
    %v1719 = vshrl.u32 %v1718, 7
    %v1720 = vsub.s32 0, %v1719
    %v1721 = vrot.slane %v1617, %v1720
    %v1722 = vlaneseq
    %v1723 = vshrl.u32 %v1722, 7
    %v1724 = vsub.s32 1, %v1723
    %v1725 = vrot.slane %v1617, %v1724
    %v1726 = vlaneseq
    %v1727 = vshrl.u32 %v1726, 7
    %v1728 = vsub.s32 2, %v1727
    %v1729 = vrot.slane %v1617, %v1728
    %v1730 = vlaneseq
    %v1731 = vshrl.u32 %v1730, 7
    %v1732 = vsub.s32 3, %v1731
    %v1733 = vrot.slane %v1617, %v1732
    %v1734 = vlaneseq
    %v1735 = vshrl.u32 %v1734, 7
    %v1736 = vsub.s32 4, %v1735
    %v1737 = vrot.slane %v1617, %v1736
    %v1738 = vlaneseq
    %v1739 = vshrl.u32 %v1738, 7
    %v1740 = vsub.s32 5, %v1739
    %v1741 = vrot.slane %v1617, %v1740
    %v1742 = vlaneseq
    %v1743 = vshrl.u32 %v1742, 7
    %v1744 = vsub.s32 6, %v1743
    %v1745 = vrot.slane %v1617, %v1744
    %v1746 = vlaneseq
    %v1747 = vshrl.u32 %v1746, 7
    %v1748 = vsub.s32 7, %v1747
    %v1749 = vrot.slane %v1617, %v1748
    %v1806 = vunpack.c.l.b16 %v54
    %v1807 = vunpack.c.h.b16 %v54
    %v1808 = vunpack.c.l.b16 %v55
    %v1809 = vunpack.c.h.b16 %v55
    %v1810 = vunpack.c.l.b16 %v56
    %v1811 = vunpack.c.h.b16 %v56
    %v1812 = vunpack.c.l.b16 %v57
    %v1813 = vunpack.c.h.b16 %v57
    %v1814 = vunpack.c.l.b16 %v58
    %v1815 = vunpack.c.h.b16 %v58
    %v1816 = vunpack.c.l.b16 %v59
    %v1817 = vunpack.c.h.b16 %v59
    %v1818 = vunpack.c.l.b16 %v60
    %v1819 = vunpack.c.h.b16 %v60
    %v1820 = vunpack.c.l.b16 %v61
    %v1821 = vunpack.c.h.b16 %v61
    %v1822 = vunpack.c.l.b16 %v62
    %v1823 = vunpack.c.h.b16 %v62
    %v1824 = vunpack.c.l.b16 %v63
    %v1825 = vunpack.c.h.b16 %v63
    %v1826 = vunpack.c.l.b16 %v64
    %v1827 = vunpack.c.h.b16 %v64
    %v1828 = vunpack.c.l.b16 %v65
    %v1829 = vunpack.c.h.b16 %v65
    %v1830 = vunpack.c.l.b16 %v66
    %v1831 = vunpack.c.h.b16 %v66
    %v1832 = vunpack.c.l.b16 %v67
    %v1833 = vunpack.c.h.b16 %v67
    %v1834 = vunpack.c.l.b16 %v68
    %v1835 = vunpack.c.h.b16 %v68
    %v1836 = vunpack.c.l.b16 %v69
    %v1837 = vunpack.c.h.b16 %v69
    %v1838 = vunpack.c.l.b16 %v70
    %v1839 = vunpack.c.h.b16 %v70
    %v1840 = vunpack.c.l.b16 %v71
    %v1841 = vunpack.c.h.b16 %v71
    %v1842 = vunpack.c.l.b16 %v72
    %v1843 = vunpack.c.h.b16 %v72
    %v1844 = vunpack.c.l.b16 %v73
    %v1845 = vunpack.c.h.b16 %v73
    %v1846 = vunpack.c.l.b16 %v74
    %v1847 = vunpack.c.h.b16 %v74
    %v1848 = vunpack.c.l.b16 %v75
    %v1849 = vunpack.c.h.b16 %v75
    %v1850 = vunpack.c.l.b16 %v76
    %v1851 = vunpack.c.h.b16 %v76
    %v1852 = vunpack.c.l.b16 %v77
    %v1853 = vunpack.c.h.b16 %v77
    %v1854 = vpack.c.b16 %v1812, %v1806
    %v1855 = vpack.c.b16 %v1813, %v1807
    %v1856 = vpack.c.b16 %v1814, %v1808
    %v1857 = vpack.c.b16 %v1815, %v1809
    %v1858 = vpack.c.b16 %v1816, %v1810
    %v1859 = vpack.c.b16 %v1817, %v1811
    %v1860 = vpack.c.b16 %v1824, %v1818
    %v1861 = vpack.c.b16 %v1825, %v1819
    %v1862 = vpack.c.b16 %v1826, %v1820
    %v1863 = vpack.c.b16 %v1827, %v1821
    %v1864 = vpack.c.b16 %v1828, %v1822
    %v1865 = vpack.c.b16 %v1829, %v1823
    %v1866 = vpack.c.b16 %v1836, %v1830
    %v1867 = vpack.c.b16 %v1837, %v1831
    %v1868 = vpack.c.b16 %v1838, %v1832
    %v1869 = vpack.c.b16 %v1839, %v1833
    %v1870 = vpack.c.b16 %v1840, %v1834
    %v1871 = vpack.c.b16 %v1841, %v1835
    %v1872 = vpack.c.b16 %v1848, %v1842
    %v1873 = vpack.c.b16 %v1849, %v1843
    %v1874 = vpack.c.b16 %v1850, %v1844
    %v1875 = vpack.c.b16 %v1851, %v1845
    %v1876 = vpack.c.b16 %v1852, %v1846
    %v1877 = vpack.c.b16 %v1853, %v1847
    %v3438 = vunpack.c.l.b16 %v78
    %v3439 = vunpack.c.h.b16 %v78
    %v3440 = vunpack.c.l.b16 %v79
    %v3441 = vunpack.c.h.b16 %v79
    %v3442 = vunpack.c.l.b16 %v80
    %v3443 = vunpack.c.h.b16 %v80
    %v3444 = vunpack.c.l.b16 %v81
    %v3445 = vunpack.c.h.b16 %v81
    %v3446 = vunpack.c.l.b16 %v82
    %v3447 = vunpack.c.h.b16 %v82
    %v3448 = vunpack.c.l.b16 %v83
    %v3449 = vunpack.c.h.b16 %v83
    %v3450 = vunpack.c.l.b16 %v84
    %v3451 = vunpack.c.h.b16 %v84
    %v3452 = vunpack.c.l.b16 %v85
    %v3453 = vunpack.c.h.b16 %v85
    %v3454 = vunpack.c.l.b16 %v86
    %v3455 = vunpack.c.h.b16 %v86
    %v3456 = vunpack.c.l.b16 %v87
    %v3457 = vunpack.c.h.b16 %v87
    %v3458 = vunpack.c.l.b16 %v88
    %v3459 = vunpack.c.h.b16 %v88
    %v3460 = vunpack.c.l.b16 %v89
    %v3461 = vunpack.c.h.b16 %v89
    %v3462 = vunpack.c.l.b16 %v90
    %v3463 = vunpack.c.h.b16 %v90
    %v3464 = vunpack.c.l.b16 %v91
    %v3465 = vunpack.c.h.b16 %v91
    %v3466 = vunpack.c.l.b16 %v92
    %v3467 = vunpack.c.h.b16 %v92
    %v3468 = vunpack.c.l.b16 %v93
    %v3469 = vunpack.c.h.b16 %v93
    %v3470 = vunpack.c.l.b16 %v94
    %v3471 = vunpack.c.h.b16 %v94
    %v3472 = vunpack.c.l.b16 %v95
    %v3473 = vunpack.c.h.b16 %v95
    %v3474 = vunpack.c.l.b16 %v96
    %v3475 = vunpack.c.h.b16 %v96
    %v3476 = vunpack.c.l.b16 %v97
    %v3477 = vunpack.c.h.b16 %v97
    %v3478 = vunpack.c.l.b16 %v98
    %v3479 = vunpack.c.h.b16 %v98
    %v3480 = vunpack.c.l.b16 %v99
    %v3481 = vunpack.c.h.b16 %v99
    %v3482 = vunpack.c.l.b16 %v100
    %v3483 = vunpack.c.h.b16 %v100
    %v3484 = vunpack.c.l.b16 %v101
    %v3485 = vunpack.c.h.b16 %v101
    %v3486 = vunpack.c.l.b16 %v102
    %v3487 = vunpack.c.h.b16 %v102
    %v3488 = vunpack.c.l.b16 %v103
    %v3489 = vunpack.c.h.b16 %v103
    %v3490 = vunpack.c.l.b16 %v104
    %v3491 = vunpack.c.h.b16 %v104
    %v3492 = vunpack.c.l.b16 %v105
    %v3493 = vunpack.c.h.b16 %v105
    %v3494 = vunpack.c.l.b16 %v106
    %v3495 = vunpack.c.h.b16 %v106
    %v3496 = vunpack.c.l.b16 %v107
    %v3497 = vunpack.c.h.b16 %v107
    %v3498 = vunpack.c.l.b16 %v108
    %v3499 = vunpack.c.h.b16 %v108
    %v3500 = vunpack.c.l.b16 %v109
    %v3501 = vunpack.c.h.b16 %v109
    %v3502 = vunpack.c.l.b16 %v110
    %v3503 = vunpack.c.h.b16 %v110
    %v3504 = vunpack.c.l.b16 %v111
    %v3505 = vunpack.c.h.b16 %v111
    %v3506 = vunpack.c.l.b16 %v112
    %v3507 = vunpack.c.h.b16 %v112
    %v3508 = vunpack.c.l.b16 %v113
    %v3509 = vunpack.c.h.b16 %v113
    %v3510 = vunpack.c.l.b16 %v114
    %v3511 = vunpack.c.h.b16 %v114
    %v3512 = vunpack.c.l.b16 %v115
    %v3513 = vunpack.c.h.b16 %v115
    %v3514 = vunpack.c.l.b16 %v116
    %v3515 = vunpack.c.h.b16 %v116
    %v3516 = vunpack.c.l.b16 %v117
    %v3517 = vunpack.c.h.b16 %v117
    %v3518 = vunpack.c.l.b16 %v118
    %v3519 = vunpack.c.h.b16 %v118
    %v3520 = vunpack.c.l.b16 %v119
    %v3521 = vunpack.c.h.b16 %v119
    %v3522 = vunpack.c.l.b16 %v120
    %v3523 = vunpack.c.h.b16 %v120
    %v3524 = vunpack.c.l.b16 %v121
    %v3525 = vunpack.c.h.b16 %v121
    %v3526 = vunpack.c.l.b16 %v122
    %v3527 = vunpack.c.h.b16 %v122
    %v3528 = vunpack.c.l.b16 %v123
    %v3529 = vunpack.c.h.b16 %v123
    %v3530 = vunpack.c.l.b16 %v124
    %v3531 = vunpack.c.h.b16 %v124
    %v3532 = vunpack.c.l.b16 %v125
    %v3533 = vunpack.c.h.b16 %v125
    %v3534 = vunpack.c.l.b16 %v126
    %v3535 = vunpack.c.h.b16 %v126
    %v3536 = vunpack.c.l.b16 %v127
    %v3537 = vunpack.c.h.b16 %v127
    %v3538 = vunpack.c.l.b16 %v128
    %v3539 = vunpack.c.h.b16 %v128
    %v3540 = vunpack.c.l.b16 %v129
    %v3541 = vunpack.c.h.b16 %v129
    %v3542 = vunpack.c.l.b16 %v130
    %v3543 = vunpack.c.h.b16 %v130
    %v3544 = vunpack.c.l.b16 %v131
    %v3545 = vunpack.c.h.b16 %v131
    %v3546 = vunpack.c.l.b16 %v132
    %v3547 = vunpack.c.h.b16 %v132
    %v3548 = vunpack.c.l.b16 %v133
    %v3549 = vunpack.c.h.b16 %v133
    %v3550 = vunpack.c.l.b16 %v134
    %v3551 = vunpack.c.h.b16 %v134
    %v3552 = vunpack.c.l.b16 %v135
    %v3553 = vunpack.c.h.b16 %v135
    %v3554 = vunpack.c.l.b16 %v136
    %v3555 = vunpack.c.h.b16 %v136
    %v3556 = vunpack.c.l.b16 %v137
    %v3557 = vunpack.c.h.b16 %v137
    %v3558 = vunpack.c.l.b16 %v138
    %v3559 = vunpack.c.h.b16 %v138
    %v3560 = vunpack.c.l.b16 %v139
    %v3561 = vunpack.c.h.b16 %v139
    %v3562 = vunpack.c.l.b16 %v140
    %v3563 = vunpack.c.h.b16 %v140
    %v3564 = vunpack.c.l.b16 %v141
    %v3565 = vunpack.c.h.b16 %v141
    %v3566 = vunpack.c.l.b16 %v142
    %v3567 = vunpack.c.h.b16 %v142
    %v3568 = vunpack.c.l.b16 %v143
    %v3569 = vunpack.c.h.b16 %v143
    %v3570 = vunpack.c.l.b16 %v144
    %v3571 = vunpack.c.h.b16 %v144
    %v3572 = vunpack.c.l.b16 %v145
    %v3573 = vunpack.c.h.b16 %v145
    %v3574 = vunpack.c.l.b16 %v146
    %v3575 = vunpack.c.h.b16 %v146
    %v3576 = vunpack.c.l.b16 %v147
    %v3577 = vunpack.c.h.b16 %v147
    %v3578 = vunpack.c.l.b16 %v148
    %v3579 = vunpack.c.h.b16 %v148
    %v3580 = vunpack.c.l.b16 %v149
    %v3581 = vunpack.c.h.b16 %v149
    %v3582 = vunpack.c.l.b16 %v150
    %v3583 = vunpack.c.h.b16 %v150
    %v3584 = vunpack.c.l.b16 %v151
    %v3585 = vunpack.c.h.b16 %v151
    %v3586 = vunpack.c.l.b16 %v152
    %v3587 = vunpack.c.h.b16 %v152
    %v3588 = vunpack.c.l.b16 %v153
    %v3589 = vunpack.c.h.b16 %v153
    %v3590 = vunpack.c.l.b16 %v154
    %v3591 = vunpack.c.h.b16 %v154
    %v3592 = vunpack.c.l.b16 %v155
    %v3593 = vunpack.c.h.b16 %v155
    %v3594 = vunpack.c.l.b16 %v156
    %v3595 = vunpack.c.h.b16 %v156
    %v3596 = vunpack.c.l.b16 %v157
    %v3597 = vunpack.c.h.b16 %v157
    %v3598 = vunpack.c.l.b16 %v158
    %v3599 = vunpack.c.h.b16 %v158
    %v3600 = vunpack.c.l.b16 %v159
    %v3601 = vunpack.c.h.b16 %v159
    %v3602 = vunpack.c.l.b16 %v160
    %v3603 = vunpack.c.h.b16 %v160
    %v3604 = vunpack.c.l.b16 %v161
    %v3605 = vunpack.c.h.b16 %v161
    %v3606 = vunpack.c.l.b16 %v162
    %v3607 = vunpack.c.h.b16 %v162
    %v3608 = vunpack.c.l.b16 %v163
    %v3609 = vunpack.c.h.b16 %v163
    %v3610 = vunpack.c.l.b16 %v164
    %v3611 = vunpack.c.h.b16 %v164
    %v3612 = vunpack.c.l.b16 %v165
    %v3613 = vunpack.c.h.b16 %v165
    %v3614 = vunpack.c.l.b16 %v166
    %v3615 = vunpack.c.h.b16 %v166
    %v3616 = vunpack.c.l.b16 %v167
    %v3617 = vunpack.c.h.b16 %v167
    %v3618 = vunpack.c.l.b16 %v168
    %v3619 = vunpack.c.h.b16 %v168
    %v3620 = vunpack.c.l.b16 %v169
    %v3621 = vunpack.c.h.b16 %v169
    %v3622 = vunpack.c.l.b16 %v170
    %v3623 = vunpack.c.h.b16 %v170
    %v3624 = vunpack.c.l.b16 %v171
    %v3625 = vunpack.c.h.b16 %v171
    %v3626 = vunpack.c.l.b16 %v172
    %v3627 = vunpack.c.h.b16 %v172
    %v3628 = vunpack.c.l.b16 %v173
    %v3629 = vunpack.c.h.b16 %v173
    %v3630 = vunpack.c.l.b16 %v174
    %v3631 = vunpack.c.h.b16 %v174
    %v3632 = vunpack.c.l.b16 %v175
    %v3633 = vunpack.c.h.b16 %v175
    %v3634 = vunpack.c.l.b16 %v176
    %v3635 = vunpack.c.h.b16 %v176
    %v3636 = vunpack.c.l.b16 %v177
    %v3637 = vunpack.c.h.b16 %v177
    %v3638 = vunpack.c.l.b16 %v178
    %v3639 = vunpack.c.h.b16 %v178
    %v3640 = vunpack.c.l.b16 %v179
    %v3641 = vunpack.c.h.b16 %v179
    %v3642 = vunpack.c.l.b16 %v180
    %v3643 = vunpack.c.h.b16 %v180
    %v3644 = vunpack.c.l.b16 %v181
    %v3645 = vunpack.c.h.b16 %v181
    %v3646 = vunpack.c.l.b16 %v182
    %v3647 = vunpack.c.h.b16 %v182
    %v3648 = vunpack.c.l.b16 %v183
    %v3649 = vunpack.c.h.b16 %v183
    %v3650 = vunpack.c.l.b16 %v184
    %v3651 = vunpack.c.h.b16 %v184
    %v3652 = vunpack.c.l.b16 %v185
    %v3653 = vunpack.c.h.b16 %v185
    %v3654 = vunpack.c.l.b16 %v186
    %v3655 = vunpack.c.h.b16 %v186
    %v3656 = vunpack.c.l.b16 %v187
    %v3657 = vunpack.c.h.b16 %v187
    %v3658 = vunpack.c.l.b16 %v188
    %v3659 = vunpack.c.h.b16 %v188
    %v3660 = vunpack.c.l.b16 %v189
    %v3661 = vunpack.c.h.b16 %v189
    %v3662 = vunpack.c.l.b16 %v190
    %v3663 = vunpack.c.h.b16 %v190
    %v3664 = vunpack.c.l.b16 %v191
    %v3665 = vunpack.c.h.b16 %v191
    %v3666 = vunpack.c.l.b16 %v192
    %v3667 = vunpack.c.h.b16 %v192
    %v3668 = vunpack.c.l.b16 %v193
    %v3669 = vunpack.c.h.b16 %v193
    %v3670 = vunpack.c.l.b16 %v194
    %v3671 = vunpack.c.h.b16 %v194
    %v3672 = vunpack.c.l.b16 %v195
    %v3673 = vunpack.c.h.b16 %v195
    %v3674 = vunpack.c.l.b16 %v196
    %v3675 = vunpack.c.h.b16 %v196
    %v3676 = vunpack.c.l.b16 %v197
    %v3677 = vunpack.c.h.b16 %v197
    %v3678 = vunpack.c.l.b16 %v198
    %v3679 = vunpack.c.h.b16 %v198
    %v3680 = vunpack.c.l.b16 %v199
    %v3681 = vunpack.c.h.b16 %v199
    %v3682 = vunpack.c.l.b16 %v200
    %v3683 = vunpack.c.h.b16 %v200
    %v3684 = vunpack.c.l.b16 %v201
    %v3685 = vunpack.c.h.b16 %v201
    %v3686 = vunpack.c.l.b16 %v202
    %v3687 = vunpack.c.h.b16 %v202
    %v3688 = vunpack.c.l.b16 %v203
    %v3689 = vunpack.c.h.b16 %v203
    %v3690 = vunpack.c.l.b16 %v204
    %v3691 = vunpack.c.h.b16 %v204
    %v3692 = vunpack.c.l.b16 %v205
    %v3693 = vunpack.c.h.b16 %v205
    %v3694 = vunpack.c.l.b16 %v206
    %v3695 = vunpack.c.h.b16 %v206
    %v3696 = vunpack.c.l.b16 %v207
    %v3697 = vunpack.c.h.b16 %v207
    %v3698 = vunpack.c.l.b16 %v208
    %v3699 = vunpack.c.h.b16 %v208
    %v3700 = vunpack.c.l.b16 %v209
    %v3701 = vunpack.c.h.b16 %v209
    %v3702 = vunpack.c.l.b16 %v210
    %v3703 = vunpack.c.h.b16 %v210
    %v3704 = vunpack.c.l.b16 %v211
    %v3705 = vunpack.c.h.b16 %v211
    %v3706 = vunpack.c.l.b16 %v212
    %v3707 = vunpack.c.h.b16 %v212
    %v3708 = vunpack.c.l.b16 %v213
    %v3709 = vunpack.c.h.b16 %v213
    %v3710 = vunpack.c.l.b16 %v214
    %v3711 = vunpack.c.h.b16 %v214
    %v3712 = vunpack.c.l.b16 %v215
    %v3713 = vunpack.c.h.b16 %v215
    %v3714 = vunpack.c.l.b16 %v216
    %v3715 = vunpack.c.h.b16 %v216
    %v3716 = vunpack.c.l.b16 %v217
    %v3717 = vunpack.c.h.b16 %v217
    %v3718 = vunpack.c.l.b16 %v218
    %v3719 = vunpack.c.h.b16 %v218
    %v3720 = vunpack.c.l.b16 %v219
    %v3721 = vunpack.c.h.b16 %v219
    %v3722 = vunpack.c.l.b16 %v220
    %v3723 = vunpack.c.h.b16 %v220
    %v3724 = vunpack.c.l.b16 %v221
    %v3725 = vunpack.c.h.b16 %v221
    %v3726 = vunpack.c.l.b16 %v222
    %v3727 = vunpack.c.h.b16 %v222
    %v3728 = vunpack.c.l.b16 %v223
    %v3729 = vunpack.c.h.b16 %v223
    %v3730 = vunpack.c.l.b16 %v224
    %v3731 = vunpack.c.h.b16 %v224
    %v3732 = vunpack.c.l.b16 %v225
    %v3733 = vunpack.c.h.b16 %v225
    %v3734 = vunpack.c.l.b16 %v226
    %v3735 = vunpack.c.h.b16 %v226
    %v3736 = vunpack.c.l.b16 %v227
    %v3737 = vunpack.c.h.b16 %v227
    %v3738 = vunpack.c.l.b16 %v228
    %v3739 = vunpack.c.h.b16 %v228
    %v3740 = vunpack.c.l.b16 %v229
    %v3741 = vunpack.c.h.b16 %v229
    %v3742 = vunpack.c.l.b16 %v230
    %v3743 = vunpack.c.h.b16 %v230
    %v3744 = vunpack.c.l.b16 %v231
    %v3745 = vunpack.c.h.b16 %v231
    %v3746 = vunpack.c.l.b16 %v232
    %v3747 = vunpack.c.h.b16 %v232
    %v3748 = vunpack.c.l.b16 %v233
    %v3749 = vunpack.c.h.b16 %v233
    %v3750 = vunpack.c.l.b16 %v234
    %v3751 = vunpack.c.h.b16 %v234
    %v3752 = vunpack.c.l.b16 %v235
    %v3753 = vunpack.c.h.b16 %v235
    %v3754 = vunpack.c.l.b16 %v236
    %v3755 = vunpack.c.h.b16 %v236
    %v3756 = vunpack.c.l.b16 %v237
    %v3757 = vunpack.c.h.b16 %v237
    %v3758 = vunpack.c.l.b16 %v238
    %v3759 = vunpack.c.h.b16 %v238
    %v3760 = vunpack.c.l.b16 %v239
    %v3761 = vunpack.c.h.b16 %v239
    %v3762 = vunpack.c.l.b16 %v240
    %v3763 = vunpack.c.h.b16 %v240
    %v3764 = vunpack.c.l.b16 %v241
    %v3765 = vunpack.c.h.b16 %v241
    %v3766 = vunpack.c.l.b16 %v242
    %v3767 = vunpack.c.h.b16 %v242
    %v3768 = vunpack.c.l.b16 %v243
    %v3769 = vunpack.c.h.b16 %v243
    %v3770 = vunpack.c.l.b16 %v244
    %v3771 = vunpack.c.h.b16 %v244
    %v3772 = vunpack.c.l.b16 %v245
    %v3773 = vunpack.c.h.b16 %v245
    %v3774 = vunpack.c.l.b16 %v246
    %v3775 = vunpack.c.h.b16 %v246
    %v3776 = vunpack.c.l.b16 %v247
    %v3777 = vunpack.c.h.b16 %v247
    %v3778 = vunpack.c.l.b16 %v248
    %v3779 = vunpack.c.h.b16 %v248
    %v3780 = vunpack.c.l.b16 %v249
    %v3781 = vunpack.c.h.b16 %v249
    %v3782 = vunpack.c.l.b16 %v250
    %v3783 = vunpack.c.h.b16 %v250
    %v3784 = vunpack.c.l.b16 %v251
    %v3785 = vunpack.c.h.b16 %v251
    %v3786 = vunpack.c.l.b16 %v252
    %v3787 = vunpack.c.h.b16 %v252
    %v3788 = vunpack.c.l.b16 %v253
    %v3789 = vunpack.c.h.b16 %v253
    %v3790 = vunpack.c.l.b16 %v254
    %v3791 = vunpack.c.h.b16 %v254
    %v3792 = vunpack.c.l.b16 %v255
    %v3793 = vunpack.c.h.b16 %v255
    %v3794 = vunpack.c.l.b16 %v256
    %v3795 = vunpack.c.h.b16 %v256
    %v3796 = vunpack.c.l.b16 %v257
    %v3797 = vunpack.c.h.b16 %v257
    %v3798 = vunpack.c.l.b16 %v258
    %v3799 = vunpack.c.h.b16 %v258
    %v3800 = vunpack.c.l.b16 %v259
    %v3801 = vunpack.c.h.b16 %v259
    %v3802 = vunpack.c.l.b16 %v260
    %v3803 = vunpack.c.h.b16 %v260
    %v3804 = vunpack.c.l.b16 %v261
    %v3805 = vunpack.c.h.b16 %v261
    %v3806 = vunpack.c.l.b16 %v262
    %v3807 = vunpack.c.h.b16 %v262
    %v3808 = vunpack.c.l.b16 %v263
    %v3809 = vunpack.c.h.b16 %v263
    %v3810 = vunpack.c.l.b16 %v264
    %v3811 = vunpack.c.h.b16 %v264
    %v3812 = vunpack.c.l.b16 %v265
    %v3813 = vunpack.c.h.b16 %v265
    %v3814 = vunpack.c.l.b16 %v266
    %v3815 = vunpack.c.h.b16 %v266
    %v3816 = vunpack.c.l.b16 %v267
    %v3817 = vunpack.c.h.b16 %v267
    %v3818 = vunpack.c.l.b16 %v268
    %v3819 = vunpack.c.h.b16 %v268
    %v3820 = vunpack.c.l.b16 %v269
    %v3821 = vunpack.c.h.b16 %v269
    %v3822 = vunpack.c.l.b16 %v270
    %v3823 = vunpack.c.h.b16 %v270
    %v3824 = vunpack.c.l.b16 %v271
    %v3825 = vunpack.c.h.b16 %v271
    %v3826 = vunpack.c.l.b16 %v272
    %v3827 = vunpack.c.h.b16 %v272
    %v3828 = vunpack.c.l.b16 %v273
    %v3829 = vunpack.c.h.b16 %v273
    %v3830 = vunpack.c.l.b16 %v274
    %v3831 = vunpack.c.h.b16 %v274
    %v3832 = vunpack.c.l.b16 %v275
    %v3833 = vunpack.c.h.b16 %v275
    %v3834 = vunpack.c.l.b16 %v276
    %v3835 = vunpack.c.h.b16 %v276
    %v3836 = vunpack.c.l.b16 %v277
    %v3837 = vunpack.c.h.b16 %v277
    %v3838 = vunpack.c.l.b16 %v278
    %v3839 = vunpack.c.h.b16 %v278
    %v3840 = vunpack.c.l.b16 %v279
    %v3841 = vunpack.c.h.b16 %v279
    %v3842 = vunpack.c.l.b16 %v280
    %v3843 = vunpack.c.h.b16 %v280
    %v3844 = vunpack.c.l.b16 %v281
    %v3845 = vunpack.c.h.b16 %v281
    %v3846 = vunpack.c.l.b16 %v282
    %v3847 = vunpack.c.h.b16 %v282
    %v3848 = vunpack.c.l.b16 %v283
    %v3849 = vunpack.c.h.b16 %v283
    %v3850 = vunpack.c.l.b16 %v284
    %v3851 = vunpack.c.h.b16 %v284
    %v3852 = vunpack.c.l.b16 %v285
    %v3853 = vunpack.c.h.b16 %v285
    %v3854 = vunpack.c.l.b16 %v286
    %v3855 = vunpack.c.h.b16 %v286
    %v3856 = vunpack.c.l.b16 %v287
    %v3857 = vunpack.c.h.b16 %v287
    %v3858 = vunpack.c.l.b16 %v288
    %v3859 = vunpack.c.h.b16 %v288
    %v3860 = vunpack.c.l.b16 %v289
    %v3861 = vunpack.c.h.b16 %v289
    %v3862 = vunpack.c.l.b16 %v290
    %v3863 = vunpack.c.h.b16 %v290
    %v3864 = vunpack.c.l.b16 %v291
    %v3865 = vunpack.c.h.b16 %v291
    %v3866 = vunpack.c.l.b16 %v292
    %v3867 = vunpack.c.h.b16 %v292
    %v3868 = vunpack.c.l.b16 %v293
    %v3869 = vunpack.c.h.b16 %v293
    %v3870 = vunpack.c.l.b16 %v294
    %v3871 = vunpack.c.h.b16 %v294
    %v3872 = vunpack.c.l.b16 %v295
    %v3873 = vunpack.c.h.b16 %v295
    %v3874 = vunpack.c.l.b16 %v296
    %v3875 = vunpack.c.h.b16 %v296
    %v3876 = vunpack.c.l.b16 %v297
    %v3877 = vunpack.c.h.b16 %v297
    %v3878 = vunpack.c.l.b16 %v298
    %v3879 = vunpack.c.h.b16 %v298
    %v3880 = vunpack.c.l.b16 %v299
    %v3881 = vunpack.c.h.b16 %v299
    %v3882 = vunpack.c.l.b16 %v300
    %v3883 = vunpack.c.h.b16 %v300
    %v3884 = vunpack.c.l.b16 %v301
    %v3885 = vunpack.c.h.b16 %v301
    %v3886 = vunpack.c.l.b16 %v302
    %v3887 = vunpack.c.h.b16 %v302
    %v3888 = vunpack.c.l.b16 %v303
    %v3889 = vunpack.c.h.b16 %v303
    %v3890 = vunpack.c.l.b16 %v304
    %v3891 = vunpack.c.h.b16 %v304
    %v3892 = vunpack.c.l.b16 %v305
    %v3893 = vunpack.c.h.b16 %v305
    %v3894 = vunpack.c.l.b16 %v306
    %v3895 = vunpack.c.h.b16 %v306
    %v3896 = vunpack.c.l.b16 %v307
    %v3897 = vunpack.c.h.b16 %v307
    %v3898 = vunpack.c.l.b16 %v308
    %v3899 = vunpack.c.h.b16 %v308
    %v3900 = vunpack.c.l.b16 %v309
    %v3901 = vunpack.c.h.b16 %v309
    %v3902 = vunpack.c.l.b16 %v310
    %v3903 = vunpack.c.h.b16 %v310
    %v3904 = vunpack.c.l.b16 %v311
    %v3905 = vunpack.c.h.b16 %v311
    %v3906 = vunpack.c.l.b16 %v312
    %v3907 = vunpack.c.h.b16 %v312
    %v3908 = vunpack.c.l.b16 %v313
    %v3909 = vunpack.c.h.b16 %v313
    %v3910 = vunpack.c.l.b16 %v314
    %v3911 = vunpack.c.h.b16 %v314
    %v3912 = vunpack.c.l.b16 %v315
    %v3913 = vunpack.c.h.b16 %v315
    %v3914 = vunpack.c.l.b16 %v316
    %v3915 = vunpack.c.h.b16 %v316
    %v3916 = vunpack.c.l.b16 %v317
    %v3917 = vunpack.c.h.b16 %v317
    %v3918 = vunpack.c.l.b16 %v318
    %v3919 = vunpack.c.h.b16 %v318
    %v3920 = vunpack.c.l.b16 %v319
    %v3921 = vunpack.c.h.b16 %v319
    %v3922 = vunpack.c.l.b16 %v320
    %v3923 = vunpack.c.h.b16 %v320
    %v3924 = vunpack.c.l.b16 %v321
    %v3925 = vunpack.c.h.b16 %v321
    %v3926 = vunpack.c.l.b16 %v322
    %v3927 = vunpack.c.h.b16 %v322
    %v3928 = vunpack.c.l.b16 %v323
    %v3929 = vunpack.c.h.b16 %v323
    %v3930 = vunpack.c.l.b16 %v324
    %v3931 = vunpack.c.h.b16 %v324
    %v3932 = vunpack.c.l.b16 %v325
    %v3933 = vunpack.c.h.b16 %v325
    %v3934 = vunpack.c.l.b16 %v326
    %v3935 = vunpack.c.h.b16 %v326
    %v3936 = vunpack.c.l.b16 %v327
    %v3937 = vunpack.c.h.b16 %v327
    %v3938 = vunpack.c.l.b16 %v328
    %v3939 = vunpack.c.h.b16 %v328
    %v3940 = vunpack.c.l.b16 %v329
    %v3941 = vunpack.c.h.b16 %v329
    %v3942 = vunpack.c.l.b16 %v330
    %v3943 = vunpack.c.h.b16 %v330
    %v3944 = vunpack.c.l.b16 %v331
    %v3945 = vunpack.c.h.b16 %v331
    %v3946 = vunpack.c.l.b16 %v332
    %v3947 = vunpack.c.h.b16 %v332
    %v3948 = vunpack.c.l.b16 %v333
    %v3949 = vunpack.c.h.b16 %v333
    %v3950 = vunpack.c.l.b16 %v334
    %v3951 = vunpack.c.h.b16 %v334
    %v3952 = vunpack.c.l.b16 %v335
    %v3953 = vunpack.c.h.b16 %v335
    %v3954 = vunpack.c.l.b16 %v336
    %v3955 = vunpack.c.h.b16 %v336
    %v3956 = vunpack.c.l.b16 %v337
    %v3957 = vunpack.c.h.b16 %v337
    %v3958 = vunpack.c.l.b16 %v338
    %v3959 = vunpack.c.h.b16 %v338
    %v3960 = vunpack.c.l.b16 %v339
    %v3961 = vunpack.c.h.b16 %v339
    %v3962 = vunpack.c.l.b16 %v340
    %v3963 = vunpack.c.h.b16 %v340
    %v3964 = vunpack.c.l.b16 %v341
    %v3965 = vunpack.c.h.b16 %v341
    %v3966 = vunpack.c.l.b16 %v342
    %v3967 = vunpack.c.h.b16 %v342
    %v3968 = vunpack.c.l.b16 %v343
    %v3969 = vunpack.c.h.b16 %v343
    %v3970 = vunpack.c.l.b16 %v344
    %v3971 = vunpack.c.h.b16 %v344
    %v3972 = vunpack.c.l.b16 %v345
    %v3973 = vunpack.c.h.b16 %v345
    %v3974 = vunpack.c.l.b16 %v346
    %v3975 = vunpack.c.h.b16 %v346
    %v3976 = vunpack.c.l.b16 %v347
    %v3977 = vunpack.c.h.b16 %v347
    %v3978 = vunpack.c.l.b16 %v348
    %v3979 = vunpack.c.h.b16 %v348
    %v3980 = vunpack.c.l.b16 %v349
    %v3981 = vunpack.c.h.b16 %v349
    %v3982 = vunpack.c.l.b16 %v350
    %v3983 = vunpack.c.h.b16 %v350
    %v3984 = vunpack.c.l.b16 %v351
    %v3985 = vunpack.c.h.b16 %v351
    %v3986 = vunpack.c.l.b16 %v352
    %v3987 = vunpack.c.h.b16 %v352
    %v3988 = vunpack.c.l.b16 %v353
    %v3989 = vunpack.c.h.b16 %v353
    %v3990 = vunpack.c.l.b16 %v354
    %v3991 = vunpack.c.h.b16 %v354
    %v3992 = vunpack.c.l.b16 %v355
    %v3993 = vunpack.c.h.b16 %v355
    %v3994 = vunpack.c.l.b16 %v356
    %v3995 = vunpack.c.h.b16 %v356
    %v3996 = vunpack.c.l.b16 %v357
    %v3997 = vunpack.c.h.b16 %v357
    %v3998 = vunpack.c.l.b16 %v358
    %v3999 = vunpack.c.h.b16 %v358
    %v4000 = vunpack.c.l.b16 %v359
    %v4001 = vunpack.c.h.b16 %v359
    %v4002 = vunpack.c.l.b16 %v360
    %v4003 = vunpack.c.h.b16 %v360
    %v4004 = vunpack.c.l.b16 %v361
    %v4005 = vunpack.c.h.b16 %v361
    %v4006 = vunpack.c.l.b16 %v362
    %v4007 = vunpack.c.h.b16 %v362
    %v4008 = vunpack.c.l.b16 %v363
    %v4009 = vunpack.c.h.b16 %v363
    %v4010 = vunpack.c.l.b16 %v364
    %v4011 = vunpack.c.h.b16 %v364
    %v4012 = vunpack.c.l.b16 %v365
    %v4013 = vunpack.c.h.b16 %v365
    %v4014 = vunpack.c.l.b16 %v366
    %v4015 = vunpack.c.h.b16 %v366
    %v4016 = vunpack.c.l.b16 %v367
    %v4017 = vunpack.c.h.b16 %v367
    %v4018 = vunpack.c.l.b16 %v368
    %v4019 = vunpack.c.h.b16 %v368
    %v4020 = vunpack.c.l.b16 %v369
    %v4021 = vunpack.c.h.b16 %v369
    %v4022 = vunpack.c.l.b16 %v370
    %v4023 = vunpack.c.h.b16 %v370
    %v4024 = vunpack.c.l.b16 %v371
    %v4025 = vunpack.c.h.b16 %v371
    %v4026 = vunpack.c.l.b16 %v372
    %v4027 = vunpack.c.h.b16 %v372
    %v4028 = vunpack.c.l.b16 %v373
    %v4029 = vunpack.c.h.b16 %v373
    %v4030 = vunpack.c.l.b16 %v374
    %v4031 = vunpack.c.h.b16 %v374
    %v4032 = vunpack.c.l.b16 %v375
    %v4033 = vunpack.c.h.b16 %v375
    %v4034 = vunpack.c.l.b16 %v376
    %v4035 = vunpack.c.h.b16 %v376
    %v4036 = vunpack.c.l.b16 %v377
    %v4037 = vunpack.c.h.b16 %v377
    %v4038 = vunpack.c.l.b16 %v378
    %v4039 = vunpack.c.h.b16 %v378
    %v4040 = vunpack.c.l.b16 %v379
    %v4041 = vunpack.c.h.b16 %v379
    %v4042 = vunpack.c.l.b16 %v380
    %v4043 = vunpack.c.h.b16 %v380
    %v4044 = vunpack.c.l.b16 %v381
    %v4045 = vunpack.c.h.b16 %v381
    %v4046 = vunpack.c.l.b16 %v382
    %v4047 = vunpack.c.h.b16 %v382
    %v4048 = vunpack.c.l.b16 %v383
    %v4049 = vunpack.c.h.b16 %v383
    %v4050 = vunpack.c.l.b16 %v384
    %v4051 = vunpack.c.h.b16 %v384
    %v4052 = vunpack.c.l.b16 %v385
    %v4053 = vunpack.c.h.b16 %v385
    %v4054 = vunpack.c.l.b16 %v386
    %v4055 = vunpack.c.h.b16 %v386
    %v4056 = vunpack.c.l.b16 %v387
    %v4057 = vunpack.c.h.b16 %v387
    %v4058 = vunpack.c.l.b16 %v388
    %v4059 = vunpack.c.h.b16 %v388
    %v4060 = vunpack.c.l.b16 %v389
    %v4061 = vunpack.c.h.b16 %v389
    %v4062 = vunpack.c.l.b16 %v390
    %v4063 = vunpack.c.h.b16 %v390
    %v4064 = vunpack.c.l.b16 %v391
    %v4065 = vunpack.c.h.b16 %v391
    %v4066 = vunpack.c.l.b16 %v392
    %v4067 = vunpack.c.h.b16 %v392
    %v4068 = vunpack.c.l.b16 %v393
    %v4069 = vunpack.c.h.b16 %v393
    %v4070 = vunpack.c.l.b16 %v394
    %v4071 = vunpack.c.h.b16 %v394
    %v4072 = vunpack.c.l.b16 %v395
    %v4073 = vunpack.c.h.b16 %v395
    %v4074 = vunpack.c.l.b16 %v396
    %v4075 = vunpack.c.h.b16 %v396
    %v4076 = vunpack.c.l.b16 %v397
    %v4077 = vunpack.c.h.b16 %v397
    %v4078 = vunpack.c.l.b16 %v398
    %v4079 = vunpack.c.h.b16 %v398
    %v4080 = vunpack.c.l.b16 %v399
    %v4081 = vunpack.c.h.b16 %v399
    %v4082 = vunpack.c.l.b16 %v400
    %v4083 = vunpack.c.h.b16 %v400
    %v4084 = vunpack.c.l.b16 %v401
    %v4085 = vunpack.c.h.b16 %v401
    %v4086 = vunpack.c.l.b16 %v402
    %v4087 = vunpack.c.h.b16 %v402
    %v4088 = vunpack.c.l.b16 %v403
    %v4089 = vunpack.c.h.b16 %v403
    %v4090 = vunpack.c.l.b16 %v404
    %v4091 = vunpack.c.h.b16 %v404
    %v4092 = vunpack.c.l.b16 %v405
    %v4093 = vunpack.c.h.b16 %v405
    %v4094 = vunpack.c.l.b16 %v406
    %v4095 = vunpack.c.h.b16 %v406
    %v4096 = vunpack.c.l.b16 %v407
    %v4097 = vunpack.c.h.b16 %v407
    %v4098 = vunpack.c.l.b16 %v408
    %v4099 = vunpack.c.h.b16 %v408
    %v4100 = vunpack.c.l.b16 %v409
    %v4101 = vunpack.c.h.b16 %v409
    %v4102 = vunpack.c.l.b16 %v410
    %v4103 = vunpack.c.h.b16 %v410
    %v4104 = vunpack.c.l.b16 %v411
    %v4105 = vunpack.c.h.b16 %v411
    %v4106 = vunpack.c.l.b16 %v412
    %v4107 = vunpack.c.h.b16 %v412
    %v4108 = vunpack.c.l.b16 %v413
    %v4109 = vunpack.c.h.b16 %v413
    %v4110 = vunpack.c.l.b16 %v414
    %v4111 = vunpack.c.h.b16 %v414
    %v4112 = vunpack.c.l.b16 %v415
    %v4113 = vunpack.c.h.b16 %v415
    %v4114 = vunpack.c.l.b16 %v416
    %v4115 = vunpack.c.h.b16 %v416
    %v4116 = vunpack.c.l.b16 %v417
    %v4117 = vunpack.c.h.b16 %v417
    %v4118 = vunpack.c.l.b16 %v418
    %v4119 = vunpack.c.h.b16 %v418
    %v4120 = vunpack.c.l.b16 %v419
    %v4121 = vunpack.c.h.b16 %v419
    %v4122 = vunpack.c.l.b16 %v420
    %v4123 = vunpack.c.h.b16 %v420
    %v4124 = vunpack.c.l.b16 %v421
    %v4125 = vunpack.c.h.b16 %v421
    %v4126 = vunpack.c.l.b16 %v422
    %v4127 = vunpack.c.h.b16 %v422
    %v4128 = vunpack.c.l.b16 %v423
    %v4129 = vunpack.c.h.b16 %v423
    %v4130 = vunpack.c.l.b16 %v424
    %v4131 = vunpack.c.h.b16 %v424
    %v4132 = vunpack.c.l.b16 %v425
    %v4133 = vunpack.c.h.b16 %v425
    %v4134 = vunpack.c.l.b16 %v426
    %v4135 = vunpack.c.h.b16 %v426
    %v4136 = vunpack.c.l.b16 %v427
    %v4137 = vunpack.c.h.b16 %v427
    %v4138 = vunpack.c.l.b16 %v428
    %v4139 = vunpack.c.h.b16 %v428
    %v4140 = vunpack.c.l.b16 %v429
    %v4141 = vunpack.c.h.b16 %v429
    %v4142 = vunpack.c.l.b16 %v430
    %v4143 = vunpack.c.h.b16 %v430
    %v4144 = vunpack.c.l.b16 %v431
    %v4145 = vunpack.c.h.b16 %v431
    %v4146 = vunpack.c.l.b16 %v432
    %v4147 = vunpack.c.h.b16 %v432
    %v4148 = vunpack.c.l.b16 %v433
    %v4149 = vunpack.c.h.b16 %v433
    %v4150 = vunpack.c.l.b16 %v434
    %v4151 = vunpack.c.h.b16 %v434
    %v4152 = vunpack.c.l.b16 %v435
    %v4153 = vunpack.c.h.b16 %v435
    %v4154 = vunpack.c.l.b16 %v436
    %v4155 = vunpack.c.h.b16 %v436
    %v4156 = vunpack.c.l.b16 %v437
    %v4157 = vunpack.c.h.b16 %v437
    %v4158 = vunpack.c.l.b16 %v438
    %v4159 = vunpack.c.h.b16 %v438
    %v4160 = vunpack.c.l.b16 %v439
    %v4161 = vunpack.c.h.b16 %v439
    %v4162 = vunpack.c.l.b16 %v440
    %v4163 = vunpack.c.h.b16 %v440
    %v4164 = vunpack.c.l.b16 %v441
    %v4165 = vunpack.c.h.b16 %v441
    %v4166 = vunpack.c.l.b16 %v442
    %v4167 = vunpack.c.h.b16 %v442
    %v4168 = vunpack.c.l.b16 %v443
    %v4169 = vunpack.c.h.b16 %v443
    %v4170 = vunpack.c.l.b16 %v444
    %v4171 = vunpack.c.h.b16 %v444
    %v4172 = vunpack.c.l.b16 %v445
    %v4173 = vunpack.c.h.b16 %v445
    %v4174 = vunpack.c.l.b16 %v446
    %v4175 = vunpack.c.h.b16 %v446
    %v4176 = vunpack.c.l.b16 %v447
    %v4177 = vunpack.c.h.b16 %v447
    %v4178 = vunpack.c.l.b16 %v448
    %v4179 = vunpack.c.h.b16 %v448
    %v4180 = vunpack.c.l.b16 %v449
    %v4181 = vunpack.c.h.b16 %v449
    %v4182 = vunpack.c.l.b16 %v450
    %v4183 = vunpack.c.h.b16 %v450
    %v4184 = vunpack.c.l.b16 %v451
    %v4185 = vunpack.c.h.b16 %v451
    %v4186 = vunpack.c.l.b16 %v452
    %v4187 = vunpack.c.h.b16 %v452
    %v4188 = vunpack.c.l.b16 %v453
    %v4189 = vunpack.c.h.b16 %v453
    %v4190 = vunpack.c.l.b16 %v454
    %v4191 = vunpack.c.h.b16 %v454
    %v4192 = vunpack.c.l.b16 %v455
    %v4193 = vunpack.c.h.b16 %v455
    %v4194 = vunpack.c.l.b16 %v456
    %v4195 = vunpack.c.h.b16 %v456
    %v4196 = vunpack.c.l.b16 %v457
    %v4197 = vunpack.c.h.b16 %v457
    %v4198 = vunpack.c.l.b16 %v458
    %v4199 = vunpack.c.h.b16 %v458
    %v4200 = vunpack.c.l.b16 %v459
    %v4201 = vunpack.c.h.b16 %v459
    %v4202 = vunpack.c.l.b16 %v460
    %v4203 = vunpack.c.h.b16 %v460
    %v4204 = vunpack.c.l.b16 %v461
    %v4205 = vunpack.c.h.b16 %v461
    %v4206 = vunpack.c.l.b16 %v462
    %v4207 = vunpack.c.h.b16 %v462
    %v4208 = vunpack.c.l.b16 %v463
    %v4209 = vunpack.c.h.b16 %v463
    %v4210 = vunpack.c.l.b16 %v464
    %v4211 = vunpack.c.h.b16 %v464
    %v4212 = vunpack.c.l.b16 %v465
    %v4213 = vunpack.c.h.b16 %v465
    %v4214 = vunpack.c.l.b16 %v466
    %v4215 = vunpack.c.h.b16 %v466
    %v4216 = vunpack.c.l.b16 %v467
    %v4217 = vunpack.c.h.b16 %v467
    %v4218 = vunpack.c.l.b16 %v468
    %v4219 = vunpack.c.h.b16 %v468
    %v4220 = vunpack.c.l.b16 %v469
    %v4221 = vunpack.c.h.b16 %v469
    %v4222 = vunpack.c.l.b16 %v470
    %v4223 = vunpack.c.h.b16 %v470
    %v4224 = vunpack.c.l.b16 %v471
    %v4225 = vunpack.c.h.b16 %v471
    %v4226 = vunpack.c.l.b16 %v472
    %v4227 = vunpack.c.h.b16 %v472
    %v4228 = vunpack.c.l.b16 %v473
    %v4229 = vunpack.c.h.b16 %v473
    %v4230 = vunpack.c.l.b16 %v474
    %v4231 = vunpack.c.h.b16 %v474
    %v4232 = vunpack.c.l.b16 %v475
    %v4233 = vunpack.c.h.b16 %v475
    %v4234 = vunpack.c.l.b16 %v476
    %v4235 = vunpack.c.h.b16 %v476
    %v4236 = vunpack.c.l.b16 %v477
    %v4237 = vunpack.c.h.b16 %v477
    %v4238 = vunpack.c.l.b16 %v478
    %v4239 = vunpack.c.h.b16 %v478
    %v4240 = vunpack.c.l.b16 %v479
    %v4241 = vunpack.c.h.b16 %v479
    %v4242 = vunpack.c.l.b16 %v480
    %v4243 = vunpack.c.h.b16 %v480
    %v4244 = vunpack.c.l.b16 %v481
    %v4245 = vunpack.c.h.b16 %v481
    %v4246 = vunpack.c.l.b16 %v482
    %v4247 = vunpack.c.h.b16 %v482
    %v4248 = vunpack.c.l.b16 %v483
    %v4249 = vunpack.c.h.b16 %v483
    %v4250 = vunpack.c.l.b16 %v484
    %v4251 = vunpack.c.h.b16 %v484
    %v4252 = vunpack.c.l.b16 %v485
    %v4253 = vunpack.c.h.b16 %v485
    %v4254 = vunpack.c.l.b16 %v486
    %v4255 = vunpack.c.h.b16 %v486
    %v4256 = vunpack.c.l.b16 %v487
    %v4257 = vunpack.c.h.b16 %v487
    %v4258 = vunpack.c.l.b16 %v488
    %v4259 = vunpack.c.h.b16 %v488
    %v4260 = vunpack.c.l.b16 %v489
    %v4261 = vunpack.c.h.b16 %v489
    %v4262 = vunpack.c.l.b16 %v490
    %v4263 = vunpack.c.h.b16 %v490
    %v4264 = vunpack.c.l.b16 %v491
    %v4265 = vunpack.c.h.b16 %v491
    %v4266 = vunpack.c.l.b16 %v492
    %v4267 = vunpack.c.h.b16 %v492
    %v4268 = vunpack.c.l.b16 %v493
    %v4269 = vunpack.c.h.b16 %v493
    %v4270 = vunpack.c.l.b16 %v494
    %v4271 = vunpack.c.h.b16 %v494
    %v4272 = vunpack.c.l.b16 %v495
    %v4273 = vunpack.c.h.b16 %v495
    %v4274 = vunpack.c.l.b16 %v496
    %v4275 = vunpack.c.h.b16 %v496
    %v4276 = vunpack.c.l.b16 %v497
    %v4277 = vunpack.c.h.b16 %v497
    %v4278 = vunpack.c.l.b16 %v498
    %v4279 = vunpack.c.h.b16 %v498
    %v4280 = vunpack.c.l.b16 %v499
    %v4281 = vunpack.c.h.b16 %v499
    %v4282 = vunpack.c.l.b16 %v500
    %v4283 = vunpack.c.h.b16 %v500
    %v4284 = vunpack.c.l.b16 %v501
    %v4285 = vunpack.c.h.b16 %v501
    %v4286 = vunpack.c.l.b16 %v502
    %v4287 = vunpack.c.h.b16 %v502
    %v4288 = vunpack.c.l.b16 %v503
    %v4289 = vunpack.c.h.b16 %v503
    %v4290 = vunpack.c.l.b16 %v504
    %v4291 = vunpack.c.h.b16 %v504
    %v4292 = vunpack.c.l.b16 %v505
    %v4293 = vunpack.c.h.b16 %v505
    %v4294 = vunpack.c.l.b16 %v506
    %v4295 = vunpack.c.h.b16 %v506
    %v4296 = vunpack.c.l.b16 %v507
    %v4297 = vunpack.c.h.b16 %v507
    %v4298 = vunpack.c.l.b16 %v508
    %v4299 = vunpack.c.h.b16 %v508
    %v4300 = vunpack.c.l.b16 %v509
    %v4301 = vunpack.c.h.b16 %v509
    %v4302 = vunpack.c.l.b16 %v510
    %v4303 = vunpack.c.h.b16 %v510
    %v4304 = vunpack.c.l.b16 %v511
    %v4305 = vunpack.c.h.b16 %v511
    %v4306 = vunpack.c.l.b16 %v512
    %v4307 = vunpack.c.h.b16 %v512
    %v4308 = vunpack.c.l.b16 %v513
    %v4309 = vunpack.c.h.b16 %v513
    %v4310 = vunpack.c.l.b16 %v514
    %v4311 = vunpack.c.h.b16 %v514
    %v4312 = vunpack.c.l.b16 %v515
    %v4313 = vunpack.c.h.b16 %v515
    %v4314 = vunpack.c.l.b16 %v516
    %v4315 = vunpack.c.h.b16 %v516
    %v4316 = vunpack.c.l.b16 %v517
    %v4317 = vunpack.c.h.b16 %v517
    %v4318 = vunpack.c.l.b16 %v518
    %v4319 = vunpack.c.h.b16 %v518
    %v4320 = vunpack.c.l.b16 %v519
    %v4321 = vunpack.c.h.b16 %v519
    %v4322 = vunpack.c.l.b16 %v520
    %v4323 = vunpack.c.h.b16 %v520
    %v4324 = vunpack.c.l.b16 %v521
    %v4325 = vunpack.c.h.b16 %v521
    %v4326 = vunpack.c.l.b16 %v522
    %v4327 = vunpack.c.h.b16 %v522
    %v4328 = vunpack.c.l.b16 %v523
    %v4329 = vunpack.c.h.b16 %v523
    %v4330 = vunpack.c.l.b16 %v524
    %v4331 = vunpack.c.h.b16 %v524
    %v4332 = vunpack.c.l.b16 %v525
    %v4333 = vunpack.c.h.b16 %v525
    %v4334 = vunpack.c.l.b16 %v526
    %v4335 = vunpack.c.h.b16 %v526
    %v4336 = vunpack.c.l.b16 %v527
    %v4337 = vunpack.c.h.b16 %v527
    %v4338 = vunpack.c.l.b16 %v528
    %v4339 = vunpack.c.h.b16 %v528
    %v4340 = vunpack.c.l.b16 %v529
    %v4341 = vunpack.c.h.b16 %v529
    %v4342 = vunpack.c.l.b16 %v530
    %v4343 = vunpack.c.h.b16 %v530
    %v4344 = vunpack.c.l.b16 %v531
    %v4345 = vunpack.c.h.b16 %v531
    %v4346 = vunpack.c.l.b16 %v532
    %v4347 = vunpack.c.h.b16 %v532
    %v4348 = vunpack.c.l.b16 %v533
    %v4349 = vunpack.c.h.b16 %v533
    %v4350 = vunpack.c.l.b16 %v534
    %v4351 = vunpack.c.h.b16 %v534
    %v4352 = vunpack.c.l.b16 %v535
    %v4353 = vunpack.c.h.b16 %v535
    %v4354 = vunpack.c.l.b16 %v536
    %v4355 = vunpack.c.h.b16 %v536
    %v4356 = vunpack.c.l.b16 %v537
    %v4357 = vunpack.c.h.b16 %v537
    %v4358 = vunpack.c.l.b16 %v538
    %v4359 = vunpack.c.h.b16 %v538
    %v4360 = vunpack.c.l.b16 %v539
    %v4361 = vunpack.c.h.b16 %v539
    %v4362 = vunpack.c.l.b16 %v540
    %v4363 = vunpack.c.h.b16 %v540
    %v4364 = vunpack.c.l.b16 %v541
    %v4365 = vunpack.c.h.b16 %v541
    %v4366 = vunpack.c.l.b16 %v542
    %v4367 = vunpack.c.h.b16 %v542
    %v4368 = vunpack.c.l.b16 %v543
    %v4369 = vunpack.c.h.b16 %v543
    %v4370 = vunpack.c.l.b16 %v544
    %v4371 = vunpack.c.h.b16 %v544
    %v4372 = vunpack.c.l.b16 %v545
    %v4373 = vunpack.c.h.b16 %v545
    %v4374 = vunpack.c.l.b16 %v546
    %v4375 = vunpack.c.h.b16 %v546
    %v4376 = vunpack.c.l.b16 %v547
    %v4377 = vunpack.c.h.b16 %v547
    %v4378 = vunpack.c.l.b16 %v548
    %v4379 = vunpack.c.h.b16 %v548
    %v4380 = vunpack.c.l.b16 %v549
    %v4381 = vunpack.c.h.b16 %v549
    %v4382 = vunpack.c.l.b16 %v550
    %v4383 = vunpack.c.h.b16 %v550
    %v4384 = vunpack.c.l.b16 %v551
    %v4385 = vunpack.c.h.b16 %v551
    %v4386 = vunpack.c.l.b16 %v552
    %v4387 = vunpack.c.h.b16 %v552
    %v4388 = vunpack.c.l.b16 %v553
    %v4389 = vunpack.c.h.b16 %v553
    %v4390 = vunpack.c.l.b16 %v554
    %v4391 = vunpack.c.h.b16 %v554
    %v4392 = vunpack.c.l.b16 %v555
    %v4393 = vunpack.c.h.b16 %v555
    %v4394 = vunpack.c.l.b16 %v556
    %v4395 = vunpack.c.h.b16 %v556
    %v4396 = vunpack.c.l.b16 %v557
    %v4397 = vunpack.c.h.b16 %v557
    %v4398 = vunpack.c.l.b16 %v558
    %v4399 = vunpack.c.h.b16 %v558
    %v4400 = vunpack.c.l.b16 %v559
    %v4401 = vunpack.c.h.b16 %v559
    %v4402 = vunpack.c.l.b16 %v560
    %v4403 = vunpack.c.h.b16 %v560
    %v4404 = vunpack.c.l.b16 %v561
    %v4405 = vunpack.c.h.b16 %v561
    %v4406 = vunpack.c.l.b16 %v562
    %v4407 = vunpack.c.h.b16 %v562
    %v4408 = vunpack.c.l.b16 %v563
    %v4409 = vunpack.c.h.b16 %v563
    %v4410 = vunpack.c.l.b16 %v564
    %v4411 = vunpack.c.h.b16 %v564
    %v4412 = vunpack.c.l.b16 %v565
    %v4413 = vunpack.c.h.b16 %v565
    %v4414 = vunpack.c.l.b16 %v566
    %v4415 = vunpack.c.h.b16 %v566
    %v4416 = vunpack.c.l.b16 %v567
    %v4417 = vunpack.c.h.b16 %v567
    %v4418 = vunpack.c.l.b16 %v568
    %v4419 = vunpack.c.h.b16 %v568
    %v4420 = vunpack.c.l.b16 %v569
    %v4421 = vunpack.c.h.b16 %v569
    %v4422 = vunpack.c.l.b16 %v570
    %v4423 = vunpack.c.h.b16 %v570
    %v4424 = vunpack.c.l.b16 %v571
    %v4425 = vunpack.c.h.b16 %v571
    %v4426 = vunpack.c.l.b16 %v572
    %v4427 = vunpack.c.h.b16 %v572
    %v4428 = vunpack.c.l.b16 %v573
    %v4429 = vunpack.c.h.b16 %v573
    %v4430 = vunpack.c.l.b16 %v574
    %v4431 = vunpack.c.h.b16 %v574
    %v4432 = vunpack.c.l.b16 %v575
    %v4433 = vunpack.c.h.b16 %v575
    %v4434 = vunpack.c.l.b16 %v576
    %v4435 = vunpack.c.h.b16 %v576
    %v4436 = vunpack.c.l.b16 %v577
    %v4437 = vunpack.c.h.b16 %v577
    %v4438 = vunpack.c.l.b16 %v578
    %v4439 = vunpack.c.h.b16 %v578
    %v4440 = vunpack.c.l.b16 %v579
    %v4441 = vunpack.c.h.b16 %v579
    %v4442 = vunpack.c.l.b16 %v580
    %v4443 = vunpack.c.h.b16 %v580
    %v4444 = vunpack.c.l.b16 %v581
    %v4445 = vunpack.c.h.b16 %v581
    %v4446 = vunpack.c.l.b16 %v582
    %v4447 = vunpack.c.h.b16 %v582
    %v4448 = vunpack.c.l.b16 %v583
    %v4449 = vunpack.c.h.b16 %v583
    %v4450 = vunpack.c.l.b16 %v584
    %v4451 = vunpack.c.h.b16 %v584
    %v4452 = vunpack.c.l.b16 %v585
    %v4453 = vunpack.c.h.b16 %v585
    %v4454 = vunpack.c.l.b16 %v586
    %v4455 = vunpack.c.h.b16 %v586
    %v4456 = vunpack.c.l.b16 %v587
    %v4457 = vunpack.c.h.b16 %v587
    %v4458 = vunpack.c.l.b16 %v588
    %v4459 = vunpack.c.h.b16 %v588
    %v4460 = vunpack.c.l.b16 %v589
    %v4461 = vunpack.c.h.b16 %v589
    %v4462 = vunpack.c.l.b16 %v590
    %v4463 = vunpack.c.h.b16 %v590
    %v4464 = vunpack.c.l.b16 %v591
    %v4465 = vunpack.c.h.b16 %v591
    %v4466 = vunpack.c.l.b16 %v592
    %v4467 = vunpack.c.h.b16 %v592
    %v4468 = vunpack.c.l.b16 %v593
    %v4469 = vunpack.c.h.b16 %v593
    %v4470 = vunpack.c.l.b16 %v594
    %v4471 = vunpack.c.h.b16 %v594
    %v4472 = vunpack.c.l.b16 %v595
    %v4473 = vunpack.c.h.b16 %v595
    %v4474 = vunpack.c.l.b16 %v596
    %v4475 = vunpack.c.h.b16 %v596
    %v4476 = vunpack.c.l.b16 %v597
    %v4477 = vunpack.c.h.b16 %v597
    %v4478 = vunpack.c.l.b16 %v598
    %v4479 = vunpack.c.h.b16 %v598
    %v4480 = vunpack.c.l.b16 %v599
    %v4481 = vunpack.c.h.b16 %v599
    %v4482 = vunpack.c.l.b16 %v600
    %v4483 = vunpack.c.h.b16 %v600
    %v4484 = vunpack.c.l.b16 %v601
    %v4485 = vunpack.c.h.b16 %v601
    %v4486 = vunpack.c.l.b16 %v602
    %v4487 = vunpack.c.h.b16 %v602
    %v4488 = vunpack.c.l.b16 %v603
    %v4489 = vunpack.c.h.b16 %v603
    %v4490 = vunpack.c.l.b16 %v604
    %v4491 = vunpack.c.h.b16 %v604
    %v4492 = vunpack.c.l.b16 %v605
    %v4493 = vunpack.c.h.b16 %v605
    %v4494 = vunpack.c.l.b16 %v606
    %v4495 = vunpack.c.h.b16 %v606
    %v4496 = vunpack.c.l.b16 %v607
    %v4497 = vunpack.c.h.b16 %v607
    %v4498 = vunpack.c.l.b16 %v608
    %v4499 = vunpack.c.h.b16 %v608
    %v4500 = vunpack.c.l.b16 %v609
    %v4501 = vunpack.c.h.b16 %v609
    %v4502 = vunpack.c.l.b16 %v610
    %v4503 = vunpack.c.h.b16 %v610
    %v4504 = vunpack.c.l.b16 %v611
    %v4505 = vunpack.c.h.b16 %v611
    %v4506 = vunpack.c.l.b16 %v612
    %v4507 = vunpack.c.h.b16 %v612
    %v4508 = vunpack.c.l.b16 %v613
    %v4509 = vunpack.c.h.b16 %v613
    %v4510 = vunpack.c.l.b16 %v614
    %v4511 = vunpack.c.h.b16 %v614
    %v4512 = vunpack.c.l.b16 %v615
    %v4513 = vunpack.c.h.b16 %v615
    %v4514 = vunpack.c.l.b16 %v616
    %v4515 = vunpack.c.h.b16 %v616
    %v4516 = vunpack.c.l.b16 %v617
    %v4517 = vunpack.c.h.b16 %v617
    %v4518 = vunpack.c.l.b16 %v618
    %v4519 = vunpack.c.h.b16 %v618
    %v4520 = vunpack.c.l.b16 %v619
    %v4521 = vunpack.c.h.b16 %v619
    %v4522 = vunpack.c.l.b16 %v620
    %v4523 = vunpack.c.h.b16 %v620
    %v4524 = vunpack.c.l.b16 %v621
    %v4525 = vunpack.c.h.b16 %v621
    %v4526 = vunpack.c.l.b16 %v622
    %v4527 = vunpack.c.h.b16 %v622
    %v4528 = vunpack.c.l.b16 %v623
    %v4529 = vunpack.c.h.b16 %v623
    %v4530 = vunpack.c.l.b16 %v624
    %v4531 = vunpack.c.h.b16 %v624
    %v4532 = vunpack.c.l.b16 %v625
    %v4533 = vunpack.c.h.b16 %v625
    %v4534 = vunpack.c.l.b16 %v626
    %v4535 = vunpack.c.h.b16 %v626
    %v4536 = vunpack.c.l.b16 %v627
    %v4537 = vunpack.c.h.b16 %v627
    %v4538 = vunpack.c.l.b16 %v628
    %v4539 = vunpack.c.h.b16 %v628
    %v4540 = vunpack.c.l.b16 %v629
    %v4541 = vunpack.c.h.b16 %v629
    %v4542 = vunpack.c.l.b16 %v630
    %v4543 = vunpack.c.h.b16 %v630
    %v4544 = vunpack.c.l.b16 %v631
    %v4545 = vunpack.c.h.b16 %v631
    %v4546 = vunpack.c.l.b16 %v632
    %v4547 = vunpack.c.h.b16 %v632
    %v4548 = vunpack.c.l.b16 %v633
    %v4549 = vunpack.c.h.b16 %v633
    %v4550 = vunpack.c.l.b16 %v634
    %v4551 = vunpack.c.h.b16 %v634
    %v4552 = vunpack.c.l.b16 %v635
    %v4553 = vunpack.c.h.b16 %v635
    %v4554 = vunpack.c.l.b16 %v636
    %v4555 = vunpack.c.h.b16 %v636
    %v4556 = vunpack.c.l.b16 %v637
    %v4557 = vunpack.c.h.b16 %v637
    %v4558 = vunpack.c.l.b16 %v638
    %v4559 = vunpack.c.h.b16 %v638
    %v4560 = vunpack.c.l.b16 %v639
    %v4561 = vunpack.c.h.b16 %v639
    %v4562 = vunpack.c.l.b16 %v640
    %v4563 = vunpack.c.h.b16 %v640
    %v4564 = vunpack.c.l.b16 %v641
    %v4565 = vunpack.c.h.b16 %v641
    %v4566 = vunpack.c.l.b16 %v642
    %v4567 = vunpack.c.h.b16 %v642
    %v4568 = vunpack.c.l.b16 %v643
    %v4569 = vunpack.c.h.b16 %v643
    %v4570 = vunpack.c.l.b16 %v644
    %v4571 = vunpack.c.h.b16 %v644
    %v4572 = vunpack.c.l.b16 %v645
    %v4573 = vunpack.c.h.b16 %v645
    %v4574 = vunpack.c.l.b16 %v646
    %v4575 = vunpack.c.h.b16 %v646
    %v4576 = vunpack.c.l.b16 %v647
    %v4577 = vunpack.c.h.b16 %v647
    %v4578 = vunpack.c.l.b16 %v648
    %v4579 = vunpack.c.h.b16 %v648
    %v4580 = vunpack.c.l.b16 %v649
    %v4581 = vunpack.c.h.b16 %v649
    %v4582 = vunpack.c.l.b16 %v650
    %v4583 = vunpack.c.h.b16 %v650
    %v4584 = vunpack.c.l.b16 %v651
    %v4585 = vunpack.c.h.b16 %v651
    %v4586 = vunpack.c.l.b16 %v652
    %v4587 = vunpack.c.h.b16 %v652
    %v4588 = vunpack.c.l.b16 %v653
    %v4589 = vunpack.c.h.b16 %v653
    %v4590 = vunpack.c.l.b16 %v654
    %v4591 = vunpack.c.h.b16 %v654
    %v4592 = vunpack.c.l.b16 %v655
    %v4593 = vunpack.c.h.b16 %v655
    %v4594 = vunpack.c.l.b16 %v656
    %v4595 = vunpack.c.h.b16 %v656
    %v4596 = vunpack.c.l.b16 %v657
    %v4597 = vunpack.c.h.b16 %v657
    %v4598 = vunpack.c.l.b16 %v658
    %v4599 = vunpack.c.h.b16 %v658
    %v4600 = vunpack.c.l.b16 %v659
    %v4601 = vunpack.c.h.b16 %v659
    %v4602 = vunpack.c.l.b16 %v660
    %v4603 = vunpack.c.h.b16 %v660
    %v4604 = vunpack.c.l.b16 %v661
    %v4605 = vunpack.c.h.b16 %v661
    %v4606 = vunpack.c.l.b16 %v662
    %v4607 = vunpack.c.h.b16 %v662
    %v4608 = vunpack.c.l.b16 %v663
    %v4609 = vunpack.c.h.b16 %v663
    %v4610 = vunpack.c.l.b16 %v664
    %v4611 = vunpack.c.h.b16 %v664
    %v4612 = vunpack.c.l.b16 %v665
    %v4613 = vunpack.c.h.b16 %v665
    %v4614 = vunpack.c.l.b16 %v666
    %v4615 = vunpack.c.h.b16 %v666
    %v4616 = vunpack.c.l.b16 %v667
    %v4617 = vunpack.c.h.b16 %v667
    %v4618 = vunpack.c.l.b16 %v668
    %v4619 = vunpack.c.h.b16 %v668
    %v4620 = vunpack.c.l.b16 %v669
    %v4621 = vunpack.c.h.b16 %v669
    %v4622 = vunpack.c.l.b16 %v670
    %v4623 = vunpack.c.h.b16 %v670
    %v4624 = vunpack.c.l.b16 %v671
    %v4625 = vunpack.c.h.b16 %v671
    %v4626 = vunpack.c.l.b16 %v672
    %v4627 = vunpack.c.h.b16 %v672
    %v4628 = vunpack.c.l.b16 %v673
    %v4629 = vunpack.c.h.b16 %v673
    %v4630 = vunpack.c.l.b16 %v674
    %v4631 = vunpack.c.h.b16 %v674
    %v4632 = vunpack.c.l.b16 %v675
    %v4633 = vunpack.c.h.b16 %v675
    %v4634 = vunpack.c.l.b16 %v676
    %v4635 = vunpack.c.h.b16 %v676
    %v4636 = vunpack.c.l.b16 %v677
    %v4637 = vunpack.c.h.b16 %v677
    %v4638 = vunpack.c.l.b16 %v678
    %v4639 = vunpack.c.h.b16 %v678
    %v4640 = vunpack.c.l.b16 %v679
    %v4641 = vunpack.c.h.b16 %v679
    %v4642 = vunpack.c.l.b16 %v680
    %v4643 = vunpack.c.h.b16 %v680
    %v4644 = vunpack.c.l.b16 %v681
    %v4645 = vunpack.c.h.b16 %v681
    %v4646 = vunpack.c.l.b16 %v682
    %v4647 = vunpack.c.h.b16 %v682
    %v4648 = vunpack.c.l.b16 %v683
    %v4649 = vunpack.c.h.b16 %v683
    %v4650 = vunpack.c.l.b16 %v684
    %v4651 = vunpack.c.h.b16 %v684
    %v4652 = vunpack.c.l.b16 %v685
    %v4653 = vunpack.c.h.b16 %v685
    %v4654 = vunpack.c.l.b16 %v686
    %v4655 = vunpack.c.h.b16 %v686
    %v4656 = vunpack.c.l.b16 %v687
    %v4657 = vunpack.c.h.b16 %v687
    %v4658 = vunpack.c.l.b16 %v688
    %v4659 = vunpack.c.h.b16 %v688
    %v4660 = vunpack.c.l.b16 %v689
    %v4661 = vunpack.c.h.b16 %v689
    %v4662 = vunpack.c.l.b16 %v690
    %v4663 = vunpack.c.h.b16 %v690
    %v4664 = vunpack.c.l.b16 %v691
    %v4665 = vunpack.c.h.b16 %v691
    %v4666 = vunpack.c.l.b16 %v692
    %v4667 = vunpack.c.h.b16 %v692
    %v4668 = vunpack.c.l.b16 %v693
    %v4669 = vunpack.c.h.b16 %v693
    %v4670 = vunpack.c.l.b16 %v694
    %v4671 = vunpack.c.h.b16 %v694
    %v4672 = vunpack.c.l.b16 %v695
    %v4673 = vunpack.c.h.b16 %v695
    %v4674 = vunpack.c.l.b16 %v696
    %v4675 = vunpack.c.h.b16 %v696
    %v4676 = vunpack.c.l.b16 %v697
    %v4677 = vunpack.c.h.b16 %v697
    %v4678 = vunpack.c.l.b16 %v698
    %v4679 = vunpack.c.h.b16 %v698
    %v4680 = vunpack.c.l.b16 %v699
    %v4681 = vunpack.c.h.b16 %v699
    %v4682 = vunpack.c.l.b16 %v700
    %v4683 = vunpack.c.h.b16 %v700
    %v4684 = vunpack.c.l.b16 %v701
    %v4685 = vunpack.c.h.b16 %v701
    %v4686 = vunpack.c.l.b16 %v702
    %v4687 = vunpack.c.h.b16 %v702
    %v4688 = vunpack.c.l.b16 %v703
    %v4689 = vunpack.c.h.b16 %v703
    %v4690 = vunpack.c.l.b16 %v704
    %v4691 = vunpack.c.h.b16 %v704
    %v4692 = vunpack.c.l.b16 %v705
    %v4693 = vunpack.c.h.b16 %v705
    %v4694 = vunpack.c.l.b16 %v706
    %v4695 = vunpack.c.h.b16 %v706
    %v4696 = vunpack.c.l.b16 %v707
    %v4697 = vunpack.c.h.b16 %v707
    %v4698 = vunpack.c.l.b16 %v708
    %v4699 = vunpack.c.h.b16 %v708
    %v4700 = vunpack.c.l.b16 %v709
    %v4701 = vunpack.c.h.b16 %v709
    %v4702 = vunpack.c.l.b16 %v710
    %v4703 = vunpack.c.h.b16 %v710
    %v4704 = vunpack.c.l.b16 %v711
    %v4705 = vunpack.c.h.b16 %v711
    %v4706 = vunpack.c.l.b16 %v712
    %v4707 = vunpack.c.h.b16 %v712
    %v4708 = vunpack.c.l.b16 %v713
    %v4709 = vunpack.c.h.b16 %v713
    %v4710 = vunpack.c.l.b16 %v714
    %v4711 = vunpack.c.h.b16 %v714
    %v4712 = vunpack.c.l.b16 %v715
    %v4713 = vunpack.c.h.b16 %v715
    %v4714 = vunpack.c.l.b16 %v716
    %v4715 = vunpack.c.h.b16 %v716
    %v4716 = vunpack.c.l.b16 %v717
    %v4717 = vunpack.c.h.b16 %v717
    %v4718 = vunpack.c.l.b16 %v718
    %v4719 = vunpack.c.h.b16 %v718
    %v4720 = vunpack.c.l.b16 %v719
    %v4721 = vunpack.c.h.b16 %v719
    %v4722 = vunpack.c.l.b16 %v720
    %v4723 = vunpack.c.h.b16 %v720
    %v4724 = vunpack.c.l.b16 %v721
    %v4725 = vunpack.c.h.b16 %v721
    %v4726 = vunpack.c.l.b16 %v722
    %v4727 = vunpack.c.h.b16 %v722
    %v4728 = vunpack.c.l.b16 %v723
    %v4729 = vunpack.c.h.b16 %v723
    %v4730 = vunpack.c.l.b16 %v724
    %v4731 = vunpack.c.h.b16 %v724
    %v4732 = vunpack.c.l.b16 %v725
    %v4733 = vunpack.c.h.b16 %v725
    %v4734 = vunpack.c.l.b16 %v726
    %v4735 = vunpack.c.h.b16 %v726
    %v4736 = vunpack.c.l.b16 %v727
    %v4737 = vunpack.c.h.b16 %v727
    %v4738 = vunpack.c.l.b16 %v728
    %v4739 = vunpack.c.h.b16 %v728
    %v4740 = vunpack.c.l.b16 %v729
    %v4741 = vunpack.c.h.b16 %v729
    %v4742 = vunpack.c.l.b16 %v730
    %v4743 = vunpack.c.h.b16 %v730
    %v4744 = vunpack.c.l.b16 %v731
    %v4745 = vunpack.c.h.b16 %v731
    %v4746 = vunpack.c.l.b16 %v732
    %v4747 = vunpack.c.h.b16 %v732
    %v4748 = vunpack.c.l.b16 %v733
    %v4749 = vunpack.c.h.b16 %v733
    %v4750 = vunpack.c.l.b16 %v734
    %v4751 = vunpack.c.h.b16 %v734
    %v4752 = vunpack.c.l.b16 %v735
    %v4753 = vunpack.c.h.b16 %v735
    %v4754 = vunpack.c.l.b16 %v736
    %v4755 = vunpack.c.h.b16 %v736
    %v4756 = vunpack.c.l.b16 %v737
    %v4757 = vunpack.c.h.b16 %v737
    %v4758 = vunpack.c.l.b16 %v738
    %v4759 = vunpack.c.h.b16 %v738
    %v4760 = vunpack.c.l.b16 %v739
    %v4761 = vunpack.c.h.b16 %v739
    %v4762 = vunpack.c.l.b16 %v740
    %v4763 = vunpack.c.h.b16 %v740
    %v4764 = vunpack.c.l.b16 %v741
    %v4765 = vunpack.c.h.b16 %v741
    %v4766 = vunpack.c.l.b16 %v742
    %v4767 = vunpack.c.h.b16 %v742
    %v4768 = vunpack.c.l.b16 %v743
    %v4769 = vunpack.c.h.b16 %v743
    %v4770 = vunpack.c.l.b16 %v744
    %v4771 = vunpack.c.h.b16 %v744
    %v4772 = vunpack.c.l.b16 %v745
    %v4773 = vunpack.c.h.b16 %v745
    %v4774 = vunpack.c.l.b16 %v746
    %v4775 = vunpack.c.h.b16 %v746
    %v4776 = vunpack.c.l.b16 %v747
    %v4777 = vunpack.c.h.b16 %v747
    %v4778 = vunpack.c.l.b16 %v748
    %v4779 = vunpack.c.h.b16 %v748
    %v4780 = vunpack.c.l.b16 %v749
    %v4781 = vunpack.c.h.b16 %v749
    %v4782 = vunpack.c.l.b16 %v750
    %v4783 = vunpack.c.h.b16 %v750
    %v4784 = vunpack.c.l.b16 %v751
    %v4785 = vunpack.c.h.b16 %v751
    %v4786 = vunpack.c.l.b16 %v752
    %v4787 = vunpack.c.h.b16 %v752
    %v4788 = vunpack.c.l.b16 %v753
    %v4789 = vunpack.c.h.b16 %v753
    %v4790 = vunpack.c.l.b16 %v754
    %v4791 = vunpack.c.h.b16 %v754
    %v4792 = vunpack.c.l.b16 %v755
    %v4793 = vunpack.c.h.b16 %v755
    %v4794 = vunpack.c.l.b16 %v756
    %v4795 = vunpack.c.h.b16 %v756
    %v4796 = vunpack.c.l.b16 %v757
    %v4797 = vunpack.c.h.b16 %v757
    %v4798 = vunpack.c.l.b16 %v758
    %v4799 = vunpack.c.h.b16 %v758
    %v4800 = vunpack.c.l.b16 %v759
    %v4801 = vunpack.c.h.b16 %v759
    %v4802 = vunpack.c.l.b16 %v760
    %v4803 = vunpack.c.h.b16 %v760
    %v4804 = vunpack.c.l.b16 %v761
    %v4805 = vunpack.c.h.b16 %v761
    %v4806 = vunpack.c.l.b16 %v762
    %v4807 = vunpack.c.h.b16 %v762
    %v4808 = vunpack.c.l.b16 %v763
    %v4809 = vunpack.c.h.b16 %v763
    %v4810 = vunpack.c.l.b16 %v764
    %v4811 = vunpack.c.h.b16 %v764
    %v4812 = vunpack.c.l.b16 %v765
    %v4813 = vunpack.c.h.b16 %v765
    %v4814 = vunpack.c.l.b16 %v766
    %v4815 = vunpack.c.h.b16 %v766
    %v4816 = vunpack.c.l.b16 %v767
    %v4817 = vunpack.c.h.b16 %v767
    %v4818 = vunpack.c.l.b16 %v768
    %v4819 = vunpack.c.h.b16 %v768
    %v4820 = vunpack.c.l.b16 %v769
    %v4821 = vunpack.c.h.b16 %v769
    %v4822 = vunpack.c.l.b16 %v770
    %v4823 = vunpack.c.h.b16 %v770
    %v4824 = vunpack.c.l.b16 %v771
    %v4825 = vunpack.c.h.b16 %v771
    %v4826 = vunpack.c.l.b16 %v772
    %v4827 = vunpack.c.h.b16 %v772
    %v4828 = vunpack.c.l.b16 %v773
    %v4829 = vunpack.c.h.b16 %v773
    %v4830 = vunpack.c.l.b16 %v774
    %v4831 = vunpack.c.h.b16 %v774
    %v4832 = vunpack.c.l.b16 %v775
    %v4833 = vunpack.c.h.b16 %v775
    %v4834 = vunpack.c.l.b16 %v776
    %v4835 = vunpack.c.h.b16 %v776
    %v4836 = vunpack.c.l.b16 %v777
    %v4837 = vunpack.c.h.b16 %v777
    %v4838 = vunpack.c.l.b16 %v778
    %v4839 = vunpack.c.h.b16 %v778
    %v4840 = vunpack.c.l.b16 %v779
    %v4841 = vunpack.c.h.b16 %v779
    %v4842 = vunpack.c.l.b16 %v780
    %v4843 = vunpack.c.h.b16 %v780
    %v4844 = vunpack.c.l.b16 %v781
    %v4845 = vunpack.c.h.b16 %v781
    %v4846 = vunpack.c.l.b16 %v782
    %v4847 = vunpack.c.h.b16 %v782
    %v4848 = vunpack.c.l.b16 %v783
    %v4849 = vunpack.c.h.b16 %v783
    %v4850 = vunpack.c.l.b16 %v784
    %v4851 = vunpack.c.h.b16 %v784
    %v4852 = vunpack.c.l.b16 %v785
    %v4853 = vunpack.c.h.b16 %v785
    %v4854 = vunpack.c.l.b16 %v786
    %v4855 = vunpack.c.h.b16 %v786
    %v4856 = vunpack.c.l.b16 %v787
    %v4857 = vunpack.c.h.b16 %v787
    %v4858 = vunpack.c.l.b16 %v788
    %v4859 = vunpack.c.h.b16 %v788
    %v4860 = vunpack.c.l.b16 %v789
    %v4861 = vunpack.c.h.b16 %v789
    %v4862 = vunpack.c.l.b16 %v790
    %v4863 = vunpack.c.h.b16 %v790
    %v4864 = vunpack.c.l.b16 %v791
    %v4865 = vunpack.c.h.b16 %v791
    %v4866 = vunpack.c.l.b16 %v792
    %v4867 = vunpack.c.h.b16 %v792
    %v4868 = vunpack.c.l.b16 %v793
    %v4869 = vunpack.c.h.b16 %v793
    %v4870 = vunpack.c.l.b16 %v794
    %v4871 = vunpack.c.h.b16 %v794
    %v4872 = vunpack.c.l.b16 %v795
    %v4873 = vunpack.c.h.b16 %v795
    %v4874 = vunpack.c.l.b16 %v796
    %v4875 = vunpack.c.h.b16 %v796
    %v4876 = vunpack.c.l.b16 %v797
    %v4877 = vunpack.c.h.b16 %v797
    %v4878 = vunpack.c.l.b16 %v798
    %v4879 = vunpack.c.h.b16 %v798
    %v4880 = vunpack.c.l.b16 %v799
    %v4881 = vunpack.c.h.b16 %v799
    %v4882 = vunpack.c.l.b16 %v800
    %v4883 = vunpack.c.h.b16 %v800
    %v4884 = vunpack.c.l.b16 %v801
    %v4885 = vunpack.c.h.b16 %v801
    %v4886 = vunpack.c.l.b16 %v802
    %v4887 = vunpack.c.h.b16 %v802
    %v4888 = vunpack.c.l.b16 %v803
    %v4889 = vunpack.c.h.b16 %v803
    %v4890 = vunpack.c.l.b16 %v804
    %v4891 = vunpack.c.h.b16 %v804
    %v4892 = vunpack.c.l.b16 %v805
    %v4893 = vunpack.c.h.b16 %v805
    %v4894 = vunpack.c.l.b16 %v806
    %v4895 = vunpack.c.h.b16 %v806
    %v4896 = vunpack.c.l.b16 %v807
    %v4897 = vunpack.c.h.b16 %v807
    %v4898 = vunpack.c.l.b16 %v808
    %v4899 = vunpack.c.h.b16 %v808
    %v4900 = vunpack.c.l.b16 %v809
    %v4901 = vunpack.c.h.b16 %v809
    %v4902 = vunpack.c.l.b16 %v810
    %v4903 = vunpack.c.h.b16 %v810
    %v4904 = vunpack.c.l.b16 %v811
    %v4905 = vunpack.c.h.b16 %v811
    %v4906 = vunpack.c.l.b16 %v812
    %v4907 = vunpack.c.h.b16 %v812
    %v4908 = vunpack.c.l.b16 %v813
    %v4909 = vunpack.c.h.b16 %v813
    %v4910 = vunpack.c.l.b16 %v814
    %v4911 = vunpack.c.h.b16 %v814
    %v4912 = vunpack.c.l.b16 %v815
    %v4913 = vunpack.c.h.b16 %v815
    %v4914 = vunpack.c.l.b16 %v816
    %v4915 = vunpack.c.h.b16 %v816
    %v4916 = vunpack.c.l.b16 %v817
    %v4917 = vunpack.c.h.b16 %v817
    %v4918 = vunpack.c.l.b16 %v818
    %v4919 = vunpack.c.h.b16 %v818
    %v4920 = vunpack.c.l.b16 %v819
    %v4921 = vunpack.c.h.b16 %v819
    %v4922 = vunpack.c.l.b16 %v820
    %v4923 = vunpack.c.h.b16 %v820
    %v4924 = vunpack.c.l.b16 %v821
    %v4925 = vunpack.c.h.b16 %v821
    %v4926 = vunpack.c.l.b16 %v822
    %v4927 = vunpack.c.h.b16 %v822
    %v4928 = vunpack.c.l.b16 %v823
    %v4929 = vunpack.c.h.b16 %v823
    %v4930 = vunpack.c.l.b16 %v824
    %v4931 = vunpack.c.h.b16 %v824
    %v4932 = vunpack.c.l.b16 %v825
    %v4933 = vunpack.c.h.b16 %v825
    %v4934 = vunpack.c.l.b16 %v826
    %v4935 = vunpack.c.h.b16 %v826
    %v4936 = vunpack.c.l.b16 %v827
    %v4937 = vunpack.c.h.b16 %v827
    %v4938 = vunpack.c.l.b16 %v828
    %v4939 = vunpack.c.h.b16 %v828
    %v4940 = vunpack.c.l.b16 %v829
    %v4941 = vunpack.c.h.b16 %v829
    %v4942 = vunpack.c.l.b16 %v830
    %v4943 = vunpack.c.h.b16 %v830
    %v4944 = vunpack.c.l.b16 %v831
    %v4945 = vunpack.c.h.b16 %v831
    %v4946 = vunpack.c.l.b16 %v832
    %v4947 = vunpack.c.h.b16 %v832
    %v4948 = vunpack.c.l.b16 %v833
    %v4949 = vunpack.c.h.b16 %v833
    %v4950 = vunpack.c.l.b16 %v834
    %v4951 = vunpack.c.h.b16 %v834
    %v4952 = vunpack.c.l.b16 %v835
    %v4953 = vunpack.c.h.b16 %v835
    %v4954 = vunpack.c.l.b16 %v836
    %v4955 = vunpack.c.h.b16 %v836
    %v4956 = vunpack.c.l.b16 %v837
    %v4957 = vunpack.c.h.b16 %v837
    %v4958 = vunpack.c.l.b16 %v838
    %v4959 = vunpack.c.h.b16 %v838
    %v4960 = vunpack.c.l.b16 %v839
    %v4961 = vunpack.c.h.b16 %v839
    %v4962 = vunpack.c.l.b16 %v840
    %v4963 = vunpack.c.h.b16 %v840
    %v4964 = vunpack.c.l.b16 %v841
    %v4965 = vunpack.c.h.b16 %v841
    %v4966 = vunpack.c.l.b16 %v842
    %v4967 = vunpack.c.h.b16 %v842
    %v4968 = vunpack.c.l.b16 %v843
    %v4969 = vunpack.c.h.b16 %v843
    %v4970 = vunpack.c.l.b16 %v844
    %v4971 = vunpack.c.h.b16 %v844
    %v4972 = vunpack.c.l.b16 %v845
    %v4973 = vunpack.c.h.b16 %v845
    %v4974 = vunpack.c.l.b16 %v846
    %v4975 = vunpack.c.h.b16 %v846
    %v4976 = vunpack.c.l.b16 %v847
    %v4977 = vunpack.c.h.b16 %v847
    %v4978 = vunpack.c.l.b16 %v848
    %v4979 = vunpack.c.h.b16 %v848
    %v4980 = vunpack.c.l.b16 %v849
    %v4981 = vunpack.c.h.b16 %v849
    %v4982 = vunpack.c.l.b16 %v850
    %v4983 = vunpack.c.h.b16 %v850
    %v4984 = vunpack.c.l.b16 %v851
    %v4985 = vunpack.c.h.b16 %v851
    %v4986 = vunpack.c.l.b16 %v852
    %v4987 = vunpack.c.h.b16 %v852
    %v4988 = vunpack.c.l.b16 %v853
    %v4989 = vunpack.c.h.b16 %v853
    %v4990 = vunpack.c.l.b16 %v854
    %v4991 = vunpack.c.h.b16 %v854
    %v4992 = vunpack.c.l.b16 %v855
    %v4993 = vunpack.c.h.b16 %v855
    %v4994 = vunpack.c.l.b16 %v856
    %v4995 = vunpack.c.h.b16 %v856
    %v4996 = vunpack.c.l.b16 %v857
    %v4997 = vunpack.c.h.b16 %v857
    %v4998 = vunpack.c.l.b16 %v858
    %v4999 = vunpack.c.h.b16 %v858
    %v5000 = vunpack.c.l.b16 %v859
    %v5001 = vunpack.c.h.b16 %v859
    %v5002 = vunpack.c.l.b16 %v860
    %v5003 = vunpack.c.h.b16 %v860
    %v5004 = vunpack.c.l.b16 %v861
    %v5005 = vunpack.c.h.b16 %v861
    %v5006 = vunpack.c.l.b16 %v862
    %v5007 = vunpack.c.h.b16 %v862
    %v5008 = vunpack.c.l.b16 %v863
    %v5009 = vunpack.c.h.b16 %v863
    %v5010 = vunpack.c.l.b16 %v864
    %v5011 = vunpack.c.h.b16 %v864
    %v5012 = vunpack.c.l.b16 %v865
    %v5013 = vunpack.c.h.b16 %v865
    %v5014 = vunpack.c.l.b16 %v866
    %v5015 = vunpack.c.h.b16 %v866
    %v5016 = vunpack.c.l.b16 %v867
    %v5017 = vunpack.c.h.b16 %v867
    %v5018 = vunpack.c.l.b16 %v868
    %v5019 = vunpack.c.h.b16 %v868
    %v5020 = vunpack.c.l.b16 %v869
    %v5021 = vunpack.c.h.b16 %v869
    %v5022 = vunpack.c.l.b16 %v870
    %v5023 = vunpack.c.h.b16 %v870
    %v5024 = vunpack.c.l.b16 %v871
    %v5025 = vunpack.c.h.b16 %v871
    %v5026 = vunpack.c.l.b16 %v872
    %v5027 = vunpack.c.h.b16 %v872
    %v5028 = vunpack.c.l.b16 %v873
    %v5029 = vunpack.c.h.b16 %v873
    %v5030 = vunpack.c.l.b16 %v874
    %v5031 = vunpack.c.h.b16 %v874
    %v5032 = vunpack.c.l.b16 %v875
    %v5033 = vunpack.c.h.b16 %v875
    %v5034 = vunpack.c.l.b16 %v876
    %v5035 = vunpack.c.h.b16 %v876
    %v5036 = vunpack.c.l.b16 %v877
    %v5037 = vunpack.c.h.b16 %v877
    %v5038 = vunpack.c.l.b16 %v878
    %v5039 = vunpack.c.h.b16 %v878
    %v5040 = vunpack.c.l.b16 %v879
    %v5041 = vunpack.c.h.b16 %v879
    %v5042 = vunpack.c.l.b16 %v880
    %v5043 = vunpack.c.h.b16 %v880
    %v5044 = vunpack.c.l.b16 %v881
    %v5045 = vunpack.c.h.b16 %v881
    %v5046 = vunpack.c.l.b16 %v882
    %v5047 = vunpack.c.h.b16 %v882
    %v5048 = vunpack.c.l.b16 %v883
    %v5049 = vunpack.c.h.b16 %v883
    %v5050 = vunpack.c.l.b16 %v884
    %v5051 = vunpack.c.h.b16 %v884
    %v5052 = vunpack.c.l.b16 %v885
    %v5053 = vunpack.c.h.b16 %v885
    %v5054 = vunpack.c.l.b16 %v886
    %v5055 = vunpack.c.h.b16 %v886
    %v5056 = vunpack.c.l.b16 %v887
    %v5057 = vunpack.c.h.b16 %v887
    %v5058 = vunpack.c.l.b16 %v888
    %v5059 = vunpack.c.h.b16 %v888
    %v5060 = vunpack.c.l.b16 %v889
    %v5061 = vunpack.c.h.b16 %v889
    %v5062 = vunpack.c.l.b16 %v890
    %v5063 = vunpack.c.h.b16 %v890
    %v5064 = vunpack.c.l.b16 %v891
    %v5065 = vunpack.c.h.b16 %v891
    %v5066 = vunpack.c.l.b16 %v892
    %v5067 = vunpack.c.h.b16 %v892
    %v5068 = vunpack.c.l.b16 %v893
    %v5069 = vunpack.c.h.b16 %v893
    %v5070 = vunpack.c.l.b16 %v894
    %v5071 = vunpack.c.h.b16 %v894
    %v5072 = vunpack.c.l.b16 %v895
    %v5073 = vunpack.c.h.b16 %v895
    %v5074 = vunpack.c.l.b16 %v896
    %v5075 = vunpack.c.h.b16 %v896
    %v5076 = vunpack.c.l.b16 %v897
    %v5077 = vunpack.c.h.b16 %v897
    %v5078 = vunpack.c.l.b16 %v898
    %v5079 = vunpack.c.h.b16 %v898
    %v5080 = vunpack.c.l.b16 %v899
    %v5081 = vunpack.c.h.b16 %v899
    %v5082 = vunpack.c.l.b16 %v900
    %v5083 = vunpack.c.h.b16 %v900
    %v5084 = vunpack.c.l.b16 %v901
    %v5085 = vunpack.c.h.b16 %v901
    %v5086 = vunpack.c.l.b16 %v902
    %v5087 = vunpack.c.h.b16 %v902
    %v5088 = vunpack.c.l.b16 %v903
    %v5089 = vunpack.c.h.b16 %v903
    %v5090 = vunpack.c.l.b16 %v904
    %v5091 = vunpack.c.h.b16 %v904
    %v5092 = vunpack.c.l.b16 %v905
    %v5093 = vunpack.c.h.b16 %v905
    %v5094 = vunpack.c.l.b16 %v906
    %v5095 = vunpack.c.h.b16 %v906
    %v5096 = vunpack.c.l.b16 %v907
    %v5097 = vunpack.c.h.b16 %v907
    %v5098 = vunpack.c.l.b16 %v908
    %v5099 = vunpack.c.h.b16 %v908
    %v5100 = vunpack.c.l.b16 %v909
    %v5101 = vunpack.c.h.b16 %v909
    %v5102 = vunpack.c.l.b16 %v910
    %v5103 = vunpack.c.h.b16 %v910
    %v5104 = vunpack.c.l.b16 %v911
    %v5105 = vunpack.c.h.b16 %v911
    %v5106 = vunpack.c.l.b16 %v912
    %v5107 = vunpack.c.h.b16 %v912
    %v5108 = vunpack.c.l.b16 %v913
    %v5109 = vunpack.c.h.b16 %v913
    %v5110 = vunpack.c.l.b16 %v914
    %v5111 = vunpack.c.h.b16 %v914
    %v5112 = vunpack.c.l.b16 %v915
    %v5113 = vunpack.c.h.b16 %v915
    %v5114 = vunpack.c.l.b16 %v916
    %v5115 = vunpack.c.h.b16 %v916
    %v5116 = vunpack.c.l.b16 %v917
    %v5117 = vunpack.c.h.b16 %v917
    %v5118 = vunpack.c.l.b16 %v918
    %v5119 = vunpack.c.h.b16 %v918
    %v5120 = vunpack.c.l.b16 %v919
    %v5121 = vunpack.c.h.b16 %v919
    %v5122 = vunpack.c.l.b16 %v920
    %v5123 = vunpack.c.h.b16 %v920
    %v5124 = vunpack.c.l.b16 %v921
    %v5125 = vunpack.c.h.b16 %v921
    %v5126 = vunpack.c.l.b16 %v922
    %v5127 = vunpack.c.h.b16 %v922
    %v5128 = vunpack.c.l.b16 %v923
    %v5129 = vunpack.c.h.b16 %v923
    %v5130 = vunpack.c.l.b16 %v924
    %v5131 = vunpack.c.h.b16 %v924
    %v5132 = vunpack.c.l.b16 %v925
    %v5133 = vunpack.c.h.b16 %v925
    %v5134 = vunpack.c.l.b16 %v926
    %v5135 = vunpack.c.h.b16 %v926
    %v5136 = vunpack.c.l.b16 %v927
    %v5137 = vunpack.c.h.b16 %v927
    %v5138 = vunpack.c.l.b16 %v928
    %v5139 = vunpack.c.h.b16 %v928
    %v5140 = vunpack.c.l.b16 %v929
    %v5141 = vunpack.c.h.b16 %v929
    %v5142 = vunpack.c.l.b16 %v930
    %v5143 = vunpack.c.h.b16 %v930
    %v5144 = vunpack.c.l.b16 %v931
    %v5145 = vunpack.c.h.b16 %v931
    %v5146 = vunpack.c.l.b16 %v932
    %v5147 = vunpack.c.h.b16 %v932
    %v5148 = vunpack.c.l.b16 %v933
    %v5149 = vunpack.c.h.b16 %v933
    %v5150 = vunpack.c.l.b16 %v934
    %v5151 = vunpack.c.h.b16 %v934
    %v5152 = vunpack.c.l.b16 %v935
    %v5153 = vunpack.c.h.b16 %v935
    %v5154 = vunpack.c.l.b16 %v936
    %v5155 = vunpack.c.h.b16 %v936
    %v5156 = vunpack.c.l.b16 %v937
    %v5157 = vunpack.c.h.b16 %v937
    %v5158 = vunpack.c.l.b16 %v938
    %v5159 = vunpack.c.h.b16 %v938
    %v5160 = vunpack.c.l.b16 %v939
    %v5161 = vunpack.c.h.b16 %v939
    %v5162 = vunpack.c.l.b16 %v940
    %v5163 = vunpack.c.h.b16 %v940
    %v5164 = vunpack.c.l.b16 %v941
    %v5165 = vunpack.c.h.b16 %v941
    %v5166 = vunpack.c.l.b16 %v942
    %v5167 = vunpack.c.h.b16 %v942
    %v5168 = vunpack.c.l.b16 %v943
    %v5169 = vunpack.c.h.b16 %v943
    %v5170 = vunpack.c.l.b16 %v944
    %v5171 = vunpack.c.h.b16 %v944
    %v5172 = vunpack.c.l.b16 %v945
    %v5173 = vunpack.c.h.b16 %v945
    %v5174 = vunpack.c.l.b16 %v946
    %v5175 = vunpack.c.h.b16 %v946
    %v5176 = vunpack.c.l.b16 %v947
    %v5177 = vunpack.c.h.b16 %v947
    %v5178 = vunpack.c.l.b16 %v948
    %v5179 = vunpack.c.h.b16 %v948
    %v5180 = vunpack.c.l.b16 %v949
    %v5181 = vunpack.c.h.b16 %v949
    %v5182 = vunpack.c.l.b16 %v950
    %v5183 = vunpack.c.h.b16 %v950
    %v5184 = vunpack.c.l.b16 %v951
    %v5185 = vunpack.c.h.b16 %v951
    %v5186 = vunpack.c.l.b16 %v952
    %v5187 = vunpack.c.h.b16 %v952
    %v5188 = vunpack.c.l.b16 %v953
    %v5189 = vunpack.c.h.b16 %v953
    %v5190 = vunpack.c.l.b16 %v954
    %v5191 = vunpack.c.h.b16 %v954
    %v5192 = vunpack.c.l.b16 %v955
    %v5193 = vunpack.c.h.b16 %v955
    %v5194 = vunpack.c.l.b16 %v956
    %v5195 = vunpack.c.h.b16 %v956
    %v5196 = vunpack.c.l.b16 %v957
    %v5197 = vunpack.c.h.b16 %v957
    %v5198 = vunpack.c.l.b16 %v958
    %v5199 = vunpack.c.h.b16 %v958
    %v5200 = vunpack.c.l.b16 %v959
    %v5201 = vunpack.c.h.b16 %v959
    %v5202 = vunpack.c.l.b16 %v960
    %v5203 = vunpack.c.h.b16 %v960
    %v5204 = vunpack.c.l.b16 %v961
    %v5205 = vunpack.c.h.b16 %v961
    %v5206 = vunpack.c.l.b16 %v962
    %v5207 = vunpack.c.h.b16 %v962
    %v5208 = vunpack.c.l.b16 %v963
    %v5209 = vunpack.c.h.b16 %v963
    %v5210 = vunpack.c.l.b16 %v964
    %v5211 = vunpack.c.h.b16 %v964
    %v5212 = vunpack.c.l.b16 %v965
    %v5213 = vunpack.c.h.b16 %v965
    %v5214 = vunpack.c.l.b16 %v966
    %v5215 = vunpack.c.h.b16 %v966
    %v5216 = vunpack.c.l.b16 %v967
    %v5217 = vunpack.c.h.b16 %v967
    %v5218 = vunpack.c.l.b16 %v968
    %v5219 = vunpack.c.h.b16 %v968
    %v5220 = vunpack.c.l.b16 %v969
    %v5221 = vunpack.c.h.b16 %v969
    %v5222 = vunpack.c.l.b16 %v970
    %v5223 = vunpack.c.h.b16 %v970
    %v5224 = vunpack.c.l.b16 %v971
    %v5225 = vunpack.c.h.b16 %v971
    %v5226 = vunpack.c.l.b16 %v972
    %v5227 = vunpack.c.h.b16 %v972
    %v5228 = vunpack.c.l.b16 %v973
    %v5229 = vunpack.c.h.b16 %v973
    %v5230 = vunpack.c.l.b16 %v974
    %v5231 = vunpack.c.h.b16 %v974
    %v5232 = vunpack.c.l.b16 %v975
    %v5233 = vunpack.c.h.b16 %v975
    %v5234 = vunpack.c.l.b16 %v976
    %v5235 = vunpack.c.h.b16 %v976
    %v5236 = vunpack.c.l.b16 %v977
    %v5237 = vunpack.c.h.b16 %v977
    %v5238 = vunpack.c.l.b16 %v978
    %v5239 = vunpack.c.h.b16 %v978
    %v5240 = vunpack.c.l.b16 %v979
    %v5241 = vunpack.c.h.b16 %v979
    %v5242 = vunpack.c.l.b16 %v980
    %v5243 = vunpack.c.h.b16 %v980
    %v5244 = vunpack.c.l.b16 %v981
    %v5245 = vunpack.c.h.b16 %v981
    %v5246 = vunpack.c.l.b16 %v982
    %v5247 = vunpack.c.h.b16 %v982
    %v5248 = vunpack.c.l.b16 %v983
    %v5249 = vunpack.c.h.b16 %v983
    %v5250 = vunpack.c.l.b16 %v984
    %v5251 = vunpack.c.h.b16 %v984
    %v5252 = vunpack.c.l.b16 %v985
    %v5253 = vunpack.c.h.b16 %v985
    %v5254 = vunpack.c.l.b16 %v986
    %v5255 = vunpack.c.h.b16 %v986
    %v5256 = vunpack.c.l.b16 %v987
    %v5257 = vunpack.c.h.b16 %v987
    %v5258 = vunpack.c.l.b16 %v988
    %v5259 = vunpack.c.h.b16 %v988
    %v5260 = vunpack.c.l.b16 %v989
    %v5261 = vunpack.c.h.b16 %v989
    %v5262 = vunpack.c.l.b16 %v990
    %v5263 = vunpack.c.h.b16 %v990
    %v5264 = vunpack.c.l.b16 %v991
    %v5265 = vunpack.c.h.b16 %v991
    %v5266 = vunpack.c.l.b16 %v992
    %v5267 = vunpack.c.h.b16 %v992
    %v5268 = vunpack.c.l.b16 %v993
    %v5269 = vunpack.c.h.b16 %v993
    %v5270 = vunpack.c.l.b16 %v994
    %v5271 = vunpack.c.h.b16 %v994
    %v5272 = vunpack.c.l.b16 %v995
    %v5273 = vunpack.c.h.b16 %v995
    %v5274 = vunpack.c.l.b16 %v996
    %v5275 = vunpack.c.h.b16 %v996
    %v5276 = vunpack.c.l.b16 %v997
    %v5277 = vunpack.c.h.b16 %v997
    %v5278 = vunpack.c.l.b16 %v998
    %v5279 = vunpack.c.h.b16 %v998
    %v5280 = vunpack.c.l.b16 %v999
    %v5281 = vunpack.c.h.b16 %v999
    %v5282 = vunpack.c.l.b16 %v1000
    %v5283 = vunpack.c.h.b16 %v1000
    %v5284 = vunpack.c.l.b16 %v1001
    %v5285 = vunpack.c.h.b16 %v1001
    %v5286 = vunpack.c.l.b16 %v1002
    %v5287 = vunpack.c.h.b16 %v1002
    %v5288 = vunpack.c.l.b16 %v1003
    %v5289 = vunpack.c.h.b16 %v1003
    %v5290 = vunpack.c.l.b16 %v1004
    %v5291 = vunpack.c.h.b16 %v1004
    %v5292 = vunpack.c.l.b16 %v1005
    %v5293 = vunpack.c.h.b16 %v1005
    %v5294 = vunpack.c.l.b16 %v1006
    %v5295 = vunpack.c.h.b16 %v1006
    %v5296 = vunpack.c.l.b16 %v1007
    %v5297 = vunpack.c.h.b16 %v1007
    %v5298 = vunpack.c.l.b16 %v1008
    %v5299 = vunpack.c.h.b16 %v1008
    %v5300 = vunpack.c.l.b16 %v1009
    %v5301 = vunpack.c.h.b16 %v1009
    %v5302 = vunpack.c.l.b16 %v1010
    %v5303 = vunpack.c.h.b16 %v1010
    %v5304 = vunpack.c.l.b16 %v1011
    %v5305 = vunpack.c.h.b16 %v1011
    %v5306 = vunpack.c.l.b16 %v1012
    %v5307 = vunpack.c.h.b16 %v1012
    %v5308 = vunpack.c.l.b16 %v1013
    %v5309 = vunpack.c.h.b16 %v1013
    %v5310 = vunpack.c.l.b16 %v1014
    %v5311 = vunpack.c.h.b16 %v1014
    %v5312 = vunpack.c.l.b16 %v1015
    %v5313 = vunpack.c.h.b16 %v1015
    %v5314 = vunpack.c.l.b16 %v1016
    %v5315 = vunpack.c.h.b16 %v1016
    %v5316 = vunpack.c.l.b16 %v1017
    %v5317 = vunpack.c.h.b16 %v1017
    %v5318 = vunpack.c.l.b16 %v1018
    %v5319 = vunpack.c.h.b16 %v1018
    %v5320 = vunpack.c.l.b16 %v1019
    %v5321 = vunpack.c.h.b16 %v1019
    %v5322 = vunpack.c.l.b16 %v1020
    %v5323 = vunpack.c.h.b16 %v1020
    %v5324 = vunpack.c.l.b16 %v1021
    %v5325 = vunpack.c.h.b16 %v1021
    %v5326 = vunpack.c.l.b16 %v1022
    %v5327 = vunpack.c.h.b16 %v1022
    %v5328 = vunpack.c.l.b16 %v1023
    %v5329 = vunpack.c.h.b16 %v1023
    %v5330 = vunpack.c.l.b16 %v1024
    %v5331 = vunpack.c.h.b16 %v1024
    %v5332 = vunpack.c.l.b16 %v1025
    %v5333 = vunpack.c.h.b16 %v1025
    %v5334 = vunpack.c.l.b16 %v1026
    %v5335 = vunpack.c.h.b16 %v1026
    %v5336 = vunpack.c.l.b16 %v1027
    %v5337 = vunpack.c.h.b16 %v1027
    %v5338 = vunpack.c.l.b16 %v1028
    %v5339 = vunpack.c.h.b16 %v1028
    %v5340 = vunpack.c.l.b16 %v1029
    %v5341 = vunpack.c.h.b16 %v1029
    %v5342 = vunpack.c.l.b16 %v1030
    %v5343 = vunpack.c.h.b16 %v1030
    %v5344 = vunpack.c.l.b16 %v1031
    %v5345 = vunpack.c.h.b16 %v1031
    %v5346 = vunpack.c.l.b16 %v1032
    %v5347 = vunpack.c.h.b16 %v1032
    %v5348 = vunpack.c.l.b16 %v1033
    %v5349 = vunpack.c.h.b16 %v1033
    %v5350 = vunpack.c.l.b16 %v1034
    %v5351 = vunpack.c.h.b16 %v1034
    %v5352 = vunpack.c.l.b16 %v1035
    %v5353 = vunpack.c.h.b16 %v1035
    %v5354 = vunpack.c.l.b16 %v1036
    %v5355 = vunpack.c.h.b16 %v1036
    %v5356 = vunpack.c.l.b16 %v1037
    %v5357 = vunpack.c.h.b16 %v1037
    %v5358 = vunpack.c.l.b16 %v1038
    %v5359 = vunpack.c.h.b16 %v1038
    %v5360 = vunpack.c.l.b16 %v1039
    %v5361 = vunpack.c.h.b16 %v1039
    %v5362 = vunpack.c.l.b16 %v1040
    %v5363 = vunpack.c.h.b16 %v1040
    %v5364 = vunpack.c.l.b16 %v1041
    %v5365 = vunpack.c.h.b16 %v1041
    %v5366 = vunpack.c.l.b16 %v1042
    %v5367 = vunpack.c.h.b16 %v1042
    %v5368 = vunpack.c.l.b16 %v1043
    %v5369 = vunpack.c.h.b16 %v1043
    %v5370 = vunpack.c.l.b16 %v1044
    %v5371 = vunpack.c.h.b16 %v1044
    %v5372 = vunpack.c.l.b16 %v1045
    %v5373 = vunpack.c.h.b16 %v1045
    %v5374 = vunpack.c.l.b16 %v1046
    %v5375 = vunpack.c.h.b16 %v1046
    %v5376 = vunpack.c.l.b16 %v1047
    %v5377 = vunpack.c.h.b16 %v1047
    %v5378 = vunpack.c.l.b16 %v1048
    %v5379 = vunpack.c.h.b16 %v1048
    %v5380 = vunpack.c.l.b16 %v1049
    %v5381 = vunpack.c.h.b16 %v1049
    %v5382 = vunpack.c.l.b16 %v1050
    %v5383 = vunpack.c.h.b16 %v1050
    %v5384 = vunpack.c.l.b16 %v1051
    %v5385 = vunpack.c.h.b16 %v1051
    %v5386 = vunpack.c.l.b16 %v1052
    %v5387 = vunpack.c.h.b16 %v1052
    %v5388 = vunpack.c.l.b16 %v1053
    %v5389 = vunpack.c.h.b16 %v1053
    %v5390 = vunpack.c.l.b16 %v1054
    %v5391 = vunpack.c.h.b16 %v1054
    %v5392 = vunpack.c.l.b16 %v1055
    %v5393 = vunpack.c.h.b16 %v1055
    %v5394 = vunpack.c.l.b16 %v1056
    %v5395 = vunpack.c.h.b16 %v1056
    %v5396 = vunpack.c.l.b16 %v1057
    %v5397 = vunpack.c.h.b16 %v1057
    %v5398 = vunpack.c.l.b16 %v1058
    %v5399 = vunpack.c.h.b16 %v1058
    %v5400 = vunpack.c.l.b16 %v1059
    %v5401 = vunpack.c.h.b16 %v1059
    %v5402 = vunpack.c.l.b16 %v1060
    %v5403 = vunpack.c.h.b16 %v1060
    %v5404 = vunpack.c.l.b16 %v1061
    %v5405 = vunpack.c.h.b16 %v1061
    %v5406 = vunpack.c.l.b16 %v1062
    %v5407 = vunpack.c.h.b16 %v1062
    %v5408 = vunpack.c.l.b16 %v1063
    %v5409 = vunpack.c.h.b16 %v1063
    %v5410 = vunpack.c.l.b16 %v1064
    %v5411 = vunpack.c.h.b16 %v1064
    %v5412 = vunpack.c.l.b16 %v1065
    %v5413 = vunpack.c.h.b16 %v1065
    %v5414 = vunpack.c.l.b16 %v1066
    %v5415 = vunpack.c.h.b16 %v1066
    %v5416 = vunpack.c.l.b16 %v1067
    %v5417 = vunpack.c.h.b16 %v1067
    %v5418 = vunpack.c.l.b16 %v1068
    %v5419 = vunpack.c.h.b16 %v1068
    %v5420 = vunpack.c.l.b16 %v1069
    %v5421 = vunpack.c.h.b16 %v1069
    %v5422 = vunpack.c.l.b16 %v1070
    %v5423 = vunpack.c.h.b16 %v1070
    %v5424 = vunpack.c.l.b16 %v1071
    %v5425 = vunpack.c.h.b16 %v1071
    %v5426 = vunpack.c.l.b16 %v1072
    %v5427 = vunpack.c.h.b16 %v1072
    %v5428 = vunpack.c.l.b16 %v1073
    %v5429 = vunpack.c.h.b16 %v1073
    %v5430 = vunpack.c.l.b16 %v1074
    %v5431 = vunpack.c.h.b16 %v1074
    %v5432 = vunpack.c.l.b16 %v1075
    %v5433 = vunpack.c.h.b16 %v1075
    %v5434 = vunpack.c.l.b16 %v1076
    %v5435 = vunpack.c.h.b16 %v1076
    %v5436 = vunpack.c.l.b16 %v1077
    %v5437 = vunpack.c.h.b16 %v1077
    %v5438 = vunpack.c.l.b16 %v1078
    %v5439 = vunpack.c.h.b16 %v1078
    %v5440 = vunpack.c.l.b16 %v1079
    %v5441 = vunpack.c.h.b16 %v1079
    %v5442 = vunpack.c.l.b16 %v1080
    %v5443 = vunpack.c.h.b16 %v1080
    %v5444 = vunpack.c.l.b16 %v1081
    %v5445 = vunpack.c.h.b16 %v1081
    %v5446 = vunpack.c.l.b16 %v1082
    %v5447 = vunpack.c.h.b16 %v1082
    %v5448 = vunpack.c.l.b16 %v1083
    %v5449 = vunpack.c.h.b16 %v1083
    %v5450 = vunpack.c.l.b16 %v1084
    %v5451 = vunpack.c.h.b16 %v1084
    %v5452 = vunpack.c.l.b16 %v1085
    %v5453 = vunpack.c.h.b16 %v1085
    %v5454 = vunpack.c.l.b16 %v1086
    %v5455 = vunpack.c.h.b16 %v1086
    %v5456 = vunpack.c.l.b16 %v1087
    %v5457 = vunpack.c.h.b16 %v1087
    %v5458 = vunpack.c.l.b16 %v1088
    %v5459 = vunpack.c.h.b16 %v1088
    %v5460 = vunpack.c.l.b16 %v1089
    %v5461 = vunpack.c.h.b16 %v1089
    %v5462 = vunpack.c.l.b16 %v1090
    %v5463 = vunpack.c.h.b16 %v1090
    %v5464 = vunpack.c.l.b16 %v1091
    %v5465 = vunpack.c.h.b16 %v1091
    %v5466 = vunpack.c.l.b16 %v1092
    %v5467 = vunpack.c.h.b16 %v1092
    %v5468 = vunpack.c.l.b16 %v1093
    %v5469 = vunpack.c.h.b16 %v1093
    %v5470 = vunpack.c.l.b16 %v1094
    %v5471 = vunpack.c.h.b16 %v1094
    %v5472 = vunpack.c.l.b16 %v1095
    %v5473 = vunpack.c.h.b16 %v1095
    %v5474 = vunpack.c.l.b16 %v1096
    %v5475 = vunpack.c.h.b16 %v1096
    %v5476 = vunpack.c.l.b16 %v1097
    %v5477 = vunpack.c.h.b16 %v1097
    %v5478 = vunpack.c.l.b16 %v1098
    %v5479 = vunpack.c.h.b16 %v1098
    %v5480 = vunpack.c.l.b16 %v1099
    %v5481 = vunpack.c.h.b16 %v1099
    %v5482 = vunpack.c.l.b16 %v1100
    %v5483 = vunpack.c.h.b16 %v1100
    %v5484 = vunpack.c.l.b16 %v1101
    %v5485 = vunpack.c.h.b16 %v1101
    %v5486 = vunpack.c.l.b16 %v1102
    %v5487 = vunpack.c.h.b16 %v1102
    %v5488 = vunpack.c.l.b16 %v1103
    %v5489 = vunpack.c.h.b16 %v1103
    %v5490 = vunpack.c.l.b16 %v1104
    %v5491 = vunpack.c.h.b16 %v1104
    %v5492 = vunpack.c.l.b16 %v1105
    %v5493 = vunpack.c.h.b16 %v1105
    %v5494 = vunpack.c.l.b16 %v1106
    %v5495 = vunpack.c.h.b16 %v1106
    %v5496 = vunpack.c.l.b16 %v1107
    %v5497 = vunpack.c.h.b16 %v1107
    %v5498 = vunpack.c.l.b16 %v1108
    %v5499 = vunpack.c.h.b16 %v1108
    %v5500 = vunpack.c.l.b16 %v1109
    %v5501 = vunpack.c.h.b16 %v1109
    %v5502 = vunpack.c.l.b16 %v1110
    %v5503 = vunpack.c.h.b16 %v1110
    %v5504 = vunpack.c.l.b16 %v1111
    %v5505 = vunpack.c.h.b16 %v1111
    %v5506 = vunpack.c.l.b16 %v1112
    %v5507 = vunpack.c.h.b16 %v1112
    %v5508 = vunpack.c.l.b16 %v1113
    %v5509 = vunpack.c.h.b16 %v1113
    %v5510 = vunpack.c.l.b16 %v1114
    %v5511 = vunpack.c.h.b16 %v1114
    %v5512 = vunpack.c.l.b16 %v1115
    %v5513 = vunpack.c.h.b16 %v1115
    %v5514 = vunpack.c.l.b16 %v1116
    %v5515 = vunpack.c.h.b16 %v1116
    %v5516 = vunpack.c.l.b16 %v1117
    %v5517 = vunpack.c.h.b16 %v1117
    %v5518 = vunpack.c.l.b16 %v1118
    %v5519 = vunpack.c.h.b16 %v1118
    %v5520 = vunpack.c.l.b16 %v1119
    %v5521 = vunpack.c.h.b16 %v1119
    %v5522 = vunpack.c.l.b16 %v1120
    %v5523 = vunpack.c.h.b16 %v1120
    %v5524 = vunpack.c.l.b16 %v1121
    %v5525 = vunpack.c.h.b16 %v1121
    %v5526 = vunpack.c.l.b16 %v1122
    %v5527 = vunpack.c.h.b16 %v1122
    %v5528 = vunpack.c.l.b16 %v1123
    %v5529 = vunpack.c.h.b16 %v1123
    %v5530 = vunpack.c.l.b16 %v1124
    %v5531 = vunpack.c.h.b16 %v1124
    %v5532 = vunpack.c.l.b16 %v1125
    %v5533 = vunpack.c.h.b16 %v1125
    %v5534 = vunpack.c.l.b16 %v1126
    %v5535 = vunpack.c.h.b16 %v1126
    %v5536 = vunpack.c.l.b16 %v1127
    %v5537 = vunpack.c.h.b16 %v1127
    %v5538 = vunpack.c.l.b16 %v1128
    %v5539 = vunpack.c.h.b16 %v1128
    %v5540 = vunpack.c.l.b16 %v1129
    %v5541 = vunpack.c.h.b16 %v1129
    %v5542 = vunpack.c.l.b16 %v1130
    %v5543 = vunpack.c.h.b16 %v1130
    %v5544 = vunpack.c.l.b16 %v1131
    %v5545 = vunpack.c.h.b16 %v1131
    %v5546 = vunpack.c.l.b16 %v1132
    %v5547 = vunpack.c.h.b16 %v1132
    %v5548 = vunpack.c.l.b16 %v1133
    %v5549 = vunpack.c.h.b16 %v1133
    %v5550 = vunpack.c.l.b16 %v1134
    %v5551 = vunpack.c.h.b16 %v1134
    %v5552 = vunpack.c.l.b16 %v1135
    %v5553 = vunpack.c.h.b16 %v1135
    %v5554 = vunpack.c.l.b16 %v1136
    %v5555 = vunpack.c.h.b16 %v1136
    %v5556 = vunpack.c.l.b16 %v1137
    %v5557 = vunpack.c.h.b16 %v1137
    %v5558 = vunpack.c.l.b16 %v1138
    %v5559 = vunpack.c.h.b16 %v1138
    %v5560 = vunpack.c.l.b16 %v1139
    %v5561 = vunpack.c.h.b16 %v1139
    %v5562 = vunpack.c.l.b16 %v1140
    %v5563 = vunpack.c.h.b16 %v1140
    %v5564 = vunpack.c.l.b16 %v1141
    %v5565 = vunpack.c.h.b16 %v1141
    %v5566 = vunpack.c.l.b16 %v1142
    %v5567 = vunpack.c.h.b16 %v1142
    %v5568 = vunpack.c.l.b16 %v1143
    %v5569 = vunpack.c.h.b16 %v1143
    %v5570 = vunpack.c.l.b16 %v1144
    %v5571 = vunpack.c.h.b16 %v1144
    %v5572 = vunpack.c.l.b16 %v1145
    %v5573 = vunpack.c.h.b16 %v1145
    %v5574 = vunpack.c.l.b16 %v1146
    %v5575 = vunpack.c.h.b16 %v1146
    %v5576 = vunpack.c.l.b16 %v1147
    %v5577 = vunpack.c.h.b16 %v1147
    %v5578 = vunpack.c.l.b16 %v1148
    %v5579 = vunpack.c.h.b16 %v1148
    %v5580 = vunpack.c.l.b16 %v1149
    %v5581 = vunpack.c.h.b16 %v1149
    %v5582 = vunpack.c.l.b16 %v1150
    %v5583 = vunpack.c.h.b16 %v1150
    %v5584 = vunpack.c.l.b16 %v1151
    %v5585 = vunpack.c.h.b16 %v1151
    %v5586 = vunpack.c.l.b16 %v1152
    %v5587 = vunpack.c.h.b16 %v1152
    %v5588 = vunpack.c.l.b16 %v1153
    %v5589 = vunpack.c.h.b16 %v1153
    %v5590 = vunpack.c.l.b16 %v1154
    %v5591 = vunpack.c.h.b16 %v1154
    %v5592 = vunpack.c.l.b16 %v1155
    %v5593 = vunpack.c.h.b16 %v1155
    %v5594 = vunpack.c.l.b16 %v1156
    %v5595 = vunpack.c.h.b16 %v1156
    %v5596 = vunpack.c.l.b16 %v1157
    %v5597 = vunpack.c.h.b16 %v1157
    %v5598 = vunpack.c.l.b16 %v1158
    %v5599 = vunpack.c.h.b16 %v1158
    %v5600 = vunpack.c.l.b16 %v1159
    %v5601 = vunpack.c.h.b16 %v1159
    %v5602 = vunpack.c.l.b16 %v1160
    %v5603 = vunpack.c.h.b16 %v1160
    %v5604 = vunpack.c.l.b16 %v1161
    %v5605 = vunpack.c.h.b16 %v1161
    %v5606 = vunpack.c.l.b16 %v1162
    %v5607 = vunpack.c.h.b16 %v1162
    %v5608 = vunpack.c.l.b16 %v1163
    %v5609 = vunpack.c.h.b16 %v1163
    %v5610 = vunpack.c.l.b16 %v1164
    %v5611 = vunpack.c.h.b16 %v1164
    %v5612 = vunpack.c.l.b16 %v1165
    %v5613 = vunpack.c.h.b16 %v1165
    %v5614 = vunpack.c.l.b16 %v1166
    %v5615 = vunpack.c.h.b16 %v1166
    %v5616 = vunpack.c.l.b16 %v1167
    %v5617 = vunpack.c.h.b16 %v1167
    %v5618 = vunpack.c.l.b16 %v1168
    %v5619 = vunpack.c.h.b16 %v1168
    %v5620 = vunpack.c.l.b16 %v1169
    %v5621 = vunpack.c.h.b16 %v1169
    %v5622 = vunpack.c.l.b16 %v1170
    %v5623 = vunpack.c.h.b16 %v1170
    %v5624 = vunpack.c.l.b16 %v1171
    %v5625 = vunpack.c.h.b16 %v1171
    %v5626 = vunpack.c.l.b16 %v1172
    %v5627 = vunpack.c.h.b16 %v1172
    %v5628 = vunpack.c.l.b16 %v1173
    %v5629 = vunpack.c.h.b16 %v1173
    %v5630 = vunpack.c.l.b16 %v1174
    %v5631 = vunpack.c.h.b16 %v1174
    %v5632 = vunpack.c.l.b16 %v1175
    %v5633 = vunpack.c.h.b16 %v1175
    %v5634 = vunpack.c.l.b16 %v1176
    %v5635 = vunpack.c.h.b16 %v1176
    %v5636 = vunpack.c.l.b16 %v1177
    %v5637 = vunpack.c.h.b16 %v1177
    %v5638 = vunpack.c.l.b16 %v1178
    %v5639 = vunpack.c.h.b16 %v1178
    %v5640 = vunpack.c.l.b16 %v1179
    %v5641 = vunpack.c.h.b16 %v1179
    %v5642 = vunpack.c.l.b16 %v1180
    %v5643 = vunpack.c.h.b16 %v1180
    %v5644 = vunpack.c.l.b16 %v1181
    %v5645 = vunpack.c.h.b16 %v1181
    %v5646 = vunpack.c.l.b16 %v1182
    %v5647 = vunpack.c.h.b16 %v1182
    %v5648 = vunpack.c.l.b16 %v1183
    %v5649 = vunpack.c.h.b16 %v1183
    %v5650 = vunpack.c.l.b16 %v1184
    %v5651 = vunpack.c.h.b16 %v1184
    %v5652 = vunpack.c.l.b16 %v1185
    %v5653 = vunpack.c.h.b16 %v1185
    %v5654 = vunpack.c.l.b16 %v1186
    %v5655 = vunpack.c.h.b16 %v1186
    %v5656 = vunpack.c.l.b16 %v1187
    %v5657 = vunpack.c.h.b16 %v1187
    %v5658 = vunpack.c.l.b16 %v1188
    %v5659 = vunpack.c.h.b16 %v1188
    %v5660 = vunpack.c.l.b16 %v1189
    %v5661 = vunpack.c.h.b16 %v1189
    %v5662 = vunpack.c.l.b16 %v1190
    %v5663 = vunpack.c.h.b16 %v1190
    %v5664 = vunpack.c.l.b16 %v1191
    %v5665 = vunpack.c.h.b16 %v1191
    %v5666 = vunpack.c.l.b16 %v1192
    %v5667 = vunpack.c.h.b16 %v1192
    %v5668 = vunpack.c.l.b16 %v1193
    %v5669 = vunpack.c.h.b16 %v1193
    %v5670 = vunpack.c.l.b16 %v1194
    %v5671 = vunpack.c.h.b16 %v1194
    %v5672 = vunpack.c.l.b16 %v1195
    %v5673 = vunpack.c.h.b16 %v1195
    %v5674 = vunpack.c.l.b16 %v1196
    %v5675 = vunpack.c.h.b16 %v1196
    %v5676 = vunpack.c.l.b16 %v1197
    %v5677 = vunpack.c.h.b16 %v1197
    %v5678 = vunpack.c.l.b16 %v1198
    %v5679 = vunpack.c.h.b16 %v1198
    %v5680 = vunpack.c.l.b16 %v1199
    %v5681 = vunpack.c.h.b16 %v1199
    %v5682 = vunpack.c.l.b16 %v1200
    %v5683 = vunpack.c.h.b16 %v1200
    %v5684 = vunpack.c.l.b16 %v1201
    %v5685 = vunpack.c.h.b16 %v1201
    %v5686 = vunpack.c.l.b16 %v1202
    %v5687 = vunpack.c.h.b16 %v1202
    %v5688 = vunpack.c.l.b16 %v1203
    %v5689 = vunpack.c.h.b16 %v1203
    %v5690 = vunpack.c.l.b16 %v1204
    %v5691 = vunpack.c.h.b16 %v1204
    %v5692 = vunpack.c.l.b16 %v1205
    %v5693 = vunpack.c.h.b16 %v1205
    %v5694 = vunpack.c.l.b16 %v1206
    %v5695 = vunpack.c.h.b16 %v1206
    %v5696 = vunpack.c.l.b16 %v1207
    %v5697 = vunpack.c.h.b16 %v1207
    %v5698 = vunpack.c.l.b16 %v1208
    %v5699 = vunpack.c.h.b16 %v1208
    %v5700 = vunpack.c.l.b16 %v1209
    %v5701 = vunpack.c.h.b16 %v1209
    %v5702 = vunpack.c.l.b16 %v1210
    %v5703 = vunpack.c.h.b16 %v1210
    %v5704 = vunpack.c.l.b16 %v1211
    %v5705 = vunpack.c.h.b16 %v1211
    %v5706 = vunpack.c.l.b16 %v1212
    %v5707 = vunpack.c.h.b16 %v1212
    %v5708 = vunpack.c.l.b16 %v1213
    %v5709 = vunpack.c.h.b16 %v1213
    %v5710 = vunpack.c.l.b16 %v1214
    %v5711 = vunpack.c.h.b16 %v1214
    %v5712 = vunpack.c.l.b16 %v1215
    %v5713 = vunpack.c.h.b16 %v1215
    %v5714 = vunpack.c.l.b16 %v1216
    %v5715 = vunpack.c.h.b16 %v1216
    %v5716 = vunpack.c.l.b16 %v1217
    %v5717 = vunpack.c.h.b16 %v1217
    %v5718 = vunpack.c.l.b16 %v1218
    %v5719 = vunpack.c.h.b16 %v1218
    %v5720 = vunpack.c.l.b16 %v1219
    %v5721 = vunpack.c.h.b16 %v1219
    %v5722 = vunpack.c.l.b16 %v1220
    %v5723 = vunpack.c.h.b16 %v1220
    %v5724 = vunpack.c.l.b16 %v1221
    %v5725 = vunpack.c.h.b16 %v1221
    %v5726 = vunpack.c.l.b16 %v1222
    %v5727 = vunpack.c.h.b16 %v1222
    %v5728 = vunpack.c.l.b16 %v1223
    %v5729 = vunpack.c.h.b16 %v1223
    %v5730 = vunpack.c.l.b16 %v1224
    %v5731 = vunpack.c.h.b16 %v1224
    %v5732 = vunpack.c.l.b16 %v1225
    %v5733 = vunpack.c.h.b16 %v1225
    %v5734 = vunpack.c.l.b16 %v1226
    %v5735 = vunpack.c.h.b16 %v1226
    %v5736 = vunpack.c.l.b16 %v1227
    %v5737 = vunpack.c.h.b16 %v1227
    %v5738 = vunpack.c.l.b16 %v1228
    %v5739 = vunpack.c.h.b16 %v1228
    %v5740 = vunpack.c.l.b16 %v1229
    %v5741 = vunpack.c.h.b16 %v1229
    %v5742 = vunpack.c.l.b16 %v1230
    %v5743 = vunpack.c.h.b16 %v1230
    %v5744 = vunpack.c.l.b16 %v1231
    %v5745 = vunpack.c.h.b16 %v1231
    %v5746 = vunpack.c.l.b16 %v1232
    %v5747 = vunpack.c.h.b16 %v1232
    %v5748 = vunpack.c.l.b16 %v1233
    %v5749 = vunpack.c.h.b16 %v1233
    %v5750 = vunpack.c.l.b16 %v1234
    %v5751 = vunpack.c.h.b16 %v1234
    %v5752 = vunpack.c.l.b16 %v1235
    %v5753 = vunpack.c.h.b16 %v1235
    %v5754 = vunpack.c.l.b16 %v1236
    %v5755 = vunpack.c.h.b16 %v1236
    %v5756 = vunpack.c.l.b16 %v1237
    %v5757 = vunpack.c.h.b16 %v1237
    %v5758 = vunpack.c.l.b16 %v1238
    %v5759 = vunpack.c.h.b16 %v1238
    %v5760 = vunpack.c.l.b16 %v1239
    %v5761 = vunpack.c.h.b16 %v1239
    %v5762 = vunpack.c.l.b16 %v1240
    %v5763 = vunpack.c.h.b16 %v1240
    %v5764 = vunpack.c.l.b16 %v1241
    %v5765 = vunpack.c.h.b16 %v1241
    %v5766 = vunpack.c.l.b16 %v1242
    %v5767 = vunpack.c.h.b16 %v1242
    %v5768 = vunpack.c.l.b16 %v1243
    %v5769 = vunpack.c.h.b16 %v1243
    %v5770 = vunpack.c.l.b16 %v1244
    %v5771 = vunpack.c.h.b16 %v1244
    %v5772 = vunpack.c.l.b16 %v1245
    %v5773 = vunpack.c.h.b16 %v1245
    %v5774 = vunpack.c.l.b16 %v1246
    %v5775 = vunpack.c.h.b16 %v1246
    %v5776 = vunpack.c.l.b16 %v1247
    %v5777 = vunpack.c.h.b16 %v1247
    %v5778 = vunpack.c.l.b16 %v1248
    %v5779 = vunpack.c.h.b16 %v1248
    %v5780 = vunpack.c.l.b16 %v1249
    %v5781 = vunpack.c.h.b16 %v1249
    %v5782 = vunpack.c.l.b16 %v1250
    %v5783 = vunpack.c.h.b16 %v1250
    %v5784 = vunpack.c.l.b16 %v1251
    %v5785 = vunpack.c.h.b16 %v1251
    %v5786 = vunpack.c.l.b16 %v1252
    %v5787 = vunpack.c.h.b16 %v1252
    %v5788 = vunpack.c.l.b16 %v1253
    %v5789 = vunpack.c.h.b16 %v1253
    %v5790 = vunpack.c.l.b16 %v1254
    %v5791 = vunpack.c.h.b16 %v1254
    %v5792 = vunpack.c.l.b16 %v1255
    %v5793 = vunpack.c.h.b16 %v1255
    %v5794 = vunpack.c.l.b16 %v1256
    %v5795 = vunpack.c.h.b16 %v1256
    %v5796 = vunpack.c.l.b16 %v1257
    %v5797 = vunpack.c.h.b16 %v1257
    %v5798 = vunpack.c.l.b16 %v1258
    %v5799 = vunpack.c.h.b16 %v1258
    %v5800 = vunpack.c.l.b16 %v1259
    %v5801 = vunpack.c.h.b16 %v1259
    %v5802 = vunpack.c.l.b16 %v1260
    %v5803 = vunpack.c.h.b16 %v1260
    %v5804 = vunpack.c.l.b16 %v1261
    %v5805 = vunpack.c.h.b16 %v1261
    %v5806 = vunpack.c.l.b16 %v1262
    %v5807 = vunpack.c.h.b16 %v1262
    %v5808 = vunpack.c.l.b16 %v1263
    %v5809 = vunpack.c.h.b16 %v1263
    %v5810 = vunpack.c.l.b16 %v1264
    %v5811 = vunpack.c.h.b16 %v1264
    %v5812 = vunpack.c.l.b16 %v1265
    %v5813 = vunpack.c.h.b16 %v1265
    %v5814 = vunpack.c.l.b16 %v1266
    %v5815 = vunpack.c.h.b16 %v1266
    %v5816 = vunpack.c.l.b16 %v1267
    %v5817 = vunpack.c.h.b16 %v1267
    %v5818 = vunpack.c.l.b16 %v1268
    %v5819 = vunpack.c.h.b16 %v1268
    %v5820 = vunpack.c.l.b16 %v1269
    %v5821 = vunpack.c.h.b16 %v1269
    %v5822 = vunpack.c.l.b16 %v1270
    %v5823 = vunpack.c.h.b16 %v1270
    %v5824 = vunpack.c.l.b16 %v1271
    %v5825 = vunpack.c.h.b16 %v1271
    %v5826 = vunpack.c.l.b16 %v1272
    %v5827 = vunpack.c.h.b16 %v1272
    %v5828 = vunpack.c.l.b16 %v1273
    %v5829 = vunpack.c.h.b16 %v1273
    %v5830 = vunpack.c.l.b16 %v1274
    %v5831 = vunpack.c.h.b16 %v1274
    %v5832 = vunpack.c.l.b16 %v1275
    %v5833 = vunpack.c.h.b16 %v1275
    %v5834 = vunpack.c.l.b16 %v1276
    %v5835 = vunpack.c.h.b16 %v1276
    %v5836 = vunpack.c.l.b16 %v1277
    %v5837 = vunpack.c.h.b16 %v1277
    %v5838 = vunpack.c.l.b16 %v1278
    %v5839 = vunpack.c.h.b16 %v1278
    %v5840 = vunpack.c.l.b16 %v1279
    %v5841 = vunpack.c.h.b16 %v1279
    %v5842 = vunpack.c.l.b16 %v1280
    %v5843 = vunpack.c.h.b16 %v1280
    %v5844 = vunpack.c.l.b16 %v1281
    %v5845 = vunpack.c.h.b16 %v1281
    %v5846 = vunpack.c.l.b16 %v1282
    %v5847 = vunpack.c.h.b16 %v1282
    %v5848 = vunpack.c.l.b16 %v1283
    %v5849 = vunpack.c.h.b16 %v1283
    %v5850 = vunpack.c.l.b16 %v1284
    %v5851 = vunpack.c.h.b16 %v1284
    %v5852 = vunpack.c.l.b16 %v1285
    %v5853 = vunpack.c.h.b16 %v1285
    %v5854 = vunpack.c.l.b16 %v1286
    %v5855 = vunpack.c.h.b16 %v1286
    %v5856 = vunpack.c.l.b16 %v1287
    %v5857 = vunpack.c.h.b16 %v1287
    %v5858 = vunpack.c.l.b16 %v1288
    %v5859 = vunpack.c.h.b16 %v1288
    %v5860 = vunpack.c.l.b16 %v1289
    %v5861 = vunpack.c.h.b16 %v1289
    %v5862 = vunpack.c.l.b16 %v1290
    %v5863 = vunpack.c.h.b16 %v1290
    %v5864 = vunpack.c.l.b16 %v1291
    %v5865 = vunpack.c.h.b16 %v1291
    %v5866 = vunpack.c.l.b16 %v1292
    %v5867 = vunpack.c.h.b16 %v1292
    %v5868 = vunpack.c.l.b16 %v1293
    %v5869 = vunpack.c.h.b16 %v1293
    %v5870 = vunpack.c.l.b16 %v1294
    %v5871 = vunpack.c.h.b16 %v1294
    %v5872 = vunpack.c.l.b16 %v1295
    %v5873 = vunpack.c.h.b16 %v1295
    %v5874 = vunpack.c.l.b16 %v1296
    %v5875 = vunpack.c.h.b16 %v1296
    %v5876 = vunpack.c.l.b16 %v1297
    %v5877 = vunpack.c.h.b16 %v1297
    %v5878 = vunpack.c.l.b16 %v1298
    %v5879 = vunpack.c.h.b16 %v1298
    %v5880 = vunpack.c.l.b16 %v1299
    %v5881 = vunpack.c.h.b16 %v1299
    %v5882 = vunpack.c.l.b16 %v1300
    %v5883 = vunpack.c.h.b16 %v1300
    %v5884 = vunpack.c.l.b16 %v1301
    %v5885 = vunpack.c.h.b16 %v1301
    %v5886 = vunpack.c.l.b16 %v1302
    %v5887 = vunpack.c.h.b16 %v1302
    %v5888 = vunpack.c.l.b16 %v1303
    %v5889 = vunpack.c.h.b16 %v1303
    %v5890 = vunpack.c.l.b16 %v1304
    %v5891 = vunpack.c.h.b16 %v1304
    %v5892 = vunpack.c.l.b16 %v1305
    %v5893 = vunpack.c.h.b16 %v1305
    %v5894 = vunpack.c.l.b16 %v1306
    %v5895 = vunpack.c.h.b16 %v1306
    %v5896 = vunpack.c.l.b16 %v1307
    %v5897 = vunpack.c.h.b16 %v1307
    %v5898 = vunpack.c.l.b16 %v1308
    %v5899 = vunpack.c.h.b16 %v1308
    %v5900 = vunpack.c.l.b16 %v1309
    %v5901 = vunpack.c.h.b16 %v1309
    %v5902 = vunpack.c.l.b16 %v1310
    %v5903 = vunpack.c.h.b16 %v1310
    %v5904 = vunpack.c.l.b16 %v1311
    %v5905 = vunpack.c.h.b16 %v1311
    %v5906 = vunpack.c.l.b16 %v1312
    %v5907 = vunpack.c.h.b16 %v1312
    %v5908 = vunpack.c.l.b16 %v1313
    %v5909 = vunpack.c.h.b16 %v1313
    %v5910 = vunpack.c.l.b16 %v1314
    %v5911 = vunpack.c.h.b16 %v1314
    %v5912 = vunpack.c.l.b16 %v1315
    %v5913 = vunpack.c.h.b16 %v1315
    %v5914 = vunpack.c.l.b16 %v1316
    %v5915 = vunpack.c.h.b16 %v1316
    %v5916 = vunpack.c.l.b16 %v1317
    %v5917 = vunpack.c.h.b16 %v1317
    %v5918 = vunpack.c.l.b16 %v1318
    %v5919 = vunpack.c.h.b16 %v1318
    %v5920 = vunpack.c.l.b16 %v1319
    %v5921 = vunpack.c.h.b16 %v1319
    %v5922 = vunpack.c.l.b16 %v1320
    %v5923 = vunpack.c.h.b16 %v1320
    %v5924 = vunpack.c.l.b16 %v1321
    %v5925 = vunpack.c.h.b16 %v1321
    %v5926 = vunpack.c.l.b16 %v1322
    %v5927 = vunpack.c.h.b16 %v1322
    %v5928 = vunpack.c.l.b16 %v1323
    %v5929 = vunpack.c.h.b16 %v1323
    %v5930 = vunpack.c.l.b16 %v1324
    %v5931 = vunpack.c.h.b16 %v1324
    %v5932 = vunpack.c.l.b16 %v1325
    %v5933 = vunpack.c.h.b16 %v1325
    %v5934 = vunpack.c.l.b16 %v1326
    %v5935 = vunpack.c.h.b16 %v1326
    %v5936 = vunpack.c.l.b16 %v1327
    %v5937 = vunpack.c.h.b16 %v1327
    %v5938 = vunpack.c.l.b16 %v1328
    %v5939 = vunpack.c.h.b16 %v1328
    %v5940 = vunpack.c.l.b16 %v1329
    %v5941 = vunpack.c.h.b16 %v1329
    %v5942 = vunpack.c.l.b16 %v1330
    %v5943 = vunpack.c.h.b16 %v1330
    %v5944 = vunpack.c.l.b16 %v1331
    %v5945 = vunpack.c.h.b16 %v1331
    %v5946 = vunpack.c.l.b16 %v1332
    %v5947 = vunpack.c.h.b16 %v1332
    %v5948 = vunpack.c.l.b16 %v1333
    %v5949 = vunpack.c.h.b16 %v1333
    %v5950 = vunpack.c.l.b16 %v1334
    %v5951 = vunpack.c.h.b16 %v1334
    %v5952 = vunpack.c.l.b16 %v1335
    %v5953 = vunpack.c.h.b16 %v1335
    %v5954 = vunpack.c.l.b16 %v1336
    %v5955 = vunpack.c.h.b16 %v1336
    %v5956 = vunpack.c.l.b16 %v1337
    %v5957 = vunpack.c.h.b16 %v1337
    %v5958 = vunpack.c.l.b16 %v1338
    %v5959 = vunpack.c.h.b16 %v1338
    %v5960 = vunpack.c.l.b16 %v1339
    %v5961 = vunpack.c.h.b16 %v1339
    %v5962 = vunpack.c.l.b16 %v1340
    %v5963 = vunpack.c.h.b16 %v1340
    %v5964 = vunpack.c.l.b16 %v1341
    %v5965 = vunpack.c.h.b16 %v1341
    %v5966 = vunpack.c.l.b16 %v1342
    %v5967 = vunpack.c.h.b16 %v1342
    %v5968 = vunpack.c.l.b16 %v1343
    %v5969 = vunpack.c.h.b16 %v1343
    %v5970 = vunpack.c.l.b16 %v1344
    %v5971 = vunpack.c.h.b16 %v1344
    %v5972 = vunpack.c.l.b16 %v1345
    %v5973 = vunpack.c.h.b16 %v1345
    %v5974 = vunpack.c.l.b16 %v1346
    %v5975 = vunpack.c.h.b16 %v1346
    %v5976 = vunpack.c.l.b16 %v1347
    %v5977 = vunpack.c.h.b16 %v1347
    %v5978 = vunpack.c.l.b16 %v1348
    %v5979 = vunpack.c.h.b16 %v1348
    %v5980 = vunpack.c.l.b16 %v1349
    %v5981 = vunpack.c.h.b16 %v1349
    %v5982 = vunpack.c.l.b16 %v1350
    %v5983 = vunpack.c.h.b16 %v1350
    %v5984 = vunpack.c.l.b16 %v1351
    %v5985 = vunpack.c.h.b16 %v1351
    %v5986 = vunpack.c.l.b16 %v1352
    %v5987 = vunpack.c.h.b16 %v1352
    %v5988 = vunpack.c.l.b16 %v1353
    %v5989 = vunpack.c.h.b16 %v1353
    %v5990 = vunpack.c.l.b16 %v1354
    %v5991 = vunpack.c.h.b16 %v1354
    %v5992 = vunpack.c.l.b16 %v1355
    %v5993 = vunpack.c.h.b16 %v1355
    %v5994 = vunpack.c.l.b16 %v1356
    %v5995 = vunpack.c.h.b16 %v1356
    %v5996 = vunpack.c.l.b16 %v1357
    %v5997 = vunpack.c.h.b16 %v1357
    %v5998 = vunpack.c.l.b16 %v1358
    %v5999 = vunpack.c.h.b16 %v1358
    %v6000 = vunpack.c.l.b16 %v1359
    %v6001 = vunpack.c.h.b16 %v1359
    %v6002 = vunpack.c.l.b16 %v1360
    %v6003 = vunpack.c.h.b16 %v1360
    %v6004 = vunpack.c.l.b16 %v1361
    %v6005 = vunpack.c.h.b16 %v1361
    %v6006 = vunpack.c.l.b16 %v1362
    %v6007 = vunpack.c.h.b16 %v1362
    %v6008 = vunpack.c.l.b16 %v1363
    %v6009 = vunpack.c.h.b16 %v1363
    %v6010 = vunpack.c.l.b16 %v1364
    %v6011 = vunpack.c.h.b16 %v1364
    %v6012 = vunpack.c.l.b16 %v1365
    %v6013 = vunpack.c.h.b16 %v1365
    %v6014 = vunpack.c.l.b16 %v1366
    %v6015 = vunpack.c.h.b16 %v1366
    %v6016 = vunpack.c.l.b16 %v1367
    %v6017 = vunpack.c.h.b16 %v1367
    %v6018 = vunpack.c.l.b16 %v1368
    %v6019 = vunpack.c.h.b16 %v1368
    %v6020 = vunpack.c.l.b16 %v1369
    %v6021 = vunpack.c.h.b16 %v1369
    %v6022 = vunpack.c.l.b16 %v1370
    %v6023 = vunpack.c.h.b16 %v1370
    %v6024 = vunpack.c.l.b16 %v1371
    %v6025 = vunpack.c.h.b16 %v1371
    %v6026 = vunpack.c.l.b16 %v1372
    %v6027 = vunpack.c.h.b16 %v1372
    %v6028 = vunpack.c.l.b16 %v1373
    %v6029 = vunpack.c.h.b16 %v1373
    %v6030 = vunpack.c.l.b16 %v1374
    %v6031 = vunpack.c.h.b16 %v1374
    %v6032 = vunpack.c.l.b16 %v1375
    %v6033 = vunpack.c.h.b16 %v1375
    %v6034 = vunpack.c.l.b16 %v1376
    %v6035 = vunpack.c.h.b16 %v1376
    %v6036 = vunpack.c.l.b16 %v1377
    %v6037 = vunpack.c.h.b16 %v1377
    %v6038 = vunpack.c.l.b16 %v1378
    %v6039 = vunpack.c.h.b16 %v1378
    %v6040 = vunpack.c.l.b16 %v1379
    %v6041 = vunpack.c.h.b16 %v1379
    %v6042 = vunpack.c.l.b16 %v1380
    %v6043 = vunpack.c.h.b16 %v1380
    %v6044 = vunpack.c.l.b16 %v1381
    %v6045 = vunpack.c.h.b16 %v1381
    %v6046 = vunpack.c.l.b16 %v1382
    %v6047 = vunpack.c.h.b16 %v1382
    %v6048 = vunpack.c.l.b16 %v1383
    %v6049 = vunpack.c.h.b16 %v1383
    %v6050 = vunpack.c.l.b16 %v1384
    %v6051 = vunpack.c.h.b16 %v1384
    %v6052 = vunpack.c.l.b16 %v1385
    %v6053 = vunpack.c.h.b16 %v1385
    %v6054 = vunpack.c.l.b16 %v1386
    %v6055 = vunpack.c.h.b16 %v1386
    %v6056 = vunpack.c.l.b16 %v1387
    %v6057 = vunpack.c.h.b16 %v1387
    %v6058 = vunpack.c.l.b16 %v1388
    %v6059 = vunpack.c.h.b16 %v1388
    %v6060 = vunpack.c.l.b16 %v1389
    %v6061 = vunpack.c.h.b16 %v1389
    %v6062 = vunpack.c.l.b16 %v1390
    %v6063 = vunpack.c.h.b16 %v1390
    %v6064 = vunpack.c.l.b16 %v1391
    %v6065 = vunpack.c.h.b16 %v1391
    %v6066 = vunpack.c.l.b16 %v1392
    %v6067 = vunpack.c.h.b16 %v1392
    %v6068 = vunpack.c.l.b16 %v1393
    %v6069 = vunpack.c.h.b16 %v1393
    %v6070 = vunpack.c.l.b16 %v1394
    %v6071 = vunpack.c.h.b16 %v1394
    %v6072 = vunpack.c.l.b16 %v1395
    %v6073 = vunpack.c.h.b16 %v1395
    %v6074 = vunpack.c.l.b16 %v1396
    %v6075 = vunpack.c.h.b16 %v1396
    %v6076 = vunpack.c.l.b16 %v1397
    %v6077 = vunpack.c.h.b16 %v1397
    %v6078 = vunpack.c.l.b16 %v1398
    %v6079 = vunpack.c.h.b16 %v1398
    %v6080 = vunpack.c.l.b16 %v1399
    %v6081 = vunpack.c.h.b16 %v1399
    %v6082 = vunpack.c.l.b16 %v1400
    %v6083 = vunpack.c.h.b16 %v1400
    %v6084 = vunpack.c.l.b16 %v1401
    %v6085 = vunpack.c.h.b16 %v1401
    %v6086 = vunpack.c.l.b16 %v1402
    %v6087 = vunpack.c.h.b16 %v1402
    %v6088 = vunpack.c.l.b16 %v1403
    %v6089 = vunpack.c.h.b16 %v1403
    %v6090 = vunpack.c.l.b16 %v1404
    %v6091 = vunpack.c.h.b16 %v1404
    %v6092 = vunpack.c.l.b16 %v1405
    %v6093 = vunpack.c.h.b16 %v1405
    %v6094 = vunpack.c.l.b16 %v1406
    %v6095 = vunpack.c.h.b16 %v1406
    %v6096 = vunpack.c.l.b16 %v1407
    %v6097 = vunpack.c.h.b16 %v1407
    %v6098 = vunpack.c.l.b16 %v1408
    %v6099 = vunpack.c.h.b16 %v1408
    %v6100 = vunpack.c.l.b16 %v1409
    %v6101 = vunpack.c.h.b16 %v1409
    %v6102 = vunpack.c.l.b16 %v1410
    %v6103 = vunpack.c.h.b16 %v1410
    %v6104 = vunpack.c.l.b16 %v1411
    %v6105 = vunpack.c.h.b16 %v1411
    %v6106 = vunpack.c.l.b16 %v1412
    %v6107 = vunpack.c.h.b16 %v1412
    %v6108 = vunpack.c.l.b16 %v1413
    %v6109 = vunpack.c.h.b16 %v1413
    %v6110 = vunpack.c.l.b16 %v1414
    %v6111 = vunpack.c.h.b16 %v1414
    %v6112 = vunpack.c.l.b16 %v1415
    %v6113 = vunpack.c.h.b16 %v1415
    %v6114 = vunpack.c.l.b16 %v1416
    %v6115 = vunpack.c.h.b16 %v1416
    %v6116 = vunpack.c.l.b16 %v1417
    %v6117 = vunpack.c.h.b16 %v1417
    %v6118 = vunpack.c.l.b16 %v1418
    %v6119 = vunpack.c.h.b16 %v1418
    %v6120 = vunpack.c.l.b16 %v1419
    %v6121 = vunpack.c.h.b16 %v1419
    %v6122 = vunpack.c.l.b16 %v1420
    %v6123 = vunpack.c.h.b16 %v1420
    %v6124 = vunpack.c.l.b16 %v1421
    %v6125 = vunpack.c.h.b16 %v1421
    %v6126 = vunpack.c.l.b16 %v1422
    %v6127 = vunpack.c.h.b16 %v1422
    %v6128 = vunpack.c.l.b16 %v1423
    %v6129 = vunpack.c.h.b16 %v1423
    %v6130 = vunpack.c.l.b16 %v1424
    %v6131 = vunpack.c.h.b16 %v1424
    %v6132 = vunpack.c.l.b16 %v1425
    %v6133 = vunpack.c.h.b16 %v1425
    %v6134 = vunpack.c.l.b16 %v1426
    %v6135 = vunpack.c.h.b16 %v1426
    %v6136 = vunpack.c.l.b16 %v1427
    %v6137 = vunpack.c.h.b16 %v1427
    %v6138 = vunpack.c.l.b16 %v1428
    %v6139 = vunpack.c.h.b16 %v1428
    %v6140 = vunpack.c.l.b16 %v1429
    %v6141 = vunpack.c.h.b16 %v1429
    %v6142 = vunpack.c.l.b16 %v1430
    %v6143 = vunpack.c.h.b16 %v1430
    %v6144 = vunpack.c.l.b16 %v1431
    %v6145 = vunpack.c.h.b16 %v1431
    %v6146 = vunpack.c.l.b16 %v1432
    %v6147 = vunpack.c.h.b16 %v1432
    %v6148 = vunpack.c.l.b16 %v1433
    %v6149 = vunpack.c.h.b16 %v1433
    %v6150 = vunpack.c.l.b16 %v1434
    %v6151 = vunpack.c.h.b16 %v1434
    %v6152 = vunpack.c.l.b16 %v1435
    %v6153 = vunpack.c.h.b16 %v1435
    %v6154 = vunpack.c.l.b16 %v1436
    %v6155 = vunpack.c.h.b16 %v1436
    %v6156 = vunpack.c.l.b16 %v1437
    %v6157 = vunpack.c.h.b16 %v1437
    %v6158 = vunpack.c.l.b16 %v1438
    %v6159 = vunpack.c.h.b16 %v1438
    %v6160 = vunpack.c.l.b16 %v1439
    %v6161 = vunpack.c.h.b16 %v1439
    %v6162 = vunpack.c.l.b16 %v1440
    %v6163 = vunpack.c.h.b16 %v1440
    %v6164 = vunpack.c.l.b16 %v1441
    %v6165 = vunpack.c.h.b16 %v1441
    %v6166 = vunpack.c.l.b16 %v1442
    %v6167 = vunpack.c.h.b16 %v1442
    %v6168 = vunpack.c.l.b16 %v1443
    %v6169 = vunpack.c.h.b16 %v1443
    %v6170 = vunpack.c.l.b16 %v1444
    %v6171 = vunpack.c.h.b16 %v1444
    %v6172 = vunpack.c.l.b16 %v1445
    %v6173 = vunpack.c.h.b16 %v1445
    %v6174 = vunpack.c.l.b16 %v1446
    %v6175 = vunpack.c.h.b16 %v1446
    %v6176 = vunpack.c.l.b16 %v1447
    %v6177 = vunpack.c.h.b16 %v1447
    %v6178 = vunpack.c.l.b16 %v1448
    %v6179 = vunpack.c.h.b16 %v1448
    %v6180 = vunpack.c.l.b16 %v1449
    %v6181 = vunpack.c.h.b16 %v1449
    %v6182 = vunpack.c.l.b16 %v1450
    %v6183 = vunpack.c.h.b16 %v1450
    %v6184 = vunpack.c.l.b16 %v1451
    %v6185 = vunpack.c.h.b16 %v1451
    %v6186 = vunpack.c.l.b16 %v1452
    %v6187 = vunpack.c.h.b16 %v1452
    %v6188 = vunpack.c.l.b16 %v1453
    %v6189 = vunpack.c.h.b16 %v1453
    %v6190 = vunpack.c.l.b16 %v1454
    %v6191 = vunpack.c.h.b16 %v1454
    %v6192 = vunpack.c.l.b16 %v1455
    %v6193 = vunpack.c.h.b16 %v1455
    %v6194 = vunpack.c.l.b16 %v1456
    %v6195 = vunpack.c.h.b16 %v1456
    %v6196 = vunpack.c.l.b16 %v1457
    %v6197 = vunpack.c.h.b16 %v1457
    %v6198 = vunpack.c.l.b16 %v1458
    %v6199 = vunpack.c.h.b16 %v1458
    %v6200 = vunpack.c.l.b16 %v1459
    %v6201 = vunpack.c.h.b16 %v1459
    %v6202 = vunpack.c.l.b16 %v1460
    %v6203 = vunpack.c.h.b16 %v1460
    %v6204 = vunpack.c.l.b16 %v1461
    %v6205 = vunpack.c.h.b16 %v1461
    %v6206 = vunpack.c.l.b16 %v1462
    %v6207 = vunpack.c.h.b16 %v1462
    %v6208 = vunpack.c.l.b16 %v1463
    %v6209 = vunpack.c.h.b16 %v1463
    %v6210 = vunpack.c.l.b16 %v1464
    %v6211 = vunpack.c.h.b16 %v1464
    %v6212 = vunpack.c.l.b16 %v1465
    %v6213 = vunpack.c.h.b16 %v1465
    %v6214 = vunpack.c.l.b16 %v1466
    %v6215 = vunpack.c.h.b16 %v1466
    %v6216 = vunpack.c.l.b16 %v1467
    %v6217 = vunpack.c.h.b16 %v1467
    %v6218 = vunpack.c.l.b16 %v1468
    %v6219 = vunpack.c.h.b16 %v1468
    %v6220 = vunpack.c.l.b16 %v1469
    %v6221 = vunpack.c.h.b16 %v1469
    %v6222 = vunpack.c.l.b16 %v1470
    %v6223 = vunpack.c.h.b16 %v1470
    %v6224 = vunpack.c.l.b16 %v1471
    %v6225 = vunpack.c.h.b16 %v1471
    %v6226 = vunpack.c.l.b16 %v1472
    %v6227 = vunpack.c.h.b16 %v1472
    %v6228 = vunpack.c.l.b16 %v1473
    %v6229 = vunpack.c.h.b16 %v1473
    %v6230 = vunpack.c.l.b16 %v1474
    %v6231 = vunpack.c.h.b16 %v1474
    %v6232 = vunpack.c.l.b16 %v1475
    %v6233 = vunpack.c.h.b16 %v1475
    %v6234 = vunpack.c.l.b16 %v1476
    %v6235 = vunpack.c.h.b16 %v1476
    %v6236 = vunpack.c.l.b16 %v1477
    %v6237 = vunpack.c.h.b16 %v1477
    %v6238 = vunpack.c.l.b16 %v1478
    %v6239 = vunpack.c.h.b16 %v1478
    %v6240 = vunpack.c.l.b16 %v1479
    %v6241 = vunpack.c.h.b16 %v1479
    %v6242 = vunpack.c.l.b16 %v1480
    %v6243 = vunpack.c.h.b16 %v1480
    %v6244 = vunpack.c.l.b16 %v1481
    %v6245 = vunpack.c.h.b16 %v1481
    %v6246 = vunpack.c.l.b16 %v1482
    %v6247 = vunpack.c.h.b16 %v1482
    %v6248 = vunpack.c.l.b16 %v1483
    %v6249 = vunpack.c.h.b16 %v1483
    %v6250 = vunpack.c.l.b16 %v1484
    %v6251 = vunpack.c.h.b16 %v1484
    %v6252 = vunpack.c.l.b16 %v1485
    %v6253 = vunpack.c.h.b16 %v1485
    %v6254 = vunpack.c.l.b16 %v1486
    %v6255 = vunpack.c.h.b16 %v1486
    %v6256 = vunpack.c.l.b16 %v1487
    %v6257 = vunpack.c.h.b16 %v1487
    %v6258 = vunpack.c.l.b16 %v1488
    %v6259 = vunpack.c.h.b16 %v1488
    %v6260 = vunpack.c.l.b16 %v1489
    %v6261 = vunpack.c.h.b16 %v1489
    %v6262 = vunpack.c.l.b16 %v1490
    %v6263 = vunpack.c.h.b16 %v1490
    %v6264 = vunpack.c.l.b16 %v1491
    %v6265 = vunpack.c.h.b16 %v1491
    %v6266 = vunpack.c.l.b16 %v1492
    %v6267 = vunpack.c.h.b16 %v1492
    %v6268 = vunpack.c.l.b16 %v1493
    %v6269 = vunpack.c.h.b16 %v1493
    %v6270 = vunpack.c.l.b16 %v1494
    %v6271 = vunpack.c.h.b16 %v1494
    %v6272 = vunpack.c.l.b16 %v1495
    %v6273 = vunpack.c.h.b16 %v1495
    %v6274 = vunpack.c.l.b16 %v1496
    %v6275 = vunpack.c.h.b16 %v1496
    %v6276 = vunpack.c.l.b16 %v1497
    %v6277 = vunpack.c.h.b16 %v1497
    %v6278 = vunpack.c.l.b16 %v1498
    %v6279 = vunpack.c.h.b16 %v1498
    %v6280 = vunpack.c.l.b16 %v1499
    %v6281 = vunpack.c.h.b16 %v1499
    %v6282 = vunpack.c.l.b16 %v1500
    %v6283 = vunpack.c.h.b16 %v1500
    %v6284 = vunpack.c.l.b16 %v1501
    %v6285 = vunpack.c.h.b16 %v1501
    %v6286 = vunpack.c.l.b16 %v1502
    %v6287 = vunpack.c.h.b16 %v1502
    %v6288 = vunpack.c.l.b16 %v1503
    %v6289 = vunpack.c.h.b16 %v1503
    %v6290 = vunpack.c.l.b16 %v1504
    %v6291 = vunpack.c.h.b16 %v1504
    %v6292 = vunpack.c.l.b16 %v1505
    %v6293 = vunpack.c.h.b16 %v1505
    %v6294 = vunpack.c.l.b16 %v1506
    %v6295 = vunpack.c.h.b16 %v1506
    %v6296 = vunpack.c.l.b16 %v1507
    %v6297 = vunpack.c.h.b16 %v1507
    %v6298 = vunpack.c.l.b16 %v1508
    %v6299 = vunpack.c.h.b16 %v1508
    %v6300 = vunpack.c.l.b16 %v1509
    %v6301 = vunpack.c.h.b16 %v1509
    %v6302 = vunpack.c.l.b16 %v1510
    %v6303 = vunpack.c.h.b16 %v1510
    %v6304 = vunpack.c.l.b16 %v1511
    %v6305 = vunpack.c.h.b16 %v1511
    %v6306 = vunpack.c.l.b16 %v1512
    %v6307 = vunpack.c.h.b16 %v1512
    %v6308 = vunpack.c.l.b16 %v1513
    %v6309 = vunpack.c.h.b16 %v1513
    %v6310 = vunpack.c.l.b16 %v1514
    %v6311 = vunpack.c.h.b16 %v1514
    %v6312 = vunpack.c.l.b16 %v1515
    %v6313 = vunpack.c.h.b16 %v1515
    %v6314 = vunpack.c.l.b16 %v1516
    %v6315 = vunpack.c.h.b16 %v1516
    %v6316 = vunpack.c.l.b16 %v1517
    %v6317 = vunpack.c.h.b16 %v1517
    %v6318 = vunpack.c.l.b16 %v1518
    %v6319 = vunpack.c.h.b16 %v1518
    %v6320 = vunpack.c.l.b16 %v1519
    %v6321 = vunpack.c.h.b16 %v1519
    %v6322 = vunpack.c.l.b16 %v1520
    %v6323 = vunpack.c.h.b16 %v1520
    %v6324 = vunpack.c.l.b16 %v1521
    %v6325 = vunpack.c.h.b16 %v1521
    %v6326 = vunpack.c.l.b16 %v1522
    %v6327 = vunpack.c.h.b16 %v1522
    %v6328 = vunpack.c.l.b16 %v1523
    %v6329 = vunpack.c.h.b16 %v1523
    %v6330 = vunpack.c.l.b16 %v1524
    %v6331 = vunpack.c.h.b16 %v1524
    %v6332 = vunpack.c.l.b16 %v1525
    %v6333 = vunpack.c.h.b16 %v1525
    %v6334 = vunpack.c.l.b16 %v1526
    %v6335 = vunpack.c.h.b16 %v1526
    %v6336 = vunpack.c.l.b16 %v1527
    %v6337 = vunpack.c.h.b16 %v1527
    %v6338 = vunpack.c.l.b16 %v1528
    %v6339 = vunpack.c.h.b16 %v1528
    %v6340 = vunpack.c.l.b16 %v1529
    %v6341 = vunpack.c.h.b16 %v1529
    %v6342 = vunpack.c.l.b16 %v1530
    %v6343 = vunpack.c.h.b16 %v1530
    %v6344 = vunpack.c.l.b16 %v1531
    %v6345 = vunpack.c.h.b16 %v1531
    %v6346 = vunpack.c.l.b16 %v1532
    %v6347 = vunpack.c.h.b16 %v1532
    %v6348 = vunpack.c.l.b16 %v1533
    %v6349 = vunpack.c.h.b16 %v1533
    %v6350 = vunpack.c.l.b16 %v1534
    %v6351 = vunpack.c.h.b16 %v1534
    %v6352 = vunpack.c.l.b16 %v1535
    %v6353 = vunpack.c.h.b16 %v1535
    %v6354 = vunpack.c.l.b16 %v1536
    %v6355 = vunpack.c.h.b16 %v1536
    %v6356 = vunpack.c.l.b16 %v1537
    %v6357 = vunpack.c.h.b16 %v1537
    %v6358 = vunpack.c.l.b16 %v1538
    %v6359 = vunpack.c.h.b16 %v1538
    %v6360 = vunpack.c.l.b16 %v1539
    %v6361 = vunpack.c.h.b16 %v1539
    %v6362 = vunpack.c.l.b16 %v1540
    %v6363 = vunpack.c.h.b16 %v1540
    %v6364 = vunpack.c.l.b16 %v1541
    %v6365 = vunpack.c.h.b16 %v1541
    %v6366 = vunpack.c.l.b16 %v1542
    %v6367 = vunpack.c.h.b16 %v1542
    %v6368 = vunpack.c.l.b16 %v1543
    %v6369 = vunpack.c.h.b16 %v1543
    %v6370 = vunpack.c.l.b16 %v1544
    %v6371 = vunpack.c.h.b16 %v1544
    %v6372 = vunpack.c.l.b16 %v1545
    %v6373 = vunpack.c.h.b16 %v1545
    %v6374 = vunpack.c.l.b16 %v1546
    %v6375 = vunpack.c.h.b16 %v1546
    %v6376 = vunpack.c.l.b16 %v1547
    %v6377 = vunpack.c.h.b16 %v1547
    %v6378 = vunpack.c.l.b16 %v1548
    %v6379 = vunpack.c.h.b16 %v1548
    %v6380 = vunpack.c.l.b16 %v1549
    %v6381 = vunpack.c.h.b16 %v1549
    %v6382 = vunpack.c.l.b16 %v1550
    %v6383 = vunpack.c.h.b16 %v1550
    %v6384 = vunpack.c.l.b16 %v1551
    %v6385 = vunpack.c.h.b16 %v1551
    %v6386 = vunpack.c.l.b16 %v1552
    %v6387 = vunpack.c.h.b16 %v1552
    %v6388 = vunpack.c.l.b16 %v1553
    %v6389 = vunpack.c.h.b16 %v1553
    %v6390 = vunpack.c.l.b16 %v1554
    %v6391 = vunpack.c.h.b16 %v1554
    %v6392 = vunpack.c.l.b16 %v1555
    %v6393 = vunpack.c.h.b16 %v1555
    %v6394 = vunpack.c.l.b16 %v1556
    %v6395 = vunpack.c.h.b16 %v1556
    %v6396 = vunpack.c.l.b16 %v1557
    %v6397 = vunpack.c.h.b16 %v1557
    %v6398 = vunpack.c.l.b16 %v1558
    %v6399 = vunpack.c.h.b16 %v1558
    %v6400 = vunpack.c.l.b16 %v1559
    %v6401 = vunpack.c.h.b16 %v1559
    %v6402 = vunpack.c.l.b16 %v1560
    %v6403 = vunpack.c.h.b16 %v1560
    %v6404 = vunpack.c.l.b16 %v1561
    %v6405 = vunpack.c.h.b16 %v1561
    %v6406 = vunpack.c.l.b16 %v1562
    %v6407 = vunpack.c.h.b16 %v1562
    %v6408 = vunpack.c.l.b16 %v1563
    %v6409 = vunpack.c.h.b16 %v1563
    %v6410 = vunpack.c.l.b16 %v1564
    %v6411 = vunpack.c.h.b16 %v1564
    %v6412 = vunpack.c.l.b16 %v1565
    %v6413 = vunpack.c.h.b16 %v1565
    %v6414 = vunpack.c.l.b16 %v1566
    %v6415 = vunpack.c.h.b16 %v1566
    %v6416 = vunpack.c.l.b16 %v1567
    %v6417 = vunpack.c.h.b16 %v1567
    %v6418 = vunpack.c.l.b16 %v1568
    %v6419 = vunpack.c.h.b16 %v1568
    %v6420 = vunpack.c.l.b16 %v1569
    %v6421 = vunpack.c.h.b16 %v1569
    %v6422 = vunpack.c.l.b16 %v1570
    %v6423 = vunpack.c.h.b16 %v1570
    %v6424 = vunpack.c.l.b16 %v1571
    %v6425 = vunpack.c.h.b16 %v1571
    %v6426 = vunpack.c.l.b16 %v1572
    %v6427 = vunpack.c.h.b16 %v1572
    %v6428 = vunpack.c.l.b16 %v1573
    %v6429 = vunpack.c.h.b16 %v1573
    %v6430 = vunpack.c.l.b16 %v1574
    %v6431 = vunpack.c.h.b16 %v1574
    %v6432 = vunpack.c.l.b16 %v1575
    %v6433 = vunpack.c.h.b16 %v1575
    %v6434 = vunpack.c.l.b16 %v1576
    %v6435 = vunpack.c.h.b16 %v1576
    %v6436 = vunpack.c.l.b16 %v1577
    %v6437 = vunpack.c.h.b16 %v1577
    %v6438 = vunpack.c.l.b16 %v1578
    %v6439 = vunpack.c.h.b16 %v1578
    %v6440 = vunpack.c.l.b16 %v1579
    %v6441 = vunpack.c.h.b16 %v1579
    %v6442 = vunpack.c.l.b16 %v1580
    %v6443 = vunpack.c.h.b16 %v1580
    %v6444 = vunpack.c.l.b16 %v1581
    %v6445 = vunpack.c.h.b16 %v1581
    %v6446 = vunpack.c.l.b16 %v1582
    %v6447 = vunpack.c.h.b16 %v1582
    %v6448 = vunpack.c.l.b16 %v1583
    %v6449 = vunpack.c.h.b16 %v1583
    %v6450 = vunpack.c.l.b16 %v1584
    %v6451 = vunpack.c.h.b16 %v1584
    %v6452 = vunpack.c.l.b16 %v1585
    %v6453 = vunpack.c.h.b16 %v1585
    %v6454 = vunpack.c.l.b16 %v1586
    %v6455 = vunpack.c.h.b16 %v1586
    %v6456 = vunpack.c.l.b16 %v1587
    %v6457 = vunpack.c.h.b16 %v1587
    %v6458 = vunpack.c.l.b16 %v1588
    %v6459 = vunpack.c.h.b16 %v1588
    %v6460 = vunpack.c.l.b16 %v1589
    %v6461 = vunpack.c.h.b16 %v1589
    %v6462 = vunpack.c.l.b16 %v1590
    %v6463 = vunpack.c.h.b16 %v1590
    %v6464 = vunpack.c.l.b16 %v1591
    %v6465 = vunpack.c.h.b16 %v1591
    %v6466 = vunpack.c.l.b16 %v1592
    %v6467 = vunpack.c.h.b16 %v1592
    %v6468 = vunpack.c.l.b16 %v1593
    %v6469 = vunpack.c.h.b16 %v1593
    %v6470 = vunpack.c.l.b16 %v1594
    %v6471 = vunpack.c.h.b16 %v1594
    %v6472 = vunpack.c.l.b16 %v1595
    %v6473 = vunpack.c.h.b16 %v1595
    %v6474 = vunpack.c.l.b16 %v1596
    %v6475 = vunpack.c.h.b16 %v1596
    %v6476 = vunpack.c.l.b16 %v1597
    %v6477 = vunpack.c.h.b16 %v1597
    %v6478 = vunpack.c.l.b16 %v1598
    %v6479 = vunpack.c.h.b16 %v1598
    %v6480 = vunpack.c.l.b16 %v1599
    %v6481 = vunpack.c.h.b16 %v1599
    %v6482 = vunpack.c.l.b16 %v1600
    %v6483 = vunpack.c.h.b16 %v1600
    %v6484 = vunpack.c.l.b16 %v1601
    %v6485 = vunpack.c.h.b16 %v1601
    %v6486 = vunpack.c.l.b16 %v1602
    %v6487 = vunpack.c.h.b16 %v1602
    %v6488 = vunpack.c.l.b16 %v1603
    %v6489 = vunpack.c.h.b16 %v1603
    %v6490 = vunpack.c.l.b16 %v1604
    %v6491 = vunpack.c.h.b16 %v1604
    %v6492 = vunpack.c.l.b16 %v1605
    %v6493 = vunpack.c.h.b16 %v1605
    %v6494 = vunpack.c.l.b16 %v1606
    %v6495 = vunpack.c.h.b16 %v1606
    %v6496 = vunpack.c.l.b16 %v1607
    %v6497 = vunpack.c.h.b16 %v1607
    %v6498 = vunpack.c.l.b16 %v1608
    %v6499 = vunpack.c.h.b16 %v1608
    %v6500 = vunpack.c.l.b16 %v1609
    %v6501 = vunpack.c.h.b16 %v1609
    %v6502 = vunpack.c.l.b16 %v1610
    %v6503 = vunpack.c.h.b16 %v1610
    %v6504 = vunpack.c.l.b16 %v1611
    %v6505 = vunpack.c.h.b16 %v1611
    %v6506 = vunpack.c.l.b16 %v1612
    %v6507 = vunpack.c.h.b16 %v1612
    %v6508 = vunpack.c.l.b16 %v1613
    %v6509 = vunpack.c.h.b16 %v1613
    %v6510 = vpack.c.b16 %v3470, %v3438
    %v6511 = vpack.c.b16 %v3471, %v3439
    %v6512 = vpack.c.b16 %v3472, %v3440
    %v6513 = vpack.c.b16 %v3473, %v3441
    %v6514 = vpack.c.b16 %v3474, %v3442
    %v6515 = vpack.c.b16 %v3475, %v3443
    %v6516 = vpack.c.b16 %v3476, %v3444
    %v6517 = vpack.c.b16 %v3477, %v3445
    %v6518 = vpack.c.b16 %v3478, %v3446
    %v6519 = vpack.c.b16 %v3479, %v3447
    %v6520 = vpack.c.b16 %v3480, %v3448
    %v6521 = vpack.c.b16 %v3481, %v3449
    %v6522 = vpack.c.b16 %v3482, %v3450
    %v6523 = vpack.c.b16 %v3483, %v3451
    %v6524 = vpack.c.b16 %v3484, %v3452
    %v6525 = vpack.c.b16 %v3485, %v3453
    %v6526 = vpack.c.b16 %v3486, %v3454
    %v6527 = vpack.c.b16 %v3487, %v3455
    %v6528 = vpack.c.b16 %v3488, %v3456
    %v6529 = vpack.c.b16 %v3489, %v3457
    %v6530 = vpack.c.b16 %v3490, %v3458
    %v6531 = vpack.c.b16 %v3491, %v3459
    %v6532 = vpack.c.b16 %v3492, %v3460
    %v6533 = vpack.c.b16 %v3493, %v3461
    %v6534 = vpack.c.b16 %v3494, %v3462
    %v6535 = vpack.c.b16 %v3495, %v3463
    %v6536 = vpack.c.b16 %v3496, %v3464
    %v6537 = vpack.c.b16 %v3497, %v3465
    %v6538 = vpack.c.b16 %v3498, %v3466
    %v6539 = vpack.c.b16 %v3499, %v3467
    %v6540 = vpack.c.b16 %v3500, %v3468
    %v6541 = vpack.c.b16 %v3501, %v3469
    %v6542 = vpack.c.b16 %v3534, %v3502
    %v6543 = vpack.c.b16 %v3535, %v3503
    %v6544 = vpack.c.b16 %v3536, %v3504
    %v6545 = vpack.c.b16 %v3537, %v3505
    %v6546 = vpack.c.b16 %v3538, %v3506
    %v6547 = vpack.c.b16 %v3539, %v3507
    %v6548 = vpack.c.b16 %v3540, %v3508
    %v6549 = vpack.c.b16 %v3541, %v3509
    %v6550 = vpack.c.b16 %v3542, %v3510
    %v6551 = vpack.c.b16 %v3543, %v3511
    %v6552 = vpack.c.b16 %v3544, %v3512
    %v6553 = vpack.c.b16 %v3545, %v3513
    %v6554 = vpack.c.b16 %v3546, %v3514
    %v6555 = vpack.c.b16 %v3547, %v3515
    %v6556 = vpack.c.b16 %v3548, %v3516
    %v6557 = vpack.c.b16 %v3549, %v3517
    %v6558 = vpack.c.b16 %v3550, %v3518
    %v6559 = vpack.c.b16 %v3551, %v3519
    %v6560 = vpack.c.b16 %v3552, %v3520
    %v6561 = vpack.c.b16 %v3553, %v3521
    %v6562 = vpack.c.b16 %v3554, %v3522
    %v6563 = vpack.c.b16 %v3555, %v3523
    %v6564 = vpack.c.b16 %v3556, %v3524
    %v6565 = vpack.c.b16 %v3557, %v3525
    %v6566 = vpack.c.b16 %v3558, %v3526
    %v6567 = vpack.c.b16 %v3559, %v3527
    %v6568 = vpack.c.b16 %v3560, %v3528
    %v6569 = vpack.c.b16 %v3561, %v3529
    %v6570 = vpack.c.b16 %v3562, %v3530
    %v6571 = vpack.c.b16 %v3563, %v3531
    %v6572 = vpack.c.b16 %v3564, %v3532
    %v6573 = vpack.c.b16 %v3565, %v3533
    %v6574 = vpack.c.b16 %v3598, %v3566
    %v6575 = vpack.c.b16 %v3599, %v3567
    %v6576 = vpack.c.b16 %v3600, %v3568
    %v6577 = vpack.c.b16 %v3601, %v3569
    %v6578 = vpack.c.b16 %v3602, %v3570
    %v6579 = vpack.c.b16 %v3603, %v3571
    %v6580 = vpack.c.b16 %v3604, %v3572
    %v6581 = vpack.c.b16 %v3605, %v3573
    %v6582 = vpack.c.b16 %v3606, %v3574
    %v6583 = vpack.c.b16 %v3607, %v3575
    %v6584 = vpack.c.b16 %v3608, %v3576
    %v6585 = vpack.c.b16 %v3609, %v3577
    %v6586 = vpack.c.b16 %v3610, %v3578
    %v6587 = vpack.c.b16 %v3611, %v3579
    %v6588 = vpack.c.b16 %v3612, %v3580
    %v6589 = vpack.c.b16 %v3613, %v3581
    %v6590 = vpack.c.b16 %v3614, %v3582
    %v6591 = vpack.c.b16 %v3615, %v3583
    %v6592 = vpack.c.b16 %v3616, %v3584
    %v6593 = vpack.c.b16 %v3617, %v3585
    %v6594 = vpack.c.b16 %v3618, %v3586
    %v6595 = vpack.c.b16 %v3619, %v3587
    %v6596 = vpack.c.b16 %v3620, %v3588
    %v6597 = vpack.c.b16 %v3621, %v3589
    %v6598 = vpack.c.b16 %v3622, %v3590
    %v6599 = vpack.c.b16 %v3623, %v3591
    %v6600 = vpack.c.b16 %v3624, %v3592
    %v6601 = vpack.c.b16 %v3625, %v3593
    %v6602 = vpack.c.b16 %v3626, %v3594
    %v6603 = vpack.c.b16 %v3627, %v3595
    %v6604 = vpack.c.b16 %v3628, %v3596
    %v6605 = vpack.c.b16 %v3629, %v3597
    %v6606 = vpack.c.b16 %v3662, %v3630
    %v6607 = vpack.c.b16 %v3663, %v3631
    %v6608 = vpack.c.b16 %v3664, %v3632
    %v6609 = vpack.c.b16 %v3665, %v3633
    %v6610 = vpack.c.b16 %v3666, %v3634
    %v6611 = vpack.c.b16 %v3667, %v3635
    %v6612 = vpack.c.b16 %v3668, %v3636
    %v6613 = vpack.c.b16 %v3669, %v3637
    %v6614 = vpack.c.b16 %v3670, %v3638
    %v6615 = vpack.c.b16 %v3671, %v3639
    %v6616 = vpack.c.b16 %v3672, %v3640
    %v6617 = vpack.c.b16 %v3673, %v3641
    %v6618 = vpack.c.b16 %v3674, %v3642
    %v6619 = vpack.c.b16 %v3675, %v3643
    %v6620 = vpack.c.b16 %v3676, %v3644
    %v6621 = vpack.c.b16 %v3677, %v3645
    %v6622 = vpack.c.b16 %v3678, %v3646
    %v6623 = vpack.c.b16 %v3679, %v3647
    %v6624 = vpack.c.b16 %v3680, %v3648
    %v6625 = vpack.c.b16 %v3681, %v3649
    %v6626 = vpack.c.b16 %v3682, %v3650
    %v6627 = vpack.c.b16 %v3683, %v3651
    %v6628 = vpack.c.b16 %v3684, %v3652
    %v6629 = vpack.c.b16 %v3685, %v3653
    %v6630 = vpack.c.b16 %v3686, %v3654
    %v6631 = vpack.c.b16 %v3687, %v3655
    %v6632 = vpack.c.b16 %v3688, %v3656
    %v6633 = vpack.c.b16 %v3689, %v3657
    %v6634 = vpack.c.b16 %v3690, %v3658
    %v6635 = vpack.c.b16 %v3691, %v3659
    %v6636 = vpack.c.b16 %v3692, %v3660
    %v6637 = vpack.c.b16 %v3693, %v3661
    %v6638 = vpack.c.b16 %v3726, %v3694
    %v6639 = vpack.c.b16 %v3727, %v3695
    %v6640 = vpack.c.b16 %v3728, %v3696
    %v6641 = vpack.c.b16 %v3729, %v3697
    %v6642 = vpack.c.b16 %v3730, %v3698
    %v6643 = vpack.c.b16 %v3731, %v3699
    %v6644 = vpack.c.b16 %v3732, %v3700
    %v6645 = vpack.c.b16 %v3733, %v3701
    %v6646 = vpack.c.b16 %v3734, %v3702
    %v6647 = vpack.c.b16 %v3735, %v3703
    %v6648 = vpack.c.b16 %v3736, %v3704
    %v6649 = vpack.c.b16 %v3737, %v3705
    %v6650 = vpack.c.b16 %v3738, %v3706
    %v6651 = vpack.c.b16 %v3739, %v3707
    %v6652 = vpack.c.b16 %v3740, %v3708
    %v6653 = vpack.c.b16 %v3741, %v3709
    %v6654 = vpack.c.b16 %v3742, %v3710
    %v6655 = vpack.c.b16 %v3743, %v3711
    %v6656 = vpack.c.b16 %v3744, %v3712
    %v6657 = vpack.c.b16 %v3745, %v3713
    %v6658 = vpack.c.b16 %v3746, %v3714
    %v6659 = vpack.c.b16 %v3747, %v3715
    %v6660 = vpack.c.b16 %v3748, %v3716
    %v6661 = vpack.c.b16 %v3749, %v3717
    %v6662 = vpack.c.b16 %v3750, %v3718
    %v6663 = vpack.c.b16 %v3751, %v3719
    %v6664 = vpack.c.b16 %v3752, %v3720
    %v6665 = vpack.c.b16 %v3753, %v3721
    %v6666 = vpack.c.b16 %v3754, %v3722
    %v6667 = vpack.c.b16 %v3755, %v3723
    %v6668 = vpack.c.b16 %v3756, %v3724
    %v6669 = vpack.c.b16 %v3757, %v3725
    %v6670 = vpack.c.b16 %v3790, %v3758
    %v6671 = vpack.c.b16 %v3791, %v3759
    %v6672 = vpack.c.b16 %v3792, %v3760
    %v6673 = vpack.c.b16 %v3793, %v3761
    %v6674 = vpack.c.b16 %v3794, %v3762
    %v6675 = vpack.c.b16 %v3795, %v3763
    %v6676 = vpack.c.b16 %v3796, %v3764
    %v6677 = vpack.c.b16 %v3797, %v3765
    %v6678 = vpack.c.b16 %v3798, %v3766
    %v6679 = vpack.c.b16 %v3799, %v3767
    %v6680 = vpack.c.b16 %v3800, %v3768
    %v6681 = vpack.c.b16 %v3801, %v3769
    %v6682 = vpack.c.b16 %v3802, %v3770
    %v6683 = vpack.c.b16 %v3803, %v3771
    %v6684 = vpack.c.b16 %v3804, %v3772
    %v6685 = vpack.c.b16 %v3805, %v3773
    %v6686 = vpack.c.b16 %v3806, %v3774
    %v6687 = vpack.c.b16 %v3807, %v3775
    %v6688 = vpack.c.b16 %v3808, %v3776
    %v6689 = vpack.c.b16 %v3809, %v3777
    %v6690 = vpack.c.b16 %v3810, %v3778
    %v6691 = vpack.c.b16 %v3811, %v3779
    %v6692 = vpack.c.b16 %v3812, %v3780
    %v6693 = vpack.c.b16 %v3813, %v3781
    %v6694 = vpack.c.b16 %v3814, %v3782
    %v6695 = vpack.c.b16 %v3815, %v3783
    %v6696 = vpack.c.b16 %v3816, %v3784
    %v6697 = vpack.c.b16 %v3817, %v3785
    %v6698 = vpack.c.b16 %v3818, %v3786
    %v6699 = vpack.c.b16 %v3819, %v3787
    %v6700 = vpack.c.b16 %v3820, %v3788
    %v6701 = vpack.c.b16 %v3821, %v3789
    %v6702 = vpack.c.b16 %v3854, %v3822
    %v6703 = vpack.c.b16 %v3855, %v3823
    %v6704 = vpack.c.b16 %v3856, %v3824
    %v6705 = vpack.c.b16 %v3857, %v3825
    %v6706 = vpack.c.b16 %v3858, %v3826
    %v6707 = vpack.c.b16 %v3859, %v3827
    %v6708 = vpack.c.b16 %v3860, %v3828
    %v6709 = vpack.c.b16 %v3861, %v3829
    %v6710 = vpack.c.b16 %v3862, %v3830
    %v6711 = vpack.c.b16 %v3863, %v3831
    %v6712 = vpack.c.b16 %v3864, %v3832
    %v6713 = vpack.c.b16 %v3865, %v3833
    %v6714 = vpack.c.b16 %v3866, %v3834
    %v6715 = vpack.c.b16 %v3867, %v3835
    %v6716 = vpack.c.b16 %v3868, %v3836
    %v6717 = vpack.c.b16 %v3869, %v3837
    %v6718 = vpack.c.b16 %v3870, %v3838
    %v6719 = vpack.c.b16 %v3871, %v3839
    %v6720 = vpack.c.b16 %v3872, %v3840
    %v6721 = vpack.c.b16 %v3873, %v3841
    %v6722 = vpack.c.b16 %v3874, %v3842
    %v6723 = vpack.c.b16 %v3875, %v3843
    %v6724 = vpack.c.b16 %v3876, %v3844
    %v6725 = vpack.c.b16 %v3877, %v3845
    %v6726 = vpack.c.b16 %v3878, %v3846
    %v6727 = vpack.c.b16 %v3879, %v3847
    %v6728 = vpack.c.b16 %v3880, %v3848
    %v6729 = vpack.c.b16 %v3881, %v3849
    %v6730 = vpack.c.b16 %v3882, %v3850
    %v6731 = vpack.c.b16 %v3883, %v3851
    %v6732 = vpack.c.b16 %v3884, %v3852
    %v6733 = vpack.c.b16 %v3885, %v3853
    %v6734 = vpack.c.b16 %v3918, %v3886
    %v6735 = vpack.c.b16 %v3919, %v3887
    %v6736 = vpack.c.b16 %v3920, %v3888
    %v6737 = vpack.c.b16 %v3921, %v3889
    %v6738 = vpack.c.b16 %v3922, %v3890
    %v6739 = vpack.c.b16 %v3923, %v3891
    %v6740 = vpack.c.b16 %v3924, %v3892
    %v6741 = vpack.c.b16 %v3925, %v3893
    %v6742 = vpack.c.b16 %v3926, %v3894
    %v6743 = vpack.c.b16 %v3927, %v3895
    %v6744 = vpack.c.b16 %v3928, %v3896
    %v6745 = vpack.c.b16 %v3929, %v3897
    %v6746 = vpack.c.b16 %v3930, %v3898
    %v6747 = vpack.c.b16 %v3931, %v3899
    %v6748 = vpack.c.b16 %v3932, %v3900
    %v6749 = vpack.c.b16 %v3933, %v3901
    %v6750 = vpack.c.b16 %v3934, %v3902
    %v6751 = vpack.c.b16 %v3935, %v3903
    %v6752 = vpack.c.b16 %v3936, %v3904
    %v6753 = vpack.c.b16 %v3937, %v3905
    %v6754 = vpack.c.b16 %v3938, %v3906
    %v6755 = vpack.c.b16 %v3939, %v3907
    %v6756 = vpack.c.b16 %v3940, %v3908
    %v6757 = vpack.c.b16 %v3941, %v3909
    %v6758 = vpack.c.b16 %v3942, %v3910
    %v6759 = vpack.c.b16 %v3943, %v3911
    %v6760 = vpack.c.b16 %v3944, %v3912
    %v6761 = vpack.c.b16 %v3945, %v3913
    %v6762 = vpack.c.b16 %v3946, %v3914
    %v6763 = vpack.c.b16 %v3947, %v3915
    %v6764 = vpack.c.b16 %v3948, %v3916
    %v6765 = vpack.c.b16 %v3949, %v3917
    %v6766 = vpack.c.b16 %v3982, %v3950
    %v6767 = vpack.c.b16 %v3983, %v3951
    %v6768 = vpack.c.b16 %v3984, %v3952
    %v6769 = vpack.c.b16 %v3985, %v3953
    %v6770 = vpack.c.b16 %v3986, %v3954
    %v6771 = vpack.c.b16 %v3987, %v3955
    %v6772 = vpack.c.b16 %v3988, %v3956
    %v6773 = vpack.c.b16 %v3989, %v3957
    %v6774 = vpack.c.b16 %v3990, %v3958
    %v6775 = vpack.c.b16 %v3991, %v3959
    %v6776 = vpack.c.b16 %v3992, %v3960
    %v6777 = vpack.c.b16 %v3993, %v3961
    %v6778 = vpack.c.b16 %v3994, %v3962
    %v6779 = vpack.c.b16 %v3995, %v3963
    %v6780 = vpack.c.b16 %v3996, %v3964
    %v6781 = vpack.c.b16 %v3997, %v3965
    %v6782 = vpack.c.b16 %v3998, %v3966
    %v6783 = vpack.c.b16 %v3999, %v3967
    %v6784 = vpack.c.b16 %v4000, %v3968
    %v6785 = vpack.c.b16 %v4001, %v3969
    %v6786 = vpack.c.b16 %v4002, %v3970
    %v6787 = vpack.c.b16 %v4003, %v3971
    %v6788 = vpack.c.b16 %v4004, %v3972
    %v6789 = vpack.c.b16 %v4005, %v3973
    %v6790 = vpack.c.b16 %v4006, %v3974
    %v6791 = vpack.c.b16 %v4007, %v3975
    %v6792 = vpack.c.b16 %v4008, %v3976
    %v6793 = vpack.c.b16 %v4009, %v3977
    %v6794 = vpack.c.b16 %v4010, %v3978
    %v6795 = vpack.c.b16 %v4011, %v3979
    %v6796 = vpack.c.b16 %v4012, %v3980
    %v6797 = vpack.c.b16 %v4013, %v3981
    %v6798 = vpack.c.b16 %v4046, %v4014
    %v6799 = vpack.c.b16 %v4047, %v4015
    %v6800 = vpack.c.b16 %v4048, %v4016
    %v6801 = vpack.c.b16 %v4049, %v4017
    %v6802 = vpack.c.b16 %v4050, %v4018
    %v6803 = vpack.c.b16 %v4051, %v4019
    %v6804 = vpack.c.b16 %v4052, %v4020
    %v6805 = vpack.c.b16 %v4053, %v4021
    %v6806 = vpack.c.b16 %v4054, %v4022
    %v6807 = vpack.c.b16 %v4055, %v4023
    %v6808 = vpack.c.b16 %v4056, %v4024
    %v6809 = vpack.c.b16 %v4057, %v4025
    %v6810 = vpack.c.b16 %v4058, %v4026
    %v6811 = vpack.c.b16 %v4059, %v4027
    %v6812 = vpack.c.b16 %v4060, %v4028
    %v6813 = vpack.c.b16 %v4061, %v4029
    %v6814 = vpack.c.b16 %v4062, %v4030
    %v6815 = vpack.c.b16 %v4063, %v4031
    %v6816 = vpack.c.b16 %v4064, %v4032
    %v6817 = vpack.c.b16 %v4065, %v4033
    %v6818 = vpack.c.b16 %v4066, %v4034
    %v6819 = vpack.c.b16 %v4067, %v4035
    %v6820 = vpack.c.b16 %v4068, %v4036
    %v6821 = vpack.c.b16 %v4069, %v4037
    %v6822 = vpack.c.b16 %v4070, %v4038
    %v6823 = vpack.c.b16 %v4071, %v4039
    %v6824 = vpack.c.b16 %v4072, %v4040
    %v6825 = vpack.c.b16 %v4073, %v4041
    %v6826 = vpack.c.b16 %v4074, %v4042
    %v6827 = vpack.c.b16 %v4075, %v4043
    %v6828 = vpack.c.b16 %v4076, %v4044
    %v6829 = vpack.c.b16 %v4077, %v4045
    %v6830 = vpack.c.b16 %v4110, %v4078
    %v6831 = vpack.c.b16 %v4111, %v4079
    %v6832 = vpack.c.b16 %v4112, %v4080
    %v6833 = vpack.c.b16 %v4113, %v4081
    %v6834 = vpack.c.b16 %v4114, %v4082
    %v6835 = vpack.c.b16 %v4115, %v4083
    %v6836 = vpack.c.b16 %v4116, %v4084
    %v6837 = vpack.c.b16 %v4117, %v4085
    %v6838 = vpack.c.b16 %v4118, %v4086
    %v6839 = vpack.c.b16 %v4119, %v4087
    %v6840 = vpack.c.b16 %v4120, %v4088
    %v6841 = vpack.c.b16 %v4121, %v4089
    %v6842 = vpack.c.b16 %v4122, %v4090
    %v6843 = vpack.c.b16 %v4123, %v4091
    %v6844 = vpack.c.b16 %v4124, %v4092
    %v6845 = vpack.c.b16 %v4125, %v4093
    %v6846 = vpack.c.b16 %v4126, %v4094
    %v6847 = vpack.c.b16 %v4127, %v4095
    %v6848 = vpack.c.b16 %v4128, %v4096
    %v6849 = vpack.c.b16 %v4129, %v4097
    %v6850 = vpack.c.b16 %v4130, %v4098
    %v6851 = vpack.c.b16 %v4131, %v4099
    %v6852 = vpack.c.b16 %v4132, %v4100
    %v6853 = vpack.c.b16 %v4133, %v4101
    %v6854 = vpack.c.b16 %v4134, %v4102
    %v6855 = vpack.c.b16 %v4135, %v4103
    %v6856 = vpack.c.b16 %v4136, %v4104
    %v6857 = vpack.c.b16 %v4137, %v4105
    %v6858 = vpack.c.b16 %v4138, %v4106
    %v6859 = vpack.c.b16 %v4139, %v4107
    %v6860 = vpack.c.b16 %v4140, %v4108
    %v6861 = vpack.c.b16 %v4141, %v4109
    %v6862 = vpack.c.b16 %v4174, %v4142
    %v6863 = vpack.c.b16 %v4175, %v4143
    %v6864 = vpack.c.b16 %v4176, %v4144
    %v6865 = vpack.c.b16 %v4177, %v4145
    %v6866 = vpack.c.b16 %v4178, %v4146
    %v6867 = vpack.c.b16 %v4179, %v4147
    %v6868 = vpack.c.b16 %v4180, %v4148
    %v6869 = vpack.c.b16 %v4181, %v4149
    %v6870 = vpack.c.b16 %v4182, %v4150
    %v6871 = vpack.c.b16 %v4183, %v4151
    %v6872 = vpack.c.b16 %v4184, %v4152
    %v6873 = vpack.c.b16 %v4185, %v4153
    %v6874 = vpack.c.b16 %v4186, %v4154
    %v6875 = vpack.c.b16 %v4187, %v4155
    %v6876 = vpack.c.b16 %v4188, %v4156
    %v6877 = vpack.c.b16 %v4189, %v4157
    %v6878 = vpack.c.b16 %v4190, %v4158
    %v6879 = vpack.c.b16 %v4191, %v4159
    %v6880 = vpack.c.b16 %v4192, %v4160
    %v6881 = vpack.c.b16 %v4193, %v4161
    %v6882 = vpack.c.b16 %v4194, %v4162
    %v6883 = vpack.c.b16 %v4195, %v4163
    %v6884 = vpack.c.b16 %v4196, %v4164
    %v6885 = vpack.c.b16 %v4197, %v4165
    %v6886 = vpack.c.b16 %v4198, %v4166
    %v6887 = vpack.c.b16 %v4199, %v4167
    %v6888 = vpack.c.b16 %v4200, %v4168
    %v6889 = vpack.c.b16 %v4201, %v4169
    %v6890 = vpack.c.b16 %v4202, %v4170
    %v6891 = vpack.c.b16 %v4203, %v4171
    %v6892 = vpack.c.b16 %v4204, %v4172
    %v6893 = vpack.c.b16 %v4205, %v4173
    %v6894 = vpack.c.b16 %v4238, %v4206
    %v6895 = vpack.c.b16 %v4239, %v4207
    %v6896 = vpack.c.b16 %v4240, %v4208
    %v6897 = vpack.c.b16 %v4241, %v4209
    %v6898 = vpack.c.b16 %v4242, %v4210
    %v6899 = vpack.c.b16 %v4243, %v4211
    %v6900 = vpack.c.b16 %v4244, %v4212
    %v6901 = vpack.c.b16 %v4245, %v4213
    %v6902 = vpack.c.b16 %v4246, %v4214
    %v6903 = vpack.c.b16 %v4247, %v4215
    %v6904 = vpack.c.b16 %v4248, %v4216
    %v6905 = vpack.c.b16 %v4249, %v4217
    %v6906 = vpack.c.b16 %v4250, %v4218
    %v6907 = vpack.c.b16 %v4251, %v4219
    %v6908 = vpack.c.b16 %v4252, %v4220
    %v6909 = vpack.c.b16 %v4253, %v4221
    %v6910 = vpack.c.b16 %v4254, %v4222
    %v6911 = vpack.c.b16 %v4255, %v4223
    %v6912 = vpack.c.b16 %v4256, %v4224
    %v6913 = vpack.c.b16 %v4257, %v4225
    %v6914 = vpack.c.b16 %v4258, %v4226
    %v6915 = vpack.c.b16 %v4259, %v4227
    %v6916 = vpack.c.b16 %v4260, %v4228
    %v6917 = vpack.c.b16 %v4261, %v4229
    %v6918 = vpack.c.b16 %v4262, %v4230
    %v6919 = vpack.c.b16 %v4263, %v4231
    %v6920 = vpack.c.b16 %v4264, %v4232
    %v6921 = vpack.c.b16 %v4265, %v4233
    %v6922 = vpack.c.b16 %v4266, %v4234
    %v6923 = vpack.c.b16 %v4267, %v4235
    %v6924 = vpack.c.b16 %v4268, %v4236
    %v6925 = vpack.c.b16 %v4269, %v4237
    %v6926 = vpack.c.b16 %v4302, %v4270
    %v6927 = vpack.c.b16 %v4303, %v4271
    %v6928 = vpack.c.b16 %v4304, %v4272
    %v6929 = vpack.c.b16 %v4305, %v4273
    %v6930 = vpack.c.b16 %v4306, %v4274
    %v6931 = vpack.c.b16 %v4307, %v4275
    %v6932 = vpack.c.b16 %v4308, %v4276
    %v6933 = vpack.c.b16 %v4309, %v4277
    %v6934 = vpack.c.b16 %v4310, %v4278
    %v6935 = vpack.c.b16 %v4311, %v4279
    %v6936 = vpack.c.b16 %v4312, %v4280
    %v6937 = vpack.c.b16 %v4313, %v4281
    %v6938 = vpack.c.b16 %v4314, %v4282
    %v6939 = vpack.c.b16 %v4315, %v4283
    %v6940 = vpack.c.b16 %v4316, %v4284
    %v6941 = vpack.c.b16 %v4317, %v4285
    %v6942 = vpack.c.b16 %v4318, %v4286
    %v6943 = vpack.c.b16 %v4319, %v4287
    %v6944 = vpack.c.b16 %v4320, %v4288
    %v6945 = vpack.c.b16 %v4321, %v4289
    %v6946 = vpack.c.b16 %v4322, %v4290
    %v6947 = vpack.c.b16 %v4323, %v4291
    %v6948 = vpack.c.b16 %v4324, %v4292
    %v6949 = vpack.c.b16 %v4325, %v4293
    %v6950 = vpack.c.b16 %v4326, %v4294
    %v6951 = vpack.c.b16 %v4327, %v4295
    %v6952 = vpack.c.b16 %v4328, %v4296
    %v6953 = vpack.c.b16 %v4329, %v4297
    %v6954 = vpack.c.b16 %v4330, %v4298
    %v6955 = vpack.c.b16 %v4331, %v4299
    %v6956 = vpack.c.b16 %v4332, %v4300
    %v6957 = vpack.c.b16 %v4333, %v4301
    %v6958 = vpack.c.b16 %v4366, %v4334
    %v6959 = vpack.c.b16 %v4367, %v4335
    %v6960 = vpack.c.b16 %v4368, %v4336
    %v6961 = vpack.c.b16 %v4369, %v4337
    %v6962 = vpack.c.b16 %v4370, %v4338
    %v6963 = vpack.c.b16 %v4371, %v4339
    %v6964 = vpack.c.b16 %v4372, %v4340
    %v6965 = vpack.c.b16 %v4373, %v4341
    %v6966 = vpack.c.b16 %v4374, %v4342
    %v6967 = vpack.c.b16 %v4375, %v4343
    %v6968 = vpack.c.b16 %v4376, %v4344
    %v6969 = vpack.c.b16 %v4377, %v4345
    %v6970 = vpack.c.b16 %v4378, %v4346
    %v6971 = vpack.c.b16 %v4379, %v4347
    %v6972 = vpack.c.b16 %v4380, %v4348
    %v6973 = vpack.c.b16 %v4381, %v4349
    %v6974 = vpack.c.b16 %v4382, %v4350
    %v6975 = vpack.c.b16 %v4383, %v4351
    %v6976 = vpack.c.b16 %v4384, %v4352
    %v6977 = vpack.c.b16 %v4385, %v4353
    %v6978 = vpack.c.b16 %v4386, %v4354
    %v6979 = vpack.c.b16 %v4387, %v4355
    %v6980 = vpack.c.b16 %v4388, %v4356
    %v6981 = vpack.c.b16 %v4389, %v4357
    %v6982 = vpack.c.b16 %v4390, %v4358
    %v6983 = vpack.c.b16 %v4391, %v4359
    %v6984 = vpack.c.b16 %v4392, %v4360
    %v6985 = vpack.c.b16 %v4393, %v4361
    %v6986 = vpack.c.b16 %v4394, %v4362
    %v6987 = vpack.c.b16 %v4395, %v4363
    %v6988 = vpack.c.b16 %v4396, %v4364
    %v6989 = vpack.c.b16 %v4397, %v4365
    %v6990 = vpack.c.b16 %v4430, %v4398
    %v6991 = vpack.c.b16 %v4431, %v4399
    %v6992 = vpack.c.b16 %v4432, %v4400
    %v6993 = vpack.c.b16 %v4433, %v4401
    %v6994 = vpack.c.b16 %v4434, %v4402
    %v6995 = vpack.c.b16 %v4435, %v4403
    %v6996 = vpack.c.b16 %v4436, %v4404
    %v6997 = vpack.c.b16 %v4437, %v4405
    %v6998 = vpack.c.b16 %v4438, %v4406
    %v6999 = vpack.c.b16 %v4439, %v4407
    %v7000 = vpack.c.b16 %v4440, %v4408
    %v7001 = vpack.c.b16 %v4441, %v4409
    %v7002 = vpack.c.b16 %v4442, %v4410
    %v7003 = vpack.c.b16 %v4443, %v4411
    %v7004 = vpack.c.b16 %v4444, %v4412
    %v7005 = vpack.c.b16 %v4445, %v4413
    %v7006 = vpack.c.b16 %v4446, %v4414
    %v7007 = vpack.c.b16 %v4447, %v4415
    %v7008 = vpack.c.b16 %v4448, %v4416
    %v7009 = vpack.c.b16 %v4449, %v4417
    %v7010 = vpack.c.b16 %v4450, %v4418
    %v7011 = vpack.c.b16 %v4451, %v4419
    %v7012 = vpack.c.b16 %v4452, %v4420
    %v7013 = vpack.c.b16 %v4453, %v4421
    %v7014 = vpack.c.b16 %v4454, %v4422
    %v7015 = vpack.c.b16 %v4455, %v4423
    %v7016 = vpack.c.b16 %v4456, %v4424
    %v7017 = vpack.c.b16 %v4457, %v4425
    %v7018 = vpack.c.b16 %v4458, %v4426
    %v7019 = vpack.c.b16 %v4459, %v4427
    %v7020 = vpack.c.b16 %v4460, %v4428
    %v7021 = vpack.c.b16 %v4461, %v4429
    %v7022 = vpack.c.b16 %v4494, %v4462
    %v7023 = vpack.c.b16 %v4495, %v4463
    %v7024 = vpack.c.b16 %v4496, %v4464
    %v7025 = vpack.c.b16 %v4497, %v4465
    %v7026 = vpack.c.b16 %v4498, %v4466
    %v7027 = vpack.c.b16 %v4499, %v4467
    %v7028 = vpack.c.b16 %v4500, %v4468
    %v7029 = vpack.c.b16 %v4501, %v4469
    %v7030 = vpack.c.b16 %v4502, %v4470
    %v7031 = vpack.c.b16 %v4503, %v4471
    %v7032 = vpack.c.b16 %v4504, %v4472
    %v7033 = vpack.c.b16 %v4505, %v4473
    %v7034 = vpack.c.b16 %v4506, %v4474
    %v7035 = vpack.c.b16 %v4507, %v4475
    %v7036 = vpack.c.b16 %v4508, %v4476
    %v7037 = vpack.c.b16 %v4509, %v4477
    %v7038 = vpack.c.b16 %v4510, %v4478
    %v7039 = vpack.c.b16 %v4511, %v4479
    %v7040 = vpack.c.b16 %v4512, %v4480
    %v7041 = vpack.c.b16 %v4513, %v4481
    %v7042 = vpack.c.b16 %v4514, %v4482
    %v7043 = vpack.c.b16 %v4515, %v4483
    %v7044 = vpack.c.b16 %v4516, %v4484
    %v7045 = vpack.c.b16 %v4517, %v4485
    %v7046 = vpack.c.b16 %v4518, %v4486
    %v7047 = vpack.c.b16 %v4519, %v4487
    %v7048 = vpack.c.b16 %v4520, %v4488
    %v7049 = vpack.c.b16 %v4521, %v4489
    %v7050 = vpack.c.b16 %v4522, %v4490
    %v7051 = vpack.c.b16 %v4523, %v4491
    %v7052 = vpack.c.b16 %v4524, %v4492
    %v7053 = vpack.c.b16 %v4525, %v4493
    %v7054 = vpack.c.b16 %v4558, %v4526
    %v7055 = vpack.c.b16 %v4559, %v4527
    %v7056 = vpack.c.b16 %v4560, %v4528
    %v7057 = vpack.c.b16 %v4561, %v4529
    %v7058 = vpack.c.b16 %v4562, %v4530
    %v7059 = vpack.c.b16 %v4563, %v4531
    %v7060 = vpack.c.b16 %v4564, %v4532
    %v7061 = vpack.c.b16 %v4565, %v4533
    %v7062 = vpack.c.b16 %v4566, %v4534
    %v7063 = vpack.c.b16 %v4567, %v4535
    %v7064 = vpack.c.b16 %v4568, %v4536
    %v7065 = vpack.c.b16 %v4569, %v4537
    %v7066 = vpack.c.b16 %v4570, %v4538
    %v7067 = vpack.c.b16 %v4571, %v4539
    %v7068 = vpack.c.b16 %v4572, %v4540
    %v7069 = vpack.c.b16 %v4573, %v4541
    %v7070 = vpack.c.b16 %v4574, %v4542
    %v7071 = vpack.c.b16 %v4575, %v4543
    %v7072 = vpack.c.b16 %v4576, %v4544
    %v7073 = vpack.c.b16 %v4577, %v4545
    %v7074 = vpack.c.b16 %v4578, %v4546
    %v7075 = vpack.c.b16 %v4579, %v4547
    %v7076 = vpack.c.b16 %v4580, %v4548
    %v7077 = vpack.c.b16 %v4581, %v4549
    %v7078 = vpack.c.b16 %v4582, %v4550
    %v7079 = vpack.c.b16 %v4583, %v4551
    %v7080 = vpack.c.b16 %v4584, %v4552
    %v7081 = vpack.c.b16 %v4585, %v4553
    %v7082 = vpack.c.b16 %v4586, %v4554
    %v7083 = vpack.c.b16 %v4587, %v4555
    %v7084 = vpack.c.b16 %v4588, %v4556
    %v7085 = vpack.c.b16 %v4589, %v4557
    %v7086 = vpack.c.b16 %v4622, %v4590
    %v7087 = vpack.c.b16 %v4623, %v4591
    %v7088 = vpack.c.b16 %v4624, %v4592
    %v7089 = vpack.c.b16 %v4625, %v4593
    %v7090 = vpack.c.b16 %v4626, %v4594
    %v7091 = vpack.c.b16 %v4627, %v4595
    %v7092 = vpack.c.b16 %v4628, %v4596
    %v7093 = vpack.c.b16 %v4629, %v4597
    %v7094 = vpack.c.b16 %v4630, %v4598
    %v7095 = vpack.c.b16 %v4631, %v4599
    %v7096 = vpack.c.b16 %v4632, %v4600
    %v7097 = vpack.c.b16 %v4633, %v4601
    %v7098 = vpack.c.b16 %v4634, %v4602
    %v7099 = vpack.c.b16 %v4635, %v4603
    %v7100 = vpack.c.b16 %v4636, %v4604
    %v7101 = vpack.c.b16 %v4637, %v4605
    %v7102 = vpack.c.b16 %v4638, %v4606
    %v7103 = vpack.c.b16 %v4639, %v4607
    %v7104 = vpack.c.b16 %v4640, %v4608
    %v7105 = vpack.c.b16 %v4641, %v4609
    %v7106 = vpack.c.b16 %v4642, %v4610
    %v7107 = vpack.c.b16 %v4643, %v4611
    %v7108 = vpack.c.b16 %v4644, %v4612
    %v7109 = vpack.c.b16 %v4645, %v4613
    %v7110 = vpack.c.b16 %v4646, %v4614
    %v7111 = vpack.c.b16 %v4647, %v4615
    %v7112 = vpack.c.b16 %v4648, %v4616
    %v7113 = vpack.c.b16 %v4649, %v4617
    %v7114 = vpack.c.b16 %v4650, %v4618
    %v7115 = vpack.c.b16 %v4651, %v4619
    %v7116 = vpack.c.b16 %v4652, %v4620
    %v7117 = vpack.c.b16 %v4653, %v4621
    %v7118 = vpack.c.b16 %v4686, %v4654
    %v7119 = vpack.c.b16 %v4687, %v4655
    %v7120 = vpack.c.b16 %v4688, %v4656
    %v7121 = vpack.c.b16 %v4689, %v4657
    %v7122 = vpack.c.b16 %v4690, %v4658
    %v7123 = vpack.c.b16 %v4691, %v4659
    %v7124 = vpack.c.b16 %v4692, %v4660
    %v7125 = vpack.c.b16 %v4693, %v4661
    %v7126 = vpack.c.b16 %v4694, %v4662
    %v7127 = vpack.c.b16 %v4695, %v4663
    %v7128 = vpack.c.b16 %v4696, %v4664
    %v7129 = vpack.c.b16 %v4697, %v4665
    %v7130 = vpack.c.b16 %v4698, %v4666
    %v7131 = vpack.c.b16 %v4699, %v4667
    %v7132 = vpack.c.b16 %v4700, %v4668
    %v7133 = vpack.c.b16 %v4701, %v4669
    %v7134 = vpack.c.b16 %v4702, %v4670
    %v7135 = vpack.c.b16 %v4703, %v4671
    %v7136 = vpack.c.b16 %v4704, %v4672
    %v7137 = vpack.c.b16 %v4705, %v4673
    %v7138 = vpack.c.b16 %v4706, %v4674
    %v7139 = vpack.c.b16 %v4707, %v4675
    %v7140 = vpack.c.b16 %v4708, %v4676
    %v7141 = vpack.c.b16 %v4709, %v4677
    %v7142 = vpack.c.b16 %v4710, %v4678
    %v7143 = vpack.c.b16 %v4711, %v4679
    %v7144 = vpack.c.b16 %v4712, %v4680
    %v7145 = vpack.c.b16 %v4713, %v4681
    %v7146 = vpack.c.b16 %v4714, %v4682
    %v7147 = vpack.c.b16 %v4715, %v4683
    %v7148 = vpack.c.b16 %v4716, %v4684
    %v7149 = vpack.c.b16 %v4717, %v4685
    %v7150 = vpack.c.b16 %v4750, %v4718
    %v7151 = vpack.c.b16 %v4751, %v4719
    %v7152 = vpack.c.b16 %v4752, %v4720
    %v7153 = vpack.c.b16 %v4753, %v4721
    %v7154 = vpack.c.b16 %v4754, %v4722
    %v7155 = vpack.c.b16 %v4755, %v4723
    %v7156 = vpack.c.b16 %v4756, %v4724
    %v7157 = vpack.c.b16 %v4757, %v4725
    %v7158 = vpack.c.b16 %v4758, %v4726
    %v7159 = vpack.c.b16 %v4759, %v4727
    %v7160 = vpack.c.b16 %v4760, %v4728
    %v7161 = vpack.c.b16 %v4761, %v4729
    %v7162 = vpack.c.b16 %v4762, %v4730
    %v7163 = vpack.c.b16 %v4763, %v4731
    %v7164 = vpack.c.b16 %v4764, %v4732
    %v7165 = vpack.c.b16 %v4765, %v4733
    %v7166 = vpack.c.b16 %v4766, %v4734
    %v7167 = vpack.c.b16 %v4767, %v4735
    %v7168 = vpack.c.b16 %v4768, %v4736
    %v7169 = vpack.c.b16 %v4769, %v4737
    %v7170 = vpack.c.b16 %v4770, %v4738
    %v7171 = vpack.c.b16 %v4771, %v4739
    %v7172 = vpack.c.b16 %v4772, %v4740
    %v7173 = vpack.c.b16 %v4773, %v4741
    %v7174 = vpack.c.b16 %v4774, %v4742
    %v7175 = vpack.c.b16 %v4775, %v4743
    %v7176 = vpack.c.b16 %v4776, %v4744
    %v7177 = vpack.c.b16 %v4777, %v4745
    %v7178 = vpack.c.b16 %v4778, %v4746
    %v7179 = vpack.c.b16 %v4779, %v4747
    %v7180 = vpack.c.b16 %v4780, %v4748
    %v7181 = vpack.c.b16 %v4781, %v4749
    %v7182 = vpack.c.b16 %v4814, %v4782
    %v7183 = vpack.c.b16 %v4815, %v4783
    %v7184 = vpack.c.b16 %v4816, %v4784
    %v7185 = vpack.c.b16 %v4817, %v4785
    %v7186 = vpack.c.b16 %v4818, %v4786
    %v7187 = vpack.c.b16 %v4819, %v4787
    %v7188 = vpack.c.b16 %v4820, %v4788
    %v7189 = vpack.c.b16 %v4821, %v4789
    %v7190 = vpack.c.b16 %v4822, %v4790
    %v7191 = vpack.c.b16 %v4823, %v4791
    %v7192 = vpack.c.b16 %v4824, %v4792
    %v7193 = vpack.c.b16 %v4825, %v4793
    %v7194 = vpack.c.b16 %v4826, %v4794
    %v7195 = vpack.c.b16 %v4827, %v4795
    %v7196 = vpack.c.b16 %v4828, %v4796
    %v7197 = vpack.c.b16 %v4829, %v4797
    %v7198 = vpack.c.b16 %v4830, %v4798
    %v7199 = vpack.c.b16 %v4831, %v4799
    %v7200 = vpack.c.b16 %v4832, %v4800
    %v7201 = vpack.c.b16 %v4833, %v4801
    %v7202 = vpack.c.b16 %v4834, %v4802
    %v7203 = vpack.c.b16 %v4835, %v4803
    %v7204 = vpack.c.b16 %v4836, %v4804
    %v7205 = vpack.c.b16 %v4837, %v4805
    %v7206 = vpack.c.b16 %v4838, %v4806
    %v7207 = vpack.c.b16 %v4839, %v4807
    %v7208 = vpack.c.b16 %v4840, %v4808
    %v7209 = vpack.c.b16 %v4841, %v4809
    %v7210 = vpack.c.b16 %v4842, %v4810
    %v7211 = vpack.c.b16 %v4843, %v4811
    %v7212 = vpack.c.b16 %v4844, %v4812
    %v7213 = vpack.c.b16 %v4845, %v4813
    %v7214 = vpack.c.b16 %v4878, %v4846
    %v7215 = vpack.c.b16 %v4879, %v4847
    %v7216 = vpack.c.b16 %v4880, %v4848
    %v7217 = vpack.c.b16 %v4881, %v4849
    %v7218 = vpack.c.b16 %v4882, %v4850
    %v7219 = vpack.c.b16 %v4883, %v4851
    %v7220 = vpack.c.b16 %v4884, %v4852
    %v7221 = vpack.c.b16 %v4885, %v4853
    %v7222 = vpack.c.b16 %v4886, %v4854
    %v7223 = vpack.c.b16 %v4887, %v4855
    %v7224 = vpack.c.b16 %v4888, %v4856
    %v7225 = vpack.c.b16 %v4889, %v4857
    %v7226 = vpack.c.b16 %v4890, %v4858
    %v7227 = vpack.c.b16 %v4891, %v4859
    %v7228 = vpack.c.b16 %v4892, %v4860
    %v7229 = vpack.c.b16 %v4893, %v4861
    %v7230 = vpack.c.b16 %v4894, %v4862
    %v7231 = vpack.c.b16 %v4895, %v4863
    %v7232 = vpack.c.b16 %v4896, %v4864
    %v7233 = vpack.c.b16 %v4897, %v4865
    %v7234 = vpack.c.b16 %v4898, %v4866
    %v7235 = vpack.c.b16 %v4899, %v4867
    %v7236 = vpack.c.b16 %v4900, %v4868
    %v7237 = vpack.c.b16 %v4901, %v4869
    %v7238 = vpack.c.b16 %v4902, %v4870
    %v7239 = vpack.c.b16 %v4903, %v4871
    %v7240 = vpack.c.b16 %v4904, %v4872
    %v7241 = vpack.c.b16 %v4905, %v4873
    %v7242 = vpack.c.b16 %v4906, %v4874
    %v7243 = vpack.c.b16 %v4907, %v4875
    %v7244 = vpack.c.b16 %v4908, %v4876
    %v7245 = vpack.c.b16 %v4909, %v4877
    %v7246 = vpack.c.b16 %v4942, %v4910
    %v7247 = vpack.c.b16 %v4943, %v4911
    %v7248 = vpack.c.b16 %v4944, %v4912
    %v7249 = vpack.c.b16 %v4945, %v4913
    %v7250 = vpack.c.b16 %v4946, %v4914
    %v7251 = vpack.c.b16 %v4947, %v4915
    %v7252 = vpack.c.b16 %v4948, %v4916
    %v7253 = vpack.c.b16 %v4949, %v4917
    %v7254 = vpack.c.b16 %v4950, %v4918
    %v7255 = vpack.c.b16 %v4951, %v4919
    %v7256 = vpack.c.b16 %v4952, %v4920
    %v7257 = vpack.c.b16 %v4953, %v4921
    %v7258 = vpack.c.b16 %v4954, %v4922
    %v7259 = vpack.c.b16 %v4955, %v4923
    %v7260 = vpack.c.b16 %v4956, %v4924
    %v7261 = vpack.c.b16 %v4957, %v4925
    %v7262 = vpack.c.b16 %v4958, %v4926
    %v7263 = vpack.c.b16 %v4959, %v4927
    %v7264 = vpack.c.b16 %v4960, %v4928
    %v7265 = vpack.c.b16 %v4961, %v4929
    %v7266 = vpack.c.b16 %v4962, %v4930
    %v7267 = vpack.c.b16 %v4963, %v4931
    %v7268 = vpack.c.b16 %v4964, %v4932
    %v7269 = vpack.c.b16 %v4965, %v4933
    %v7270 = vpack.c.b16 %v4966, %v4934
    %v7271 = vpack.c.b16 %v4967, %v4935
    %v7272 = vpack.c.b16 %v4968, %v4936
    %v7273 = vpack.c.b16 %v4969, %v4937
    %v7274 = vpack.c.b16 %v4970, %v4938
    %v7275 = vpack.c.b16 %v4971, %v4939
    %v7276 = vpack.c.b16 %v4972, %v4940
    %v7277 = vpack.c.b16 %v4973, %v4941
    %v7278 = vpack.c.b16 %v5006, %v4974
    %v7279 = vpack.c.b16 %v5007, %v4975
    %v7280 = vpack.c.b16 %v5008, %v4976
    %v7281 = vpack.c.b16 %v5009, %v4977
    %v7282 = vpack.c.b16 %v5010, %v4978
    %v7283 = vpack.c.b16 %v5011, %v4979
    %v7284 = vpack.c.b16 %v5012, %v4980
    %v7285 = vpack.c.b16 %v5013, %v4981
    %v7286 = vpack.c.b16 %v5014, %v4982
    %v7287 = vpack.c.b16 %v5015, %v4983
    %v7288 = vpack.c.b16 %v5016, %v4984
    %v7289 = vpack.c.b16 %v5017, %v4985
    %v7290 = vpack.c.b16 %v5018, %v4986
    %v7291 = vpack.c.b16 %v5019, %v4987
    %v7292 = vpack.c.b16 %v5020, %v4988
    %v7293 = vpack.c.b16 %v5021, %v4989
    %v7294 = vpack.c.b16 %v5022, %v4990
    %v7295 = vpack.c.b16 %v5023, %v4991
    %v7296 = vpack.c.b16 %v5024, %v4992
    %v7297 = vpack.c.b16 %v5025, %v4993
    %v7298 = vpack.c.b16 %v5026, %v4994
    %v7299 = vpack.c.b16 %v5027, %v4995
    %v7300 = vpack.c.b16 %v5028, %v4996
    %v7301 = vpack.c.b16 %v5029, %v4997
    %v7302 = vpack.c.b16 %v5030, %v4998
    %v7303 = vpack.c.b16 %v5031, %v4999
    %v7304 = vpack.c.b16 %v5032, %v5000
    %v7305 = vpack.c.b16 %v5033, %v5001
    %v7306 = vpack.c.b16 %v5034, %v5002
    %v7307 = vpack.c.b16 %v5035, %v5003
    %v7308 = vpack.c.b16 %v5036, %v5004
    %v7309 = vpack.c.b16 %v5037, %v5005
    %v7310 = vpack.c.b16 %v5070, %v5038
    %v7311 = vpack.c.b16 %v5071, %v5039
    %v7312 = vpack.c.b16 %v5072, %v5040
    %v7313 = vpack.c.b16 %v5073, %v5041
    %v7314 = vpack.c.b16 %v5074, %v5042
    %v7315 = vpack.c.b16 %v5075, %v5043
    %v7316 = vpack.c.b16 %v5076, %v5044
    %v7317 = vpack.c.b16 %v5077, %v5045
    %v7318 = vpack.c.b16 %v5078, %v5046
    %v7319 = vpack.c.b16 %v5079, %v5047
    %v7320 = vpack.c.b16 %v5080, %v5048
    %v7321 = vpack.c.b16 %v5081, %v5049
    %v7322 = vpack.c.b16 %v5082, %v5050
    %v7323 = vpack.c.b16 %v5083, %v5051
    %v7324 = vpack.c.b16 %v5084, %v5052
    %v7325 = vpack.c.b16 %v5085, %v5053
    %v7326 = vpack.c.b16 %v5086, %v5054
    %v7327 = vpack.c.b16 %v5087, %v5055
    %v7328 = vpack.c.b16 %v5088, %v5056
    %v7329 = vpack.c.b16 %v5089, %v5057
    %v7330 = vpack.c.b16 %v5090, %v5058
    %v7331 = vpack.c.b16 %v5091, %v5059
    %v7332 = vpack.c.b16 %v5092, %v5060
    %v7333 = vpack.c.b16 %v5093, %v5061
    %v7334 = vpack.c.b16 %v5094, %v5062
    %v7335 = vpack.c.b16 %v5095, %v5063
    %v7336 = vpack.c.b16 %v5096, %v5064
    %v7337 = vpack.c.b16 %v5097, %v5065
    %v7338 = vpack.c.b16 %v5098, %v5066
    %v7339 = vpack.c.b16 %v5099, %v5067
    %v7340 = vpack.c.b16 %v5100, %v5068
    %v7341 = vpack.c.b16 %v5101, %v5069
    %v7342 = vpack.c.b16 %v5134, %v5102
    %v7343 = vpack.c.b16 %v5135, %v5103
    %v7344 = vpack.c.b16 %v5136, %v5104
    %v7345 = vpack.c.b16 %v5137, %v5105
    %v7346 = vpack.c.b16 %v5138, %v5106
    %v7347 = vpack.c.b16 %v5139, %v5107
    %v7348 = vpack.c.b16 %v5140, %v5108
    %v7349 = vpack.c.b16 %v5141, %v5109
    %v7350 = vpack.c.b16 %v5142, %v5110
    %v7351 = vpack.c.b16 %v5143, %v5111
    %v7352 = vpack.c.b16 %v5144, %v5112
    %v7353 = vpack.c.b16 %v5145, %v5113
    %v7354 = vpack.c.b16 %v5146, %v5114
    %v7355 = vpack.c.b16 %v5147, %v5115
    %v7356 = vpack.c.b16 %v5148, %v5116
    %v7357 = vpack.c.b16 %v5149, %v5117
    %v7358 = vpack.c.b16 %v5150, %v5118
    %v7359 = vpack.c.b16 %v5151, %v5119
    %v7360 = vpack.c.b16 %v5152, %v5120
    %v7361 = vpack.c.b16 %v5153, %v5121
    %v7362 = vpack.c.b16 %v5154, %v5122
    %v7363 = vpack.c.b16 %v5155, %v5123
    %v7364 = vpack.c.b16 %v5156, %v5124
    %v7365 = vpack.c.b16 %v5157, %v5125
    %v7366 = vpack.c.b16 %v5158, %v5126
    %v7367 = vpack.c.b16 %v5159, %v5127
    %v7368 = vpack.c.b16 %v5160, %v5128
    %v7369 = vpack.c.b16 %v5161, %v5129
    %v7370 = vpack.c.b16 %v5162, %v5130
    %v7371 = vpack.c.b16 %v5163, %v5131
    %v7372 = vpack.c.b16 %v5164, %v5132
    %v7373 = vpack.c.b16 %v5165, %v5133
    %v7374 = vpack.c.b16 %v5198, %v5166
    %v7375 = vpack.c.b16 %v5199, %v5167
    %v7376 = vpack.c.b16 %v5200, %v5168
    %v7377 = vpack.c.b16 %v5201, %v5169
    %v7378 = vpack.c.b16 %v5202, %v5170
    %v7379 = vpack.c.b16 %v5203, %v5171
    %v7380 = vpack.c.b16 %v5204, %v5172
    %v7381 = vpack.c.b16 %v5205, %v5173
    %v7382 = vpack.c.b16 %v5206, %v5174
    %v7383 = vpack.c.b16 %v5207, %v5175
    %v7384 = vpack.c.b16 %v5208, %v5176
    %v7385 = vpack.c.b16 %v5209, %v5177
    %v7386 = vpack.c.b16 %v5210, %v5178
    %v7387 = vpack.c.b16 %v5211, %v5179
    %v7388 = vpack.c.b16 %v5212, %v5180
    %v7389 = vpack.c.b16 %v5213, %v5181
    %v7390 = vpack.c.b16 %v5214, %v5182
    %v7391 = vpack.c.b16 %v5215, %v5183
    %v7392 = vpack.c.b16 %v5216, %v5184
    %v7393 = vpack.c.b16 %v5217, %v5185
    %v7394 = vpack.c.b16 %v5218, %v5186
    %v7395 = vpack.c.b16 %v5219, %v5187
    %v7396 = vpack.c.b16 %v5220, %v5188
    %v7397 = vpack.c.b16 %v5221, %v5189
    %v7398 = vpack.c.b16 %v5222, %v5190
    %v7399 = vpack.c.b16 %v5223, %v5191
    %v7400 = vpack.c.b16 %v5224, %v5192
    %v7401 = vpack.c.b16 %v5225, %v5193
    %v7402 = vpack.c.b16 %v5226, %v5194
    %v7403 = vpack.c.b16 %v5227, %v5195
    %v7404 = vpack.c.b16 %v5228, %v5196
    %v7405 = vpack.c.b16 %v5229, %v5197
    %v7406 = vpack.c.b16 %v5262, %v5230
    %v7407 = vpack.c.b16 %v5263, %v5231
    %v7408 = vpack.c.b16 %v5264, %v5232
    %v7409 = vpack.c.b16 %v5265, %v5233
    %v7410 = vpack.c.b16 %v5266, %v5234
    %v7411 = vpack.c.b16 %v5267, %v5235
    %v7412 = vpack.c.b16 %v5268, %v5236
    %v7413 = vpack.c.b16 %v5269, %v5237
    %v7414 = vpack.c.b16 %v5270, %v5238
    %v7415 = vpack.c.b16 %v5271, %v5239
    %v7416 = vpack.c.b16 %v5272, %v5240
    %v7417 = vpack.c.b16 %v5273, %v5241
    %v7418 = vpack.c.b16 %v5274, %v5242
    %v7419 = vpack.c.b16 %v5275, %v5243
    %v7420 = vpack.c.b16 %v5276, %v5244
    %v7421 = vpack.c.b16 %v5277, %v5245
    %v7422 = vpack.c.b16 %v5278, %v5246
    %v7423 = vpack.c.b16 %v5279, %v5247
    %v7424 = vpack.c.b16 %v5280, %v5248
    %v7425 = vpack.c.b16 %v5281, %v5249
    %v7426 = vpack.c.b16 %v5282, %v5250
    %v7427 = vpack.c.b16 %v5283, %v5251
    %v7428 = vpack.c.b16 %v5284, %v5252
    %v7429 = vpack.c.b16 %v5285, %v5253
    %v7430 = vpack.c.b16 %v5286, %v5254
    %v7431 = vpack.c.b16 %v5287, %v5255
    %v7432 = vpack.c.b16 %v5288, %v5256
    %v7433 = vpack.c.b16 %v5289, %v5257
    %v7434 = vpack.c.b16 %v5290, %v5258
    %v7435 = vpack.c.b16 %v5291, %v5259
    %v7436 = vpack.c.b16 %v5292, %v5260
    %v7437 = vpack.c.b16 %v5293, %v5261
    %v7438 = vpack.c.b16 %v5326, %v5294
    %v7439 = vpack.c.b16 %v5327, %v5295
    %v7440 = vpack.c.b16 %v5328, %v5296
    %v7441 = vpack.c.b16 %v5329, %v5297
    %v7442 = vpack.c.b16 %v5330, %v5298
    %v7443 = vpack.c.b16 %v5331, %v5299
    %v7444 = vpack.c.b16 %v5332, %v5300
    %v7445 = vpack.c.b16 %v5333, %v5301
    %v7446 = vpack.c.b16 %v5334, %v5302
    %v7447 = vpack.c.b16 %v5335, %v5303
    %v7448 = vpack.c.b16 %v5336, %v5304
    %v7449 = vpack.c.b16 %v5337, %v5305
    %v7450 = vpack.c.b16 %v5338, %v5306
    %v7451 = vpack.c.b16 %v5339, %v5307
    %v7452 = vpack.c.b16 %v5340, %v5308
    %v7453 = vpack.c.b16 %v5341, %v5309
    %v7454 = vpack.c.b16 %v5342, %v5310
    %v7455 = vpack.c.b16 %v5343, %v5311
    %v7456 = vpack.c.b16 %v5344, %v5312
    %v7457 = vpack.c.b16 %v5345, %v5313
    %v7458 = vpack.c.b16 %v5346, %v5314
    %v7459 = vpack.c.b16 %v5347, %v5315
    %v7460 = vpack.c.b16 %v5348, %v5316
    %v7461 = vpack.c.b16 %v5349, %v5317
    %v7462 = vpack.c.b16 %v5350, %v5318
    %v7463 = vpack.c.b16 %v5351, %v5319
    %v7464 = vpack.c.b16 %v5352, %v5320
    %v7465 = vpack.c.b16 %v5353, %v5321
    %v7466 = vpack.c.b16 %v5354, %v5322
    %v7467 = vpack.c.b16 %v5355, %v5323
    %v7468 = vpack.c.b16 %v5356, %v5324
    %v7469 = vpack.c.b16 %v5357, %v5325
    %v7470 = vpack.c.b16 %v5390, %v5358
    %v7471 = vpack.c.b16 %v5391, %v5359
    %v7472 = vpack.c.b16 %v5392, %v5360
    %v7473 = vpack.c.b16 %v5393, %v5361
    %v7474 = vpack.c.b16 %v5394, %v5362
    %v7475 = vpack.c.b16 %v5395, %v5363
    %v7476 = vpack.c.b16 %v5396, %v5364
    %v7477 = vpack.c.b16 %v5397, %v5365
    %v7478 = vpack.c.b16 %v5398, %v5366
    %v7479 = vpack.c.b16 %v5399, %v5367
    %v7480 = vpack.c.b16 %v5400, %v5368
    %v7481 = vpack.c.b16 %v5401, %v5369
    %v7482 = vpack.c.b16 %v5402, %v5370
    %v7483 = vpack.c.b16 %v5403, %v5371
    %v7484 = vpack.c.b16 %v5404, %v5372
    %v7485 = vpack.c.b16 %v5405, %v5373
    %v7486 = vpack.c.b16 %v5406, %v5374
    %v7487 = vpack.c.b16 %v5407, %v5375
    %v7488 = vpack.c.b16 %v5408, %v5376
    %v7489 = vpack.c.b16 %v5409, %v5377
    %v7490 = vpack.c.b16 %v5410, %v5378
    %v7491 = vpack.c.b16 %v5411, %v5379
    %v7492 = vpack.c.b16 %v5412, %v5380
    %v7493 = vpack.c.b16 %v5413, %v5381
    %v7494 = vpack.c.b16 %v5414, %v5382
    %v7495 = vpack.c.b16 %v5415, %v5383
    %v7496 = vpack.c.b16 %v5416, %v5384
    %v7497 = vpack.c.b16 %v5417, %v5385
    %v7498 = vpack.c.b16 %v5418, %v5386
    %v7499 = vpack.c.b16 %v5419, %v5387
    %v7500 = vpack.c.b16 %v5420, %v5388
    %v7501 = vpack.c.b16 %v5421, %v5389
    %v7502 = vpack.c.b16 %v5454, %v5422
    %v7503 = vpack.c.b16 %v5455, %v5423
    %v7504 = vpack.c.b16 %v5456, %v5424
    %v7505 = vpack.c.b16 %v5457, %v5425
    %v7506 = vpack.c.b16 %v5458, %v5426
    %v7507 = vpack.c.b16 %v5459, %v5427
    %v7508 = vpack.c.b16 %v5460, %v5428
    %v7509 = vpack.c.b16 %v5461, %v5429
    %v7510 = vpack.c.b16 %v5462, %v5430
    %v7511 = vpack.c.b16 %v5463, %v5431
    %v7512 = vpack.c.b16 %v5464, %v5432
    %v7513 = vpack.c.b16 %v5465, %v5433
    %v7514 = vpack.c.b16 %v5466, %v5434
    %v7515 = vpack.c.b16 %v5467, %v5435
    %v7516 = vpack.c.b16 %v5468, %v5436
    %v7517 = vpack.c.b16 %v5469, %v5437
    %v7518 = vpack.c.b16 %v5470, %v5438
    %v7519 = vpack.c.b16 %v5471, %v5439
    %v7520 = vpack.c.b16 %v5472, %v5440
    %v7521 = vpack.c.b16 %v5473, %v5441
    %v7522 = vpack.c.b16 %v5474, %v5442
    %v7523 = vpack.c.b16 %v5475, %v5443
    %v7524 = vpack.c.b16 %v5476, %v5444
    %v7525 = vpack.c.b16 %v5477, %v5445
    %v7526 = vpack.c.b16 %v5478, %v5446
    %v7527 = vpack.c.b16 %v5479, %v5447
    %v7528 = vpack.c.b16 %v5480, %v5448
    %v7529 = vpack.c.b16 %v5481, %v5449
    %v7530 = vpack.c.b16 %v5482, %v5450
    %v7531 = vpack.c.b16 %v5483, %v5451
    %v7532 = vpack.c.b16 %v5484, %v5452
    %v7533 = vpack.c.b16 %v5485, %v5453
    %v7534 = vpack.c.b16 %v5518, %v5486
    %v7535 = vpack.c.b16 %v5519, %v5487
    %v7536 = vpack.c.b16 %v5520, %v5488
    %v7537 = vpack.c.b16 %v5521, %v5489
    %v7538 = vpack.c.b16 %v5522, %v5490
    %v7539 = vpack.c.b16 %v5523, %v5491
    %v7540 = vpack.c.b16 %v5524, %v5492
    %v7541 = vpack.c.b16 %v5525, %v5493
    %v7542 = vpack.c.b16 %v5526, %v5494
    %v7543 = vpack.c.b16 %v5527, %v5495
    %v7544 = vpack.c.b16 %v5528, %v5496
    %v7545 = vpack.c.b16 %v5529, %v5497
    %v7546 = vpack.c.b16 %v5530, %v5498
    %v7547 = vpack.c.b16 %v5531, %v5499
    %v7548 = vpack.c.b16 %v5532, %v5500
    %v7549 = vpack.c.b16 %v5533, %v5501
    %v7550 = vpack.c.b16 %v5534, %v5502
    %v7551 = vpack.c.b16 %v5535, %v5503
    %v7552 = vpack.c.b16 %v5536, %v5504
    %v7553 = vpack.c.b16 %v5537, %v5505
    %v7554 = vpack.c.b16 %v5538, %v5506
    %v7555 = vpack.c.b16 %v5539, %v5507
    %v7556 = vpack.c.b16 %v5540, %v5508
    %v7557 = vpack.c.b16 %v5541, %v5509
    %v7558 = vpack.c.b16 %v5542, %v5510
    %v7559 = vpack.c.b16 %v5543, %v5511
    %v7560 = vpack.c.b16 %v5544, %v5512
    %v7561 = vpack.c.b16 %v5545, %v5513
    %v7562 = vpack.c.b16 %v5546, %v5514
    %v7563 = vpack.c.b16 %v5547, %v5515
    %v7564 = vpack.c.b16 %v5548, %v5516
    %v7565 = vpack.c.b16 %v5549, %v5517
    %v7566 = vpack.c.b16 %v5582, %v5550
    %v7567 = vpack.c.b16 %v5583, %v5551
    %v7568 = vpack.c.b16 %v5584, %v5552
    %v7569 = vpack.c.b16 %v5585, %v5553
    %v7570 = vpack.c.b16 %v5586, %v5554
    %v7571 = vpack.c.b16 %v5587, %v5555
    %v7572 = vpack.c.b16 %v5588, %v5556
    %v7573 = vpack.c.b16 %v5589, %v5557
    %v7574 = vpack.c.b16 %v5590, %v5558
    %v7575 = vpack.c.b16 %v5591, %v5559
    %v7576 = vpack.c.b16 %v5592, %v5560
    %v7577 = vpack.c.b16 %v5593, %v5561
    %v7578 = vpack.c.b16 %v5594, %v5562
    %v7579 = vpack.c.b16 %v5595, %v5563
    %v7580 = vpack.c.b16 %v5596, %v5564
    %v7581 = vpack.c.b16 %v5597, %v5565
    %v7582 = vpack.c.b16 %v5598, %v5566
    %v7583 = vpack.c.b16 %v5599, %v5567
    %v7584 = vpack.c.b16 %v5600, %v5568
    %v7585 = vpack.c.b16 %v5601, %v5569
    %v7586 = vpack.c.b16 %v5602, %v5570
    %v7587 = vpack.c.b16 %v5603, %v5571
    %v7588 = vpack.c.b16 %v5604, %v5572
    %v7589 = vpack.c.b16 %v5605, %v5573
    %v7590 = vpack.c.b16 %v5606, %v5574
    %v7591 = vpack.c.b16 %v5607, %v5575
    %v7592 = vpack.c.b16 %v5608, %v5576
    %v7593 = vpack.c.b16 %v5609, %v5577
    %v7594 = vpack.c.b16 %v5610, %v5578
    %v7595 = vpack.c.b16 %v5611, %v5579
    %v7596 = vpack.c.b16 %v5612, %v5580
    %v7597 = vpack.c.b16 %v5613, %v5581
    %v7598 = vpack.c.b16 %v5646, %v5614
    %v7599 = vpack.c.b16 %v5647, %v5615
    %v7600 = vpack.c.b16 %v5648, %v5616
    %v7601 = vpack.c.b16 %v5649, %v5617
    %v7602 = vpack.c.b16 %v5650, %v5618
    %v7603 = vpack.c.b16 %v5651, %v5619
    %v7604 = vpack.c.b16 %v5652, %v5620
    %v7605 = vpack.c.b16 %v5653, %v5621
    %v7606 = vpack.c.b16 %v5654, %v5622
    %v7607 = vpack.c.b16 %v5655, %v5623
    %v7608 = vpack.c.b16 %v5656, %v5624
    %v7609 = vpack.c.b16 %v5657, %v5625
    %v7610 = vpack.c.b16 %v5658, %v5626
    %v7611 = vpack.c.b16 %v5659, %v5627
    %v7612 = vpack.c.b16 %v5660, %v5628
    %v7613 = vpack.c.b16 %v5661, %v5629
    %v7614 = vpack.c.b16 %v5662, %v5630
    %v7615 = vpack.c.b16 %v5663, %v5631
    %v7616 = vpack.c.b16 %v5664, %v5632
    %v7617 = vpack.c.b16 %v5665, %v5633
    %v7618 = vpack.c.b16 %v5666, %v5634
    %v7619 = vpack.c.b16 %v5667, %v5635
    %v7620 = vpack.c.b16 %v5668, %v5636
    %v7621 = vpack.c.b16 %v5669, %v5637
    %v7622 = vpack.c.b16 %v5670, %v5638
    %v7623 = vpack.c.b16 %v5671, %v5639
    %v7624 = vpack.c.b16 %v5672, %v5640
    %v7625 = vpack.c.b16 %v5673, %v5641
    %v7626 = vpack.c.b16 %v5674, %v5642
    %v7627 = vpack.c.b16 %v5675, %v5643
    %v7628 = vpack.c.b16 %v5676, %v5644
    %v7629 = vpack.c.b16 %v5677, %v5645
    %v7630 = vpack.c.b16 %v5710, %v5678
    %v7631 = vpack.c.b16 %v5711, %v5679
    %v7632 = vpack.c.b16 %v5712, %v5680
    %v7633 = vpack.c.b16 %v5713, %v5681
    %v7634 = vpack.c.b16 %v5714, %v5682
    %v7635 = vpack.c.b16 %v5715, %v5683
    %v7636 = vpack.c.b16 %v5716, %v5684
    %v7637 = vpack.c.b16 %v5717, %v5685
    %v7638 = vpack.c.b16 %v5718, %v5686
    %v7639 = vpack.c.b16 %v5719, %v5687
    %v7640 = vpack.c.b16 %v5720, %v5688
    %v7641 = vpack.c.b16 %v5721, %v5689
    %v7642 = vpack.c.b16 %v5722, %v5690
    %v7643 = vpack.c.b16 %v5723, %v5691
    %v7644 = vpack.c.b16 %v5724, %v5692
    %v7645 = vpack.c.b16 %v5725, %v5693
    %v7646 = vpack.c.b16 %v5726, %v5694
    %v7647 = vpack.c.b16 %v5727, %v5695
    %v7648 = vpack.c.b16 %v5728, %v5696
    %v7649 = vpack.c.b16 %v5729, %v5697
    %v7650 = vpack.c.b16 %v5730, %v5698
    %v7651 = vpack.c.b16 %v5731, %v5699
    %v7652 = vpack.c.b16 %v5732, %v5700
    %v7653 = vpack.c.b16 %v5733, %v5701
    %v7654 = vpack.c.b16 %v5734, %v5702
    %v7655 = vpack.c.b16 %v5735, %v5703
    %v7656 = vpack.c.b16 %v5736, %v5704
    %v7657 = vpack.c.b16 %v5737, %v5705
    %v7658 = vpack.c.b16 %v5738, %v5706
    %v7659 = vpack.c.b16 %v5739, %v5707
    %v7660 = vpack.c.b16 %v5740, %v5708
    %v7661 = vpack.c.b16 %v5741, %v5709
    %v7662 = vpack.c.b16 %v5774, %v5742
    %v7663 = vpack.c.b16 %v5775, %v5743
    %v7664 = vpack.c.b16 %v5776, %v5744
    %v7665 = vpack.c.b16 %v5777, %v5745
    %v7666 = vpack.c.b16 %v5778, %v5746
    %v7667 = vpack.c.b16 %v5779, %v5747
    %v7668 = vpack.c.b16 %v5780, %v5748
    %v7669 = vpack.c.b16 %v5781, %v5749
    %v7670 = vpack.c.b16 %v5782, %v5750
    %v7671 = vpack.c.b16 %v5783, %v5751
    %v7672 = vpack.c.b16 %v5784, %v5752
    %v7673 = vpack.c.b16 %v5785, %v5753
    %v7674 = vpack.c.b16 %v5786, %v5754
    %v7675 = vpack.c.b16 %v5787, %v5755
    %v7676 = vpack.c.b16 %v5788, %v5756
    %v7677 = vpack.c.b16 %v5789, %v5757
    %v7678 = vpack.c.b16 %v5790, %v5758
    %v7679 = vpack.c.b16 %v5791, %v5759
    %v7680 = vpack.c.b16 %v5792, %v5760
    %v7681 = vpack.c.b16 %v5793, %v5761
    %v7682 = vpack.c.b16 %v5794, %v5762
    %v7683 = vpack.c.b16 %v5795, %v5763
    %v7684 = vpack.c.b16 %v5796, %v5764
    %v7685 = vpack.c.b16 %v5797, %v5765
    %v7686 = vpack.c.b16 %v5798, %v5766
    %v7687 = vpack.c.b16 %v5799, %v5767
    %v7688 = vpack.c.b16 %v5800, %v5768
    %v7689 = vpack.c.b16 %v5801, %v5769
    %v7690 = vpack.c.b16 %v5802, %v5770
    %v7691 = vpack.c.b16 %v5803, %v5771
    %v7692 = vpack.c.b16 %v5804, %v5772
    %v7693 = vpack.c.b16 %v5805, %v5773
    %v7694 = vpack.c.b16 %v5838, %v5806
    %v7695 = vpack.c.b16 %v5839, %v5807
    %v7696 = vpack.c.b16 %v5840, %v5808
    %v7697 = vpack.c.b16 %v5841, %v5809
    %v7698 = vpack.c.b16 %v5842, %v5810
    %v7699 = vpack.c.b16 %v5843, %v5811
    %v7700 = vpack.c.b16 %v5844, %v5812
    %v7701 = vpack.c.b16 %v5845, %v5813
    %v7702 = vpack.c.b16 %v5846, %v5814
    %v7703 = vpack.c.b16 %v5847, %v5815
    %v7704 = vpack.c.b16 %v5848, %v5816
    %v7705 = vpack.c.b16 %v5849, %v5817
    %v7706 = vpack.c.b16 %v5850, %v5818
    %v7707 = vpack.c.b16 %v5851, %v5819
    %v7708 = vpack.c.b16 %v5852, %v5820
    %v7709 = vpack.c.b16 %v5853, %v5821
    %v7710 = vpack.c.b16 %v5854, %v5822
    %v7711 = vpack.c.b16 %v5855, %v5823
    %v7712 = vpack.c.b16 %v5856, %v5824
    %v7713 = vpack.c.b16 %v5857, %v5825
    %v7714 = vpack.c.b16 %v5858, %v5826
    %v7715 = vpack.c.b16 %v5859, %v5827
    %v7716 = vpack.c.b16 %v5860, %v5828
    %v7717 = vpack.c.b16 %v5861, %v5829
    %v7718 = vpack.c.b16 %v5862, %v5830
    %v7719 = vpack.c.b16 %v5863, %v5831
    %v7720 = vpack.c.b16 %v5864, %v5832
    %v7721 = vpack.c.b16 %v5865, %v5833
    %v7722 = vpack.c.b16 %v5866, %v5834
    %v7723 = vpack.c.b16 %v5867, %v5835
    %v7724 = vpack.c.b16 %v5868, %v5836
    %v7725 = vpack.c.b16 %v5869, %v5837
    %v7726 = vpack.c.b16 %v5902, %v5870
    %v7727 = vpack.c.b16 %v5903, %v5871
    %v7728 = vpack.c.b16 %v5904, %v5872
    %v7729 = vpack.c.b16 %v5905, %v5873
    %v7730 = vpack.c.b16 %v5906, %v5874
    %v7731 = vpack.c.b16 %v5907, %v5875
    %v7732 = vpack.c.b16 %v5908, %v5876
    %v7733 = vpack.c.b16 %v5909, %v5877
    %v7734 = vpack.c.b16 %v5910, %v5878
    %v7735 = vpack.c.b16 %v5911, %v5879
    %v7736 = vpack.c.b16 %v5912, %v5880
    %v7737 = vpack.c.b16 %v5913, %v5881
    %v7738 = vpack.c.b16 %v5914, %v5882
    %v7739 = vpack.c.b16 %v5915, %v5883
    %v7740 = vpack.c.b16 %v5916, %v5884
    %v7741 = vpack.c.b16 %v5917, %v5885
    %v7742 = vpack.c.b16 %v5918, %v5886
    %v7743 = vpack.c.b16 %v5919, %v5887
    %v7744 = vpack.c.b16 %v5920, %v5888
    %v7745 = vpack.c.b16 %v5921, %v5889
    %v7746 = vpack.c.b16 %v5922, %v5890
    %v7747 = vpack.c.b16 %v5923, %v5891
    %v7748 = vpack.c.b16 %v5924, %v5892
    %v7749 = vpack.c.b16 %v5925, %v5893
    %v7750 = vpack.c.b16 %v5926, %v5894
    %v7751 = vpack.c.b16 %v5927, %v5895
    %v7752 = vpack.c.b16 %v5928, %v5896
    %v7753 = vpack.c.b16 %v5929, %v5897
    %v7754 = vpack.c.b16 %v5930, %v5898
    %v7755 = vpack.c.b16 %v5931, %v5899
    %v7756 = vpack.c.b16 %v5932, %v5900
    %v7757 = vpack.c.b16 %v5933, %v5901
    %v7758 = vpack.c.b16 %v5966, %v5934
    %v7759 = vpack.c.b16 %v5967, %v5935
    %v7760 = vpack.c.b16 %v5968, %v5936
    %v7761 = vpack.c.b16 %v5969, %v5937
    %v7762 = vpack.c.b16 %v5970, %v5938
    %v7763 = vpack.c.b16 %v5971, %v5939
    %v7764 = vpack.c.b16 %v5972, %v5940
    %v7765 = vpack.c.b16 %v5973, %v5941
    %v7766 = vpack.c.b16 %v5974, %v5942
    %v7767 = vpack.c.b16 %v5975, %v5943
    %v7768 = vpack.c.b16 %v5976, %v5944
    %v7769 = vpack.c.b16 %v5977, %v5945
    %v7770 = vpack.c.b16 %v5978, %v5946
    %v7771 = vpack.c.b16 %v5979, %v5947
    %v7772 = vpack.c.b16 %v5980, %v5948
    %v7773 = vpack.c.b16 %v5981, %v5949
    %v7774 = vpack.c.b16 %v5982, %v5950
    %v7775 = vpack.c.b16 %v5983, %v5951
    %v7776 = vpack.c.b16 %v5984, %v5952
    %v7777 = vpack.c.b16 %v5985, %v5953
    %v7778 = vpack.c.b16 %v5986, %v5954
    %v7779 = vpack.c.b16 %v5987, %v5955
    %v7780 = vpack.c.b16 %v5988, %v5956
    %v7781 = vpack.c.b16 %v5989, %v5957
    %v7782 = vpack.c.b16 %v5990, %v5958
    %v7783 = vpack.c.b16 %v5991, %v5959
    %v7784 = vpack.c.b16 %v5992, %v5960
    %v7785 = vpack.c.b16 %v5993, %v5961
    %v7786 = vpack.c.b16 %v5994, %v5962
    %v7787 = vpack.c.b16 %v5995, %v5963
    %v7788 = vpack.c.b16 %v5996, %v5964
    %v7789 = vpack.c.b16 %v5997, %v5965
    %v7790 = vpack.c.b16 %v6030, %v5998
    %v7791 = vpack.c.b16 %v6031, %v5999
    %v7792 = vpack.c.b16 %v6032, %v6000
    %v7793 = vpack.c.b16 %v6033, %v6001
    %v7794 = vpack.c.b16 %v6034, %v6002
    %v7795 = vpack.c.b16 %v6035, %v6003
    %v7796 = vpack.c.b16 %v6036, %v6004
    %v7797 = vpack.c.b16 %v6037, %v6005
    %v7798 = vpack.c.b16 %v6038, %v6006
    %v7799 = vpack.c.b16 %v6039, %v6007
    %v7800 = vpack.c.b16 %v6040, %v6008
    %v7801 = vpack.c.b16 %v6041, %v6009
    %v7802 = vpack.c.b16 %v6042, %v6010
    %v7803 = vpack.c.b16 %v6043, %v6011
    %v7804 = vpack.c.b16 %v6044, %v6012
    %v7805 = vpack.c.b16 %v6045, %v6013
    %v7806 = vpack.c.b16 %v6046, %v6014
    %v7807 = vpack.c.b16 %v6047, %v6015
    %v7808 = vpack.c.b16 %v6048, %v6016
    %v7809 = vpack.c.b16 %v6049, %v6017
    %v7810 = vpack.c.b16 %v6050, %v6018
    %v7811 = vpack.c.b16 %v6051, %v6019
    %v7812 = vpack.c.b16 %v6052, %v6020
    %v7813 = vpack.c.b16 %v6053, %v6021
    %v7814 = vpack.c.b16 %v6054, %v6022
    %v7815 = vpack.c.b16 %v6055, %v6023
    %v7816 = vpack.c.b16 %v6056, %v6024
    %v7817 = vpack.c.b16 %v6057, %v6025
    %v7818 = vpack.c.b16 %v6058, %v6026
    %v7819 = vpack.c.b16 %v6059, %v6027
    %v7820 = vpack.c.b16 %v6060, %v6028
    %v7821 = vpack.c.b16 %v6061, %v6029
    %v7822 = vpack.c.b16 %v6094, %v6062
    %v7823 = vpack.c.b16 %v6095, %v6063
    %v7824 = vpack.c.b16 %v6096, %v6064
    %v7825 = vpack.c.b16 %v6097, %v6065
    %v7826 = vpack.c.b16 %v6098, %v6066
    %v7827 = vpack.c.b16 %v6099, %v6067
    %v7828 = vpack.c.b16 %v6100, %v6068
    %v7829 = vpack.c.b16 %v6101, %v6069
    %v7830 = vpack.c.b16 %v6102, %v6070
    %v7831 = vpack.c.b16 %v6103, %v6071
    %v7832 = vpack.c.b16 %v6104, %v6072
    %v7833 = vpack.c.b16 %v6105, %v6073
    %v7834 = vpack.c.b16 %v6106, %v6074
    %v7835 = vpack.c.b16 %v6107, %v6075
    %v7836 = vpack.c.b16 %v6108, %v6076
    %v7837 = vpack.c.b16 %v6109, %v6077
    %v7838 = vpack.c.b16 %v6110, %v6078
    %v7839 = vpack.c.b16 %v6111, %v6079
    %v7840 = vpack.c.b16 %v6112, %v6080
    %v7841 = vpack.c.b16 %v6113, %v6081
    %v7842 = vpack.c.b16 %v6114, %v6082
    %v7843 = vpack.c.b16 %v6115, %v6083
    %v7844 = vpack.c.b16 %v6116, %v6084
    %v7845 = vpack.c.b16 %v6117, %v6085
    %v7846 = vpack.c.b16 %v6118, %v6086
    %v7847 = vpack.c.b16 %v6119, %v6087
    %v7848 = vpack.c.b16 %v6120, %v6088
    %v7849 = vpack.c.b16 %v6121, %v6089
    %v7850 = vpack.c.b16 %v6122, %v6090
    %v7851 = vpack.c.b16 %v6123, %v6091
    %v7852 = vpack.c.b16 %v6124, %v6092
    %v7853 = vpack.c.b16 %v6125, %v6093
    %v7854 = vpack.c.b16 %v6158, %v6126
    %v7855 = vpack.c.b16 %v6159, %v6127
    %v7856 = vpack.c.b16 %v6160, %v6128
    %v7857 = vpack.c.b16 %v6161, %v6129
    %v7858 = vpack.c.b16 %v6162, %v6130
    %v7859 = vpack.c.b16 %v6163, %v6131
    %v7860 = vpack.c.b16 %v6164, %v6132
    %v7861 = vpack.c.b16 %v6165, %v6133
    %v7862 = vpack.c.b16 %v6166, %v6134
    %v7863 = vpack.c.b16 %v6167, %v6135
    %v7864 = vpack.c.b16 %v6168, %v6136
    %v7865 = vpack.c.b16 %v6169, %v6137
    %v7866 = vpack.c.b16 %v6170, %v6138
    %v7867 = vpack.c.b16 %v6171, %v6139
    %v7868 = vpack.c.b16 %v6172, %v6140
    %v7869 = vpack.c.b16 %v6173, %v6141
    %v7870 = vpack.c.b16 %v6174, %v6142
    %v7871 = vpack.c.b16 %v6175, %v6143
    %v7872 = vpack.c.b16 %v6176, %v6144
    %v7873 = vpack.c.b16 %v6177, %v6145
    %v7874 = vpack.c.b16 %v6178, %v6146
    %v7875 = vpack.c.b16 %v6179, %v6147
    %v7876 = vpack.c.b16 %v6180, %v6148
    %v7877 = vpack.c.b16 %v6181, %v6149
    %v7878 = vpack.c.b16 %v6182, %v6150
    %v7879 = vpack.c.b16 %v6183, %v6151
    %v7880 = vpack.c.b16 %v6184, %v6152
    %v7881 = vpack.c.b16 %v6185, %v6153
    %v7882 = vpack.c.b16 %v6186, %v6154
    %v7883 = vpack.c.b16 %v6187, %v6155
    %v7884 = vpack.c.b16 %v6188, %v6156
    %v7885 = vpack.c.b16 %v6189, %v6157
    %v7886 = vpack.c.b16 %v6222, %v6190
    %v7887 = vpack.c.b16 %v6223, %v6191
    %v7888 = vpack.c.b16 %v6224, %v6192
    %v7889 = vpack.c.b16 %v6225, %v6193
    %v7890 = vpack.c.b16 %v6226, %v6194
    %v7891 = vpack.c.b16 %v6227, %v6195
    %v7892 = vpack.c.b16 %v6228, %v6196
    %v7893 = vpack.c.b16 %v6229, %v6197
    %v7894 = vpack.c.b16 %v6230, %v6198
    %v7895 = vpack.c.b16 %v6231, %v6199
    %v7896 = vpack.c.b16 %v6232, %v6200
    %v7897 = vpack.c.b16 %v6233, %v6201
    %v7898 = vpack.c.b16 %v6234, %v6202
    %v7899 = vpack.c.b16 %v6235, %v6203
    %v7900 = vpack.c.b16 %v6236, %v6204
    %v7901 = vpack.c.b16 %v6237, %v6205
    %v7902 = vpack.c.b16 %v6238, %v6206
    %v7903 = vpack.c.b16 %v6239, %v6207
    %v7904 = vpack.c.b16 %v6240, %v6208
    %v7905 = vpack.c.b16 %v6241, %v6209
    %v7906 = vpack.c.b16 %v6242, %v6210
    %v7907 = vpack.c.b16 %v6243, %v6211
    %v7908 = vpack.c.b16 %v6244, %v6212
    %v7909 = vpack.c.b16 %v6245, %v6213
    %v7910 = vpack.c.b16 %v6246, %v6214
    %v7911 = vpack.c.b16 %v6247, %v6215
    %v7912 = vpack.c.b16 %v6248, %v6216
    %v7913 = vpack.c.b16 %v6249, %v6217
    %v7914 = vpack.c.b16 %v6250, %v6218
    %v7915 = vpack.c.b16 %v6251, %v6219
    %v7916 = vpack.c.b16 %v6252, %v6220
    %v7917 = vpack.c.b16 %v6253, %v6221
    %v7918 = vpack.c.b16 %v6286, %v6254
    %v7919 = vpack.c.b16 %v6287, %v6255
    %v7920 = vpack.c.b16 %v6288, %v6256
    %v7921 = vpack.c.b16 %v6289, %v6257
    %v7922 = vpack.c.b16 %v6290, %v6258
    %v7923 = vpack.c.b16 %v6291, %v6259
    %v7924 = vpack.c.b16 %v6292, %v6260
    %v7925 = vpack.c.b16 %v6293, %v6261
    %v7926 = vpack.c.b16 %v6294, %v6262
    %v7927 = vpack.c.b16 %v6295, %v6263
    %v7928 = vpack.c.b16 %v6296, %v6264
    %v7929 = vpack.c.b16 %v6297, %v6265
    %v7930 = vpack.c.b16 %v6298, %v6266
    %v7931 = vpack.c.b16 %v6299, %v6267
    %v7932 = vpack.c.b16 %v6300, %v6268
    %v7933 = vpack.c.b16 %v6301, %v6269
    %v7934 = vpack.c.b16 %v6302, %v6270
    %v7935 = vpack.c.b16 %v6303, %v6271
    %v7936 = vpack.c.b16 %v6304, %v6272
    %v7937 = vpack.c.b16 %v6305, %v6273
    %v7938 = vpack.c.b16 %v6306, %v6274
    %v7939 = vpack.c.b16 %v6307, %v6275
    %v7940 = vpack.c.b16 %v6308, %v6276
    %v7941 = vpack.c.b16 %v6309, %v6277
    %v7942 = vpack.c.b16 %v6310, %v6278
    %v7943 = vpack.c.b16 %v6311, %v6279
    %v7944 = vpack.c.b16 %v6312, %v6280
    %v7945 = vpack.c.b16 %v6313, %v6281
    %v7946 = vpack.c.b16 %v6314, %v6282
    %v7947 = vpack.c.b16 %v6315, %v6283
    %v7948 = vpack.c.b16 %v6316, %v6284
    %v7949 = vpack.c.b16 %v6317, %v6285
    %v7950 = vpack.c.b16 %v6350, %v6318
    %v7951 = vpack.c.b16 %v6351, %v6319
    %v7952 = vpack.c.b16 %v6352, %v6320
    %v7953 = vpack.c.b16 %v6353, %v6321
    %v7954 = vpack.c.b16 %v6354, %v6322
    %v7955 = vpack.c.b16 %v6355, %v6323
    %v7956 = vpack.c.b16 %v6356, %v6324
    %v7957 = vpack.c.b16 %v6357, %v6325
    %v7958 = vpack.c.b16 %v6358, %v6326
    %v7959 = vpack.c.b16 %v6359, %v6327
    %v7960 = vpack.c.b16 %v6360, %v6328
    %v7961 = vpack.c.b16 %v6361, %v6329
    %v7962 = vpack.c.b16 %v6362, %v6330
    %v7963 = vpack.c.b16 %v6363, %v6331
    %v7964 = vpack.c.b16 %v6364, %v6332
    %v7965 = vpack.c.b16 %v6365, %v6333
    %v7966 = vpack.c.b16 %v6366, %v6334
    %v7967 = vpack.c.b16 %v6367, %v6335
    %v7968 = vpack.c.b16 %v6368, %v6336
    %v7969 = vpack.c.b16 %v6369, %v6337
    %v7970 = vpack.c.b16 %v6370, %v6338
    %v7971 = vpack.c.b16 %v6371, %v6339
    %v7972 = vpack.c.b16 %v6372, %v6340
    %v7973 = vpack.c.b16 %v6373, %v6341
    %v7974 = vpack.c.b16 %v6374, %v6342
    %v7975 = vpack.c.b16 %v6375, %v6343
    %v7976 = vpack.c.b16 %v6376, %v6344
    %v7977 = vpack.c.b16 %v6377, %v6345
    %v7978 = vpack.c.b16 %v6378, %v6346
    %v7979 = vpack.c.b16 %v6379, %v6347
    %v7980 = vpack.c.b16 %v6380, %v6348
    %v7981 = vpack.c.b16 %v6381, %v6349
    %v7982 = vpack.c.b16 %v6414, %v6382
    %v7983 = vpack.c.b16 %v6415, %v6383
    %v7984 = vpack.c.b16 %v6416, %v6384
    %v7985 = vpack.c.b16 %v6417, %v6385
    %v7986 = vpack.c.b16 %v6418, %v6386
    %v7987 = vpack.c.b16 %v6419, %v6387
    %v7988 = vpack.c.b16 %v6420, %v6388
    %v7989 = vpack.c.b16 %v6421, %v6389
    %v7990 = vpack.c.b16 %v6422, %v6390
    %v7991 = vpack.c.b16 %v6423, %v6391
    %v7992 = vpack.c.b16 %v6424, %v6392
    %v7993 = vpack.c.b16 %v6425, %v6393
    %v7994 = vpack.c.b16 %v6426, %v6394
    %v7995 = vpack.c.b16 %v6427, %v6395
    %v7996 = vpack.c.b16 %v6428, %v6396
    %v7997 = vpack.c.b16 %v6429, %v6397
    %v7998 = vpack.c.b16 %v6430, %v6398
    %v7999 = vpack.c.b16 %v6431, %v6399
    %v8000 = vpack.c.b16 %v6432, %v6400
    %v8001 = vpack.c.b16 %v6433, %v6401
    %v8002 = vpack.c.b16 %v6434, %v6402
    %v8003 = vpack.c.b16 %v6435, %v6403
    %v8004 = vpack.c.b16 %v6436, %v6404
    %v8005 = vpack.c.b16 %v6437, %v6405
    %v8006 = vpack.c.b16 %v6438, %v6406
    %v8007 = vpack.c.b16 %v6439, %v6407
    %v8008 = vpack.c.b16 %v6440, %v6408
    %v8009 = vpack.c.b16 %v6441, %v6409
    %v8010 = vpack.c.b16 %v6442, %v6410
    %v8011 = vpack.c.b16 %v6443, %v6411
    %v8012 = vpack.c.b16 %v6444, %v6412
    %v8013 = vpack.c.b16 %v6445, %v6413
    %v8014 = vpack.c.b16 %v6478, %v6446
    %v8015 = vpack.c.b16 %v6479, %v6447
    %v8016 = vpack.c.b16 %v6480, %v6448
    %v8017 = vpack.c.b16 %v6481, %v6449
    %v8018 = vpack.c.b16 %v6482, %v6450
    %v8019 = vpack.c.b16 %v6483, %v6451
    %v8020 = vpack.c.b16 %v6484, %v6452
    %v8021 = vpack.c.b16 %v6485, %v6453
    %v8022 = vpack.c.b16 %v6486, %v6454
    %v8023 = vpack.c.b16 %v6487, %v6455
    %v8024 = vpack.c.b16 %v6488, %v6456
    %v8025 = vpack.c.b16 %v6489, %v6457
    %v8026 = vpack.c.b16 %v6490, %v6458
    %v8027 = vpack.c.b16 %v6491, %v6459
    %v8028 = vpack.c.b16 %v6492, %v6460
    %v8029 = vpack.c.b16 %v6493, %v6461
    %v8030 = vpack.c.b16 %v6494, %v6462
    %v8031 = vpack.c.b16 %v6495, %v6463
    %v8032 = vpack.c.b16 %v6496, %v6464
    %v8033 = vpack.c.b16 %v6497, %v6465
    %v8034 = vpack.c.b16 %v6498, %v6466
    %v8035 = vpack.c.b16 %v6499, %v6467
    %v8036 = vpack.c.b16 %v6500, %v6468
    %v8037 = vpack.c.b16 %v6501, %v6469
    %v8038 = vpack.c.b16 %v6502, %v6470
    %v8039 = vpack.c.b16 %v6503, %v6471
    %v8040 = vpack.c.b16 %v6504, %v6472
    %v8041 = vpack.c.b16 %v6505, %v6473
    %v8042 = vpack.c.b16 %v6506, %v6474
    %v8043 = vpack.c.b16 %v6507, %v6475
    %v8044 = vpack.c.b16 %v6508, %v6476
    %v8045 = vpack.c.b16 %v6509, %v6477
    %9582 = vmatprep.subr.bf16.mxu0 %v6511
    %9583 = vmatpush1.bf16.msra.mxu0 %v6510
    %9584 = vmatprep.subr.bf16.mxu0 %v6543
    %9585 = vmatpush1.bf16.msra.mxu0 %v6542
    %9586 = vmatprep.subr.bf16.mxu0 %v6575
    %9587 = vmatpush1.bf16.msra.mxu0 %v6574
    %9588 = vmatprep.subr.bf16.mxu0 %v6607
    %9589 = vmatpush1.bf16.msra.mxu0 %v6606
    %9590 = vmatprep.subr.bf16.mxu0 %v6639
    %9591 = vmatpush1.bf16.msra.mxu0 %v6638
    %9592 = vmatprep.subr.bf16.mxu0 %v6671
    %9593 = vmatpush1.bf16.msra.mxu0 %v6670
    %9594 = vmatprep.subr.bf16.mxu0 %v6703
    %9595 = vmatpush1.bf16.msra.mxu0 %v6702
    %9596 = vmatprep.subr.bf16.mxu0 %v6735
    %9597 = vmatpush1.bf16.msra.mxu0 %v6734
    %9598 = vmatprep.subr.bf16.mxu0 %v6767
    %9599 = vmatpush1.bf16.msra.mxu0 %v6766
    %9600 = vmatprep.subr.bf16.mxu0 %v6799
    %9601 = vmatpush1.bf16.msra.mxu0 %v6798
    %9602 = vmatprep.subr.bf16.mxu0 %v6831
    %9603 = vmatpush1.bf16.msra.mxu0 %v6830
    %9604 = vmatprep.subr.bf16.mxu0 %v6863
    %9605 = vmatpush1.bf16.msra.mxu0 %v6862
    %9606 = vmatprep.subr.bf16.mxu0 %v6895
    %9607 = vmatpush1.bf16.msra.mxu0 %v6894
    %9608 = vmatprep.subr.bf16.mxu0 %v6927
    %9609 = vmatpush1.bf16.msra.mxu0 %v6926
    %9610 = vmatprep.subr.bf16.mxu0 %v6959
    %9611 = vmatpush1.bf16.msra.mxu0 %v6958
    %9612 = vmatprep.subr.bf16.mxu0 %v6991
    %9613 = vmatpush1.bf16.msra.mxu0 %v6990
    %9614 = vmatprep.mubr.bf16.mxu0 %v1855
    %9615 = vmatmul.mubr.bf16.gmra.mrb[0].mxu0 %v1854
    %v9616 = vpop.f32.mrb[0].mxu0
    %v9617 = vadd.f32 %v1625, %v9616
    %v9618 = vpop.f32.mrb[0].mxu0
    %v9619 = vadd.f32 %v1629, %v9618
    %v9620 = vpop.f32.mrb[0].mxu0
    %v9621 = vadd.f32 %v1625, %v9620
    %v9622 = vpop.f32.mrb[0].mxu0
    %v9623 = vadd.f32 %v1629, %v9622
    %9624 = vmatprep.mubr.bf16.mxu0 %v1861
    %9625 = vmatmul.mubr.bf16.gmra.mrb[0].mxu0 %v1860
    %v9626 = vpop.f32.mrb[0].mxu0
    %v9627 = vadd.f32 %v1625, %v9626
    %v9628 = vpop.f32.mrb[0].mxu0
    %v9629 = vadd.f32 %v1629, %v9628
    %v9630 = vpop.f32.mrb[0].mxu0
    %v9631 = vadd.f32 %v1625, %v9630
    %v9632 = vpop.f32.mrb[0].mxu0
    %v9633 = vadd.f32 %v1629, %v9632
    %9634 = vmatprep.mubr.bf16.mxu0 %v1867
    %9635 = vmatmul.mubr.bf16.gmra.mrb[0].mxu0 %v1866
    %v9636 = vpop.f32.mrb[0].mxu0
    %v9637 = vadd.f32 %v1625, %v9636
    %v9638 = vpop.f32.mrb[0].mxu0
    %v9639 = vadd.f32 %v1629, %v9638
    %v9640 = vpop.f32.mrb[0].mxu0
    %v9641 = vadd.f32 %v1625, %v9640
    %v9642 = vpop.f32.mrb[0].mxu0
    %v9643 = vadd.f32 %v1629, %v9642
    %9644 = vmatprep.mubr.bf16.mxu0 %v1873
    %9645 = vmatmul.mubr.bf16.gmra.mrb[0].mxu0 %v1872
    %v9646 = vpop.f32.mrb[0].mxu0
    %v9647 = vadd.f32 %v1625, %v9646
    %v9648 = vpop.f32.mrb[0].mxu0
    %v9649 = vadd.f32 %v1629, %v9648
    %v9650 = vpop.f32.mrb[0].mxu0
    %v9651 = vadd.f32 %v1625, %v9650
    %v9652 = vpop.f32.mrb[0].mxu0
    %v9653 = vadd.f32 %v1629, %v9652
    %9654 = vdwg.mxu0
    %9655 = vmatprep.subr.bf16.mxu0 %v7023
    %9656 = vmatpush1.bf16.msra.mxu0 %v7022
    %9657 = vmatprep.subr.bf16.mxu0 %v7055
    %9658 = vmatpush1.bf16.msra.mxu0 %v7054
    %9659 = vmatprep.subr.bf16.mxu0 %v7087
    %9660 = vmatpush1.bf16.msra.mxu0 %v7086
    %9661 = vmatprep.subr.bf16.mxu0 %v7119
    %9662 = vmatpush1.bf16.msra.mxu0 %v7118
    %9663 = vmatprep.subr.bf16.mxu0 %v7151
    %9664 = vmatpush1.bf16.msra.mxu0 %v7150
    %9665 = vmatprep.subr.bf16.mxu0 %v7183
    %9666 = vmatpush1.bf16.msra.mxu0 %v7182
    %9667 = vmatprep.subr.bf16.mxu0 %v7215
    %9668 = vmatpush1.bf16.msra.mxu0 %v7214
    %9669 = vmatprep.subr.bf16.mxu0 %v7247
    %9670 = vmatpush1.bf16.msra.mxu0 %v7246
    %9671 = vmatprep.subr.bf16.mxu0 %v7279
    %9672 = vmatpush1.bf16.msra.mxu0 %v7278
    %9673 = vmatprep.subr.bf16.mxu0 %v7311
    %9674 = vmatpush1.bf16.msra.mxu0 %v7310
    %9675 = vmatprep.subr.bf16.mxu0 %v7343
    %9676 = vmatpush1.bf16.msra.mxu0 %v7342
    %9677 = vmatprep.subr.bf16.mxu0 %v7375
    %9678 = vmatpush1.bf16.msra.mxu0 %v7374
    %9679 = vmatprep.subr.bf16.mxu0 %v7407
    %9680 = vmatpush1.bf16.msra.mxu0 %v7406
    %9681 = vmatprep.subr.bf16.mxu0 %v7439
    %9682 = vmatpush1.bf16.msra.mxu0 %v7438
    %9683 = vmatprep.subr.bf16.mxu0 %v7471
    %9684 = vmatpush1.bf16.msra.mxu0 %v7470
    %9685 = vmatprep.subr.bf16.mxu0 %v7503
    %9686 = vmatpush1.bf16.msra.mxu0 %v7502
    %9687 = vmatprep.mubr.bf16.mxu0 %v1857
    %9688 = vmatmul.mubr.bf16.gmra.mrb[0].mxu0 %v1856
    %v9689 = vpop.f32.mrb[0].mxu0
    %v9690 = vadd.f32 %v9617, %v9689
    %v9691 = vpop.f32.mrb[0].mxu0
    %v9692 = vadd.f32 %v9619, %v9691
    %v9693 = vpop.f32.mrb[0].mxu0
    %v9694 = vadd.f32 %v9621, %v9693
    %v9695 = vpop.f32.mrb[0].mxu0
    %v9696 = vadd.f32 %v9623, %v9695
    %9697 = vmatprep.mubr.bf16.mxu0 %v1863
    %9698 = vmatmul.mubr.bf16.gmra.mrb[0].mxu0 %v1862
    %v9699 = vpop.f32.mrb[0].mxu0
    %v9700 = vadd.f32 %v9627, %v9699
    %v9701 = vpop.f32.mrb[0].mxu0
    %v9702 = vadd.f32 %v9629, %v9701
    %v9703 = vpop.f32.mrb[0].mxu0
    %v9704 = vadd.f32 %v9631, %v9703
    %v9705 = vpop.f32.mrb[0].mxu0
    %v9706 = vadd.f32 %v9633, %v9705
    %9707 = vmatprep.mubr.bf16.mxu0 %v1869
    %9708 = vmatmul.mubr.bf16.gmra.mrb[0].mxu0 %v1868
    %v9709 = vpop.f32.mrb[0].mxu0
    %v9710 = vadd.f32 %v9637, %v9709
    %v9711 = vpop.f32.mrb[0].mxu0
    %v9712 = vadd.f32 %v9639, %v9711
    %v9713 = vpop.f32.mrb[0].mxu0
    %v9714 = vadd.f32 %v9641, %v9713
    %v9715 = vpop.f32.mrb[0].mxu0
    %v9716 = vadd.f32 %v9643, %v9715
    %9717 = vmatprep.mubr.bf16.mxu0 %v1875
    %9718 = vmatmul.mubr.bf16.gmra.mrb[0].mxu0 %v1874
    %v9719 = vpop.f32.mrb[0].mxu0
    %v9720 = vadd.f32 %v9647, %v9719
    %v9721 = vpop.f32.mrb[0].mxu0
    %v9722 = vadd.f32 %v9649, %v9721
    %v9723 = vpop.f32.mrb[0].mxu0
    %v9724 = vadd.f32 %v9651, %v9723
    %v9725 = vpop.f32.mrb[0].mxu0
    %v9726 = vadd.f32 %v9653, %v9725
    %9727 = vdwg.mxu0
    %9728 = vmatprep.subr.bf16.mxu0 %v7535
    %9729 = vmatpush1.bf16.msra.mxu0 %v7534
    %9730 = vmatprep.subr.bf16.mxu0 %v7567
    %9731 = vmatpush1.bf16.msra.mxu0 %v7566
    %9732 = vmatprep.subr.bf16.mxu0 %v7599
    %9733 = vmatpush1.bf16.msra.mxu0 %v7598
    %9734 = vmatprep.subr.bf16.mxu0 %v7631
    %9735 = vmatpush1.bf16.msra.mxu0 %v7630
    %9736 = vmatprep.subr.bf16.mxu0 %v7663
    %9737 = vmatpush1.bf16.msra.mxu0 %v7662
    %9738 = vmatprep.subr.bf16.mxu0 %v7695
    %9739 = vmatpush1.bf16.msra.mxu0 %v7694
    %9740 = vmatprep.subr.bf16.mxu0 %v7727
    %9741 = vmatpush1.bf16.msra.mxu0 %v7726
    %9742 = vmatprep.subr.bf16.mxu0 %v7759
    %9743 = vmatpush1.bf16.msra.mxu0 %v7758
    %9744 = vmatprep.subr.bf16.mxu0 %v7791
    %9745 = vmatpush1.bf16.msra.mxu0 %v7790
    %9746 = vmatprep.subr.bf16.mxu0 %v7823
    %9747 = vmatpush1.bf16.msra.mxu0 %v7822
    %9748 = vmatprep.subr.bf16.mxu0 %v7855
    %9749 = vmatpush1.bf16.msra.mxu0 %v7854
    %9750 = vmatprep.subr.bf16.mxu0 %v7887
    %9751 = vmatpush1.bf16.msra.mxu0 %v7886
    %9752 = vmatprep.subr.bf16.mxu0 %v7919
    %9753 = vmatpush1.bf16.msra.mxu0 %v7918
    %9754 = vmatprep.subr.bf16.mxu0 %v7951
    %9755 = vmatpush1.bf16.msra.mxu0 %v7950
    %9756 = vmatprep.subr.bf16.mxu0 %v7983
    %9757 = vmatpush1.bf16.msra.mxu0 %v7982
    %9758 = vmatprep.subr.bf16.mxu0 %v8015
    %9759 = vmatpush1.bf16.msra.mxu0 %v8014
    %9760 = vmatprep.mubr.bf16.mxu0 %v1859
    %9761 = vmatmul.mubr.bf16.gmra.mrb[0].mxu0 %v1858
    %v9762 = vpop.f32.mrb[0].mxu0
    %v9763 = vadd.f32 %v9690, %v9762
    %v9764 = vpop.f32.mrb[0].mxu0
    %v9765 = vadd.f32 %v9692, %v9764
    %v9766 = vpop.f32.mrb[0].mxu0
    %v9767 = vadd.f32 %v9694, %v9766
    %v9768 = vpop.f32.mrb[0].mxu0
    %v9769 = vadd.f32 %v9696, %v9768
    %9770 = vmatprep.mubr.bf16.mxu0 %v1865
    %9771 = vmatmul.mubr.bf16.gmra.mrb[0].mxu0 %v1864
    %v9772 = vpop.f32.mrb[0].mxu0
    %v9773 = vadd.f32 %v9700, %v9772
    %v9774 = vpop.f32.mrb[0].mxu0
    %v9775 = vadd.f32 %v9702, %v9774
    %v9776 = vpop.f32.mrb[0].mxu0
    %v9777 = vadd.f32 %v9704, %v9776
    %v9778 = vpop.f32.mrb[0].mxu0
    %v9779 = vadd.f32 %v9706, %v9778
    %9780 = vmatprep.mubr.bf16.mxu0 %v1871
    %9781 = vmatmul.mubr.bf16.gmra.mrb[0].mxu0 %v1870
    %v9782 = vpop.f32.mrb[0].mxu0
    %v9783 = vadd.f32 %v9710, %v9782
    %v9784 = vpop.f32.mrb[0].mxu0
    %v9785 = vadd.f32 %v9712, %v9784
    %v9786 = vpop.f32.mrb[0].mxu0
    %v9787 = vadd.f32 %v9714, %v9786
    %v9788 = vpop.f32.mrb[0].mxu0
    %v9789 = vadd.f32 %v9716, %v9788
    %9790 = vmatprep.mubr.bf16.mxu0 %v1877
    %9791 = vmatmul.mubr.bf16.gmra.mrb[0].mxu0 %v1876
    %v9792 = vpop.f32.mrb[0].mxu0
    %v9793 = vadd.f32 %v9720, %v9792
    %v9794 = vpop.f32.mrb[0].mxu0
    %v9795 = vadd.f32 %v9722, %v9794
    %v9796 = vpop.f32.mrb[0].mxu0
    %v9797 = vadd.f32 %v9724, %v9796
    %v9798 = vpop.f32.mrb[0].mxu0
    %v9799 = vadd.f32 %v9726, %v9798
    %9800 = vdwg.mxu0
    %9801 = vmatprep.subr.bf16.mxu0 %v6513
    %9802 = vmatpush1.bf16.msra.mxu0 %v6512
    %9803 = vmatprep.subr.bf16.mxu0 %v6545
    %9804 = vmatpush1.bf16.msra.mxu0 %v6544
    %9805 = vmatprep.subr.bf16.mxu0 %v6577
    %9806 = vmatpush1.bf16.msra.mxu0 %v6576
    %9807 = vmatprep.subr.bf16.mxu0 %v6609
    %9808 = vmatpush1.bf16.msra.mxu0 %v6608
    %9809 = vmatprep.subr.bf16.mxu0 %v6641
    %9810 = vmatpush1.bf16.msra.mxu0 %v6640
    %9811 = vmatprep.subr.bf16.mxu0 %v6673
    %9812 = vmatpush1.bf16.msra.mxu0 %v6672
    %9813 = vmatprep.subr.bf16.mxu0 %v6705
    %9814 = vmatpush1.bf16.msra.mxu0 %v6704
    %9815 = vmatprep.subr.bf16.mxu0 %v6737
    %9816 = vmatpush1.bf16.msra.mxu0 %v6736
    %9817 = vmatprep.subr.bf16.mxu0 %v6769
    %9818 = vmatpush1.bf16.msra.mxu0 %v6768
    %9819 = vmatprep.subr.bf16.mxu0 %v6801
    %9820 = vmatpush1.bf16.msra.mxu0 %v6800
    %9821 = vmatprep.subr.bf16.mxu0 %v6833
    %9822 = vmatpush1.bf16.msra.mxu0 %v6832
    %9823 = vmatprep.subr.bf16.mxu0 %v6865
    %9824 = vmatpush1.bf16.msra.mxu0 %v6864
    %9825 = vmatprep.subr.bf16.mxu0 %v6897
    %9826 = vmatpush1.bf16.msra.mxu0 %v6896
    %9827 = vmatprep.subr.bf16.mxu0 %v6929
    %9828 = vmatpush1.bf16.msra.mxu0 %v6928
    %9829 = vmatprep.subr.bf16.mxu0 %v6961
    %9830 = vmatpush1.bf16.msra.mxu0 %v6960
    %9831 = vmatprep.subr.bf16.mxu0 %v6993
    %9832 = vmatpush1.bf16.msra.mxu0 %v6992
    %9833 = vmatprep.mubr.bf16.mxu0 %v1855
    %9834 = vmatmul.mubr.bf16.gmra.mrb[0].mxu0 %v1854
    %v9835 = vpop.f32.mrb[0].mxu0
    %v9836 = vadd.f32 %v1633, %v9835
    %v9837 = vpop.f32.mrb[0].mxu0
    %v9838 = vadd.f32 %v1637, %v9837
    %v9839 = vpop.f32.mrb[0].mxu0
    %v9840 = vadd.f32 %v1633, %v9839
    %v9841 = vpop.f32.mrb[0].mxu0
    %v9842 = vadd.f32 %v1637, %v9841
    %9843 = vmatprep.mubr.bf16.mxu0 %v1861
    %9844 = vmatmul.mubr.bf16.gmra.mrb[0].mxu0 %v1860
    %v9845 = vpop.f32.mrb[0].mxu0
    %v9846 = vadd.f32 %v1633, %v9845
    %v9847 = vpop.f32.mrb[0].mxu0
    %v9848 = vadd.f32 %v1637, %v9847
    %v9849 = vpop.f32.mrb[0].mxu0
    %v9850 = vadd.f32 %v1633, %v9849
    %v9851 = vpop.f32.mrb[0].mxu0
    %v9852 = vadd.f32 %v1637, %v9851
    %9853 = vmatprep.mubr.bf16.mxu0 %v1867
    %9854 = vmatmul.mubr.bf16.gmra.mrb[0].mxu0 %v1866
    %v9855 = vpop.f32.mrb[0].mxu0
    %v9856 = vadd.f32 %v1633, %v9855
    %v9857 = vpop.f32.mrb[0].mxu0
    %v9858 = vadd.f32 %v1637, %v9857
    %v9859 = vpop.f32.mrb[0].mxu0
    %v9860 = vadd.f32 %v1633, %v9859
    %v9861 = vpop.f32.mrb[0].mxu0
    %v9862 = vadd.f32 %v1637, %v9861
    %9863 = vmatprep.mubr.bf16.mxu0 %v1873
    %9864 = vmatmul.mubr.bf16.gmra.mrb[0].mxu0 %v1872
    %v9865 = vpop.f32.mrb[0].mxu0
    %v9866 = vadd.f32 %v1633, %v9865
    %v9867 = vpop.f32.mrb[0].mxu0
    %v9868 = vadd.f32 %v1637, %v9867
    %v9869 = vpop.f32.mrb[0].mxu0
    %v9870 = vadd.f32 %v1633, %v9869
    %v9871 = vpop.f32.mrb[0].mxu0
    %v9872 = vadd.f32 %v1637, %v9871
    %9873 = vdwg.mxu0
    %9874 = vmatprep.subr.bf16.mxu0 %v7025
    %9875 = vmatpush1.bf16.msra.mxu0 %v7024
    %9876 = vmatprep.subr.bf16.mxu0 %v7057
    %9877 = vmatpush1.bf16.msra.mxu0 %v7056
    %9878 = vmatprep.subr.bf16.mxu0 %v7089
    %9879 = vmatpush1.bf16.msra.mxu0 %v7088
    %9880 = vmatprep.subr.bf16.mxu0 %v7121
    %9881 = vmatpush1.bf16.msra.mxu0 %v7120
    %9882 = vmatprep.subr.bf16.mxu0 %v7153
    %9883 = vmatpush1.bf16.msra.mxu0 %v7152
    %9884 = vmatprep.subr.bf16.mxu0 %v7185
    %9885 = vmatpush1.bf16.msra.mxu0 %v7184
    %9886 = vmatprep.subr.bf16.mxu0 %v7217
    %9887 = vmatpush1.bf16.msra.mxu0 %v7216
    %9888 = vmatprep.subr.bf16.mxu0 %v7249
    %9889 = vmatpush1.bf16.msra.mxu0 %v7248
    %9890 = vmatprep.subr.bf16.mxu0 %v7281
    %9891 = vmatpush1.bf16.msra.mxu0 %v7280
    %9892 = vmatprep.subr.bf16.mxu0 %v7313
    %9893 = vmatpush1.bf16.msra.mxu0 %v7312
    %9894 = vmatprep.subr.bf16.mxu0 %v7345
    %9895 = vmatpush1.bf16.msra.mxu0 %v7344
    %9896 = vmatprep.subr.bf16.mxu0 %v7377
    %9897 = vmatpush1.bf16.msra.mxu0 %v7376
    %9898 = vmatprep.subr.bf16.mxu0 %v7409
    %9899 = vmatpush1.bf16.msra.mxu0 %v7408
    %9900 = vmatprep.subr.bf16.mxu0 %v7441
    %9901 = vmatpush1.bf16.msra.mxu0 %v7440
    %9902 = vmatprep.subr.bf16.mxu0 %v7473
    %9903 = vmatpush1.bf16.msra.mxu0 %v7472
    %9904 = vmatprep.subr.bf16.mxu0 %v7505
    %9905 = vmatpush1.bf16.msra.mxu0 %v7504
    %9906 = vmatprep.mubr.bf16.mxu0 %v1857
    %9907 = vmatmul.mubr.bf16.gmra.mrb[0].mxu0 %v1856
    %v9908 = vpop.f32.mrb[0].mxu0
    %v9909 = vadd.f32 %v9836, %v9908
    %v9910 = vpop.f32.mrb[0].mxu0
    %v9911 = vadd.f32 %v9838, %v9910
    %v9912 = vpop.f32.mrb[0].mxu0
    %v9913 = vadd.f32 %v9840, %v9912
    %v9914 = vpop.f32.mrb[0].mxu0
    %v9915 = vadd.f32 %v9842, %v9914
    %9916 = vmatprep.mubr.bf16.mxu0 %v1863
    %9917 = vmatmul.mubr.bf16.gmra.mrb[0].mxu0 %v1862
    %v9918 = vpop.f32.mrb[0].mxu0
    %v9919 = vadd.f32 %v9846, %v9918
    %v9920 = vpop.f32.mrb[0].mxu0
    %v9921 = vadd.f32 %v9848, %v9920
    %v9922 = vpop.f32.mrb[0].mxu0
    %v9923 = vadd.f32 %v9850, %v9922
    %v9924 = vpop.f32.mrb[0].mxu0
    %v9925 = vadd.f32 %v9852, %v9924
    %9926 = vmatprep.mubr.bf16.mxu0 %v1869
    %9927 = vmatmul.mubr.bf16.gmra.mrb[0].mxu0 %v1868
    %v9928 = vpop.f32.mrb[0].mxu0
    %v9929 = vadd.f32 %v9856, %v9928
    %v9930 = vpop.f32.mrb[0].mxu0
    %v9931 = vadd.f32 %v9858, %v9930
    %v9932 = vpop.f32.mrb[0].mxu0
    %v9933 = vadd.f32 %v9860, %v9932
    %v9934 = vpop.f32.mrb[0].mxu0
    %v9935 = vadd.f32 %v9862, %v9934
    %9936 = vmatprep.mubr.bf16.mxu0 %v1875
    %9937 = vmatmul.mubr.bf16.gmra.mrb[0].mxu0 %v1874
    %v9938 = vpop.f32.mrb[0].mxu0
    %v9939 = vadd.f32 %v9866, %v9938
    %v9940 = vpop.f32.mrb[0].mxu0
    %v9941 = vadd.f32 %v9868, %v9940
    %v9942 = vpop.f32.mrb[0].mxu0
    %v9943 = vadd.f32 %v9870, %v9942
    %v9944 = vpop.f32.mrb[0].mxu0
    %v9945 = vadd.f32 %v9872, %v9944
    %9946 = vdwg.mxu0
    %9947 = vmatprep.subr.bf16.mxu0 %v7537
    %9948 = vmatpush1.bf16.msra.mxu0 %v7536
    %9949 = vmatprep.subr.bf16.mxu0 %v7569
    %9950 = vmatpush1.bf16.msra.mxu0 %v7568
    %9951 = vmatprep.subr.bf16.mxu0 %v7601
    %9952 = vmatpush1.bf16.msra.mxu0 %v7600
    %9953 = vmatprep.subr.bf16.mxu0 %v7633
    %9954 = vmatpush1.bf16.msra.mxu0 %v7632
    %9955 = vmatprep.subr.bf16.mxu0 %v7665
    %9956 = vmatpush1.bf16.msra.mxu0 %v7664
    %9957 = vmatprep.subr.bf16.mxu0 %v7697
    %9958 = vmatpush1.bf16.msra.mxu0 %v7696
    %9959 = vmatprep.subr.bf16.mxu0 %v7729
    %9960 = vmatpush1.bf16.msra.mxu0 %v7728
    %9961 = vmatprep.subr.bf16.mxu0 %v7761
    %9962 = vmatpush1.bf16.msra.mxu0 %v7760
    %9963 = vmatprep.subr.bf16.mxu0 %v7793
    %9964 = vmatpush1.bf16.msra.mxu0 %v7792
    %9965 = vmatprep.subr.bf16.mxu0 %v7825
    %9966 = vmatpush1.bf16.msra.mxu0 %v7824
    %9967 = vmatprep.subr.bf16.mxu0 %v7857
    %9968 = vmatpush1.bf16.msra.mxu0 %v7856
    %9969 = vmatprep.subr.bf16.mxu0 %v7889
    %9970 = vmatpush1.bf16.msra.mxu0 %v7888
    %9971 = vmatprep.subr.bf16.mxu0 %v7921
    %9972 = vmatpush1.bf16.msra.mxu0 %v7920
    %9973 = vmatprep.subr.bf16.mxu0 %v7953
    %9974 = vmatpush1.bf16.msra.mxu0 %v7952
    %9975 = vmatprep.subr.bf16.mxu0 %v7985
    %9976 = vmatpush1.bf16.msra.mxu0 %v7984
    %9977 = vmatprep.subr.bf16.mxu0 %v8017
    %9978 = vmatpush1.bf16.msra.mxu0 %v8016
    %9979 = vmatprep.mubr.bf16.mxu0 %v1859
    %9980 = vmatmul.mubr.bf16.gmra.mrb[0].mxu0 %v1858
    %v9981 = vpop.f32.mrb[0].mxu0
    %v9982 = vadd.f32 %v9909, %v9981
    %v9983 = vpop.f32.mrb[0].mxu0
    %v9984 = vadd.f32 %v9911, %v9983
    %v9985 = vpop.f32.mrb[0].mxu0
    %v9986 = vadd.f32 %v9913, %v9985
    %v9987 = vpop.f32.mrb[0].mxu0
    %v9988 = vadd.f32 %v9915, %v9987
    %9989 = vmatprep.mubr.bf16.mxu0 %v1865
    %9990 = vmatmul.mubr.bf16.gmra.mrb[0].mxu0 %v1864
    %v9991 = vpop.f32.mrb[0].mxu0
    %v9992 = vadd.f32 %v9919, %v9991
    %v9993 = vpop.f32.mrb[0].mxu0
    %v9994 = vadd.f32 %v9921, %v9993
    %v9995 = vpop.f32.mrb[0].mxu0
    %v9996 = vadd.f32 %v9923, %v9995
    %v9997 = vpop.f32.mrb[0].mxu0
    %v9998 = vadd.f32 %v9925, %v9997
    %9999 = vmatprep.mubr.bf16.mxu0 %v1871
    %10000 = vmatmul.mubr.bf16.gmra.mrb[0].mxu0 %v1870
    %v10001 = vpop.f32.mrb[0].mxu0
    %v10002 = vadd.f32 %v9929, %v10001
    %v10003 = vpop.f32.mrb[0].mxu0
    %v10004 = vadd.f32 %v9931, %v10003
    %v10005 = vpop.f32.mrb[0].mxu0
    %v10006 = vadd.f32 %v9933, %v10005
    %v10007 = vpop.f32.mrb[0].mxu0
    %v10008 = vadd.f32 %v9935, %v10007
    %10009 = vmatprep.mubr.bf16.mxu0 %v1877
    %10010 = vmatmul.mubr.bf16.gmra.mrb[0].mxu0 %v1876
    %v10011 = vpop.f32.mrb[0].mxu0
    %v10012 = vadd.f32 %v9939, %v10011
    %v10013 = vpop.f32.mrb[0].mxu0
    %v10014 = vadd.f32 %v9941, %v10013
    %v10015 = vpop.f32.mrb[0].mxu0
    %v10016 = vadd.f32 %v9943, %v10015
    %v10017 = vpop.f32.mrb[0].mxu0
    %v10018 = vadd.f32 %v9945, %v10017
    %10019 = vdwg.mxu0
    %10020 = vmatprep.subr.bf16.mxu0 %v6515
    %10021 = vmatpush1.bf16.msra.mxu0 %v6514
    %10022 = vmatprep.subr.bf16.mxu0 %v6547
    %10023 = vmatpush1.bf16.msra.mxu0 %v6546
    %10024 = vmatprep.subr.bf16.mxu0 %v6579
    %10025 = vmatpush1.bf16.msra.mxu0 %v6578
    %10026 = vmatprep.subr.bf16.mxu0 %v6611
    %10027 = vmatpush1.bf16.msra.mxu0 %v6610
    %10028 = vmatprep.subr.bf16.mxu0 %v6643
    %10029 = vmatpush1.bf16.msra.mxu0 %v6642
    %10030 = vmatprep.subr.bf16.mxu0 %v6675
    %10031 = vmatpush1.bf16.msra.mxu0 %v6674
    %10032 = vmatprep.subr.bf16.mxu0 %v6707
    %10033 = vmatpush1.bf16.msra.mxu0 %v6706
    %10034 = vmatprep.subr.bf16.mxu0 %v6739
    %10035 = vmatpush1.bf16.msra.mxu0 %v6738
    %10036 = vmatprep.subr.bf16.mxu0 %v6771
    %10037 = vmatpush1.bf16.msra.mxu0 %v6770
    %10038 = vmatprep.subr.bf16.mxu0 %v6803
    %10039 = vmatpush1.bf16.msra.mxu0 %v6802
    %10040 = vmatprep.subr.bf16.mxu0 %v6835
    %10041 = vmatpush1.bf16.msra.mxu0 %v6834
    %10042 = vmatprep.subr.bf16.mxu0 %v6867
    %10043 = vmatpush1.bf16.msra.mxu0 %v6866
    %10044 = vmatprep.subr.bf16.mxu0 %v6899
    %10045 = vmatpush1.bf16.msra.mxu0 %v6898
    %10046 = vmatprep.subr.bf16.mxu0 %v6931
    %10047 = vmatpush1.bf16.msra.mxu0 %v6930
    %10048 = vmatprep.subr.bf16.mxu0 %v6963
    %10049 = vmatpush1.bf16.msra.mxu0 %v6962
    %10050 = vmatprep.subr.bf16.mxu0 %v6995
    %10051 = vmatpush1.bf16.msra.mxu0 %v6994
    %10052 = vmatprep.mubr.bf16.mxu0 %v1855
    %10053 = vmatmul.mubr.bf16.gmra.mrb[0].mxu0 %v1854
    %v10054 = vpop.f32.mrb[0].mxu0
    %v10055 = vadd.f32 %v1641, %v10054
    %v10056 = vpop.f32.mrb[0].mxu0
    %v10057 = vadd.f32 %v1645, %v10056
    %v10058 = vpop.f32.mrb[0].mxu0
    %v10059 = vadd.f32 %v1641, %v10058
    %v10060 = vpop.f32.mrb[0].mxu0
    %v10061 = vadd.f32 %v1645, %v10060
    %10062 = vmatprep.mubr.bf16.mxu0 %v1861
    %10063 = vmatmul.mubr.bf16.gmra.mrb[0].mxu0 %v1860
    %v10064 = vpop.f32.mrb[0].mxu0
    %v10065 = vadd.f32 %v1641, %v10064
    %v10066 = vpop.f32.mrb[0].mxu0
    %v10067 = vadd.f32 %v1645, %v10066
    %v10068 = vpop.f32.mrb[0].mxu0
    %v10069 = vadd.f32 %v1641, %v10068
    %v10070 = vpop.f32.mrb[0].mxu0
    %v10071 = vadd.f32 %v1645, %v10070
    %10072 = vmatprep.mubr.bf16.mxu0 %v1867
    %10073 = vmatmul.mubr.bf16.gmra.mrb[0].mxu0 %v1866
    %v10074 = vpop.f32.mrb[0].mxu0
    %v10075 = vadd.f32 %v1641, %v10074
    %v10076 = vpop.f32.mrb[0].mxu0
    %v10077 = vadd.f32 %v1645, %v10076
    %v10078 = vpop.f32.mrb[0].mxu0
    %v10079 = vadd.f32 %v1641, %v10078
    %v10080 = vpop.f32.mrb[0].mxu0
    %v10081 = vadd.f32 %v1645, %v10080
    %10082 = vmatprep.mubr.bf16.mxu0 %v1873
    %10083 = vmatmul.mubr.bf16.gmra.mrb[0].mxu0 %v1872
    %v10084 = vpop.f32.mrb[0].mxu0
    %v10085 = vadd.f32 %v1641, %v10084
    %v10086 = vpop.f32.mrb[0].mxu0
    %v10087 = vadd.f32 %v1645, %v10086
    %v10088 = vpop.f32.mrb[0].mxu0
    %v10089 = vadd.f32 %v1641, %v10088
    %v10090 = vpop.f32.mrb[0].mxu0
    %v10091 = vadd.f32 %v1645, %v10090
    %10092 = vdwg.mxu0
    %10093 = vmatprep.subr.bf16.mxu0 %v7027
    %10094 = vmatpush1.bf16.msra.mxu0 %v7026
    %10095 = vmatprep.subr.bf16.mxu0 %v7059
    %10096 = vmatpush1.bf16.msra.mxu0 %v7058
    %10097 = vmatprep.subr.bf16.mxu0 %v7091
    %10098 = vmatpush1.bf16.msra.mxu0 %v7090
    %10099 = vmatprep.subr.bf16.mxu0 %v7123
    %10100 = vmatpush1.bf16.msra.mxu0 %v7122
    %10101 = vmatprep.subr.bf16.mxu0 %v7155
    %10102 = vmatpush1.bf16.msra.mxu0 %v7154
    %10103 = vmatprep.subr.bf16.mxu0 %v7187
    %10104 = vmatpush1.bf16.msra.mxu0 %v7186
    %10105 = vmatprep.subr.bf16.mxu0 %v7219
    %10106 = vmatpush1.bf16.msra.mxu0 %v7218
    %10107 = vmatprep.subr.bf16.mxu0 %v7251
    %10108 = vmatpush1.bf16.msra.mxu0 %v7250
    %10109 = vmatprep.subr.bf16.mxu0 %v7283
    %10110 = vmatpush1.bf16.msra.mxu0 %v7282
    %10111 = vmatprep.subr.bf16.mxu0 %v7315
    %10112 = vmatpush1.bf16.msra.mxu0 %v7314
    %10113 = vmatprep.subr.bf16.mxu0 %v7347
    %10114 = vmatpush1.bf16.msra.mxu0 %v7346
    %10115 = vmatprep.subr.bf16.mxu0 %v7379
    %10116 = vmatpush1.bf16.msra.mxu0 %v7378
    %10117 = vmatprep.subr.bf16.mxu0 %v7411
    %10118 = vmatpush1.bf16.msra.mxu0 %v7410
    %10119 = vmatprep.subr.bf16.mxu0 %v7443
    %10120 = vmatpush1.bf16.msra.mxu0 %v7442
    %10121 = vmatprep.subr.bf16.mxu0 %v7475
    %10122 = vmatpush1.bf16.msra.mxu0 %v7474
    %10123 = vmatprep.subr.bf16.mxu0 %v7507
    %10124 = vmatpush1.bf16.msra.mxu0 %v7506
    %10125 = vmatprep.mubr.bf16.mxu0 %v1857
    %10126 = vmatmul.mubr.bf16.gmra.mrb[0].mxu0 %v1856
    %v10127 = vpop.f32.mrb[0].mxu0
    %v10128 = vadd.f32 %v10055, %v10127
    %v10129 = vpop.f32.mrb[0].mxu0
    %v10130 = vadd.f32 %v10057, %v10129
    %v10131 = vpop.f32.mrb[0].mxu0
    %v10132 = vadd.f32 %v10059, %v10131
    %v10133 = vpop.f32.mrb[0].mxu0
    %v10134 = vadd.f32 %v10061, %v10133
    %10135 = vmatprep.mubr.bf16.mxu0 %v1863
    %10136 = vmatmul.mubr.bf16.gmra.mrb[0].mxu0 %v1862
    %v10137 = vpop.f32.mrb[0].mxu0
    %v10138 = vadd.f32 %v10065, %v10137
    %v10139 = vpop.f32.mrb[0].mxu0
    %v10140 = vadd.f32 %v10067, %v10139
    %v10141 = vpop.f32.mrb[0].mxu0
    %v10142 = vadd.f32 %v10069, %v10141
    %v10143 = vpop.f32.mrb[0].mxu0
    %v10144 = vadd.f32 %v10071, %v10143
    %10145 = vmatprep.mubr.bf16.mxu0 %v1869
    %10146 = vmatmul.mubr.bf16.gmra.mrb[0].mxu0 %v1868
    %v10147 = vpop.f32.mrb[0].mxu0
    %v10148 = vadd.f32 %v10075, %v10147
    %v10149 = vpop.f32.mrb[0].mxu0
    %v10150 = vadd.f32 %v10077, %v10149
    %v10151 = vpop.f32.mrb[0].mxu0
    %v10152 = vadd.f32 %v10079, %v10151
    %v10153 = vpop.f32.mrb[0].mxu0
    %v10154 = vadd.f32 %v10081, %v10153
    %10155 = vmatprep.mubr.bf16.mxu0 %v1875
    %10156 = vmatmul.mubr.bf16.gmra.mrb[0].mxu0 %v1874
    %v10157 = vpop.f32.mrb[0].mxu0
    %v10158 = vadd.f32 %v10085, %v10157
    %v10159 = vpop.f32.mrb[0].mxu0
    %v10160 = vadd.f32 %v10087, %v10159
    %v10161 = vpop.f32.mrb[0].mxu0
    %v10162 = vadd.f32 %v10089, %v10161
    %v10163 = vpop.f32.mrb[0].mxu0
    %v10164 = vadd.f32 %v10091, %v10163
    %10165 = vdwg.mxu0
    %10166 = vmatprep.subr.bf16.mxu0 %v7539
    %10167 = vmatpush1.bf16.msra.mxu0 %v7538
    %10168 = vmatprep.subr.bf16.mxu0 %v7571
    %10169 = vmatpush1.bf16.msra.mxu0 %v7570
    %10170 = vmatprep.subr.bf16.mxu0 %v7603
    %10171 = vmatpush1.bf16.msra.mxu0 %v7602
    %10172 = vmatprep.subr.bf16.mxu0 %v7635
    %10173 = vmatpush1.bf16.msra.mxu0 %v7634
    %10174 = vmatprep.subr.bf16.mxu0 %v7667
    %10175 = vmatpush1.bf16.msra.mxu0 %v7666
    %10176 = vmatprep.subr.bf16.mxu0 %v7699
    %10177 = vmatpush1.bf16.msra.mxu0 %v7698
    %10178 = vmatprep.subr.bf16.mxu0 %v7731
    %10179 = vmatpush1.bf16.msra.mxu0 %v7730
    %10180 = vmatprep.subr.bf16.mxu0 %v7763
    %10181 = vmatpush1.bf16.msra.mxu0 %v7762
    %10182 = vmatprep.subr.bf16.mxu0 %v7795
    %10183 = vmatpush1.bf16.msra.mxu0 %v7794
    %10184 = vmatprep.subr.bf16.mxu0 %v7827
    %10185 = vmatpush1.bf16.msra.mxu0 %v7826
    %10186 = vmatprep.subr.bf16.mxu0 %v7859
    %10187 = vmatpush1.bf16.msra.mxu0 %v7858
    %10188 = vmatprep.subr.bf16.mxu0 %v7891
    %10189 = vmatpush1.bf16.msra.mxu0 %v7890
    %10190 = vmatprep.subr.bf16.mxu0 %v7923
    %10191 = vmatpush1.bf16.msra.mxu0 %v7922
    %10192 = vmatprep.subr.bf16.mxu0 %v7955
    %10193 = vmatpush1.bf16.msra.mxu0 %v7954
    %10194 = vmatprep.subr.bf16.mxu0 %v7987
    %10195 = vmatpush1.bf16.msra.mxu0 %v7986
    %10196 = vmatprep.subr.bf16.mxu0 %v8019
    %10197 = vmatpush1.bf16.msra.mxu0 %v8018
    %10198 = vmatprep.mubr.bf16.mxu0 %v1859
    %10199 = vmatmul.mubr.bf16.gmra.mrb[0].mxu0 %v1858
    %v10200 = vpop.f32.mrb[0].mxu0
    %v10201 = vadd.f32 %v10128, %v10200
    %v10202 = vpop.f32.mrb[0].mxu0
    %v10203 = vadd.f32 %v10130, %v10202
    %v10204 = vpop.f32.mrb[0].mxu0
    %v10205 = vadd.f32 %v10132, %v10204
    %v10206 = vpop.f32.mrb[0].mxu0
    %v10207 = vadd.f32 %v10134, %v10206
    %10208 = vmatprep.mubr.bf16.mxu0 %v1865
    %10209 = vmatmul.mubr.bf16.gmra.mrb[0].mxu0 %v1864
    %v10210 = vpop.f32.mrb[0].mxu0
    %v10211 = vadd.f32 %v10138, %v10210
    %v10212 = vpop.f32.mrb[0].mxu0
    %v10213 = vadd.f32 %v10140, %v10212
    %v10214 = vpop.f32.mrb[0].mxu0
    %v10215 = vadd.f32 %v10142, %v10214
    %v10216 = vpop.f32.mrb[0].mxu0
    %v10217 = vadd.f32 %v10144, %v10216
    %10218 = vmatprep.mubr.bf16.mxu0 %v1871
    %10219 = vmatmul.mubr.bf16.gmra.mrb[0].mxu0 %v1870
    %v10220 = vpop.f32.mrb[0].mxu0
    %v10221 = vadd.f32 %v10148, %v10220
    %v10222 = vpop.f32.mrb[0].mxu0
    %v10223 = vadd.f32 %v10150, %v10222
    %v10224 = vpop.f32.mrb[0].mxu0
    %v10225 = vadd.f32 %v10152, %v10224
    %v10226 = vpop.f32.mrb[0].mxu0
    %v10227 = vadd.f32 %v10154, %v10226
    %10228 = vmatprep.mubr.bf16.mxu0 %v1877
    %10229 = vmatmul.mubr.bf16.gmra.mrb[0].mxu0 %v1876
    %v10230 = vpop.f32.mrb[0].mxu0
    %v10231 = vadd.f32 %v10158, %v10230
    %v10232 = vpop.f32.mrb[0].mxu0
    %v10233 = vadd.f32 %v10160, %v10232
    %v10234 = vpop.f32.mrb[0].mxu0
    %v10235 = vadd.f32 %v10162, %v10234
    %v10236 = vpop.f32.mrb[0].mxu0
    %v10237 = vadd.f32 %v10164, %v10236
    %10238 = vdwg.mxu0
    %10239 = vmatprep.subr.bf16.mxu0 %v6517
    %10240 = vmatpush1.bf16.msra.mxu0 %v6516
    %10241 = vmatprep.subr.bf16.mxu0 %v6549
    %10242 = vmatpush1.bf16.msra.mxu0 %v6548
    %10243 = vmatprep.subr.bf16.mxu0 %v6581
    %10244 = vmatpush1.bf16.msra.mxu0 %v6580
    %10245 = vmatprep.subr.bf16.mxu0 %v6613
    %10246 = vmatpush1.bf16.msra.mxu0 %v6612
    %10247 = vmatprep.subr.bf16.mxu0 %v6645
    %10248 = vmatpush1.bf16.msra.mxu0 %v6644
    %10249 = vmatprep.subr.bf16.mxu0 %v6677
    %10250 = vmatpush1.bf16.msra.mxu0 %v6676
    %10251 = vmatprep.subr.bf16.mxu0 %v6709
    %10252 = vmatpush1.bf16.msra.mxu0 %v6708
    %10253 = vmatprep.subr.bf16.mxu0 %v6741
    %10254 = vmatpush1.bf16.msra.mxu0 %v6740
    %10255 = vmatprep.subr.bf16.mxu0 %v6773
    %10256 = vmatpush1.bf16.msra.mxu0 %v6772
    %10257 = vmatprep.subr.bf16.mxu0 %v6805
    %10258 = vmatpush1.bf16.msra.mxu0 %v6804
    %10259 = vmatprep.subr.bf16.mxu0 %v6837
    %10260 = vmatpush1.bf16.msra.mxu0 %v6836
    %10261 = vmatprep.subr.bf16.mxu0 %v6869
    %10262 = vmatpush1.bf16.msra.mxu0 %v6868
    %10263 = vmatprep.subr.bf16.mxu0 %v6901
    %10264 = vmatpush1.bf16.msra.mxu0 %v6900
    %10265 = vmatprep.subr.bf16.mxu0 %v6933
    %10266 = vmatpush1.bf16.msra.mxu0 %v6932
    %10267 = vmatprep.subr.bf16.mxu0 %v6965
    %10268 = vmatpush1.bf16.msra.mxu0 %v6964
    %10269 = vmatprep.subr.bf16.mxu0 %v6997
    %10270 = vmatpush1.bf16.msra.mxu0 %v6996
    %10271 = vmatprep.mubr.bf16.mxu0 %v1855
    %10272 = vmatmul.mubr.bf16.gmra.mrb[0].mxu0 %v1854
    %v10273 = vpop.f32.mrb[0].mxu0
    %v10274 = vadd.f32 %v1649, %v10273
    %v10275 = vpop.f32.mrb[0].mxu0
    %v10276 = vadd.f32 %v1653, %v10275
    %v10277 = vpop.f32.mrb[0].mxu0
    %v10278 = vadd.f32 %v1649, %v10277
    %v10279 = vpop.f32.mrb[0].mxu0
    %v10280 = vadd.f32 %v1653, %v10279
    %10281 = vmatprep.mubr.bf16.mxu0 %v1861
    %10282 = vmatmul.mubr.bf16.gmra.mrb[0].mxu0 %v1860
    %v10283 = vpop.f32.mrb[0].mxu0
    %v10284 = vadd.f32 %v1649, %v10283
    %v10285 = vpop.f32.mrb[0].mxu0
    %v10286 = vadd.f32 %v1653, %v10285
    %v10287 = vpop.f32.mrb[0].mxu0
    %v10288 = vadd.f32 %v1649, %v10287
    %v10289 = vpop.f32.mrb[0].mxu0
    %v10290 = vadd.f32 %v1653, %v10289
    %10291 = vmatprep.mubr.bf16.mxu0 %v1867
    %10292 = vmatmul.mubr.bf16.gmra.mrb[0].mxu0 %v1866
    %v10293 = vpop.f32.mrb[0].mxu0
    %v10294 = vadd.f32 %v1649, %v10293
    %v10295 = vpop.f32.mrb[0].mxu0
    %v10296 = vadd.f32 %v1653, %v10295
    %v10297 = vpop.f32.mrb[0].mxu0
    %v10298 = vadd.f32 %v1649, %v10297
    %v10299 = vpop.f32.mrb[0].mxu0
    %v10300 = vadd.f32 %v1653, %v10299
    %10301 = vmatprep.mubr.bf16.mxu0 %v1873
    %10302 = vmatmul.mubr.bf16.gmra.mrb[0].mxu0 %v1872
    %v10303 = vpop.f32.mrb[0].mxu0
    %v10304 = vadd.f32 %v1649, %v10303
    %v10305 = vpop.f32.mrb[0].mxu0
    %v10306 = vadd.f32 %v1653, %v10305
    %v10307 = vpop.f32.mrb[0].mxu0
    %v10308 = vadd.f32 %v1649, %v10307
    %v10309 = vpop.f32.mrb[0].mxu0
    %v10310 = vadd.f32 %v1653, %v10309
    %10311 = vdwg.mxu0
    %10312 = vmatprep.subr.bf16.mxu0 %v7029
    %10313 = vmatpush1.bf16.msra.mxu0 %v7028
    %10314 = vmatprep.subr.bf16.mxu0 %v7061
    %10315 = vmatpush1.bf16.msra.mxu0 %v7060
    %10316 = vmatprep.subr.bf16.mxu0 %v7093
    %10317 = vmatpush1.bf16.msra.mxu0 %v7092
    %10318 = vmatprep.subr.bf16.mxu0 %v7125
    %10319 = vmatpush1.bf16.msra.mxu0 %v7124
    %10320 = vmatprep.subr.bf16.mxu0 %v7157
    %10321 = vmatpush1.bf16.msra.mxu0 %v7156
    %10322 = vmatprep.subr.bf16.mxu0 %v7189
    %10323 = vmatpush1.bf16.msra.mxu0 %v7188
    %10324 = vmatprep.subr.bf16.mxu0 %v7221
    %10325 = vmatpush1.bf16.msra.mxu0 %v7220
    %10326 = vmatprep.subr.bf16.mxu0 %v7253
    %10327 = vmatpush1.bf16.msra.mxu0 %v7252
    %10328 = vmatprep.subr.bf16.mxu0 %v7285
    %10329 = vmatpush1.bf16.msra.mxu0 %v7284
    %10330 = vmatprep.subr.bf16.mxu0 %v7317
    %10331 = vmatpush1.bf16.msra.mxu0 %v7316
    %10332 = vmatprep.subr.bf16.mxu0 %v7349
    %10333 = vmatpush1.bf16.msra.mxu0 %v7348
    %10334 = vmatprep.subr.bf16.mxu0 %v7381
    %10335 = vmatpush1.bf16.msra.mxu0 %v7380
    %10336 = vmatprep.subr.bf16.mxu0 %v7413
    %10337 = vmatpush1.bf16.msra.mxu0 %v7412
    %10338 = vmatprep.subr.bf16.mxu0 %v7445
    %10339 = vmatpush1.bf16.msra.mxu0 %v7444
    %10340 = vmatprep.subr.bf16.mxu0 %v7477
    %10341 = vmatpush1.bf16.msra.mxu0 %v7476
    %10342 = vmatprep.subr.bf16.mxu0 %v7509
    %10343 = vmatpush1.bf16.msra.mxu0 %v7508
    %10344 = vmatprep.mubr.bf16.mxu0 %v1857
    %10345 = vmatmul.mubr.bf16.gmra.mrb[0].mxu0 %v1856
    %v10346 = vpop.f32.mrb[0].mxu0
    %v10347 = vadd.f32 %v10274, %v10346
    %v10348 = vpop.f32.mrb[0].mxu0
    %v10349 = vadd.f32 %v10276, %v10348
    %v10350 = vpop.f32.mrb[0].mxu0
    %v10351 = vadd.f32 %v10278, %v10350
    %v10352 = vpop.f32.mrb[0].mxu0
    %v10353 = vadd.f32 %v10280, %v10352
    %10354 = vmatprep.mubr.bf16.mxu0 %v1863
    %10355 = vmatmul.mubr.bf16.gmra.mrb[0].mxu0 %v1862
    %v10356 = vpop.f32.mrb[0].mxu0
    %v10357 = vadd.f32 %v10284, %v10356
    %v10358 = vpop.f32.mrb[0].mxu0
    %v10359 = vadd.f32 %v10286, %v10358
    %v10360 = vpop.f32.mrb[0].mxu0
    %v10361 = vadd.f32 %v10288, %v10360
    %v10362 = vpop.f32.mrb[0].mxu0
    %v10363 = vadd.f32 %v10290, %v10362
    %10364 = vmatprep.mubr.bf16.mxu0 %v1869
    %10365 = vmatmul.mubr.bf16.gmra.mrb[0].mxu0 %v1868
    %v10366 = vpop.f32.mrb[0].mxu0
    %v10367 = vadd.f32 %v10294, %v10366
    %v10368 = vpop.f32.mrb[0].mxu0
    %v10369 = vadd.f32 %v10296, %v10368
    %v10370 = vpop.f32.mrb[0].mxu0
    %v10371 = vadd.f32 %v10298, %v10370
    %v10372 = vpop.f32.mrb[0].mxu0
    %v10373 = vadd.f32 %v10300, %v10372
    %10374 = vmatprep.mubr.bf16.mxu0 %v1875
    %10375 = vmatmul.mubr.bf16.gmra.mrb[0].mxu0 %v1874
    %v10376 = vpop.f32.mrb[0].mxu0
    %v10377 = vadd.f32 %v10304, %v10376
    %v10378 = vpop.f32.mrb[0].mxu0
    %v10379 = vadd.f32 %v10306, %v10378
    %v10380 = vpop.f32.mrb[0].mxu0
    %v10381 = vadd.f32 %v10308, %v10380
    %v10382 = vpop.f32.mrb[0].mxu0
    %v10383 = vadd.f32 %v10310, %v10382
    %10384 = vdwg.mxu0
    %10385 = vmatprep.subr.bf16.mxu0 %v7541
    %10386 = vmatpush1.bf16.msra.mxu0 %v7540
    %10387 = vmatprep.subr.bf16.mxu0 %v7573
    %10388 = vmatpush1.bf16.msra.mxu0 %v7572
    %10389 = vmatprep.subr.bf16.mxu0 %v7605
    %10390 = vmatpush1.bf16.msra.mxu0 %v7604
    %10391 = vmatprep.subr.bf16.mxu0 %v7637
    %10392 = vmatpush1.bf16.msra.mxu0 %v7636
    %10393 = vmatprep.subr.bf16.mxu0 %v7669
    %10394 = vmatpush1.bf16.msra.mxu0 %v7668
    %10395 = vmatprep.subr.bf16.mxu0 %v7701
    %10396 = vmatpush1.bf16.msra.mxu0 %v7700
    %10397 = vmatprep.subr.bf16.mxu0 %v7733
    %10398 = vmatpush1.bf16.msra.mxu0 %v7732
    %10399 = vmatprep.subr.bf16.mxu0 %v7765
    %10400 = vmatpush1.bf16.msra.mxu0 %v7764
    %10401 = vmatprep.subr.bf16.mxu0 %v7797
    %10402 = vmatpush1.bf16.msra.mxu0 %v7796
    %10403 = vmatprep.subr.bf16.mxu0 %v7829
    %10404 = vmatpush1.bf16.msra.mxu0 %v7828
    %10405 = vmatprep.subr.bf16.mxu0 %v7861
    %10406 = vmatpush1.bf16.msra.mxu0 %v7860
    %10407 = vmatprep.subr.bf16.mxu0 %v7893
    %10408 = vmatpush1.bf16.msra.mxu0 %v7892
    %10409 = vmatprep.subr.bf16.mxu0 %v7925
    %10410 = vmatpush1.bf16.msra.mxu0 %v7924
    %10411 = vmatprep.subr.bf16.mxu0 %v7957
    %10412 = vmatpush1.bf16.msra.mxu0 %v7956
    %10413 = vmatprep.subr.bf16.mxu0 %v7989
    %10414 = vmatpush1.bf16.msra.mxu0 %v7988
    %10415 = vmatprep.subr.bf16.mxu0 %v8021
    %10416 = vmatpush1.bf16.msra.mxu0 %v8020
    %10417 = vmatprep.mubr.bf16.mxu0 %v1859
    %10418 = vmatmul.mubr.bf16.gmra.mrb[0].mxu0 %v1858
    %v10419 = vpop.f32.mrb[0].mxu0
    %v10420 = vadd.f32 %v10347, %v10419
    %v10421 = vpop.f32.mrb[0].mxu0
    %v10422 = vadd.f32 %v10349, %v10421
    %v10423 = vpop.f32.mrb[0].mxu0
    %v10424 = vadd.f32 %v10351, %v10423
    %v10425 = vpop.f32.mrb[0].mxu0
    %v10426 = vadd.f32 %v10353, %v10425
    %10427 = vmatprep.mubr.bf16.mxu0 %v1865
    %10428 = vmatmul.mubr.bf16.gmra.mrb[0].mxu0 %v1864
    %v10429 = vpop.f32.mrb[0].mxu0
    %v10430 = vadd.f32 %v10357, %v10429
    %v10431 = vpop.f32.mrb[0].mxu0
    %v10432 = vadd.f32 %v10359, %v10431
    %v10433 = vpop.f32.mrb[0].mxu0
    %v10434 = vadd.f32 %v10361, %v10433
    %v10435 = vpop.f32.mrb[0].mxu0
    %v10436 = vadd.f32 %v10363, %v10435
    %10437 = vmatprep.mubr.bf16.mxu0 %v1871
    %10438 = vmatmul.mubr.bf16.gmra.mrb[0].mxu0 %v1870
    %v10439 = vpop.f32.mrb[0].mxu0
    %v10440 = vadd.f32 %v10367, %v10439
    %v10441 = vpop.f32.mrb[0].mxu0
    %v10442 = vadd.f32 %v10369, %v10441
    %v10443 = vpop.f32.mrb[0].mxu0
    %v10444 = vadd.f32 %v10371, %v10443
    %v10445 = vpop.f32.mrb[0].mxu0
    %v10446 = vadd.f32 %v10373, %v10445
    %10447 = vmatprep.mubr.bf16.mxu0 %v1877
    %10448 = vmatmul.mubr.bf16.gmra.mrb[0].mxu0 %v1876
    %v10449 = vpop.f32.mrb[0].mxu0
    %v10450 = vadd.f32 %v10377, %v10449
    %v10451 = vpop.f32.mrb[0].mxu0
    %v10452 = vadd.f32 %v10379, %v10451
    %v10453 = vpop.f32.mrb[0].mxu0
    %v10454 = vadd.f32 %v10381, %v10453
    %v10455 = vpop.f32.mrb[0].mxu0
    %v10456 = vadd.f32 %v10383, %v10455
    %10457 = vdwg.mxu0
    %10458 = vmatprep.subr.bf16.mxu0 %v6519
    %10459 = vmatpush1.bf16.msra.mxu0 %v6518
    %10460 = vmatprep.subr.bf16.mxu0 %v6551
    %10461 = vmatpush1.bf16.msra.mxu0 %v6550
    %10462 = vmatprep.subr.bf16.mxu0 %v6583
    %10463 = vmatpush1.bf16.msra.mxu0 %v6582
    %10464 = vmatprep.subr.bf16.mxu0 %v6615
    %10465 = vmatpush1.bf16.msra.mxu0 %v6614
    %10466 = vmatprep.subr.bf16.mxu0 %v6647
    %10467 = vmatpush1.bf16.msra.mxu0 %v6646
    %10468 = vmatprep.subr.bf16.mxu0 %v6679
    %10469 = vmatpush1.bf16.msra.mxu0 %v6678
    %10470 = vmatprep.subr.bf16.mxu0 %v6711
    %10471 = vmatpush1.bf16.msra.mxu0 %v6710
    %10472 = vmatprep.subr.bf16.mxu0 %v6743
    %10473 = vmatpush1.bf16.msra.mxu0 %v6742
    %10474 = vmatprep.subr.bf16.mxu0 %v6775
    %10475 = vmatpush1.bf16.msra.mxu0 %v6774
    %10476 = vmatprep.subr.bf16.mxu0 %v6807
    %10477 = vmatpush1.bf16.msra.mxu0 %v6806
    %10478 = vmatprep.subr.bf16.mxu0 %v6839
    %10479 = vmatpush1.bf16.msra.mxu0 %v6838
    %10480 = vmatprep.subr.bf16.mxu0 %v6871
    %10481 = vmatpush1.bf16.msra.mxu0 %v6870
    %10482 = vmatprep.subr.bf16.mxu0 %v6903
    %10483 = vmatpush1.bf16.msra.mxu0 %v6902
    %10484 = vmatprep.subr.bf16.mxu0 %v6935
    %10485 = vmatpush1.bf16.msra.mxu0 %v6934
    %10486 = vmatprep.subr.bf16.mxu0 %v6967
    %10487 = vmatpush1.bf16.msra.mxu0 %v6966
    %10488 = vmatprep.subr.bf16.mxu0 %v6999
    %10489 = vmatpush1.bf16.msra.mxu0 %v6998
    %10490 = vmatprep.mubr.bf16.mxu0 %v1855
    %10491 = vmatmul.mubr.bf16.gmra.mrb[0].mxu0 %v1854
    %v10492 = vpop.f32.mrb[0].mxu0
    %v10493 = vadd.f32 %v1657, %v10492
    %v10494 = vpop.f32.mrb[0].mxu0
    %v10495 = vadd.f32 %v1661, %v10494
    %v10496 = vpop.f32.mrb[0].mxu0
    %v10497 = vadd.f32 %v1657, %v10496
    %v10498 = vpop.f32.mrb[0].mxu0
    %v10499 = vadd.f32 %v1661, %v10498
    %10500 = vmatprep.mubr.bf16.mxu0 %v1861
    %10501 = vmatmul.mubr.bf16.gmra.mrb[0].mxu0 %v1860
    %v10502 = vpop.f32.mrb[0].mxu0
    %v10503 = vadd.f32 %v1657, %v10502
    %v10504 = vpop.f32.mrb[0].mxu0
    %v10505 = vadd.f32 %v1661, %v10504
    %v10506 = vpop.f32.mrb[0].mxu0
    %v10507 = vadd.f32 %v1657, %v10506
    %v10508 = vpop.f32.mrb[0].mxu0
    %v10509 = vadd.f32 %v1661, %v10508
    %10510 = vmatprep.mubr.bf16.mxu0 %v1867
    %10511 = vmatmul.mubr.bf16.gmra.mrb[0].mxu0 %v1866
    %v10512 = vpop.f32.mrb[0].mxu0
    %v10513 = vadd.f32 %v1657, %v10512
    %v10514 = vpop.f32.mrb[0].mxu0
    %v10515 = vadd.f32 %v1661, %v10514
    %v10516 = vpop.f32.mrb[0].mxu0
    %v10517 = vadd.f32 %v1657, %v10516
    %v10518 = vpop.f32.mrb[0].mxu0
    %v10519 = vadd.f32 %v1661, %v10518
    %10520 = vmatprep.mubr.bf16.mxu0 %v1873
    %10521 = vmatmul.mubr.bf16.gmra.mrb[0].mxu0 %v1872
    %v10522 = vpop.f32.mrb[0].mxu0
    %v10523 = vadd.f32 %v1657, %v10522
    %v10524 = vpop.f32.mrb[0].mxu0
    %v10525 = vadd.f32 %v1661, %v10524
    %v10526 = vpop.f32.mrb[0].mxu0
    %v10527 = vadd.f32 %v1657, %v10526
    %v10528 = vpop.f32.mrb[0].mxu0
    %v10529 = vadd.f32 %v1661, %v10528
    %10530 = vdwg.mxu0
    %10531 = vmatprep.subr.bf16.mxu0 %v7031
    %10532 = vmatpush1.bf16.msra.mxu0 %v7030
    %10533 = vmatprep.subr.bf16.mxu0 %v7063
    %10534 = vmatpush1.bf16.msra.mxu0 %v7062
    %10535 = vmatprep.subr.bf16.mxu0 %v7095
    %10536 = vmatpush1.bf16.msra.mxu0 %v7094
    %10537 = vmatprep.subr.bf16.mxu0 %v7127
    %10538 = vmatpush1.bf16.msra.mxu0 %v7126
    %10539 = vmatprep.subr.bf16.mxu0 %v7159
    %10540 = vmatpush1.bf16.msra.mxu0 %v7158
    %10541 = vmatprep.subr.bf16.mxu0 %v7191
    %10542 = vmatpush1.bf16.msra.mxu0 %v7190
    %10543 = vmatprep.subr.bf16.mxu0 %v7223
    %10544 = vmatpush1.bf16.msra.mxu0 %v7222
    %10545 = vmatprep.subr.bf16.mxu0 %v7255
    %10546 = vmatpush1.bf16.msra.mxu0 %v7254
    %10547 = vmatprep.subr.bf16.mxu0 %v7287
    %10548 = vmatpush1.bf16.msra.mxu0 %v7286
    %10549 = vmatprep.subr.bf16.mxu0 %v7319
    %10550 = vmatpush1.bf16.msra.mxu0 %v7318
    %10551 = vmatprep.subr.bf16.mxu0 %v7351
    %10552 = vmatpush1.bf16.msra.mxu0 %v7350
    %10553 = vmatprep.subr.bf16.mxu0 %v7383
    %10554 = vmatpush1.bf16.msra.mxu0 %v7382
    %10555 = vmatprep.subr.bf16.mxu0 %v7415
    %10556 = vmatpush1.bf16.msra.mxu0 %v7414
    %10557 = vmatprep.subr.bf16.mxu0 %v7447
    %10558 = vmatpush1.bf16.msra.mxu0 %v7446
    %10559 = vmatprep.subr.bf16.mxu0 %v7479
    %10560 = vmatpush1.bf16.msra.mxu0 %v7478
    %10561 = vmatprep.subr.bf16.mxu0 %v7511
    %10562 = vmatpush1.bf16.msra.mxu0 %v7510
    %10563 = vmatprep.mubr.bf16.mxu0 %v1857
    %10564 = vmatmul.mubr.bf16.gmra.mrb[0].mxu0 %v1856
    %v10565 = vpop.f32.mrb[0].mxu0
    %v10566 = vadd.f32 %v10493, %v10565
    %v10567 = vpop.f32.mrb[0].mxu0
    %v10568 = vadd.f32 %v10495, %v10567
    %v10569 = vpop.f32.mrb[0].mxu0
    %v10570 = vadd.f32 %v10497, %v10569
    %v10571 = vpop.f32.mrb[0].mxu0
    %v10572 = vadd.f32 %v10499, %v10571
    %10573 = vmatprep.mubr.bf16.mxu0 %v1863
    %10574 = vmatmul.mubr.bf16.gmra.mrb[0].mxu0 %v1862
    %v10575 = vpop.f32.mrb[0].mxu0
    %v10576 = vadd.f32 %v10503, %v10575
    %v10577 = vpop.f32.mrb[0].mxu0
    %v10578 = vadd.f32 %v10505, %v10577
    %v10579 = vpop.f32.mrb[0].mxu0
    %v10580 = vadd.f32 %v10507, %v10579
    %v10581 = vpop.f32.mrb[0].mxu0
    %v10582 = vadd.f32 %v10509, %v10581
    %10583 = vmatprep.mubr.bf16.mxu0 %v1869
    %10584 = vmatmul.mubr.bf16.gmra.mrb[0].mxu0 %v1868
    %v10585 = vpop.f32.mrb[0].mxu0
    %v10586 = vadd.f32 %v10513, %v10585
    %v10587 = vpop.f32.mrb[0].mxu0
    %v10588 = vadd.f32 %v10515, %v10587
    %v10589 = vpop.f32.mrb[0].mxu0
    %v10590 = vadd.f32 %v10517, %v10589
    %v10591 = vpop.f32.mrb[0].mxu0
    %v10592 = vadd.f32 %v10519, %v10591
    %10593 = vmatprep.mubr.bf16.mxu0 %v1875
    %10594 = vmatmul.mubr.bf16.gmra.mrb[0].mxu0 %v1874
    %v10595 = vpop.f32.mrb[0].mxu0
    %v10596 = vadd.f32 %v10523, %v10595
    %v10597 = vpop.f32.mrb[0].mxu0
    %v10598 = vadd.f32 %v10525, %v10597
    %v10599 = vpop.f32.mrb[0].mxu0
    %v10600 = vadd.f32 %v10527, %v10599
    %v10601 = vpop.f32.mrb[0].mxu0
    %v10602 = vadd.f32 %v10529, %v10601
    %10603 = vdwg.mxu0
    %10604 = vmatprep.subr.bf16.mxu0 %v7543
    %10605 = vmatpush1.bf16.msra.mxu0 %v7542
    %10606 = vmatprep.subr.bf16.mxu0 %v7575
    %10607 = vmatpush1.bf16.msra.mxu0 %v7574
    %10608 = vmatprep.subr.bf16.mxu0 %v7607
    %10609 = vmatpush1.bf16.msra.mxu0 %v7606
    %10610 = vmatprep.subr.bf16.mxu0 %v7639
    %10611 = vmatpush1.bf16.msra.mxu0 %v7638
    %10612 = vmatprep.subr.bf16.mxu0 %v7671
    %10613 = vmatpush1.bf16.msra.mxu0 %v7670
    %10614 = vmatprep.subr.bf16.mxu0 %v7703
    %10615 = vmatpush1.bf16.msra.mxu0 %v7702
    %10616 = vmatprep.subr.bf16.mxu0 %v7735
    %10617 = vmatpush1.bf16.msra.mxu0 %v7734
    %10618 = vmatprep.subr.bf16.mxu0 %v7767
    %10619 = vmatpush1.bf16.msra.mxu0 %v7766
    %10620 = vmatprep.subr.bf16.mxu0 %v7799
    %10621 = vmatpush1.bf16.msra.mxu0 %v7798
    %10622 = vmatprep.subr.bf16.mxu0 %v7831
    %10623 = vmatpush1.bf16.msra.mxu0 %v7830
    %10624 = vmatprep.subr.bf16.mxu0 %v7863
    %10625 = vmatpush1.bf16.msra.mxu0 %v7862
    %10626 = vmatprep.subr.bf16.mxu0 %v7895
    %10627 = vmatpush1.bf16.msra.mxu0 %v7894
    %10628 = vmatprep.subr.bf16.mxu0 %v7927
    %10629 = vmatpush1.bf16.msra.mxu0 %v7926
    %10630 = vmatprep.subr.bf16.mxu0 %v7959
    %10631 = vmatpush1.bf16.msra.mxu0 %v7958
    %10632 = vmatprep.subr.bf16.mxu0 %v7991
    %10633 = vmatpush1.bf16.msra.mxu0 %v7990
    %10634 = vmatprep.subr.bf16.mxu0 %v8023
    %10635 = vmatpush1.bf16.msra.mxu0 %v8022
    %10636 = vmatprep.mubr.bf16.mxu0 %v1859
    %10637 = vmatmul.mubr.bf16.gmra.mrb[0].mxu0 %v1858
    %v10638 = vpop.f32.mrb[0].mxu0
    %v10639 = vadd.f32 %v10566, %v10638
    %v10640 = vpop.f32.mrb[0].mxu0
    %v10641 = vadd.f32 %v10568, %v10640
    %v10642 = vpop.f32.mrb[0].mxu0
    %v10643 = vadd.f32 %v10570, %v10642
    %v10644 = vpop.f32.mrb[0].mxu0
    %v10645 = vadd.f32 %v10572, %v10644
    %10646 = vmatprep.mubr.bf16.mxu0 %v1865
    %10647 = vmatmul.mubr.bf16.gmra.mrb[0].mxu0 %v1864
    %v10648 = vpop.f32.mrb[0].mxu0
    %v10649 = vadd.f32 %v10576, %v10648
    %v10650 = vpop.f32.mrb[0].mxu0
    %v10651 = vadd.f32 %v10578, %v10650
    %v10652 = vpop.f32.mrb[0].mxu0
    %v10653 = vadd.f32 %v10580, %v10652
    %v10654 = vpop.f32.mrb[0].mxu0
    %v10655 = vadd.f32 %v10582, %v10654
    %10656 = vmatprep.mubr.bf16.mxu0 %v1871
    %10657 = vmatmul.mubr.bf16.gmra.mrb[0].mxu0 %v1870
    %v10658 = vpop.f32.mrb[0].mxu0
    %v10659 = vadd.f32 %v10586, %v10658
    %v10660 = vpop.f32.mrb[0].mxu0
    %v10661 = vadd.f32 %v10588, %v10660
    %v10662 = vpop.f32.mrb[0].mxu0
    %v10663 = vadd.f32 %v10590, %v10662
    %v10664 = vpop.f32.mrb[0].mxu0
    %v10665 = vadd.f32 %v10592, %v10664
    %10666 = vmatprep.mubr.bf16.mxu0 %v1877
    %10667 = vmatmul.mubr.bf16.gmra.mrb[0].mxu0 %v1876
    %v10668 = vpop.f32.mrb[0].mxu0
    %v10669 = vadd.f32 %v10596, %v10668
    %v10670 = vpop.f32.mrb[0].mxu0
    %v10671 = vadd.f32 %v10598, %v10670
    %v10672 = vpop.f32.mrb[0].mxu0
    %v10673 = vadd.f32 %v10600, %v10672
    %v10674 = vpop.f32.mrb[0].mxu0
    %v10675 = vadd.f32 %v10602, %v10674
    %10676 = vdwg.mxu0
    %10677 = vmatprep.subr.bf16.mxu0 %v6521
    %10678 = vmatpush1.bf16.msra.mxu0 %v6520
    %10679 = vmatprep.subr.bf16.mxu0 %v6553
    %10680 = vmatpush1.bf16.msra.mxu0 %v6552
    %10681 = vmatprep.subr.bf16.mxu0 %v6585
    %10682 = vmatpush1.bf16.msra.mxu0 %v6584
    %10683 = vmatprep.subr.bf16.mxu0 %v6617
    %10684 = vmatpush1.bf16.msra.mxu0 %v6616
    %10685 = vmatprep.subr.bf16.mxu0 %v6649
    %10686 = vmatpush1.bf16.msra.mxu0 %v6648
    %10687 = vmatprep.subr.bf16.mxu0 %v6681
    %10688 = vmatpush1.bf16.msra.mxu0 %v6680
    %10689 = vmatprep.subr.bf16.mxu0 %v6713
    %10690 = vmatpush1.bf16.msra.mxu0 %v6712
    %10691 = vmatprep.subr.bf16.mxu0 %v6745
    %10692 = vmatpush1.bf16.msra.mxu0 %v6744
    %10693 = vmatprep.subr.bf16.mxu0 %v6777
    %10694 = vmatpush1.bf16.msra.mxu0 %v6776
    %10695 = vmatprep.subr.bf16.mxu0 %v6809
    %10696 = vmatpush1.bf16.msra.mxu0 %v6808
    %10697 = vmatprep.subr.bf16.mxu0 %v6841
    %10698 = vmatpush1.bf16.msra.mxu0 %v6840
    %10699 = vmatprep.subr.bf16.mxu0 %v6873
    %10700 = vmatpush1.bf16.msra.mxu0 %v6872
    %10701 = vmatprep.subr.bf16.mxu0 %v6905
    %10702 = vmatpush1.bf16.msra.mxu0 %v6904
    %10703 = vmatprep.subr.bf16.mxu0 %v6937
    %10704 = vmatpush1.bf16.msra.mxu0 %v6936
    %10705 = vmatprep.subr.bf16.mxu0 %v6969
    %10706 = vmatpush1.bf16.msra.mxu0 %v6968
    %10707 = vmatprep.subr.bf16.mxu0 %v7001
    %10708 = vmatpush1.bf16.msra.mxu0 %v7000
    %10709 = vmatprep.mubr.bf16.mxu0 %v1855
    %10710 = vmatmul.mubr.bf16.gmra.mrb[0].mxu0 %v1854
    %v10711 = vpop.f32.mrb[0].mxu0
    %v10712 = vadd.f32 %v1665, %v10711
    %v10713 = vpop.f32.mrb[0].mxu0
    %v10714 = vadd.f32 %v1669, %v10713
    %v10715 = vpop.f32.mrb[0].mxu0
    %v10716 = vadd.f32 %v1665, %v10715
    %v10717 = vpop.f32.mrb[0].mxu0
    %v10718 = vadd.f32 %v1669, %v10717
    %10719 = vmatprep.mubr.bf16.mxu0 %v1861
    %10720 = vmatmul.mubr.bf16.gmra.mrb[0].mxu0 %v1860
    %v10721 = vpop.f32.mrb[0].mxu0
    %v10722 = vadd.f32 %v1665, %v10721
    %v10723 = vpop.f32.mrb[0].mxu0
    %v10724 = vadd.f32 %v1669, %v10723
    %v10725 = vpop.f32.mrb[0].mxu0
    %v10726 = vadd.f32 %v1665, %v10725
    %v10727 = vpop.f32.mrb[0].mxu0
    %v10728 = vadd.f32 %v1669, %v10727
    %10729 = vmatprep.mubr.bf16.mxu0 %v1867
    %10730 = vmatmul.mubr.bf16.gmra.mrb[0].mxu0 %v1866
    %v10731 = vpop.f32.mrb[0].mxu0
    %v10732 = vadd.f32 %v1665, %v10731
    %v10733 = vpop.f32.mrb[0].mxu0
    %v10734 = vadd.f32 %v1669, %v10733
    %v10735 = vpop.f32.mrb[0].mxu0
    %v10736 = vadd.f32 %v1665, %v10735
    %v10737 = vpop.f32.mrb[0].mxu0
    %v10738 = vadd.f32 %v1669, %v10737
    %10739 = vmatprep.mubr.bf16.mxu0 %v1873
    %10740 = vmatmul.mubr.bf16.gmra.mrb[0].mxu0 %v1872
    %v10741 = vpop.f32.mrb[0].mxu0
    %v10742 = vadd.f32 %v1665, %v10741
    %v10743 = vpop.f32.mrb[0].mxu0
    %v10744 = vadd.f32 %v1669, %v10743
    %v10745 = vpop.f32.mrb[0].mxu0
    %v10746 = vadd.f32 %v1665, %v10745
    %v10747 = vpop.f32.mrb[0].mxu0
    %v10748 = vadd.f32 %v1669, %v10747
    %10749 = vdwg.mxu0
    %10750 = vmatprep.subr.bf16.mxu0 %v7033
    %10751 = vmatpush1.bf16.msra.mxu0 %v7032
    %10752 = vmatprep.subr.bf16.mxu0 %v7065
    %10753 = vmatpush1.bf16.msra.mxu0 %v7064
    %10754 = vmatprep.subr.bf16.mxu0 %v7097
    %10755 = vmatpush1.bf16.msra.mxu0 %v7096
    %10756 = vmatprep.subr.bf16.mxu0 %v7129
    %10757 = vmatpush1.bf16.msra.mxu0 %v7128
    %10758 = vmatprep.subr.bf16.mxu0 %v7161
    %10759 = vmatpush1.bf16.msra.mxu0 %v7160
    %10760 = vmatprep.subr.bf16.mxu0 %v7193
    %10761 = vmatpush1.bf16.msra.mxu0 %v7192
    %10762 = vmatprep.subr.bf16.mxu0 %v7225
    %10763 = vmatpush1.bf16.msra.mxu0 %v7224
    %10764 = vmatprep.subr.bf16.mxu0 %v7257
    %10765 = vmatpush1.bf16.msra.mxu0 %v7256
    %10766 = vmatprep.subr.bf16.mxu0 %v7289
    %10767 = vmatpush1.bf16.msra.mxu0 %v7288
    %10768 = vmatprep.subr.bf16.mxu0 %v7321
    %10769 = vmatpush1.bf16.msra.mxu0 %v7320
    %10770 = vmatprep.subr.bf16.mxu0 %v7353
    %10771 = vmatpush1.bf16.msra.mxu0 %v7352
    %10772 = vmatprep.subr.bf16.mxu0 %v7385
    %10773 = vmatpush1.bf16.msra.mxu0 %v7384
    %10774 = vmatprep.subr.bf16.mxu0 %v7417
    %10775 = vmatpush1.bf16.msra.mxu0 %v7416
    %10776 = vmatprep.subr.bf16.mxu0 %v7449
    %10777 = vmatpush1.bf16.msra.mxu0 %v7448
    %10778 = vmatprep.subr.bf16.mxu0 %v7481
    %10779 = vmatpush1.bf16.msra.mxu0 %v7480
    %10780 = vmatprep.subr.bf16.mxu0 %v7513
    %10781 = vmatpush1.bf16.msra.mxu0 %v7512
    %10782 = vmatprep.mubr.bf16.mxu0 %v1857
    %10783 = vmatmul.mubr.bf16.gmra.mrb[0].mxu0 %v1856
    %v10784 = vpop.f32.mrb[0].mxu0
    %v10785 = vadd.f32 %v10712, %v10784
    %v10786 = vpop.f32.mrb[0].mxu0
    %v10787 = vadd.f32 %v10714, %v10786
    %v10788 = vpop.f32.mrb[0].mxu0
    %v10789 = vadd.f32 %v10716, %v10788
    %v10790 = vpop.f32.mrb[0].mxu0
    %v10791 = vadd.f32 %v10718, %v10790
    %10792 = vmatprep.mubr.bf16.mxu0 %v1863
    %10793 = vmatmul.mubr.bf16.gmra.mrb[0].mxu0 %v1862
    %v10794 = vpop.f32.mrb[0].mxu0
    %v10795 = vadd.f32 %v10722, %v10794
    %v10796 = vpop.f32.mrb[0].mxu0
    %v10797 = vadd.f32 %v10724, %v10796
    %v10798 = vpop.f32.mrb[0].mxu0
    %v10799 = vadd.f32 %v10726, %v10798
    %v10800 = vpop.f32.mrb[0].mxu0
    %v10801 = vadd.f32 %v10728, %v10800
    %10802 = vmatprep.mubr.bf16.mxu0 %v1869
    %10803 = vmatmul.mubr.bf16.gmra.mrb[0].mxu0 %v1868
    %v10804 = vpop.f32.mrb[0].mxu0
    %v10805 = vadd.f32 %v10732, %v10804
    %v10806 = vpop.f32.mrb[0].mxu0
    %v10807 = vadd.f32 %v10734, %v10806
    %v10808 = vpop.f32.mrb[0].mxu0
    %v10809 = vadd.f32 %v10736, %v10808
    %v10810 = vpop.f32.mrb[0].mxu0
    %v10811 = vadd.f32 %v10738, %v10810
    %10812 = vmatprep.mubr.bf16.mxu0 %v1875
    %10813 = vmatmul.mubr.bf16.gmra.mrb[0].mxu0 %v1874
    %v10814 = vpop.f32.mrb[0].mxu0
    %v10815 = vadd.f32 %v10742, %v10814
    %v10816 = vpop.f32.mrb[0].mxu0
    %v10817 = vadd.f32 %v10744, %v10816
    %v10818 = vpop.f32.mrb[0].mxu0
    %v10819 = vadd.f32 %v10746, %v10818
    %v10820 = vpop.f32.mrb[0].mxu0
    %v10821 = vadd.f32 %v10748, %v10820
    %10822 = vdwg.mxu0
    %10823 = vmatprep.subr.bf16.mxu0 %v7545
    %10824 = vmatpush1.bf16.msra.mxu0 %v7544
    %10825 = vmatprep.subr.bf16.mxu0 %v7577
    %10826 = vmatpush1.bf16.msra.mxu0 %v7576
    %10827 = vmatprep.subr.bf16.mxu0 %v7609
    %10828 = vmatpush1.bf16.msra.mxu0 %v7608
    %10829 = vmatprep.subr.bf16.mxu0 %v7641
    %10830 = vmatpush1.bf16.msra.mxu0 %v7640
    %10831 = vmatprep.subr.bf16.mxu0 %v7673
    %10832 = vmatpush1.bf16.msra.mxu0 %v7672
    %10833 = vmatprep.subr.bf16.mxu0 %v7705
    %10834 = vmatpush1.bf16.msra.mxu0 %v7704
    %10835 = vmatprep.subr.bf16.mxu0 %v7737
    %10836 = vmatpush1.bf16.msra.mxu0 %v7736
    %10837 = vmatprep.subr.bf16.mxu0 %v7769
    %10838 = vmatpush1.bf16.msra.mxu0 %v7768
    %10839 = vmatprep.subr.bf16.mxu0 %v7801
    %10840 = vmatpush1.bf16.msra.mxu0 %v7800
    %10841 = vmatprep.subr.bf16.mxu0 %v7833
    %10842 = vmatpush1.bf16.msra.mxu0 %v7832
    %10843 = vmatprep.subr.bf16.mxu0 %v7865
    %10844 = vmatpush1.bf16.msra.mxu0 %v7864
    %10845 = vmatprep.subr.bf16.mxu0 %v7897
    %10846 = vmatpush1.bf16.msra.mxu0 %v7896
    %10847 = vmatprep.subr.bf16.mxu0 %v7929
    %10848 = vmatpush1.bf16.msra.mxu0 %v7928
    %10849 = vmatprep.subr.bf16.mxu0 %v7961
    %10850 = vmatpush1.bf16.msra.mxu0 %v7960
    %10851 = vmatprep.subr.bf16.mxu0 %v7993
    %10852 = vmatpush1.bf16.msra.mxu0 %v7992
    %10853 = vmatprep.subr.bf16.mxu0 %v8025
    %10854 = vmatpush1.bf16.msra.mxu0 %v8024
    %10855 = vmatprep.mubr.bf16.mxu0 %v1859
    %10856 = vmatmul.mubr.bf16.gmra.mrb[0].mxu0 %v1858
    %v10857 = vpop.f32.mrb[0].mxu0
    %v10858 = vadd.f32 %v10785, %v10857
    %v10859 = vpop.f32.mrb[0].mxu0
    %v10860 = vadd.f32 %v10787, %v10859
    %v10861 = vpop.f32.mrb[0].mxu0
    %v10862 = vadd.f32 %v10789, %v10861
    %v10863 = vpop.f32.mrb[0].mxu0
    %v10864 = vadd.f32 %v10791, %v10863
    %10865 = vmatprep.mubr.bf16.mxu0 %v1865
    %10866 = vmatmul.mubr.bf16.gmra.mrb[0].mxu0 %v1864
    %v10867 = vpop.f32.mrb[0].mxu0
    %v10868 = vadd.f32 %v10795, %v10867
    %v10869 = vpop.f32.mrb[0].mxu0
    %v10870 = vadd.f32 %v10797, %v10869
    %v10871 = vpop.f32.mrb[0].mxu0
    %v10872 = vadd.f32 %v10799, %v10871
    %v10873 = vpop.f32.mrb[0].mxu0
    %v10874 = vadd.f32 %v10801, %v10873
    %10875 = vmatprep.mubr.bf16.mxu0 %v1871
    %10876 = vmatmul.mubr.bf16.gmra.mrb[0].mxu0 %v1870
    %v10877 = vpop.f32.mrb[0].mxu0
    %v10878 = vadd.f32 %v10805, %v10877
    %v10879 = vpop.f32.mrb[0].mxu0
    %v10880 = vadd.f32 %v10807, %v10879
    %v10881 = vpop.f32.mrb[0].mxu0
    %v10882 = vadd.f32 %v10809, %v10881
    %v10883 = vpop.f32.mrb[0].mxu0
    %v10884 = vadd.f32 %v10811, %v10883
    %10885 = vmatprep.mubr.bf16.mxu0 %v1877
    %10886 = vmatmul.mubr.bf16.gmra.mrb[0].mxu0 %v1876
    %v10887 = vpop.f32.mrb[0].mxu0
    %v10888 = vadd.f32 %v10815, %v10887
    %v10889 = vpop.f32.mrb[0].mxu0
    %v10890 = vadd.f32 %v10817, %v10889
    %v10891 = vpop.f32.mrb[0].mxu0
    %v10892 = vadd.f32 %v10819, %v10891
    %v10893 = vpop.f32.mrb[0].mxu0
    %v10894 = vadd.f32 %v10821, %v10893
    %10895 = vdwg.mxu0
    %10896 = vmatprep.subr.bf16.mxu0 %v6523
    %10897 = vmatpush1.bf16.msra.mxu0 %v6522
    %10898 = vmatprep.subr.bf16.mxu0 %v6555
    %10899 = vmatpush1.bf16.msra.mxu0 %v6554
    %10900 = vmatprep.subr.bf16.mxu0 %v6587
    %10901 = vmatpush1.bf16.msra.mxu0 %v6586
    %10902 = vmatprep.subr.bf16.mxu0 %v6619
    %10903 = vmatpush1.bf16.msra.mxu0 %v6618
    %10904 = vmatprep.subr.bf16.mxu0 %v6651
    %10905 = vmatpush1.bf16.msra.mxu0 %v6650
    %10906 = vmatprep.subr.bf16.mxu0 %v6683
    %10907 = vmatpush1.bf16.msra.mxu0 %v6682
    %10908 = vmatprep.subr.bf16.mxu0 %v6715
    %10909 = vmatpush1.bf16.msra.mxu0 %v6714
    %10910 = vmatprep.subr.bf16.mxu0 %v6747
    %10911 = vmatpush1.bf16.msra.mxu0 %v6746
    %10912 = vmatprep.subr.bf16.mxu0 %v6779
    %10913 = vmatpush1.bf16.msra.mxu0 %v6778
    %10914 = vmatprep.subr.bf16.mxu0 %v6811
    %10915 = vmatpush1.bf16.msra.mxu0 %v6810
    %10916 = vmatprep.subr.bf16.mxu0 %v6843
    %10917 = vmatpush1.bf16.msra.mxu0 %v6842
    %10918 = vmatprep.subr.bf16.mxu0 %v6875
    %10919 = vmatpush1.bf16.msra.mxu0 %v6874
    %10920 = vmatprep.subr.bf16.mxu0 %v6907
    %10921 = vmatpush1.bf16.msra.mxu0 %v6906
    %10922 = vmatprep.subr.bf16.mxu0 %v6939
    %10923 = vmatpush1.bf16.msra.mxu0 %v6938
    %10924 = vmatprep.subr.bf16.mxu0 %v6971
    %10925 = vmatpush1.bf16.msra.mxu0 %v6970
    %10926 = vmatprep.subr.bf16.mxu0 %v7003
    %10927 = vmatpush1.bf16.msra.mxu0 %v7002
    %10928 = vmatprep.mubr.bf16.mxu0 %v1855
    %10929 = vmatmul.mubr.bf16.gmra.mrb[0].mxu0 %v1854
    %v10930 = vpop.f32.mrb[0].mxu0
    %v10931 = vadd.f32 %v1673, %v10930
    %v10932 = vpop.f32.mrb[0].mxu0
    %v10933 = vadd.f32 %v1677, %v10932
    %v10934 = vpop.f32.mrb[0].mxu0
    %v10935 = vadd.f32 %v1673, %v10934
    %v10936 = vpop.f32.mrb[0].mxu0
    %v10937 = vadd.f32 %v1677, %v10936
    %10938 = vmatprep.mubr.bf16.mxu0 %v1861
    %10939 = vmatmul.mubr.bf16.gmra.mrb[0].mxu0 %v1860
    %v10940 = vpop.f32.mrb[0].mxu0
    %v10941 = vadd.f32 %v1673, %v10940
    %v10942 = vpop.f32.mrb[0].mxu0
    %v10943 = vadd.f32 %v1677, %v10942
    %v10944 = vpop.f32.mrb[0].mxu0
    %v10945 = vadd.f32 %v1673, %v10944
    %v10946 = vpop.f32.mrb[0].mxu0
    %v10947 = vadd.f32 %v1677, %v10946
    %10948 = vmatprep.mubr.bf16.mxu0 %v1867
    %10949 = vmatmul.mubr.bf16.gmra.mrb[0].mxu0 %v1866
    %v10950 = vpop.f32.mrb[0].mxu0
    %v10951 = vadd.f32 %v1673, %v10950
    %v10952 = vpop.f32.mrb[0].mxu0
    %v10953 = vadd.f32 %v1677, %v10952
    %v10954 = vpop.f32.mrb[0].mxu0
    %v10955 = vadd.f32 %v1673, %v10954
    %v10956 = vpop.f32.mrb[0].mxu0
    %v10957 = vadd.f32 %v1677, %v10956
    %10958 = vmatprep.mubr.bf16.mxu0 %v1873
    %10959 = vmatmul.mubr.bf16.gmra.mrb[0].mxu0 %v1872
    %v10960 = vpop.f32.mrb[0].mxu0
    %v10961 = vadd.f32 %v1673, %v10960
    %v10962 = vpop.f32.mrb[0].mxu0
    %v10963 = vadd.f32 %v1677, %v10962
    %v10964 = vpop.f32.mrb[0].mxu0
    %v10965 = vadd.f32 %v1673, %v10964
    %v10966 = vpop.f32.mrb[0].mxu0
    %v10967 = vadd.f32 %v1677, %v10966
    %10968 = vdwg.mxu0
    %10969 = vmatprep.subr.bf16.mxu0 %v7035
    %10970 = vmatpush1.bf16.msra.mxu0 %v7034
    %10971 = vmatprep.subr.bf16.mxu0 %v7067
    %10972 = vmatpush1.bf16.msra.mxu0 %v7066
    %10973 = vmatprep.subr.bf16.mxu0 %v7099
    %10974 = vmatpush1.bf16.msra.mxu0 %v7098
    %10975 = vmatprep.subr.bf16.mxu0 %v7131
    %10976 = vmatpush1.bf16.msra.mxu0 %v7130
    %10977 = vmatprep.subr.bf16.mxu0 %v7163
    %10978 = vmatpush1.bf16.msra.mxu0 %v7162
    %10979 = vmatprep.subr.bf16.mxu0 %v7195
    %10980 = vmatpush1.bf16.msra.mxu0 %v7194
    %10981 = vmatprep.subr.bf16.mxu0 %v7227
    %10982 = vmatpush1.bf16.msra.mxu0 %v7226
    %10983 = vmatprep.subr.bf16.mxu0 %v7259
    %10984 = vmatpush1.bf16.msra.mxu0 %v7258
    %10985 = vmatprep.subr.bf16.mxu0 %v7291
    %10986 = vmatpush1.bf16.msra.mxu0 %v7290
    %10987 = vmatprep.subr.bf16.mxu0 %v7323
    %10988 = vmatpush1.bf16.msra.mxu0 %v7322
    %10989 = vmatprep.subr.bf16.mxu0 %v7355
    %10990 = vmatpush1.bf16.msra.mxu0 %v7354
    %10991 = vmatprep.subr.bf16.mxu0 %v7387
    %10992 = vmatpush1.bf16.msra.mxu0 %v7386
    %10993 = vmatprep.subr.bf16.mxu0 %v7419
    %10994 = vmatpush1.bf16.msra.mxu0 %v7418
    %10995 = vmatprep.subr.bf16.mxu0 %v7451
    %10996 = vmatpush1.bf16.msra.mxu0 %v7450
    %10997 = vmatprep.subr.bf16.mxu0 %v7483
    %10998 = vmatpush1.bf16.msra.mxu0 %v7482
    %10999 = vmatprep.subr.bf16.mxu0 %v7515
    %11000 = vmatpush1.bf16.msra.mxu0 %v7514
    %11001 = vmatprep.mubr.bf16.mxu0 %v1857
    %11002 = vmatmul.mubr.bf16.gmra.mrb[0].mxu0 %v1856
    %v11003 = vpop.f32.mrb[0].mxu0
    %v11004 = vadd.f32 %v10931, %v11003
    %v11005 = vpop.f32.mrb[0].mxu0
    %v11006 = vadd.f32 %v10933, %v11005
    %v11007 = vpop.f32.mrb[0].mxu0
    %v11008 = vadd.f32 %v10935, %v11007
    %v11009 = vpop.f32.mrb[0].mxu0
    %v11010 = vadd.f32 %v10937, %v11009
    %11011 = vmatprep.mubr.bf16.mxu0 %v1863
    %11012 = vmatmul.mubr.bf16.gmra.mrb[0].mxu0 %v1862
    %v11013 = vpop.f32.mrb[0].mxu0
    %v11014 = vadd.f32 %v10941, %v11013
    %v11015 = vpop.f32.mrb[0].mxu0
    %v11016 = vadd.f32 %v10943, %v11015
    %v11017 = vpop.f32.mrb[0].mxu0
    %v11018 = vadd.f32 %v10945, %v11017
    %v11019 = vpop.f32.mrb[0].mxu0
    %v11020 = vadd.f32 %v10947, %v11019
    %11021 = vmatprep.mubr.bf16.mxu0 %v1869
    %11022 = vmatmul.mubr.bf16.gmra.mrb[0].mxu0 %v1868
    %v11023 = vpop.f32.mrb[0].mxu0
    %v11024 = vadd.f32 %v10951, %v11023
    %v11025 = vpop.f32.mrb[0].mxu0
    %v11026 = vadd.f32 %v10953, %v11025
    %v11027 = vpop.f32.mrb[0].mxu0
    %v11028 = vadd.f32 %v10955, %v11027
    %v11029 = vpop.f32.mrb[0].mxu0
    %v11030 = vadd.f32 %v10957, %v11029
    %11031 = vmatprep.mubr.bf16.mxu0 %v1875
    %11032 = vmatmul.mubr.bf16.gmra.mrb[0].mxu0 %v1874
    %v11033 = vpop.f32.mrb[0].mxu0
    %v11034 = vadd.f32 %v10961, %v11033
    %v11035 = vpop.f32.mrb[0].mxu0
    %v11036 = vadd.f32 %v10963, %v11035
    %v11037 = vpop.f32.mrb[0].mxu0
    %v11038 = vadd.f32 %v10965, %v11037
    %v11039 = vpop.f32.mrb[0].mxu0
    %v11040 = vadd.f32 %v10967, %v11039
    %11041 = vdwg.mxu0
    %11042 = vmatprep.subr.bf16.mxu0 %v7547
    %11043 = vmatpush1.bf16.msra.mxu0 %v7546
    %11044 = vmatprep.subr.bf16.mxu0 %v7579
    %11045 = vmatpush1.bf16.msra.mxu0 %v7578
    %11046 = vmatprep.subr.bf16.mxu0 %v7611
    %11047 = vmatpush1.bf16.msra.mxu0 %v7610
    %11048 = vmatprep.subr.bf16.mxu0 %v7643
    %11049 = vmatpush1.bf16.msra.mxu0 %v7642
    %11050 = vmatprep.subr.bf16.mxu0 %v7675
    %11051 = vmatpush1.bf16.msra.mxu0 %v7674
    %11052 = vmatprep.subr.bf16.mxu0 %v7707
    %11053 = vmatpush1.bf16.msra.mxu0 %v7706
    %11054 = vmatprep.subr.bf16.mxu0 %v7739
    %11055 = vmatpush1.bf16.msra.mxu0 %v7738
    %11056 = vmatprep.subr.bf16.mxu0 %v7771
    %11057 = vmatpush1.bf16.msra.mxu0 %v7770
    %11058 = vmatprep.subr.bf16.mxu0 %v7803
    %11059 = vmatpush1.bf16.msra.mxu0 %v7802
    %11060 = vmatprep.subr.bf16.mxu0 %v7835
    %11061 = vmatpush1.bf16.msra.mxu0 %v7834
    %11062 = vmatprep.subr.bf16.mxu0 %v7867
    %11063 = vmatpush1.bf16.msra.mxu0 %v7866
    %11064 = vmatprep.subr.bf16.mxu0 %v7899
    %11065 = vmatpush1.bf16.msra.mxu0 %v7898
    %11066 = vmatprep.subr.bf16.mxu0 %v7931
    %11067 = vmatpush1.bf16.msra.mxu0 %v7930
    %11068 = vmatprep.subr.bf16.mxu0 %v7963
    %11069 = vmatpush1.bf16.msra.mxu0 %v7962
    %11070 = vmatprep.subr.bf16.mxu0 %v7995
    %11071 = vmatpush1.bf16.msra.mxu0 %v7994
    %11072 = vmatprep.subr.bf16.mxu0 %v8027
    %11073 = vmatpush1.bf16.msra.mxu0 %v8026
    %11074 = vmatprep.mubr.bf16.mxu0 %v1859
    %11075 = vmatmul.mubr.bf16.gmra.mrb[0].mxu0 %v1858
    %v11076 = vpop.f32.mrb[0].mxu0
    %v11077 = vadd.f32 %v11004, %v11076
    %v11078 = vpop.f32.mrb[0].mxu0
    %v11079 = vadd.f32 %v11006, %v11078
    %v11080 = vpop.f32.mrb[0].mxu0
    %v11081 = vadd.f32 %v11008, %v11080
    %v11082 = vpop.f32.mrb[0].mxu0
    %v11083 = vadd.f32 %v11010, %v11082
    %11084 = vmatprep.mubr.bf16.mxu0 %v1865
    %11085 = vmatmul.mubr.bf16.gmra.mrb[0].mxu0 %v1864
    %v11086 = vpop.f32.mrb[0].mxu0
    %v11087 = vadd.f32 %v11014, %v11086
    %v11088 = vpop.f32.mrb[0].mxu0
    %v11089 = vadd.f32 %v11016, %v11088
    %v11090 = vpop.f32.mrb[0].mxu0
    %v11091 = vadd.f32 %v11018, %v11090
    %v11092 = vpop.f32.mrb[0].mxu0
    %v11093 = vadd.f32 %v11020, %v11092
    %11094 = vmatprep.mubr.bf16.mxu0 %v1871
    %11095 = vmatmul.mubr.bf16.gmra.mrb[0].mxu0 %v1870
    %v11096 = vpop.f32.mrb[0].mxu0
    %v11097 = vadd.f32 %v11024, %v11096
    %v11098 = vpop.f32.mrb[0].mxu0
    %v11099 = vadd.f32 %v11026, %v11098
    %v11100 = vpop.f32.mrb[0].mxu0
    %v11101 = vadd.f32 %v11028, %v11100
    %v11102 = vpop.f32.mrb[0].mxu0
    %v11103 = vadd.f32 %v11030, %v11102
    %11104 = vmatprep.mubr.bf16.mxu0 %v1877
    %11105 = vmatmul.mubr.bf16.gmra.mrb[0].mxu0 %v1876
    %v11106 = vpop.f32.mrb[0].mxu0
    %v11107 = vadd.f32 %v11034, %v11106
    %v11108 = vpop.f32.mrb[0].mxu0
    %v11109 = vadd.f32 %v11036, %v11108
    %v11110 = vpop.f32.mrb[0].mxu0
    %v11111 = vadd.f32 %v11038, %v11110
    %v11112 = vpop.f32.mrb[0].mxu0
    %v11113 = vadd.f32 %v11040, %v11112
    %11114 = vdwg.mxu0
    %11115 = vmatprep.subr.bf16.mxu0 %v6525
    %11116 = vmatpush1.bf16.msra.mxu0 %v6524
    %11117 = vmatprep.subr.bf16.mxu0 %v6557
    %11118 = vmatpush1.bf16.msra.mxu0 %v6556
    %11119 = vmatprep.subr.bf16.mxu0 %v6589
    %11120 = vmatpush1.bf16.msra.mxu0 %v6588
    %11121 = vmatprep.subr.bf16.mxu0 %v6621
    %11122 = vmatpush1.bf16.msra.mxu0 %v6620
    %11123 = vmatprep.subr.bf16.mxu0 %v6653
    %11124 = vmatpush1.bf16.msra.mxu0 %v6652
    %11125 = vmatprep.subr.bf16.mxu0 %v6685
    %11126 = vmatpush1.bf16.msra.mxu0 %v6684
    %11127 = vmatprep.subr.bf16.mxu0 %v6717
    %11128 = vmatpush1.bf16.msra.mxu0 %v6716
    %11129 = vmatprep.subr.bf16.mxu0 %v6749
    %11130 = vmatpush1.bf16.msra.mxu0 %v6748
    %11131 = vmatprep.subr.bf16.mxu0 %v6781
    %11132 = vmatpush1.bf16.msra.mxu0 %v6780
    %11133 = vmatprep.subr.bf16.mxu0 %v6813
    %11134 = vmatpush1.bf16.msra.mxu0 %v6812
    %11135 = vmatprep.subr.bf16.mxu0 %v6845
    %11136 = vmatpush1.bf16.msra.mxu0 %v6844
    %11137 = vmatprep.subr.bf16.mxu0 %v6877
    %11138 = vmatpush1.bf16.msra.mxu0 %v6876
    %11139 = vmatprep.subr.bf16.mxu0 %v6909
    %11140 = vmatpush1.bf16.msra.mxu0 %v6908
    %11141 = vmatprep.subr.bf16.mxu0 %v6941
    %11142 = vmatpush1.bf16.msra.mxu0 %v6940
    %11143 = vmatprep.subr.bf16.mxu0 %v6973
    %11144 = vmatpush1.bf16.msra.mxu0 %v6972
    %11145 = vmatprep.subr.bf16.mxu0 %v7005
    %11146 = vmatpush1.bf16.msra.mxu0 %v7004
    %11147 = vmatprep.mubr.bf16.mxu0 %v1855
    %11148 = vmatmul.mubr.bf16.gmra.mrb[0].mxu0 %v1854
    %v11149 = vpop.f32.mrb[0].mxu0
    %v11150 = vadd.f32 %v1681, %v11149
    %v11151 = vpop.f32.mrb[0].mxu0
    %v11152 = vadd.f32 %v1685, %v11151
    %v11153 = vpop.f32.mrb[0].mxu0
    %v11154 = vadd.f32 %v1681, %v11153
    %v11155 = vpop.f32.mrb[0].mxu0
    %v11156 = vadd.f32 %v1685, %v11155
    %11157 = vmatprep.mubr.bf16.mxu0 %v1861
    %11158 = vmatmul.mubr.bf16.gmra.mrb[0].mxu0 %v1860
    %v11159 = vpop.f32.mrb[0].mxu0
    %v11160 = vadd.f32 %v1681, %v11159
    %v11161 = vpop.f32.mrb[0].mxu0
    %v11162 = vadd.f32 %v1685, %v11161
    %v11163 = vpop.f32.mrb[0].mxu0
    %v11164 = vadd.f32 %v1681, %v11163
    %v11165 = vpop.f32.mrb[0].mxu0
    %v11166 = vadd.f32 %v1685, %v11165
    %11167 = vmatprep.mubr.bf16.mxu0 %v1867
    %11168 = vmatmul.mubr.bf16.gmra.mrb[0].mxu0 %v1866
    %v11169 = vpop.f32.mrb[0].mxu0
    %v11170 = vadd.f32 %v1681, %v11169
    %v11171 = vpop.f32.mrb[0].mxu0
    %v11172 = vadd.f32 %v1685, %v11171
    %v11173 = vpop.f32.mrb[0].mxu0
    %v11174 = vadd.f32 %v1681, %v11173
    %v11175 = vpop.f32.mrb[0].mxu0
    %v11176 = vadd.f32 %v1685, %v11175
    %11177 = vmatprep.mubr.bf16.mxu0 %v1873
    %11178 = vmatmul.mubr.bf16.gmra.mrb[0].mxu0 %v1872
    %v11179 = vpop.f32.mrb[0].mxu0
    %v11180 = vadd.f32 %v1681, %v11179
    %v11181 = vpop.f32.mrb[0].mxu0
    %v11182 = vadd.f32 %v1685, %v11181
    %v11183 = vpop.f32.mrb[0].mxu0
    %v11184 = vadd.f32 %v1681, %v11183
    %v11185 = vpop.f32.mrb[0].mxu0
    %v11186 = vadd.f32 %v1685, %v11185
    %11187 = vdwg.mxu0
    %11188 = vmatprep.subr.bf16.mxu0 %v7037
    %11189 = vmatpush1.bf16.msra.mxu0 %v7036
    %11190 = vmatprep.subr.bf16.mxu0 %v7069
    %11191 = vmatpush1.bf16.msra.mxu0 %v7068
    %11192 = vmatprep.subr.bf16.mxu0 %v7101
    %11193 = vmatpush1.bf16.msra.mxu0 %v7100
    %11194 = vmatprep.subr.bf16.mxu0 %v7133
    %11195 = vmatpush1.bf16.msra.mxu0 %v7132
    %11196 = vmatprep.subr.bf16.mxu0 %v7165
    %11197 = vmatpush1.bf16.msra.mxu0 %v7164
    %11198 = vmatprep.subr.bf16.mxu0 %v7197
    %11199 = vmatpush1.bf16.msra.mxu0 %v7196
    %11200 = vmatprep.subr.bf16.mxu0 %v7229
    %11201 = vmatpush1.bf16.msra.mxu0 %v7228
    %11202 = vmatprep.subr.bf16.mxu0 %v7261
    %11203 = vmatpush1.bf16.msra.mxu0 %v7260
    %11204 = vmatprep.subr.bf16.mxu0 %v7293
    %11205 = vmatpush1.bf16.msra.mxu0 %v7292
    %11206 = vmatprep.subr.bf16.mxu0 %v7325
    %11207 = vmatpush1.bf16.msra.mxu0 %v7324
    %11208 = vmatprep.subr.bf16.mxu0 %v7357
    %11209 = vmatpush1.bf16.msra.mxu0 %v7356
    %11210 = vmatprep.subr.bf16.mxu0 %v7389
    %11211 = vmatpush1.bf16.msra.mxu0 %v7388
    %11212 = vmatprep.subr.bf16.mxu0 %v7421
    %11213 = vmatpush1.bf16.msra.mxu0 %v7420
    %11214 = vmatprep.subr.bf16.mxu0 %v7453
    %11215 = vmatpush1.bf16.msra.mxu0 %v7452
    %11216 = vmatprep.subr.bf16.mxu0 %v7485
    %11217 = vmatpush1.bf16.msra.mxu0 %v7484
    %11218 = vmatprep.subr.bf16.mxu0 %v7517
    %11219 = vmatpush1.bf16.msra.mxu0 %v7516
    %11220 = vmatprep.mubr.bf16.mxu0 %v1857
    %11221 = vmatmul.mubr.bf16.gmra.mrb[0].mxu0 %v1856
    %v11222 = vpop.f32.mrb[0].mxu0
    %v11223 = vadd.f32 %v11150, %v11222
    %v11224 = vpop.f32.mrb[0].mxu0
    %v11225 = vadd.f32 %v11152, %v11224
    %v11226 = vpop.f32.mrb[0].mxu0
    %v11227 = vadd.f32 %v11154, %v11226
    %v11228 = vpop.f32.mrb[0].mxu0
    %v11229 = vadd.f32 %v11156, %v11228
    %11230 = vmatprep.mubr.bf16.mxu0 %v1863
    %11231 = vmatmul.mubr.bf16.gmra.mrb[0].mxu0 %v1862
    %v11232 = vpop.f32.mrb[0].mxu0
    %v11233 = vadd.f32 %v11160, %v11232
    %v11234 = vpop.f32.mrb[0].mxu0
    %v11235 = vadd.f32 %v11162, %v11234
    %v11236 = vpop.f32.mrb[0].mxu0
    %v11237 = vadd.f32 %v11164, %v11236
    %v11238 = vpop.f32.mrb[0].mxu0
    %v11239 = vadd.f32 %v11166, %v11238
    %11240 = vmatprep.mubr.bf16.mxu0 %v1869
    %11241 = vmatmul.mubr.bf16.gmra.mrb[0].mxu0 %v1868
    %v11242 = vpop.f32.mrb[0].mxu0
    %v11243 = vadd.f32 %v11170, %v11242
    %v11244 = vpop.f32.mrb[0].mxu0
    %v11245 = vadd.f32 %v11172, %v11244
    %v11246 = vpop.f32.mrb[0].mxu0
    %v11247 = vadd.f32 %v11174, %v11246
    %v11248 = vpop.f32.mrb[0].mxu0
    %v11249 = vadd.f32 %v11176, %v11248
    %11250 = vmatprep.mubr.bf16.mxu0 %v1875
    %11251 = vmatmul.mubr.bf16.gmra.mrb[0].mxu0 %v1874
    %v11252 = vpop.f32.mrb[0].mxu0
    %v11253 = vadd.f32 %v11180, %v11252
    %v11254 = vpop.f32.mrb[0].mxu0
    %v11255 = vadd.f32 %v11182, %v11254
    %v11256 = vpop.f32.mrb[0].mxu0
    %v11257 = vadd.f32 %v11184, %v11256
    %v11258 = vpop.f32.mrb[0].mxu0
    %v11259 = vadd.f32 %v11186, %v11258
    %11260 = vdwg.mxu0
    %11261 = vmatprep.subr.bf16.mxu0 %v7549
    %11262 = vmatpush1.bf16.msra.mxu0 %v7548
    %11263 = vmatprep.subr.bf16.mxu0 %v7581
    %11264 = vmatpush1.bf16.msra.mxu0 %v7580
    %11265 = vmatprep.subr.bf16.mxu0 %v7613
    %11266 = vmatpush1.bf16.msra.mxu0 %v7612
    %11267 = vmatprep.subr.bf16.mxu0 %v7645
    %11268 = vmatpush1.bf16.msra.mxu0 %v7644
    %11269 = vmatprep.subr.bf16.mxu0 %v7677
    %11270 = vmatpush1.bf16.msra.mxu0 %v7676
    %11271 = vmatprep.subr.bf16.mxu0 %v7709
    %11272 = vmatpush1.bf16.msra.mxu0 %v7708
    %11273 = vmatprep.subr.bf16.mxu0 %v7741
    %11274 = vmatpush1.bf16.msra.mxu0 %v7740
    %11275 = vmatprep.subr.bf16.mxu0 %v7773
    %11276 = vmatpush1.bf16.msra.mxu0 %v7772
    %11277 = vmatprep.subr.bf16.mxu0 %v7805
    %11278 = vmatpush1.bf16.msra.mxu0 %v7804
    %11279 = vmatprep.subr.bf16.mxu0 %v7837
    %11280 = vmatpush1.bf16.msra.mxu0 %v7836
    %11281 = vmatprep.subr.bf16.mxu0 %v7869
    %11282 = vmatpush1.bf16.msra.mxu0 %v7868
    %11283 = vmatprep.subr.bf16.mxu0 %v7901
    %11284 = vmatpush1.bf16.msra.mxu0 %v7900
    %11285 = vmatprep.subr.bf16.mxu0 %v7933
    %11286 = vmatpush1.bf16.msra.mxu0 %v7932
    %11287 = vmatprep.subr.bf16.mxu0 %v7965
    %11288 = vmatpush1.bf16.msra.mxu0 %v7964
    %11289 = vmatprep.subr.bf16.mxu0 %v7997
    %11290 = vmatpush1.bf16.msra.mxu0 %v7996
    %11291 = vmatprep.subr.bf16.mxu0 %v8029
    %11292 = vmatpush1.bf16.msra.mxu0 %v8028
    %11293 = vmatprep.mubr.bf16.mxu0 %v1859
    %11294 = vmatmul.mubr.bf16.gmra.mrb[0].mxu0 %v1858
    %v11295 = vpop.f32.mrb[0].mxu0
    %v11296 = vadd.f32 %v11223, %v11295
    %v11297 = vpop.f32.mrb[0].mxu0
    %v11298 = vadd.f32 %v11225, %v11297
    %v11299 = vpop.f32.mrb[0].mxu0
    %v11300 = vadd.f32 %v11227, %v11299
    %v11301 = vpop.f32.mrb[0].mxu0
    %v11302 = vadd.f32 %v11229, %v11301
    %11303 = vmatprep.mubr.bf16.mxu0 %v1865
    %11304 = vmatmul.mubr.bf16.gmra.mrb[0].mxu0 %v1864
    %v11305 = vpop.f32.mrb[0].mxu0
    %v11306 = vadd.f32 %v11233, %v11305
    %v11307 = vpop.f32.mrb[0].mxu0
    %v11308 = vadd.f32 %v11235, %v11307
    %v11309 = vpop.f32.mrb[0].mxu0
    %v11310 = vadd.f32 %v11237, %v11309
    %v11311 = vpop.f32.mrb[0].mxu0
    %v11312 = vadd.f32 %v11239, %v11311
    %11313 = vmatprep.mubr.bf16.mxu0 %v1871
    %11314 = vmatmul.mubr.bf16.gmra.mrb[0].mxu0 %v1870
    %v11315 = vpop.f32.mrb[0].mxu0
    %v11316 = vadd.f32 %v11243, %v11315
    %v11317 = vpop.f32.mrb[0].mxu0
    %v11318 = vadd.f32 %v11245, %v11317
    %v11319 = vpop.f32.mrb[0].mxu0
    %v11320 = vadd.f32 %v11247, %v11319
    %v11321 = vpop.f32.mrb[0].mxu0
    %v11322 = vadd.f32 %v11249, %v11321
    %11323 = vmatprep.mubr.bf16.mxu0 %v1877
    %11324 = vmatmul.mubr.bf16.gmra.mrb[0].mxu0 %v1876
    %v11325 = vpop.f32.mrb[0].mxu0
    %v11326 = vadd.f32 %v11253, %v11325
    %v11327 = vpop.f32.mrb[0].mxu0
    %v11328 = vadd.f32 %v11255, %v11327
    %v11329 = vpop.f32.mrb[0].mxu0
    %v11330 = vadd.f32 %v11257, %v11329
    %v11331 = vpop.f32.mrb[0].mxu0
    %v11332 = vadd.f32 %v11259, %v11331
    %11333 = vdwg.mxu0
    %11334 = vmatprep.subr.bf16.mxu0 %v6527
    %11335 = vmatpush1.bf16.msra.mxu0 %v6526
    %11336 = vmatprep.subr.bf16.mxu0 %v6559
    %11337 = vmatpush1.bf16.msra.mxu0 %v6558
    %11338 = vmatprep.subr.bf16.mxu0 %v6591
    %11339 = vmatpush1.bf16.msra.mxu0 %v6590
    %11340 = vmatprep.subr.bf16.mxu0 %v6623
    %11341 = vmatpush1.bf16.msra.mxu0 %v6622
    %11342 = vmatprep.subr.bf16.mxu0 %v6655
    %11343 = vmatpush1.bf16.msra.mxu0 %v6654
    %11344 = vmatprep.subr.bf16.mxu0 %v6687
    %11345 = vmatpush1.bf16.msra.mxu0 %v6686
    %11346 = vmatprep.subr.bf16.mxu0 %v6719
    %11347 = vmatpush1.bf16.msra.mxu0 %v6718
    %11348 = vmatprep.subr.bf16.mxu0 %v6751
    %11349 = vmatpush1.bf16.msra.mxu0 %v6750
    %11350 = vmatprep.subr.bf16.mxu0 %v6783
    %11351 = vmatpush1.bf16.msra.mxu0 %v6782
    %11352 = vmatprep.subr.bf16.mxu0 %v6815
    %11353 = vmatpush1.bf16.msra.mxu0 %v6814
    %11354 = vmatprep.subr.bf16.mxu0 %v6847
    %11355 = vmatpush1.bf16.msra.mxu0 %v6846
    %11356 = vmatprep.subr.bf16.mxu0 %v6879
    %11357 = vmatpush1.bf16.msra.mxu0 %v6878
    %11358 = vmatprep.subr.bf16.mxu0 %v6911
    %11359 = vmatpush1.bf16.msra.mxu0 %v6910
    %11360 = vmatprep.subr.bf16.mxu0 %v6943
    %11361 = vmatpush1.bf16.msra.mxu0 %v6942
    %11362 = vmatprep.subr.bf16.mxu0 %v6975
    %11363 = vmatpush1.bf16.msra.mxu0 %v6974
    %11364 = vmatprep.subr.bf16.mxu0 %v7007
    %11365 = vmatpush1.bf16.msra.mxu0 %v7006
    %11366 = vmatprep.mubr.bf16.mxu0 %v1855
    %11367 = vmatmul.mubr.bf16.gmra.mrb[0].mxu0 %v1854
    %v11368 = vpop.f32.mrb[0].mxu0
    %v11369 = vadd.f32 %v1689, %v11368
    %v11370 = vpop.f32.mrb[0].mxu0
    %v11371 = vadd.f32 %v1693, %v11370
    %v11372 = vpop.f32.mrb[0].mxu0
    %v11373 = vadd.f32 %v1689, %v11372
    %v11374 = vpop.f32.mrb[0].mxu0
    %v11375 = vadd.f32 %v1693, %v11374
    %11376 = vmatprep.mubr.bf16.mxu0 %v1861
    %11377 = vmatmul.mubr.bf16.gmra.mrb[0].mxu0 %v1860
    %v11378 = vpop.f32.mrb[0].mxu0
    %v11379 = vadd.f32 %v1689, %v11378
    %v11380 = vpop.f32.mrb[0].mxu0
    %v11381 = vadd.f32 %v1693, %v11380
    %v11382 = vpop.f32.mrb[0].mxu0
    %v11383 = vadd.f32 %v1689, %v11382
    %v11384 = vpop.f32.mrb[0].mxu0
    %v11385 = vadd.f32 %v1693, %v11384
    %11386 = vmatprep.mubr.bf16.mxu0 %v1867
    %11387 = vmatmul.mubr.bf16.gmra.mrb[0].mxu0 %v1866
    %v11388 = vpop.f32.mrb[0].mxu0
    %v11389 = vadd.f32 %v1689, %v11388
    %v11390 = vpop.f32.mrb[0].mxu0
    %v11391 = vadd.f32 %v1693, %v11390
    %v11392 = vpop.f32.mrb[0].mxu0
    %v11393 = vadd.f32 %v1689, %v11392
    %v11394 = vpop.f32.mrb[0].mxu0
    %v11395 = vadd.f32 %v1693, %v11394
    %11396 = vmatprep.mubr.bf16.mxu0 %v1873
    %11397 = vmatmul.mubr.bf16.gmra.mrb[0].mxu0 %v1872
    %v11398 = vpop.f32.mrb[0].mxu0
    %v11399 = vadd.f32 %v1689, %v11398
    %v11400 = vpop.f32.mrb[0].mxu0
    %v11401 = vadd.f32 %v1693, %v11400
    %v11402 = vpop.f32.mrb[0].mxu0
    %v11403 = vadd.f32 %v1689, %v11402
    %v11404 = vpop.f32.mrb[0].mxu0
    %v11405 = vadd.f32 %v1693, %v11404
    %11406 = vdwg.mxu0
    %11407 = vmatprep.subr.bf16.mxu0 %v7039
    %11408 = vmatpush1.bf16.msra.mxu0 %v7038
    %11409 = vmatprep.subr.bf16.mxu0 %v7071
    %11410 = vmatpush1.bf16.msra.mxu0 %v7070
    %11411 = vmatprep.subr.bf16.mxu0 %v7103
    %11412 = vmatpush1.bf16.msra.mxu0 %v7102
    %11413 = vmatprep.subr.bf16.mxu0 %v7135
    %11414 = vmatpush1.bf16.msra.mxu0 %v7134
    %11415 = vmatprep.subr.bf16.mxu0 %v7167
    %11416 = vmatpush1.bf16.msra.mxu0 %v7166
    %11417 = vmatprep.subr.bf16.mxu0 %v7199
    %11418 = vmatpush1.bf16.msra.mxu0 %v7198
    %11419 = vmatprep.subr.bf16.mxu0 %v7231
    %11420 = vmatpush1.bf16.msra.mxu0 %v7230
    %11421 = vmatprep.subr.bf16.mxu0 %v7263
    %11422 = vmatpush1.bf16.msra.mxu0 %v7262
    %11423 = vmatprep.subr.bf16.mxu0 %v7295
    %11424 = vmatpush1.bf16.msra.mxu0 %v7294
    %11425 = vmatprep.subr.bf16.mxu0 %v7327
    %11426 = vmatpush1.bf16.msra.mxu0 %v7326
    %11427 = vmatprep.subr.bf16.mxu0 %v7359
    %11428 = vmatpush1.bf16.msra.mxu0 %v7358
    %11429 = vmatprep.subr.bf16.mxu0 %v7391
    %11430 = vmatpush1.bf16.msra.mxu0 %v7390
    %11431 = vmatprep.subr.bf16.mxu0 %v7423
    %11432 = vmatpush1.bf16.msra.mxu0 %v7422
    %11433 = vmatprep.subr.bf16.mxu0 %v7455
    %11434 = vmatpush1.bf16.msra.mxu0 %v7454
    %11435 = vmatprep.subr.bf16.mxu0 %v7487
    %11436 = vmatpush1.bf16.msra.mxu0 %v7486
    %11437 = vmatprep.subr.bf16.mxu0 %v7519
    %11438 = vmatpush1.bf16.msra.mxu0 %v7518
    %11439 = vmatprep.mubr.bf16.mxu0 %v1857
    %11440 = vmatmul.mubr.bf16.gmra.mrb[0].mxu0 %v1856
    %v11441 = vpop.f32.mrb[0].mxu0
    %v11442 = vadd.f32 %v11369, %v11441
    %v11443 = vpop.f32.mrb[0].mxu0
    %v11444 = vadd.f32 %v11371, %v11443
    %v11445 = vpop.f32.mrb[0].mxu0
    %v11446 = vadd.f32 %v11373, %v11445
    %v11447 = vpop.f32.mrb[0].mxu0
    %v11448 = vadd.f32 %v11375, %v11447
    %11449 = vmatprep.mubr.bf16.mxu0 %v1863
    %11450 = vmatmul.mubr.bf16.gmra.mrb[0].mxu0 %v1862
    %v11451 = vpop.f32.mrb[0].mxu0
    %v11452 = vadd.f32 %v11379, %v11451
    %v11453 = vpop.f32.mrb[0].mxu0
    %v11454 = vadd.f32 %v11381, %v11453
    %v11455 = vpop.f32.mrb[0].mxu0
    %v11456 = vadd.f32 %v11383, %v11455
    %v11457 = vpop.f32.mrb[0].mxu0
    %v11458 = vadd.f32 %v11385, %v11457
    %11459 = vmatprep.mubr.bf16.mxu0 %v1869
    %11460 = vmatmul.mubr.bf16.gmra.mrb[0].mxu0 %v1868
    %v11461 = vpop.f32.mrb[0].mxu0
    %v11462 = vadd.f32 %v11389, %v11461
    %v11463 = vpop.f32.mrb[0].mxu0
    %v11464 = vadd.f32 %v11391, %v11463
    %v11465 = vpop.f32.mrb[0].mxu0
    %v11466 = vadd.f32 %v11393, %v11465
    %v11467 = vpop.f32.mrb[0].mxu0
    %v11468 = vadd.f32 %v11395, %v11467
    %11469 = vmatprep.mubr.bf16.mxu0 %v1875
    %11470 = vmatmul.mubr.bf16.gmra.mrb[0].mxu0 %v1874
    %v11471 = vpop.f32.mrb[0].mxu0
    %v11472 = vadd.f32 %v11399, %v11471
    %v11473 = vpop.f32.mrb[0].mxu0
    %v11474 = vadd.f32 %v11401, %v11473
    %v11475 = vpop.f32.mrb[0].mxu0
    %v11476 = vadd.f32 %v11403, %v11475
    %v11477 = vpop.f32.mrb[0].mxu0
    %v11478 = vadd.f32 %v11405, %v11477
    %11479 = vdwg.mxu0
    %11480 = vmatprep.subr.bf16.mxu0 %v7551
    %11481 = vmatpush1.bf16.msra.mxu0 %v7550
    %11482 = vmatprep.subr.bf16.mxu0 %v7583
    %11483 = vmatpush1.bf16.msra.mxu0 %v7582
    %11484 = vmatprep.subr.bf16.mxu0 %v7615
    %11485 = vmatpush1.bf16.msra.mxu0 %v7614
    %11486 = vmatprep.subr.bf16.mxu0 %v7647
    %11487 = vmatpush1.bf16.msra.mxu0 %v7646
    %11488 = vmatprep.subr.bf16.mxu0 %v7679
    %11489 = vmatpush1.bf16.msra.mxu0 %v7678
    %11490 = vmatprep.subr.bf16.mxu0 %v7711
    %11491 = vmatpush1.bf16.msra.mxu0 %v7710
    %11492 = vmatprep.subr.bf16.mxu0 %v7743
    %11493 = vmatpush1.bf16.msra.mxu0 %v7742
    %11494 = vmatprep.subr.bf16.mxu0 %v7775
    %11495 = vmatpush1.bf16.msra.mxu0 %v7774
    %11496 = vmatprep.subr.bf16.mxu0 %v7807
    %11497 = vmatpush1.bf16.msra.mxu0 %v7806
    %11498 = vmatprep.subr.bf16.mxu0 %v7839
    %11499 = vmatpush1.bf16.msra.mxu0 %v7838
    %11500 = vmatprep.subr.bf16.mxu0 %v7871
    %11501 = vmatpush1.bf16.msra.mxu0 %v7870
    %11502 = vmatprep.subr.bf16.mxu0 %v7903
    %11503 = vmatpush1.bf16.msra.mxu0 %v7902
    %11504 = vmatprep.subr.bf16.mxu0 %v7935
    %11505 = vmatpush1.bf16.msra.mxu0 %v7934
    %11506 = vmatprep.subr.bf16.mxu0 %v7967
    %11507 = vmatpush1.bf16.msra.mxu0 %v7966
    %11508 = vmatprep.subr.bf16.mxu0 %v7999
    %11509 = vmatpush1.bf16.msra.mxu0 %v7998
    %11510 = vmatprep.subr.bf16.mxu0 %v8031
    %11511 = vmatpush1.bf16.msra.mxu0 %v8030
    %11512 = vmatprep.mubr.bf16.mxu0 %v1859
    %11513 = vmatmul.mubr.bf16.gmra.mrb[0].mxu0 %v1858
    %v11514 = vpop.f32.mrb[0].mxu0
    %v11515 = vadd.f32 %v11442, %v11514
    %v11516 = vpop.f32.mrb[0].mxu0
    %v11517 = vadd.f32 %v11444, %v11516
    %v11518 = vpop.f32.mrb[0].mxu0
    %v11519 = vadd.f32 %v11446, %v11518
    %v11520 = vpop.f32.mrb[0].mxu0
    %v11521 = vadd.f32 %v11448, %v11520
    %11522 = vmatprep.mubr.bf16.mxu0 %v1865
    %11523 = vmatmul.mubr.bf16.gmra.mrb[0].mxu0 %v1864
    %v11524 = vpop.f32.mrb[0].mxu0
    %v11525 = vadd.f32 %v11452, %v11524
    %v11526 = vpop.f32.mrb[0].mxu0
    %v11527 = vadd.f32 %v11454, %v11526
    %v11528 = vpop.f32.mrb[0].mxu0
    %v11529 = vadd.f32 %v11456, %v11528
    %v11530 = vpop.f32.mrb[0].mxu0
    %v11531 = vadd.f32 %v11458, %v11530
    %11532 = vmatprep.mubr.bf16.mxu0 %v1871
    %11533 = vmatmul.mubr.bf16.gmra.mrb[0].mxu0 %v1870
    %v11534 = vpop.f32.mrb[0].mxu0
    %v11535 = vadd.f32 %v11462, %v11534
    %v11536 = vpop.f32.mrb[0].mxu0
    %v11537 = vadd.f32 %v11464, %v11536
    %v11538 = vpop.f32.mrb[0].mxu0
    %v11539 = vadd.f32 %v11466, %v11538
    %v11540 = vpop.f32.mrb[0].mxu0
    %v11541 = vadd.f32 %v11468, %v11540
    %11542 = vmatprep.mubr.bf16.mxu0 %v1877
    %11543 = vmatmul.mubr.bf16.gmra.mrb[0].mxu0 %v1876
    %v11544 = vpop.f32.mrb[0].mxu0
    %v11545 = vadd.f32 %v11472, %v11544
    %v11546 = vpop.f32.mrb[0].mxu0
    %v11547 = vadd.f32 %v11474, %v11546
    %v11548 = vpop.f32.mrb[0].mxu0
    %v11549 = vadd.f32 %v11476, %v11548
    %v11550 = vpop.f32.mrb[0].mxu0
    %v11551 = vadd.f32 %v11478, %v11550
    %11552 = vdwg.mxu0
    %11553 = vmatprep.subr.bf16.mxu0 %v6529
    %11554 = vmatpush1.bf16.msra.mxu0 %v6528
    %11555 = vmatprep.subr.bf16.mxu0 %v6561
    %11556 = vmatpush1.bf16.msra.mxu0 %v6560
    %11557 = vmatprep.subr.bf16.mxu0 %v6593
    %11558 = vmatpush1.bf16.msra.mxu0 %v6592
    %11559 = vmatprep.subr.bf16.mxu0 %v6625
    %11560 = vmatpush1.bf16.msra.mxu0 %v6624
    %11561 = vmatprep.subr.bf16.mxu0 %v6657
    %11562 = vmatpush1.bf16.msra.mxu0 %v6656
    %11563 = vmatprep.subr.bf16.mxu0 %v6689
    %11564 = vmatpush1.bf16.msra.mxu0 %v6688
    %11565 = vmatprep.subr.bf16.mxu0 %v6721
    %11566 = vmatpush1.bf16.msra.mxu0 %v6720
    %11567 = vmatprep.subr.bf16.mxu0 %v6753
    %11568 = vmatpush1.bf16.msra.mxu0 %v6752
    %11569 = vmatprep.subr.bf16.mxu0 %v6785
    %11570 = vmatpush1.bf16.msra.mxu0 %v6784
    %11571 = vmatprep.subr.bf16.mxu0 %v6817
    %11572 = vmatpush1.bf16.msra.mxu0 %v6816
    %11573 = vmatprep.subr.bf16.mxu0 %v6849
    %11574 = vmatpush1.bf16.msra.mxu0 %v6848
    %11575 = vmatprep.subr.bf16.mxu0 %v6881
    %11576 = vmatpush1.bf16.msra.mxu0 %v6880
    %11577 = vmatprep.subr.bf16.mxu0 %v6913
    %11578 = vmatpush1.bf16.msra.mxu0 %v6912
    %11579 = vmatprep.subr.bf16.mxu0 %v6945
    %11580 = vmatpush1.bf16.msra.mxu0 %v6944
    %11581 = vmatprep.subr.bf16.mxu0 %v6977
    %11582 = vmatpush1.bf16.msra.mxu0 %v6976
    %11583 = vmatprep.subr.bf16.mxu0 %v7009
    %11584 = vmatpush1.bf16.msra.mxu0 %v7008
    %11585 = vmatprep.mubr.bf16.mxu0 %v1855
    %11586 = vmatmul.mubr.bf16.gmra.mrb[0].mxu0 %v1854
    %v11587 = vpop.f32.mrb[0].mxu0
    %v11588 = vadd.f32 %v1697, %v11587
    %v11589 = vpop.f32.mrb[0].mxu0
    %v11590 = vadd.f32 %v1701, %v11589
    %v11591 = vpop.f32.mrb[0].mxu0
    %v11592 = vadd.f32 %v1697, %v11591
    %v11593 = vpop.f32.mrb[0].mxu0
    %v11594 = vadd.f32 %v1701, %v11593
    %11595 = vmatprep.mubr.bf16.mxu0 %v1861
    %11596 = vmatmul.mubr.bf16.gmra.mrb[0].mxu0 %v1860
    %v11597 = vpop.f32.mrb[0].mxu0
    %v11598 = vadd.f32 %v1697, %v11597
    %v11599 = vpop.f32.mrb[0].mxu0
    %v11600 = vadd.f32 %v1701, %v11599
    %v11601 = vpop.f32.mrb[0].mxu0
    %v11602 = vadd.f32 %v1697, %v11601
    %v11603 = vpop.f32.mrb[0].mxu0
    %v11604 = vadd.f32 %v1701, %v11603
    %11605 = vmatprep.mubr.bf16.mxu0 %v1867
    %11606 = vmatmul.mubr.bf16.gmra.mrb[0].mxu0 %v1866
    %v11607 = vpop.f32.mrb[0].mxu0
    %v11608 = vadd.f32 %v1697, %v11607
    %v11609 = vpop.f32.mrb[0].mxu0
    %v11610 = vadd.f32 %v1701, %v11609
    %v11611 = vpop.f32.mrb[0].mxu0
    %v11612 = vadd.f32 %v1697, %v11611
    %v11613 = vpop.f32.mrb[0].mxu0
    %v11614 = vadd.f32 %v1701, %v11613
    %11615 = vmatprep.mubr.bf16.mxu0 %v1873
    %11616 = vmatmul.mubr.bf16.gmra.mrb[0].mxu0 %v1872
    %v11617 = vpop.f32.mrb[0].mxu0
    %v11618 = vadd.f32 %v1697, %v11617
    %v11619 = vpop.f32.mrb[0].mxu0
    %v11620 = vadd.f32 %v1701, %v11619
    %v11621 = vpop.f32.mrb[0].mxu0
    %v11622 = vadd.f32 %v1697, %v11621
    %v11623 = vpop.f32.mrb[0].mxu0
    %v11624 = vadd.f32 %v1701, %v11623
    %11625 = vdwg.mxu0
    %11626 = vmatprep.subr.bf16.mxu0 %v7041
    %11627 = vmatpush1.bf16.msra.mxu0 %v7040
    %11628 = vmatprep.subr.bf16.mxu0 %v7073
    %11629 = vmatpush1.bf16.msra.mxu0 %v7072
    %11630 = vmatprep.subr.bf16.mxu0 %v7105
    %11631 = vmatpush1.bf16.msra.mxu0 %v7104
    %11632 = vmatprep.subr.bf16.mxu0 %v7137
    %11633 = vmatpush1.bf16.msra.mxu0 %v7136
    %11634 = vmatprep.subr.bf16.mxu0 %v7169
    %11635 = vmatpush1.bf16.msra.mxu0 %v7168
    %11636 = vmatprep.subr.bf16.mxu0 %v7201
    %11637 = vmatpush1.bf16.msra.mxu0 %v7200
    %11638 = vmatprep.subr.bf16.mxu0 %v7233
    %11639 = vmatpush1.bf16.msra.mxu0 %v7232
    %11640 = vmatprep.subr.bf16.mxu0 %v7265
    %11641 = vmatpush1.bf16.msra.mxu0 %v7264
    %11642 = vmatprep.subr.bf16.mxu0 %v7297
    %11643 = vmatpush1.bf16.msra.mxu0 %v7296
    %11644 = vmatprep.subr.bf16.mxu0 %v7329
    %11645 = vmatpush1.bf16.msra.mxu0 %v7328
    %11646 = vmatprep.subr.bf16.mxu0 %v7361
    %11647 = vmatpush1.bf16.msra.mxu0 %v7360
    %11648 = vmatprep.subr.bf16.mxu0 %v7393
    %11649 = vmatpush1.bf16.msra.mxu0 %v7392
    %11650 = vmatprep.subr.bf16.mxu0 %v7425
    %11651 = vmatpush1.bf16.msra.mxu0 %v7424
    %11652 = vmatprep.subr.bf16.mxu0 %v7457
    %11653 = vmatpush1.bf16.msra.mxu0 %v7456
    %11654 = vmatprep.subr.bf16.mxu0 %v7489
    %11655 = vmatpush1.bf16.msra.mxu0 %v7488
    %11656 = vmatprep.subr.bf16.mxu0 %v7521
    %11657 = vmatpush1.bf16.msra.mxu0 %v7520
    %11658 = vmatprep.mubr.bf16.mxu0 %v1857
    %11659 = vmatmul.mubr.bf16.gmra.mrb[0].mxu0 %v1856
    %v11660 = vpop.f32.mrb[0].mxu0
    %v11661 = vadd.f32 %v11588, %v11660
    %v11662 = vpop.f32.mrb[0].mxu0
    %v11663 = vadd.f32 %v11590, %v11662
    %v11664 = vpop.f32.mrb[0].mxu0
    %v11665 = vadd.f32 %v11592, %v11664
    %v11666 = vpop.f32.mrb[0].mxu0
    %v11667 = vadd.f32 %v11594, %v11666
    %11668 = vmatprep.mubr.bf16.mxu0 %v1863
    %11669 = vmatmul.mubr.bf16.gmra.mrb[0].mxu0 %v1862
    %v11670 = vpop.f32.mrb[0].mxu0
    %v11671 = vadd.f32 %v11598, %v11670
    %v11672 = vpop.f32.mrb[0].mxu0
    %v11673 = vadd.f32 %v11600, %v11672
    %v11674 = vpop.f32.mrb[0].mxu0
    %v11675 = vadd.f32 %v11602, %v11674
    %v11676 = vpop.f32.mrb[0].mxu0
    %v11677 = vadd.f32 %v11604, %v11676
    %11678 = vmatprep.mubr.bf16.mxu0 %v1869
    %11679 = vmatmul.mubr.bf16.gmra.mrb[0].mxu0 %v1868
    %v11680 = vpop.f32.mrb[0].mxu0
    %v11681 = vadd.f32 %v11608, %v11680
    %v11682 = vpop.f32.mrb[0].mxu0
    %v11683 = vadd.f32 %v11610, %v11682
    %v11684 = vpop.f32.mrb[0].mxu0
    %v11685 = vadd.f32 %v11612, %v11684
    %v11686 = vpop.f32.mrb[0].mxu0
    %v11687 = vadd.f32 %v11614, %v11686
    %11688 = vmatprep.mubr.bf16.mxu0 %v1875
    %11689 = vmatmul.mubr.bf16.gmra.mrb[0].mxu0 %v1874
    %v11690 = vpop.f32.mrb[0].mxu0
    %v11691 = vadd.f32 %v11618, %v11690
    %v11692 = vpop.f32.mrb[0].mxu0
    %v11693 = vadd.f32 %v11620, %v11692
    %v11694 = vpop.f32.mrb[0].mxu0
    %v11695 = vadd.f32 %v11622, %v11694
    %v11696 = vpop.f32.mrb[0].mxu0
    %v11697 = vadd.f32 %v11624, %v11696
    %11698 = vdwg.mxu0
    %11699 = vmatprep.subr.bf16.mxu0 %v7553
    %11700 = vmatpush1.bf16.msra.mxu0 %v7552
    %11701 = vmatprep.subr.bf16.mxu0 %v7585
    %11702 = vmatpush1.bf16.msra.mxu0 %v7584
    %11703 = vmatprep.subr.bf16.mxu0 %v7617
    %11704 = vmatpush1.bf16.msra.mxu0 %v7616
    %11705 = vmatprep.subr.bf16.mxu0 %v7649
    %11706 = vmatpush1.bf16.msra.mxu0 %v7648
    %11707 = vmatprep.subr.bf16.mxu0 %v7681
    %11708 = vmatpush1.bf16.msra.mxu0 %v7680
    %11709 = vmatprep.subr.bf16.mxu0 %v7713
    %11710 = vmatpush1.bf16.msra.mxu0 %v7712
    %11711 = vmatprep.subr.bf16.mxu0 %v7745
    %11712 = vmatpush1.bf16.msra.mxu0 %v7744
    %11713 = vmatprep.subr.bf16.mxu0 %v7777
    %11714 = vmatpush1.bf16.msra.mxu0 %v7776
    %11715 = vmatprep.subr.bf16.mxu0 %v7809
    %11716 = vmatpush1.bf16.msra.mxu0 %v7808
    %11717 = vmatprep.subr.bf16.mxu0 %v7841
    %11718 = vmatpush1.bf16.msra.mxu0 %v7840
    %11719 = vmatprep.subr.bf16.mxu0 %v7873
    %11720 = vmatpush1.bf16.msra.mxu0 %v7872
    %11721 = vmatprep.subr.bf16.mxu0 %v7905
    %11722 = vmatpush1.bf16.msra.mxu0 %v7904
    %11723 = vmatprep.subr.bf16.mxu0 %v7937
    %11724 = vmatpush1.bf16.msra.mxu0 %v7936
    %11725 = vmatprep.subr.bf16.mxu0 %v7969
    %11726 = vmatpush1.bf16.msra.mxu0 %v7968
    %11727 = vmatprep.subr.bf16.mxu0 %v8001
    %11728 = vmatpush1.bf16.msra.mxu0 %v8000
    %11729 = vmatprep.subr.bf16.mxu0 %v8033
    %11730 = vmatpush1.bf16.msra.mxu0 %v8032
    %11731 = vmatprep.mubr.bf16.mxu0 %v1859
    %11732 = vmatmul.mubr.bf16.gmra.mrb[0].mxu0 %v1858
    %v11733 = vpop.f32.mrb[0].mxu0
    %v11734 = vadd.f32 %v11661, %v11733
    %v11735 = vpop.f32.mrb[0].mxu0
    %v11736 = vadd.f32 %v11663, %v11735
    %v11737 = vpop.f32.mrb[0].mxu0
    %v11738 = vadd.f32 %v11665, %v11737
    %v11739 = vpop.f32.mrb[0].mxu0
    %v11740 = vadd.f32 %v11667, %v11739
    %11741 = vmatprep.mubr.bf16.mxu0 %v1865
    %11742 = vmatmul.mubr.bf16.gmra.mrb[0].mxu0 %v1864
    %v11743 = vpop.f32.mrb[0].mxu0
    %v11744 = vadd.f32 %v11671, %v11743
    %v11745 = vpop.f32.mrb[0].mxu0
    %v11746 = vadd.f32 %v11673, %v11745
    %v11747 = vpop.f32.mrb[0].mxu0
    %v11748 = vadd.f32 %v11675, %v11747
    %v11749 = vpop.f32.mrb[0].mxu0
    %v11750 = vadd.f32 %v11677, %v11749
    %11751 = vmatprep.mubr.bf16.mxu0 %v1871
    %11752 = vmatmul.mubr.bf16.gmra.mrb[0].mxu0 %v1870
    %v11753 = vpop.f32.mrb[0].mxu0
    %v11754 = vadd.f32 %v11681, %v11753
    %v11755 = vpop.f32.mrb[0].mxu0
    %v11756 = vadd.f32 %v11683, %v11755
    %v11757 = vpop.f32.mrb[0].mxu0
    %v11758 = vadd.f32 %v11685, %v11757
    %v11759 = vpop.f32.mrb[0].mxu0
    %v11760 = vadd.f32 %v11687, %v11759
    %11761 = vmatprep.mubr.bf16.mxu0 %v1877
    %11762 = vmatmul.mubr.bf16.gmra.mrb[0].mxu0 %v1876
    %v11763 = vpop.f32.mrb[0].mxu0
    %v11764 = vadd.f32 %v11691, %v11763
    %v11765 = vpop.f32.mrb[0].mxu0
    %v11766 = vadd.f32 %v11693, %v11765
    %v11767 = vpop.f32.mrb[0].mxu0
    %v11768 = vadd.f32 %v11695, %v11767
    %v11769 = vpop.f32.mrb[0].mxu0
    %v11770 = vadd.f32 %v11697, %v11769
    %11771 = vdwg.mxu0
    %11772 = vmatprep.subr.bf16.mxu0 %v6531
    %11773 = vmatpush1.bf16.msra.mxu0 %v6530
    %11774 = vmatprep.subr.bf16.mxu0 %v6563
    %11775 = vmatpush1.bf16.msra.mxu0 %v6562
    %11776 = vmatprep.subr.bf16.mxu0 %v6595
    %11777 = vmatpush1.bf16.msra.mxu0 %v6594
    %11778 = vmatprep.subr.bf16.mxu0 %v6627
    %11779 = vmatpush1.bf16.msra.mxu0 %v6626
    %11780 = vmatprep.subr.bf16.mxu0 %v6659
    %11781 = vmatpush1.bf16.msra.mxu0 %v6658
    %11782 = vmatprep.subr.bf16.mxu0 %v6691
    %11783 = vmatpush1.bf16.msra.mxu0 %v6690
    %11784 = vmatprep.subr.bf16.mxu0 %v6723
    %11785 = vmatpush1.bf16.msra.mxu0 %v6722
    %11786 = vmatprep.subr.bf16.mxu0 %v6755
    %11787 = vmatpush1.bf16.msra.mxu0 %v6754
    %11788 = vmatprep.subr.bf16.mxu0 %v6787
    %11789 = vmatpush1.bf16.msra.mxu0 %v6786
    %11790 = vmatprep.subr.bf16.mxu0 %v6819
    %11791 = vmatpush1.bf16.msra.mxu0 %v6818
    %11792 = vmatprep.subr.bf16.mxu0 %v6851
    %11793 = vmatpush1.bf16.msra.mxu0 %v6850
    %11794 = vmatprep.subr.bf16.mxu0 %v6883
    %11795 = vmatpush1.bf16.msra.mxu0 %v6882
    %11796 = vmatprep.subr.bf16.mxu0 %v6915
    %11797 = vmatpush1.bf16.msra.mxu0 %v6914
    %11798 = vmatprep.subr.bf16.mxu0 %v6947
    %11799 = vmatpush1.bf16.msra.mxu0 %v6946
    %11800 = vmatprep.subr.bf16.mxu0 %v6979
    %11801 = vmatpush1.bf16.msra.mxu0 %v6978
    %11802 = vmatprep.subr.bf16.mxu0 %v7011
    %11803 = vmatpush1.bf16.msra.mxu0 %v7010
    %11804 = vmatprep.mubr.bf16.mxu0 %v1855
    %11805 = vmatmul.mubr.bf16.gmra.mrb[0].mxu0 %v1854
    %v11806 = vpop.f32.mrb[0].mxu0
    %v11807 = vadd.f32 %v1705, %v11806
    %v11808 = vpop.f32.mrb[0].mxu0
    %v11809 = vadd.f32 %v1709, %v11808
    %v11810 = vpop.f32.mrb[0].mxu0
    %v11811 = vadd.f32 %v1705, %v11810
    %v11812 = vpop.f32.mrb[0].mxu0
    %v11813 = vadd.f32 %v1709, %v11812
    %11814 = vmatprep.mubr.bf16.mxu0 %v1861
    %11815 = vmatmul.mubr.bf16.gmra.mrb[0].mxu0 %v1860
    %v11816 = vpop.f32.mrb[0].mxu0
    %v11817 = vadd.f32 %v1705, %v11816
    %v11818 = vpop.f32.mrb[0].mxu0
    %v11819 = vadd.f32 %v1709, %v11818
    %v11820 = vpop.f32.mrb[0].mxu0
    %v11821 = vadd.f32 %v1705, %v11820
    %v11822 = vpop.f32.mrb[0].mxu0
    %v11823 = vadd.f32 %v1709, %v11822
    %11824 = vmatprep.mubr.bf16.mxu0 %v1867
    %11825 = vmatmul.mubr.bf16.gmra.mrb[0].mxu0 %v1866
    %v11826 = vpop.f32.mrb[0].mxu0
    %v11827 = vadd.f32 %v1705, %v11826
    %v11828 = vpop.f32.mrb[0].mxu0
    %v11829 = vadd.f32 %v1709, %v11828
    %v11830 = vpop.f32.mrb[0].mxu0
    %v11831 = vadd.f32 %v1705, %v11830
    %v11832 = vpop.f32.mrb[0].mxu0
    %v11833 = vadd.f32 %v1709, %v11832
    %11834 = vmatprep.mubr.bf16.mxu0 %v1873
    %11835 = vmatmul.mubr.bf16.gmra.mrb[0].mxu0 %v1872
    %v11836 = vpop.f32.mrb[0].mxu0
    %v11837 = vadd.f32 %v1705, %v11836
    %v11838 = vpop.f32.mrb[0].mxu0
    %v11839 = vadd.f32 %v1709, %v11838
    %v11840 = vpop.f32.mrb[0].mxu0
    %v11841 = vadd.f32 %v1705, %v11840
    %v11842 = vpop.f32.mrb[0].mxu0
    %v11843 = vadd.f32 %v1709, %v11842
    %11844 = vdwg.mxu0
    %11845 = vmatprep.subr.bf16.mxu0 %v7043
    %11846 = vmatpush1.bf16.msra.mxu0 %v7042
    %11847 = vmatprep.subr.bf16.mxu0 %v7075
    %11848 = vmatpush1.bf16.msra.mxu0 %v7074
    %11849 = vmatprep.subr.bf16.mxu0 %v7107
    %11850 = vmatpush1.bf16.msra.mxu0 %v7106
    %11851 = vmatprep.subr.bf16.mxu0 %v7139
    %11852 = vmatpush1.bf16.msra.mxu0 %v7138
    %11853 = vmatprep.subr.bf16.mxu0 %v7171
    %11854 = vmatpush1.bf16.msra.mxu0 %v7170
    %11855 = vmatprep.subr.bf16.mxu0 %v7203
    %11856 = vmatpush1.bf16.msra.mxu0 %v7202
    %11857 = vmatprep.subr.bf16.mxu0 %v7235
    %11858 = vmatpush1.bf16.msra.mxu0 %v7234
    %11859 = vmatprep.subr.bf16.mxu0 %v7267
    %11860 = vmatpush1.bf16.msra.mxu0 %v7266
    %11861 = vmatprep.subr.bf16.mxu0 %v7299
    %11862 = vmatpush1.bf16.msra.mxu0 %v7298
    %11863 = vmatprep.subr.bf16.mxu0 %v7331
    %11864 = vmatpush1.bf16.msra.mxu0 %v7330
    %11865 = vmatprep.subr.bf16.mxu0 %v7363
    %11866 = vmatpush1.bf16.msra.mxu0 %v7362
    %11867 = vmatprep.subr.bf16.mxu0 %v7395
    %11868 = vmatpush1.bf16.msra.mxu0 %v7394
    %11869 = vmatprep.subr.bf16.mxu0 %v7427
    %11870 = vmatpush1.bf16.msra.mxu0 %v7426
    %11871 = vmatprep.subr.bf16.mxu0 %v7459
    %11872 = vmatpush1.bf16.msra.mxu0 %v7458
    %11873 = vmatprep.subr.bf16.mxu0 %v7491
    %11874 = vmatpush1.bf16.msra.mxu0 %v7490
    %11875 = vmatprep.subr.bf16.mxu0 %v7523
    %11876 = vmatpush1.bf16.msra.mxu0 %v7522
    %11877 = vmatprep.mubr.bf16.mxu0 %v1857
    %11878 = vmatmul.mubr.bf16.gmra.mrb[0].mxu0 %v1856
    %v11879 = vpop.f32.mrb[0].mxu0
    %v11880 = vadd.f32 %v11807, %v11879
    %v11881 = vpop.f32.mrb[0].mxu0
    %v11882 = vadd.f32 %v11809, %v11881
    %v11883 = vpop.f32.mrb[0].mxu0
    %v11884 = vadd.f32 %v11811, %v11883
    %v11885 = vpop.f32.mrb[0].mxu0
    %v11886 = vadd.f32 %v11813, %v11885
    %11887 = vmatprep.mubr.bf16.mxu0 %v1863
    %11888 = vmatmul.mubr.bf16.gmra.mrb[0].mxu0 %v1862
    %v11889 = vpop.f32.mrb[0].mxu0
    %v11890 = vadd.f32 %v11817, %v11889
    %v11891 = vpop.f32.mrb[0].mxu0
    %v11892 = vadd.f32 %v11819, %v11891
    %v11893 = vpop.f32.mrb[0].mxu0
    %v11894 = vadd.f32 %v11821, %v11893
    %v11895 = vpop.f32.mrb[0].mxu0
    %v11896 = vadd.f32 %v11823, %v11895
    %11897 = vmatprep.mubr.bf16.mxu0 %v1869
    %11898 = vmatmul.mubr.bf16.gmra.mrb[0].mxu0 %v1868
    %v11899 = vpop.f32.mrb[0].mxu0
    %v11900 = vadd.f32 %v11827, %v11899
    %v11901 = vpop.f32.mrb[0].mxu0
    %v11902 = vadd.f32 %v11829, %v11901
    %v11903 = vpop.f32.mrb[0].mxu0
    %v11904 = vadd.f32 %v11831, %v11903
    %v11905 = vpop.f32.mrb[0].mxu0
    %v11906 = vadd.f32 %v11833, %v11905
    %11907 = vmatprep.mubr.bf16.mxu0 %v1875
    %11908 = vmatmul.mubr.bf16.gmra.mrb[0].mxu0 %v1874
    %v11909 = vpop.f32.mrb[0].mxu0
    %v11910 = vadd.f32 %v11837, %v11909
    %v11911 = vpop.f32.mrb[0].mxu0
    %v11912 = vadd.f32 %v11839, %v11911
    %v11913 = vpop.f32.mrb[0].mxu0
    %v11914 = vadd.f32 %v11841, %v11913
    %v11915 = vpop.f32.mrb[0].mxu0
    %v11916 = vadd.f32 %v11843, %v11915
    %11917 = vdwg.mxu0
    %11918 = vmatprep.subr.bf16.mxu0 %v7555
    %11919 = vmatpush1.bf16.msra.mxu0 %v7554
    %11920 = vmatprep.subr.bf16.mxu0 %v7587
    %11921 = vmatpush1.bf16.msra.mxu0 %v7586
    %11922 = vmatprep.subr.bf16.mxu0 %v7619
    %11923 = vmatpush1.bf16.msra.mxu0 %v7618
    %11924 = vmatprep.subr.bf16.mxu0 %v7651
    %11925 = vmatpush1.bf16.msra.mxu0 %v7650
    %11926 = vmatprep.subr.bf16.mxu0 %v7683
    %11927 = vmatpush1.bf16.msra.mxu0 %v7682
    %11928 = vmatprep.subr.bf16.mxu0 %v7715
    %11929 = vmatpush1.bf16.msra.mxu0 %v7714
    %11930 = vmatprep.subr.bf16.mxu0 %v7747
    %11931 = vmatpush1.bf16.msra.mxu0 %v7746
    %11932 = vmatprep.subr.bf16.mxu0 %v7779
    %11933 = vmatpush1.bf16.msra.mxu0 %v7778
    %11934 = vmatprep.subr.bf16.mxu0 %v7811
    %11935 = vmatpush1.bf16.msra.mxu0 %v7810
    %11936 = vmatprep.subr.bf16.mxu0 %v7843
    %11937 = vmatpush1.bf16.msra.mxu0 %v7842
    %11938 = vmatprep.subr.bf16.mxu0 %v7875
    %11939 = vmatpush1.bf16.msra.mxu0 %v7874
    %11940 = vmatprep.subr.bf16.mxu0 %v7907
    %11941 = vmatpush1.bf16.msra.mxu0 %v7906
    %11942 = vmatprep.subr.bf16.mxu0 %v7939
    %11943 = vmatpush1.bf16.msra.mxu0 %v7938
    %11944 = vmatprep.subr.bf16.mxu0 %v7971
    %11945 = vmatpush1.bf16.msra.mxu0 %v7970
    %11946 = vmatprep.subr.bf16.mxu0 %v8003
    %11947 = vmatpush1.bf16.msra.mxu0 %v8002
    %11948 = vmatprep.subr.bf16.mxu0 %v8035
    %11949 = vmatpush1.bf16.msra.mxu0 %v8034
    %11950 = vmatprep.mubr.bf16.mxu0 %v1859
    %11951 = vmatmul.mubr.bf16.gmra.mrb[0].mxu0 %v1858
    %v11952 = vpop.f32.mrb[0].mxu0
    %v11953 = vadd.f32 %v11880, %v11952
    %v11954 = vpop.f32.mrb[0].mxu0
    %v11955 = vadd.f32 %v11882, %v11954
    %v11956 = vpop.f32.mrb[0].mxu0
    %v11957 = vadd.f32 %v11884, %v11956
    %v11958 = vpop.f32.mrb[0].mxu0
    %v11959 = vadd.f32 %v11886, %v11958
    %11960 = vmatprep.mubr.bf16.mxu0 %v1865
    %11961 = vmatmul.mubr.bf16.gmra.mrb[0].mxu0 %v1864
    %v11962 = vpop.f32.mrb[0].mxu0
    %v11963 = vadd.f32 %v11890, %v11962
    %v11964 = vpop.f32.mrb[0].mxu0
    %v11965 = vadd.f32 %v11892, %v11964
    %v11966 = vpop.f32.mrb[0].mxu0
    %v11967 = vadd.f32 %v11894, %v11966
    %v11968 = vpop.f32.mrb[0].mxu0
    %v11969 = vadd.f32 %v11896, %v11968
    %11970 = vmatprep.mubr.bf16.mxu0 %v1871
    %11971 = vmatmul.mubr.bf16.gmra.mrb[0].mxu0 %v1870
    %v11972 = vpop.f32.mrb[0].mxu0
    %v11973 = vadd.f32 %v11900, %v11972
    %v11974 = vpop.f32.mrb[0].mxu0
    %v11975 = vadd.f32 %v11902, %v11974
    %v11976 = vpop.f32.mrb[0].mxu0
    %v11977 = vadd.f32 %v11904, %v11976
    %v11978 = vpop.f32.mrb[0].mxu0
    %v11979 = vadd.f32 %v11906, %v11978
    %11980 = vmatprep.mubr.bf16.mxu0 %v1877
    %11981 = vmatmul.mubr.bf16.gmra.mrb[0].mxu0 %v1876
    %v11982 = vpop.f32.mrb[0].mxu0
    %v11983 = vadd.f32 %v11910, %v11982
    %v11984 = vpop.f32.mrb[0].mxu0
    %v11985 = vadd.f32 %v11912, %v11984
    %v11986 = vpop.f32.mrb[0].mxu0
    %v11987 = vadd.f32 %v11914, %v11986
    %v11988 = vpop.f32.mrb[0].mxu0
    %v11989 = vadd.f32 %v11916, %v11988
    %11990 = vdwg.mxu0
    %11991 = vmatprep.subr.bf16.mxu0 %v6533
    %11992 = vmatpush1.bf16.msra.mxu0 %v6532
    %11993 = vmatprep.subr.bf16.mxu0 %v6565
    %11994 = vmatpush1.bf16.msra.mxu0 %v6564
    %11995 = vmatprep.subr.bf16.mxu0 %v6597
    %11996 = vmatpush1.bf16.msra.mxu0 %v6596
    %11997 = vmatprep.subr.bf16.mxu0 %v6629
    %11998 = vmatpush1.bf16.msra.mxu0 %v6628
    %11999 = vmatprep.subr.bf16.mxu0 %v6661
    %12000 = vmatpush1.bf16.msra.mxu0 %v6660
    %12001 = vmatprep.subr.bf16.mxu0 %v6693
    %12002 = vmatpush1.bf16.msra.mxu0 %v6692
    %12003 = vmatprep.subr.bf16.mxu0 %v6725
    %12004 = vmatpush1.bf16.msra.mxu0 %v6724
    %12005 = vmatprep.subr.bf16.mxu0 %v6757
    %12006 = vmatpush1.bf16.msra.mxu0 %v6756
    %12007 = vmatprep.subr.bf16.mxu0 %v6789
    %12008 = vmatpush1.bf16.msra.mxu0 %v6788
    %12009 = vmatprep.subr.bf16.mxu0 %v6821
    %12010 = vmatpush1.bf16.msra.mxu0 %v6820
    %12011 = vmatprep.subr.bf16.mxu0 %v6853
    %12012 = vmatpush1.bf16.msra.mxu0 %v6852
    %12013 = vmatprep.subr.bf16.mxu0 %v6885
    %12014 = vmatpush1.bf16.msra.mxu0 %v6884
    %12015 = vmatprep.subr.bf16.mxu0 %v6917
    %12016 = vmatpush1.bf16.msra.mxu0 %v6916
    %12017 = vmatprep.subr.bf16.mxu0 %v6949
    %12018 = vmatpush1.bf16.msra.mxu0 %v6948
    %12019 = vmatprep.subr.bf16.mxu0 %v6981
    %12020 = vmatpush1.bf16.msra.mxu0 %v6980
    %12021 = vmatprep.subr.bf16.mxu0 %v7013
    %12022 = vmatpush1.bf16.msra.mxu0 %v7012
    %12023 = vmatprep.mubr.bf16.mxu0 %v1855
    %12024 = vmatmul.mubr.bf16.gmra.mrb[0].mxu0 %v1854
    %v12025 = vpop.f32.mrb[0].mxu0
    %v12026 = vadd.f32 %v1713, %v12025
    %v12027 = vpop.f32.mrb[0].mxu0
    %v12028 = vadd.f32 %v1717, %v12027
    %v12029 = vpop.f32.mrb[0].mxu0
    %v12030 = vadd.f32 %v1713, %v12029
    %v12031 = vpop.f32.mrb[0].mxu0
    %v12032 = vadd.f32 %v1717, %v12031
    %12033 = vmatprep.mubr.bf16.mxu0 %v1861
    %12034 = vmatmul.mubr.bf16.gmra.mrb[0].mxu0 %v1860
    %v12035 = vpop.f32.mrb[0].mxu0
    %v12036 = vadd.f32 %v1713, %v12035
    %v12037 = vpop.f32.mrb[0].mxu0
    %v12038 = vadd.f32 %v1717, %v12037
    %v12039 = vpop.f32.mrb[0].mxu0
    %v12040 = vadd.f32 %v1713, %v12039
    %v12041 = vpop.f32.mrb[0].mxu0
    %v12042 = vadd.f32 %v1717, %v12041
    %12043 = vmatprep.mubr.bf16.mxu0 %v1867
    %12044 = vmatmul.mubr.bf16.gmra.mrb[0].mxu0 %v1866
    %v12045 = vpop.f32.mrb[0].mxu0
    %v12046 = vadd.f32 %v1713, %v12045
    %v12047 = vpop.f32.mrb[0].mxu0
    %v12048 = vadd.f32 %v1717, %v12047
    %v12049 = vpop.f32.mrb[0].mxu0
    %v12050 = vadd.f32 %v1713, %v12049
    %v12051 = vpop.f32.mrb[0].mxu0
    %v12052 = vadd.f32 %v1717, %v12051
    %12053 = vmatprep.mubr.bf16.mxu0 %v1873
    %12054 = vmatmul.mubr.bf16.gmra.mrb[0].mxu0 %v1872
    %v12055 = vpop.f32.mrb[0].mxu0
    %v12056 = vadd.f32 %v1713, %v12055
    %v12057 = vpop.f32.mrb[0].mxu0
    %v12058 = vadd.f32 %v1717, %v12057
    %v12059 = vpop.f32.mrb[0].mxu0
    %v12060 = vadd.f32 %v1713, %v12059
    %v12061 = vpop.f32.mrb[0].mxu0
    %v12062 = vadd.f32 %v1717, %v12061
    %12063 = vdwg.mxu0
    %12064 = vmatprep.subr.bf16.mxu0 %v7045
    %12065 = vmatpush1.bf16.msra.mxu0 %v7044
    %12066 = vmatprep.subr.bf16.mxu0 %v7077
    %12067 = vmatpush1.bf16.msra.mxu0 %v7076
    %12068 = vmatprep.subr.bf16.mxu0 %v7109
    %12069 = vmatpush1.bf16.msra.mxu0 %v7108
    %12070 = vmatprep.subr.bf16.mxu0 %v7141
    %12071 = vmatpush1.bf16.msra.mxu0 %v7140
    %12072 = vmatprep.subr.bf16.mxu0 %v7173
    %12073 = vmatpush1.bf16.msra.mxu0 %v7172
    %12074 = vmatprep.subr.bf16.mxu0 %v7205
    %12075 = vmatpush1.bf16.msra.mxu0 %v7204
    %12076 = vmatprep.subr.bf16.mxu0 %v7237
    %12077 = vmatpush1.bf16.msra.mxu0 %v7236
    %12078 = vmatprep.subr.bf16.mxu0 %v7269
    %12079 = vmatpush1.bf16.msra.mxu0 %v7268
    %12080 = vmatprep.subr.bf16.mxu0 %v7301
    %12081 = vmatpush1.bf16.msra.mxu0 %v7300
    %12082 = vmatprep.subr.bf16.mxu0 %v7333
    %12083 = vmatpush1.bf16.msra.mxu0 %v7332
    %12084 = vmatprep.subr.bf16.mxu0 %v7365
    %12085 = vmatpush1.bf16.msra.mxu0 %v7364
    %12086 = vmatprep.subr.bf16.mxu0 %v7397
    %12087 = vmatpush1.bf16.msra.mxu0 %v7396
    %12088 = vmatprep.subr.bf16.mxu0 %v7429
    %12089 = vmatpush1.bf16.msra.mxu0 %v7428
    %12090 = vmatprep.subr.bf16.mxu0 %v7461
    %12091 = vmatpush1.bf16.msra.mxu0 %v7460
    %12092 = vmatprep.subr.bf16.mxu0 %v7493
    %12093 = vmatpush1.bf16.msra.mxu0 %v7492
    %12094 = vmatprep.subr.bf16.mxu0 %v7525
    %12095 = vmatpush1.bf16.msra.mxu0 %v7524
    %12096 = vmatprep.mubr.bf16.mxu0 %v1857
    %12097 = vmatmul.mubr.bf16.gmra.mrb[0].mxu0 %v1856
    %v12098 = vpop.f32.mrb[0].mxu0
    %v12099 = vadd.f32 %v12026, %v12098
    %v12100 = vpop.f32.mrb[0].mxu0
    %v12101 = vadd.f32 %v12028, %v12100
    %v12102 = vpop.f32.mrb[0].mxu0
    %v12103 = vadd.f32 %v12030, %v12102
    %v12104 = vpop.f32.mrb[0].mxu0
    %v12105 = vadd.f32 %v12032, %v12104
    %12106 = vmatprep.mubr.bf16.mxu0 %v1863
    %12107 = vmatmul.mubr.bf16.gmra.mrb[0].mxu0 %v1862
    %v12108 = vpop.f32.mrb[0].mxu0
    %v12109 = vadd.f32 %v12036, %v12108
    %v12110 = vpop.f32.mrb[0].mxu0
    %v12111 = vadd.f32 %v12038, %v12110
    %v12112 = vpop.f32.mrb[0].mxu0
    %v12113 = vadd.f32 %v12040, %v12112
    %v12114 = vpop.f32.mrb[0].mxu0
    %v12115 = vadd.f32 %v12042, %v12114
    %12116 = vmatprep.mubr.bf16.mxu0 %v1869
    %12117 = vmatmul.mubr.bf16.gmra.mrb[0].mxu0 %v1868
    %v12118 = vpop.f32.mrb[0].mxu0
    %v12119 = vadd.f32 %v12046, %v12118
    %v12120 = vpop.f32.mrb[0].mxu0
    %v12121 = vadd.f32 %v12048, %v12120
    %v12122 = vpop.f32.mrb[0].mxu0
    %v12123 = vadd.f32 %v12050, %v12122
    %v12124 = vpop.f32.mrb[0].mxu0
    %v12125 = vadd.f32 %v12052, %v12124
    %12126 = vmatprep.mubr.bf16.mxu0 %v1875
    %12127 = vmatmul.mubr.bf16.gmra.mrb[0].mxu0 %v1874
    %v12128 = vpop.f32.mrb[0].mxu0
    %v12129 = vadd.f32 %v12056, %v12128
    %v12130 = vpop.f32.mrb[0].mxu0
    %v12131 = vadd.f32 %v12058, %v12130
    %v12132 = vpop.f32.mrb[0].mxu0
    %v12133 = vadd.f32 %v12060, %v12132
    %v12134 = vpop.f32.mrb[0].mxu0
    %v12135 = vadd.f32 %v12062, %v12134
    %12136 = vdwg.mxu0
    %12137 = vmatprep.subr.bf16.mxu0 %v7557
    %12138 = vmatpush1.bf16.msra.mxu0 %v7556
    %12139 = vmatprep.subr.bf16.mxu0 %v7589
    %12140 = vmatpush1.bf16.msra.mxu0 %v7588
    %12141 = vmatprep.subr.bf16.mxu0 %v7621
    %12142 = vmatpush1.bf16.msra.mxu0 %v7620
    %12143 = vmatprep.subr.bf16.mxu0 %v7653
    %12144 = vmatpush1.bf16.msra.mxu0 %v7652
    %12145 = vmatprep.subr.bf16.mxu0 %v7685
    %12146 = vmatpush1.bf16.msra.mxu0 %v7684
    %12147 = vmatprep.subr.bf16.mxu0 %v7717
    %12148 = vmatpush1.bf16.msra.mxu0 %v7716
    %12149 = vmatprep.subr.bf16.mxu0 %v7749
    %12150 = vmatpush1.bf16.msra.mxu0 %v7748
    %12151 = vmatprep.subr.bf16.mxu0 %v7781
    %12152 = vmatpush1.bf16.msra.mxu0 %v7780
    %12153 = vmatprep.subr.bf16.mxu0 %v7813
    %12154 = vmatpush1.bf16.msra.mxu0 %v7812
    %12155 = vmatprep.subr.bf16.mxu0 %v7845
    %12156 = vmatpush1.bf16.msra.mxu0 %v7844
    %12157 = vmatprep.subr.bf16.mxu0 %v7877
    %12158 = vmatpush1.bf16.msra.mxu0 %v7876
    %12159 = vmatprep.subr.bf16.mxu0 %v7909
    %12160 = vmatpush1.bf16.msra.mxu0 %v7908
    %12161 = vmatprep.subr.bf16.mxu0 %v7941
    %12162 = vmatpush1.bf16.msra.mxu0 %v7940
    %12163 = vmatprep.subr.bf16.mxu0 %v7973
    %12164 = vmatpush1.bf16.msra.mxu0 %v7972
    %12165 = vmatprep.subr.bf16.mxu0 %v8005
    %12166 = vmatpush1.bf16.msra.mxu0 %v8004
    %12167 = vmatprep.subr.bf16.mxu0 %v8037
    %12168 = vmatpush1.bf16.msra.mxu0 %v8036
    %12169 = vmatprep.mubr.bf16.mxu0 %v1859
    %12170 = vmatmul.mubr.bf16.gmra.mrb[0].mxu0 %v1858
    %v12171 = vpop.f32.mrb[0].mxu0
    %v12172 = vadd.f32 %v12099, %v12171
    %v12173 = vpop.f32.mrb[0].mxu0
    %v12174 = vadd.f32 %v12101, %v12173
    %v12175 = vpop.f32.mrb[0].mxu0
    %v12176 = vadd.f32 %v12103, %v12175
    %v12177 = vpop.f32.mrb[0].mxu0
    %v12178 = vadd.f32 %v12105, %v12177
    %12179 = vmatprep.mubr.bf16.mxu0 %v1865
    %12180 = vmatmul.mubr.bf16.gmra.mrb[0].mxu0 %v1864
    %v12181 = vpop.f32.mrb[0].mxu0
    %v12182 = vadd.f32 %v12109, %v12181
    %v12183 = vpop.f32.mrb[0].mxu0
    %v12184 = vadd.f32 %v12111, %v12183
    %v12185 = vpop.f32.mrb[0].mxu0
    %v12186 = vadd.f32 %v12113, %v12185
    %v12187 = vpop.f32.mrb[0].mxu0
    %v12188 = vadd.f32 %v12115, %v12187
    %12189 = vmatprep.mubr.bf16.mxu0 %v1871
    %12190 = vmatmul.mubr.bf16.gmra.mrb[0].mxu0 %v1870
    %v12191 = vpop.f32.mrb[0].mxu0
    %v12192 = vadd.f32 %v12119, %v12191
    %v12193 = vpop.f32.mrb[0].mxu0
    %v12194 = vadd.f32 %v12121, %v12193
    %v12195 = vpop.f32.mrb[0].mxu0
    %v12196 = vadd.f32 %v12123, %v12195
    %v12197 = vpop.f32.mrb[0].mxu0
    %v12198 = vadd.f32 %v12125, %v12197
    %12199 = vmatprep.mubr.bf16.mxu0 %v1877
    %12200 = vmatmul.mubr.bf16.gmra.mrb[0].mxu0 %v1876
    %v12201 = vpop.f32.mrb[0].mxu0
    %v12202 = vadd.f32 %v12129, %v12201
    %v12203 = vpop.f32.mrb[0].mxu0
    %v12204 = vadd.f32 %v12131, %v12203
    %v12205 = vpop.f32.mrb[0].mxu0
    %v12206 = vadd.f32 %v12133, %v12205
    %v12207 = vpop.f32.mrb[0].mxu0
    %v12208 = vadd.f32 %v12135, %v12207
    %12209 = vdwg.mxu0
    %12210 = vmatprep.subr.bf16.mxu0 %v6535
    %12211 = vmatpush1.bf16.msra.mxu0 %v6534
    %12212 = vmatprep.subr.bf16.mxu0 %v6567
    %12213 = vmatpush1.bf16.msra.mxu0 %v6566
    %12214 = vmatprep.subr.bf16.mxu0 %v6599
    %12215 = vmatpush1.bf16.msra.mxu0 %v6598
    %12216 = vmatprep.subr.bf16.mxu0 %v6631
    %12217 = vmatpush1.bf16.msra.mxu0 %v6630
    %12218 = vmatprep.subr.bf16.mxu0 %v6663
    %12219 = vmatpush1.bf16.msra.mxu0 %v6662
    %12220 = vmatprep.subr.bf16.mxu0 %v6695
    %12221 = vmatpush1.bf16.msra.mxu0 %v6694
    %12222 = vmatprep.subr.bf16.mxu0 %v6727
    %12223 = vmatpush1.bf16.msra.mxu0 %v6726
    %12224 = vmatprep.subr.bf16.mxu0 %v6759
    %12225 = vmatpush1.bf16.msra.mxu0 %v6758
    %12226 = vmatprep.subr.bf16.mxu0 %v6791
    %12227 = vmatpush1.bf16.msra.mxu0 %v6790
    %12228 = vmatprep.subr.bf16.mxu0 %v6823
    %12229 = vmatpush1.bf16.msra.mxu0 %v6822
    %12230 = vmatprep.subr.bf16.mxu0 %v6855
    %12231 = vmatpush1.bf16.msra.mxu0 %v6854
    %12232 = vmatprep.subr.bf16.mxu0 %v6887
    %12233 = vmatpush1.bf16.msra.mxu0 %v6886
    %12234 = vmatprep.subr.bf16.mxu0 %v6919
    %12235 = vmatpush1.bf16.msra.mxu0 %v6918
    %12236 = vmatprep.subr.bf16.mxu0 %v6951
    %12237 = vmatpush1.bf16.msra.mxu0 %v6950
    %12238 = vmatprep.subr.bf16.mxu0 %v6983
    %12239 = vmatpush1.bf16.msra.mxu0 %v6982
    %12240 = vmatprep.subr.bf16.mxu0 %v7015
    %12241 = vmatpush1.bf16.msra.mxu0 %v7014
    %12242 = vmatprep.mubr.bf16.mxu0 %v1855
    %12243 = vmatmul.mubr.bf16.gmra.mrb[0].mxu0 %v1854
    %v12244 = vpop.f32.mrb[0].mxu0
    %v12245 = vadd.f32 %v1721, %v12244
    %v12246 = vpop.f32.mrb[0].mxu0
    %v12247 = vadd.f32 %v1725, %v12246
    %v12248 = vpop.f32.mrb[0].mxu0
    %v12249 = vadd.f32 %v1721, %v12248
    %v12250 = vpop.f32.mrb[0].mxu0
    %v12251 = vadd.f32 %v1725, %v12250
    %12252 = vmatprep.mubr.bf16.mxu0 %v1861
    %12253 = vmatmul.mubr.bf16.gmra.mrb[0].mxu0 %v1860
    %v12254 = vpop.f32.mrb[0].mxu0
    %v12255 = vadd.f32 %v1721, %v12254
    %v12256 = vpop.f32.mrb[0].mxu0
    %v12257 = vadd.f32 %v1725, %v12256
    %v12258 = vpop.f32.mrb[0].mxu0
    %v12259 = vadd.f32 %v1721, %v12258
    %v12260 = vpop.f32.mrb[0].mxu0
    %v12261 = vadd.f32 %v1725, %v12260
    %12262 = vmatprep.mubr.bf16.mxu0 %v1867
    %12263 = vmatmul.mubr.bf16.gmra.mrb[0].mxu0 %v1866
    %v12264 = vpop.f32.mrb[0].mxu0
    %v12265 = vadd.f32 %v1721, %v12264
    %v12266 = vpop.f32.mrb[0].mxu0
    %v12267 = vadd.f32 %v1725, %v12266
    %v12268 = vpop.f32.mrb[0].mxu0
    %v12269 = vadd.f32 %v1721, %v12268
    %v12270 = vpop.f32.mrb[0].mxu0
    %v12271 = vadd.f32 %v1725, %v12270
    %12272 = vmatprep.mubr.bf16.mxu0 %v1873
    %12273 = vmatmul.mubr.bf16.gmra.mrb[0].mxu0 %v1872
    %v12274 = vpop.f32.mrb[0].mxu0
    %v12275 = vadd.f32 %v1721, %v12274
    %v12276 = vpop.f32.mrb[0].mxu0
    %v12277 = vadd.f32 %v1725, %v12276
    %v12278 = vpop.f32.mrb[0].mxu0
    %v12279 = vadd.f32 %v1721, %v12278
    %v12280 = vpop.f32.mrb[0].mxu0
    %v12281 = vadd.f32 %v1725, %v12280
    %12282 = vdwg.mxu0
    %12283 = vmatprep.subr.bf16.mxu0 %v7047
    %12284 = vmatpush1.bf16.msra.mxu0 %v7046
    %12285 = vmatprep.subr.bf16.mxu0 %v7079
    %12286 = vmatpush1.bf16.msra.mxu0 %v7078
    %12287 = vmatprep.subr.bf16.mxu0 %v7111
    %12288 = vmatpush1.bf16.msra.mxu0 %v7110
    %12289 = vmatprep.subr.bf16.mxu0 %v7143
    %12290 = vmatpush1.bf16.msra.mxu0 %v7142
    %12291 = vmatprep.subr.bf16.mxu0 %v7175
    %12292 = vmatpush1.bf16.msra.mxu0 %v7174
    %12293 = vmatprep.subr.bf16.mxu0 %v7207
    %12294 = vmatpush1.bf16.msra.mxu0 %v7206
    %12295 = vmatprep.subr.bf16.mxu0 %v7239
    %12296 = vmatpush1.bf16.msra.mxu0 %v7238
    %12297 = vmatprep.subr.bf16.mxu0 %v7271
    %12298 = vmatpush1.bf16.msra.mxu0 %v7270
    %12299 = vmatprep.subr.bf16.mxu0 %v7303
    %12300 = vmatpush1.bf16.msra.mxu0 %v7302
    %12301 = vmatprep.subr.bf16.mxu0 %v7335
    %12302 = vmatpush1.bf16.msra.mxu0 %v7334
    %12303 = vmatprep.subr.bf16.mxu0 %v7367
    %12304 = vmatpush1.bf16.msra.mxu0 %v7366
    %12305 = vmatprep.subr.bf16.mxu0 %v7399
    %12306 = vmatpush1.bf16.msra.mxu0 %v7398
    %12307 = vmatprep.subr.bf16.mxu0 %v7431
    %12308 = vmatpush1.bf16.msra.mxu0 %v7430
    %12309 = vmatprep.subr.bf16.mxu0 %v7463
    %12310 = vmatpush1.bf16.msra.mxu0 %v7462
    %12311 = vmatprep.subr.bf16.mxu0 %v7495
    %12312 = vmatpush1.bf16.msra.mxu0 %v7494
    %12313 = vmatprep.subr.bf16.mxu0 %v7527
    %12314 = vmatpush1.bf16.msra.mxu0 %v7526
    %12315 = vmatprep.mubr.bf16.mxu0 %v1857
    %12316 = vmatmul.mubr.bf16.gmra.mrb[0].mxu0 %v1856
    %v12317 = vpop.f32.mrb[0].mxu0
    %v12318 = vadd.f32 %v12245, %v12317
    %v12319 = vpop.f32.mrb[0].mxu0
    %v12320 = vadd.f32 %v12247, %v12319
    %v12321 = vpop.f32.mrb[0].mxu0
    %v12322 = vadd.f32 %v12249, %v12321
    %v12323 = vpop.f32.mrb[0].mxu0
    %v12324 = vadd.f32 %v12251, %v12323
    %12325 = vmatprep.mubr.bf16.mxu0 %v1863
    %12326 = vmatmul.mubr.bf16.gmra.mrb[0].mxu0 %v1862
    %v12327 = vpop.f32.mrb[0].mxu0
    %v12328 = vadd.f32 %v12255, %v12327
    %v12329 = vpop.f32.mrb[0].mxu0
    %v12330 = vadd.f32 %v12257, %v12329
    %v12331 = vpop.f32.mrb[0].mxu0
    %v12332 = vadd.f32 %v12259, %v12331
    %v12333 = vpop.f32.mrb[0].mxu0
    %v12334 = vadd.f32 %v12261, %v12333
    %12335 = vmatprep.mubr.bf16.mxu0 %v1869
    %12336 = vmatmul.mubr.bf16.gmra.mrb[0].mxu0 %v1868
    %v12337 = vpop.f32.mrb[0].mxu0
    %v12338 = vadd.f32 %v12265, %v12337
    %v12339 = vpop.f32.mrb[0].mxu0
    %v12340 = vadd.f32 %v12267, %v12339
    %v12341 = vpop.f32.mrb[0].mxu0
    %v12342 = vadd.f32 %v12269, %v12341
    %v12343 = vpop.f32.mrb[0].mxu0
    %v12344 = vadd.f32 %v12271, %v12343
    %12345 = vmatprep.mubr.bf16.mxu0 %v1875
    %12346 = vmatmul.mubr.bf16.gmra.mrb[0].mxu0 %v1874
    %v12347 = vpop.f32.mrb[0].mxu0
    %v12348 = vadd.f32 %v12275, %v12347
    %v12349 = vpop.f32.mrb[0].mxu0
    %v12350 = vadd.f32 %v12277, %v12349
    %v12351 = vpop.f32.mrb[0].mxu0
    %v12352 = vadd.f32 %v12279, %v12351
    %v12353 = vpop.f32.mrb[0].mxu0
    %v12354 = vadd.f32 %v12281, %v12353
    %12355 = vdwg.mxu0
    %12356 = vmatprep.subr.bf16.mxu0 %v7559
    %12357 = vmatpush1.bf16.msra.mxu0 %v7558
    %12358 = vmatprep.subr.bf16.mxu0 %v7591
    %12359 = vmatpush1.bf16.msra.mxu0 %v7590
    %12360 = vmatprep.subr.bf16.mxu0 %v7623
    %12361 = vmatpush1.bf16.msra.mxu0 %v7622
    %12362 = vmatprep.subr.bf16.mxu0 %v7655
    %12363 = vmatpush1.bf16.msra.mxu0 %v7654
    %12364 = vmatprep.subr.bf16.mxu0 %v7687
    %12365 = vmatpush1.bf16.msra.mxu0 %v7686
    %12366 = vmatprep.subr.bf16.mxu0 %v7719
    %12367 = vmatpush1.bf16.msra.mxu0 %v7718
    %12368 = vmatprep.subr.bf16.mxu0 %v7751
    %12369 = vmatpush1.bf16.msra.mxu0 %v7750
    %12370 = vmatprep.subr.bf16.mxu0 %v7783
    %12371 = vmatpush1.bf16.msra.mxu0 %v7782
    %12372 = vmatprep.subr.bf16.mxu0 %v7815
    %12373 = vmatpush1.bf16.msra.mxu0 %v7814
    %12374 = vmatprep.subr.bf16.mxu0 %v7847
    %12375 = vmatpush1.bf16.msra.mxu0 %v7846
    %12376 = vmatprep.subr.bf16.mxu0 %v7879
    %12377 = vmatpush1.bf16.msra.mxu0 %v7878
    %12378 = vmatprep.subr.bf16.mxu0 %v7911
    %12379 = vmatpush1.bf16.msra.mxu0 %v7910
    %12380 = vmatprep.subr.bf16.mxu0 %v7943
    %12381 = vmatpush1.bf16.msra.mxu0 %v7942
    %12382 = vmatprep.subr.bf16.mxu0 %v7975
    %12383 = vmatpush1.bf16.msra.mxu0 %v7974
    %12384 = vmatprep.subr.bf16.mxu0 %v8007
    %12385 = vmatpush1.bf16.msra.mxu0 %v8006
    %12386 = vmatprep.subr.bf16.mxu0 %v8039
    %12387 = vmatpush1.bf16.msra.mxu0 %v8038
    %12388 = vmatprep.mubr.bf16.mxu0 %v1859
    %12389 = vmatmul.mubr.bf16.gmra.mrb[0].mxu0 %v1858
    %v12390 = vpop.f32.mrb[0].mxu0
    %v12391 = vadd.f32 %v12318, %v12390
    %v12392 = vpop.f32.mrb[0].mxu0
    %v12393 = vadd.f32 %v12320, %v12392
    %v12394 = vpop.f32.mrb[0].mxu0
    %v12395 = vadd.f32 %v12322, %v12394
    %v12396 = vpop.f32.mrb[0].mxu0
    %v12397 = vadd.f32 %v12324, %v12396
    %12398 = vmatprep.mubr.bf16.mxu0 %v1865
    %12399 = vmatmul.mubr.bf16.gmra.mrb[0].mxu0 %v1864
    %v12400 = vpop.f32.mrb[0].mxu0
    %v12401 = vadd.f32 %v12328, %v12400
    %v12402 = vpop.f32.mrb[0].mxu0
    %v12403 = vadd.f32 %v12330, %v12402
    %v12404 = vpop.f32.mrb[0].mxu0
    %v12405 = vadd.f32 %v12332, %v12404
    %v12406 = vpop.f32.mrb[0].mxu0
    %v12407 = vadd.f32 %v12334, %v12406
    %12408 = vmatprep.mubr.bf16.mxu0 %v1871
    %12409 = vmatmul.mubr.bf16.gmra.mrb[0].mxu0 %v1870
    %v12410 = vpop.f32.mrb[0].mxu0
    %v12411 = vadd.f32 %v12338, %v12410
    %v12412 = vpop.f32.mrb[0].mxu0
    %v12413 = vadd.f32 %v12340, %v12412
    %v12414 = vpop.f32.mrb[0].mxu0
    %v12415 = vadd.f32 %v12342, %v12414
    %v12416 = vpop.f32.mrb[0].mxu0
    %v12417 = vadd.f32 %v12344, %v12416
    %12418 = vmatprep.mubr.bf16.mxu0 %v1877
    %12419 = vmatmul.mubr.bf16.gmra.mrb[0].mxu0 %v1876
    %v12420 = vpop.f32.mrb[0].mxu0
    %v12421 = vadd.f32 %v12348, %v12420
    %v12422 = vpop.f32.mrb[0].mxu0
    %v12423 = vadd.f32 %v12350, %v12422
    %v12424 = vpop.f32.mrb[0].mxu0
    %v12425 = vadd.f32 %v12352, %v12424
    %v12426 = vpop.f32.mrb[0].mxu0
    %v12427 = vadd.f32 %v12354, %v12426
    %12428 = vdwg.mxu0
    %12429 = vmatprep.subr.bf16.mxu0 %v6537
    %12430 = vmatpush1.bf16.msra.mxu0 %v6536
    %12431 = vmatprep.subr.bf16.mxu0 %v6569
    %12432 = vmatpush1.bf16.msra.mxu0 %v6568
    %12433 = vmatprep.subr.bf16.mxu0 %v6601
    %12434 = vmatpush1.bf16.msra.mxu0 %v6600
    %12435 = vmatprep.subr.bf16.mxu0 %v6633
    %12436 = vmatpush1.bf16.msra.mxu0 %v6632
    %12437 = vmatprep.subr.bf16.mxu0 %v6665
    %12438 = vmatpush1.bf16.msra.mxu0 %v6664
    %12439 = vmatprep.subr.bf16.mxu0 %v6697
    %12440 = vmatpush1.bf16.msra.mxu0 %v6696
    %12441 = vmatprep.subr.bf16.mxu0 %v6729
    %12442 = vmatpush1.bf16.msra.mxu0 %v6728
    %12443 = vmatprep.subr.bf16.mxu0 %v6761
    %12444 = vmatpush1.bf16.msra.mxu0 %v6760
    %12445 = vmatprep.subr.bf16.mxu0 %v6793
    %12446 = vmatpush1.bf16.msra.mxu0 %v6792
    %12447 = vmatprep.subr.bf16.mxu0 %v6825
    %12448 = vmatpush1.bf16.msra.mxu0 %v6824
    %12449 = vmatprep.subr.bf16.mxu0 %v6857
    %12450 = vmatpush1.bf16.msra.mxu0 %v6856
    %12451 = vmatprep.subr.bf16.mxu0 %v6889
    %12452 = vmatpush1.bf16.msra.mxu0 %v6888
    %12453 = vmatprep.subr.bf16.mxu0 %v6921
    %12454 = vmatpush1.bf16.msra.mxu0 %v6920
    %12455 = vmatprep.subr.bf16.mxu0 %v6953
    %12456 = vmatpush1.bf16.msra.mxu0 %v6952
    %12457 = vmatprep.subr.bf16.mxu0 %v6985
    %12458 = vmatpush1.bf16.msra.mxu0 %v6984
    %12459 = vmatprep.subr.bf16.mxu0 %v7017
    %12460 = vmatpush1.bf16.msra.mxu0 %v7016
    %12461 = vmatprep.mubr.bf16.mxu0 %v1855
    %12462 = vmatmul.mubr.bf16.gmra.mrb[0].mxu0 %v1854
    %v12463 = vpop.f32.mrb[0].mxu0
    %v12464 = vadd.f32 %v1729, %v12463
    %v12465 = vpop.f32.mrb[0].mxu0
    %v12466 = vadd.f32 %v1733, %v12465
    %v12467 = vpop.f32.mrb[0].mxu0
    %v12468 = vadd.f32 %v1729, %v12467
    %v12469 = vpop.f32.mrb[0].mxu0
    %v12470 = vadd.f32 %v1733, %v12469
    %12471 = vmatprep.mubr.bf16.mxu0 %v1861
    %12472 = vmatmul.mubr.bf16.gmra.mrb[0].mxu0 %v1860
    %v12473 = vpop.f32.mrb[0].mxu0
    %v12474 = vadd.f32 %v1729, %v12473
    %v12475 = vpop.f32.mrb[0].mxu0
    %v12476 = vadd.f32 %v1733, %v12475
    %v12477 = vpop.f32.mrb[0].mxu0
    %v12478 = vadd.f32 %v1729, %v12477
    %v12479 = vpop.f32.mrb[0].mxu0
    %v12480 = vadd.f32 %v1733, %v12479
    %12481 = vmatprep.mubr.bf16.mxu0 %v1867
    %12482 = vmatmul.mubr.bf16.gmra.mrb[0].mxu0 %v1866
    %v12483 = vpop.f32.mrb[0].mxu0
    %v12484 = vadd.f32 %v1729, %v12483
    %v12485 = vpop.f32.mrb[0].mxu0
    %v12486 = vadd.f32 %v1733, %v12485
    %v12487 = vpop.f32.mrb[0].mxu0
    %v12488 = vadd.f32 %v1729, %v12487
    %v12489 = vpop.f32.mrb[0].mxu0
    %v12490 = vadd.f32 %v1733, %v12489
    %12491 = vmatprep.mubr.bf16.mxu0 %v1873
    %12492 = vmatmul.mubr.bf16.gmra.mrb[0].mxu0 %v1872
    %v12493 = vpop.f32.mrb[0].mxu0
    %v12494 = vadd.f32 %v1729, %v12493
    %v12495 = vpop.f32.mrb[0].mxu0
    %v12496 = vadd.f32 %v1733, %v12495
    %v12497 = vpop.f32.mrb[0].mxu0
    %v12498 = vadd.f32 %v1729, %v12497
    %v12499 = vpop.f32.mrb[0].mxu0
    %v12500 = vadd.f32 %v1733, %v12499
    %12501 = vdwg.mxu0
    %12502 = vmatprep.subr.bf16.mxu0 %v7049
    %12503 = vmatpush1.bf16.msra.mxu0 %v7048
    %12504 = vmatprep.subr.bf16.mxu0 %v7081
    %12505 = vmatpush1.bf16.msra.mxu0 %v7080
    %12506 = vmatprep.subr.bf16.mxu0 %v7113
    %12507 = vmatpush1.bf16.msra.mxu0 %v7112
    %12508 = vmatprep.subr.bf16.mxu0 %v7145
    %12509 = vmatpush1.bf16.msra.mxu0 %v7144
    %12510 = vmatprep.subr.bf16.mxu0 %v7177
    %12511 = vmatpush1.bf16.msra.mxu0 %v7176
    %12512 = vmatprep.subr.bf16.mxu0 %v7209
    %12513 = vmatpush1.bf16.msra.mxu0 %v7208
    %12514 = vmatprep.subr.bf16.mxu0 %v7241
    %12515 = vmatpush1.bf16.msra.mxu0 %v7240
    %12516 = vmatprep.subr.bf16.mxu0 %v7273
    %12517 = vmatpush1.bf16.msra.mxu0 %v7272
    %12518 = vmatprep.subr.bf16.mxu0 %v7305
    %12519 = vmatpush1.bf16.msra.mxu0 %v7304
    %12520 = vmatprep.subr.bf16.mxu0 %v7337
    %12521 = vmatpush1.bf16.msra.mxu0 %v7336
    %12522 = vmatprep.subr.bf16.mxu0 %v7369
    %12523 = vmatpush1.bf16.msra.mxu0 %v7368
    %12524 = vmatprep.subr.bf16.mxu0 %v7401
    %12525 = vmatpush1.bf16.msra.mxu0 %v7400
    %12526 = vmatprep.subr.bf16.mxu0 %v7433
    %12527 = vmatpush1.bf16.msra.mxu0 %v7432
    %12528 = vmatprep.subr.bf16.mxu0 %v7465
    %12529 = vmatpush1.bf16.msra.mxu0 %v7464
    %12530 = vmatprep.subr.bf16.mxu0 %v7497
    %12531 = vmatpush1.bf16.msra.mxu0 %v7496
    %12532 = vmatprep.subr.bf16.mxu0 %v7529
    %12533 = vmatpush1.bf16.msra.mxu0 %v7528
    %12534 = vmatprep.mubr.bf16.mxu0 %v1857
    %12535 = vmatmul.mubr.bf16.gmra.mrb[0].mxu0 %v1856
    %v12536 = vpop.f32.mrb[0].mxu0
    %v12537 = vadd.f32 %v12464, %v12536
    %v12538 = vpop.f32.mrb[0].mxu0
    %v12539 = vadd.f32 %v12466, %v12538
    %v12540 = vpop.f32.mrb[0].mxu0
    %v12541 = vadd.f32 %v12468, %v12540
    %v12542 = vpop.f32.mrb[0].mxu0
    %v12543 = vadd.f32 %v12470, %v12542
    %12544 = vmatprep.mubr.bf16.mxu0 %v1863
    %12545 = vmatmul.mubr.bf16.gmra.mrb[0].mxu0 %v1862
    %v12546 = vpop.f32.mrb[0].mxu0
    %v12547 = vadd.f32 %v12474, %v12546
    %v12548 = vpop.f32.mrb[0].mxu0
    %v12549 = vadd.f32 %v12476, %v12548
    %v12550 = vpop.f32.mrb[0].mxu0
    %v12551 = vadd.f32 %v12478, %v12550
    %v12552 = vpop.f32.mrb[0].mxu0
    %v12553 = vadd.f32 %v12480, %v12552
    %12554 = vmatprep.mubr.bf16.mxu0 %v1869
    %12555 = vmatmul.mubr.bf16.gmra.mrb[0].mxu0 %v1868
    %v12556 = vpop.f32.mrb[0].mxu0
    %v12557 = vadd.f32 %v12484, %v12556
    %v12558 = vpop.f32.mrb[0].mxu0
    %v12559 = vadd.f32 %v12486, %v12558
    %v12560 = vpop.f32.mrb[0].mxu0
    %v12561 = vadd.f32 %v12488, %v12560
    %v12562 = vpop.f32.mrb[0].mxu0
    %v12563 = vadd.f32 %v12490, %v12562
    %12564 = vmatprep.mubr.bf16.mxu0 %v1875
    %12565 = vmatmul.mubr.bf16.gmra.mrb[0].mxu0 %v1874
    %v12566 = vpop.f32.mrb[0].mxu0
    %v12567 = vadd.f32 %v12494, %v12566
    %v12568 = vpop.f32.mrb[0].mxu0
    %v12569 = vadd.f32 %v12496, %v12568
    %v12570 = vpop.f32.mrb[0].mxu0
    %v12571 = vadd.f32 %v12498, %v12570
    %v12572 = vpop.f32.mrb[0].mxu0
    %v12573 = vadd.f32 %v12500, %v12572
    %12574 = vdwg.mxu0
    %12575 = vmatprep.subr.bf16.mxu0 %v7561
    %12576 = vmatpush1.bf16.msra.mxu0 %v7560
    %12577 = vmatprep.subr.bf16.mxu0 %v7593
    %12578 = vmatpush1.bf16.msra.mxu0 %v7592
    %12579 = vmatprep.subr.bf16.mxu0 %v7625
    %12580 = vmatpush1.bf16.msra.mxu0 %v7624
    %12581 = vmatprep.subr.bf16.mxu0 %v7657
    %12582 = vmatpush1.bf16.msra.mxu0 %v7656
    %12583 = vmatprep.subr.bf16.mxu0 %v7689
    %12584 = vmatpush1.bf16.msra.mxu0 %v7688
    %12585 = vmatprep.subr.bf16.mxu0 %v7721
    %12586 = vmatpush1.bf16.msra.mxu0 %v7720
    %12587 = vmatprep.subr.bf16.mxu0 %v7753
    %12588 = vmatpush1.bf16.msra.mxu0 %v7752
    %12589 = vmatprep.subr.bf16.mxu0 %v7785
    %12590 = vmatpush1.bf16.msra.mxu0 %v7784
    %12591 = vmatprep.subr.bf16.mxu0 %v7817
    %12592 = vmatpush1.bf16.msra.mxu0 %v7816
    %12593 = vmatprep.subr.bf16.mxu0 %v7849
    %12594 = vmatpush1.bf16.msra.mxu0 %v7848
    %12595 = vmatprep.subr.bf16.mxu0 %v7881
    %12596 = vmatpush1.bf16.msra.mxu0 %v7880
    %12597 = vmatprep.subr.bf16.mxu0 %v7913
    %12598 = vmatpush1.bf16.msra.mxu0 %v7912
    %12599 = vmatprep.subr.bf16.mxu0 %v7945
    %12600 = vmatpush1.bf16.msra.mxu0 %v7944
    %12601 = vmatprep.subr.bf16.mxu0 %v7977
    %12602 = vmatpush1.bf16.msra.mxu0 %v7976
    %12603 = vmatprep.subr.bf16.mxu0 %v8009
    %12604 = vmatpush1.bf16.msra.mxu0 %v8008
    %12605 = vmatprep.subr.bf16.mxu0 %v8041
    %12606 = vmatpush1.bf16.msra.mxu0 %v8040
    %12607 = vmatprep.mubr.bf16.mxu0 %v1859
    %12608 = vmatmul.mubr.bf16.gmra.mrb[0].mxu0 %v1858
    %v12609 = vpop.f32.mrb[0].mxu0
    %v12610 = vadd.f32 %v12537, %v12609
    %v12611 = vpop.f32.mrb[0].mxu0
    %v12612 = vadd.f32 %v12539, %v12611
    %v12613 = vpop.f32.mrb[0].mxu0
    %v12614 = vadd.f32 %v12541, %v12613
    %v12615 = vpop.f32.mrb[0].mxu0
    %v12616 = vadd.f32 %v12543, %v12615
    %12617 = vmatprep.mubr.bf16.mxu0 %v1865
    %12618 = vmatmul.mubr.bf16.gmra.mrb[0].mxu0 %v1864
    %v12619 = vpop.f32.mrb[0].mxu0
    %v12620 = vadd.f32 %v12547, %v12619
    %v12621 = vpop.f32.mrb[0].mxu0
    %v12622 = vadd.f32 %v12549, %v12621
    %v12623 = vpop.f32.mrb[0].mxu0
    %v12624 = vadd.f32 %v12551, %v12623
    %v12625 = vpop.f32.mrb[0].mxu0
    %v12626 = vadd.f32 %v12553, %v12625
    %12627 = vmatprep.mubr.bf16.mxu0 %v1871
    %12628 = vmatmul.mubr.bf16.gmra.mrb[0].mxu0 %v1870
    %v12629 = vpop.f32.mrb[0].mxu0
    %v12630 = vadd.f32 %v12557, %v12629
    %v12631 = vpop.f32.mrb[0].mxu0
    %v12632 = vadd.f32 %v12559, %v12631
    %v12633 = vpop.f32.mrb[0].mxu0
    %v12634 = vadd.f32 %v12561, %v12633
    %v12635 = vpop.f32.mrb[0].mxu0
    %v12636 = vadd.f32 %v12563, %v12635
    %12637 = vmatprep.mubr.bf16.mxu0 %v1877
    %12638 = vmatmul.mubr.bf16.gmra.mrb[0].mxu0 %v1876
    %v12639 = vpop.f32.mrb[0].mxu0
    %v12640 = vadd.f32 %v12567, %v12639
    %v12641 = vpop.f32.mrb[0].mxu0
    %v12642 = vadd.f32 %v12569, %v12641
    %v12643 = vpop.f32.mrb[0].mxu0
    %v12644 = vadd.f32 %v12571, %v12643
    %v12645 = vpop.f32.mrb[0].mxu0
    %v12646 = vadd.f32 %v12573, %v12645
    %12647 = vdwg.mxu0
    %12648 = vmatprep.subr.bf16.mxu0 %v6539
    %12649 = vmatpush1.bf16.msra.mxu0 %v6538
    %12650 = vmatprep.subr.bf16.mxu0 %v6571
    %12651 = vmatpush1.bf16.msra.mxu0 %v6570
    %12652 = vmatprep.subr.bf16.mxu0 %v6603
    %12653 = vmatpush1.bf16.msra.mxu0 %v6602
    %12654 = vmatprep.subr.bf16.mxu0 %v6635
    %12655 = vmatpush1.bf16.msra.mxu0 %v6634
    %12656 = vmatprep.subr.bf16.mxu0 %v6667
    %12657 = vmatpush1.bf16.msra.mxu0 %v6666
    %12658 = vmatprep.subr.bf16.mxu0 %v6699
    %12659 = vmatpush1.bf16.msra.mxu0 %v6698
    %12660 = vmatprep.subr.bf16.mxu0 %v6731
    %12661 = vmatpush1.bf16.msra.mxu0 %v6730
    %12662 = vmatprep.subr.bf16.mxu0 %v6763
    %12663 = vmatpush1.bf16.msra.mxu0 %v6762
    %12664 = vmatprep.subr.bf16.mxu0 %v6795
    %12665 = vmatpush1.bf16.msra.mxu0 %v6794
    %12666 = vmatprep.subr.bf16.mxu0 %v6827
    %12667 = vmatpush1.bf16.msra.mxu0 %v6826
    %12668 = vmatprep.subr.bf16.mxu0 %v6859
    %12669 = vmatpush1.bf16.msra.mxu0 %v6858
    %12670 = vmatprep.subr.bf16.mxu0 %v6891
    %12671 = vmatpush1.bf16.msra.mxu0 %v6890
    %12672 = vmatprep.subr.bf16.mxu0 %v6923
    %12673 = vmatpush1.bf16.msra.mxu0 %v6922
    %12674 = vmatprep.subr.bf16.mxu0 %v6955
    %12675 = vmatpush1.bf16.msra.mxu0 %v6954
    %12676 = vmatprep.subr.bf16.mxu0 %v6987
    %12677 = vmatpush1.bf16.msra.mxu0 %v6986
    %12678 = vmatprep.subr.bf16.mxu0 %v7019
    %12679 = vmatpush1.bf16.msra.mxu0 %v7018
    %12680 = vmatprep.mubr.bf16.mxu0 %v1855
    %12681 = vmatmul.mubr.bf16.gmra.mrb[0].mxu0 %v1854
    %v12682 = vpop.f32.mrb[0].mxu0
    %v12683 = vadd.f32 %v1737, %v12682
    %v12684 = vpop.f32.mrb[0].mxu0
    %v12685 = vadd.f32 %v1741, %v12684
    %v12686 = vpop.f32.mrb[0].mxu0
    %v12687 = vadd.f32 %v1737, %v12686
    %v12688 = vpop.f32.mrb[0].mxu0
    %v12689 = vadd.f32 %v1741, %v12688
    %12690 = vmatprep.mubr.bf16.mxu0 %v1861
    %12691 = vmatmul.mubr.bf16.gmra.mrb[0].mxu0 %v1860
    %v12692 = vpop.f32.mrb[0].mxu0
    %v12693 = vadd.f32 %v1737, %v12692
    %v12694 = vpop.f32.mrb[0].mxu0
    %v12695 = vadd.f32 %v1741, %v12694
    %v12696 = vpop.f32.mrb[0].mxu0
    %v12697 = vadd.f32 %v1737, %v12696
    %v12698 = vpop.f32.mrb[0].mxu0
    %v12699 = vadd.f32 %v1741, %v12698
    %12700 = vmatprep.mubr.bf16.mxu0 %v1867
    %12701 = vmatmul.mubr.bf16.gmra.mrb[0].mxu0 %v1866
    %v12702 = vpop.f32.mrb[0].mxu0
    %v12703 = vadd.f32 %v1737, %v12702
    %v12704 = vpop.f32.mrb[0].mxu0
    %v12705 = vadd.f32 %v1741, %v12704
    %v12706 = vpop.f32.mrb[0].mxu0
    %v12707 = vadd.f32 %v1737, %v12706
    %v12708 = vpop.f32.mrb[0].mxu0
    %v12709 = vadd.f32 %v1741, %v12708
    %12710 = vmatprep.mubr.bf16.mxu0 %v1873
    %12711 = vmatmul.mubr.bf16.gmra.mrb[0].mxu0 %v1872
    %v12712 = vpop.f32.mrb[0].mxu0
    %v12713 = vadd.f32 %v1737, %v12712
    %v12714 = vpop.f32.mrb[0].mxu0
    %v12715 = vadd.f32 %v1741, %v12714
    %v12716 = vpop.f32.mrb[0].mxu0
    %v12717 = vadd.f32 %v1737, %v12716
    %v12718 = vpop.f32.mrb[0].mxu0
    %v12719 = vadd.f32 %v1741, %v12718
    %12720 = vdwg.mxu0
    %12721 = vmatprep.subr.bf16.mxu0 %v7051
    %12722 = vmatpush1.bf16.msra.mxu0 %v7050
    %12723 = vmatprep.subr.bf16.mxu0 %v7083
    %12724 = vmatpush1.bf16.msra.mxu0 %v7082
    %12725 = vmatprep.subr.bf16.mxu0 %v7115
    %12726 = vmatpush1.bf16.msra.mxu0 %v7114
    %12727 = vmatprep.subr.bf16.mxu0 %v7147
    %12728 = vmatpush1.bf16.msra.mxu0 %v7146
    %12729 = vmatprep.subr.bf16.mxu0 %v7179
    %12730 = vmatpush1.bf16.msra.mxu0 %v7178
    %12731 = vmatprep.subr.bf16.mxu0 %v7211
    %12732 = vmatpush1.bf16.msra.mxu0 %v7210
    %12733 = vmatprep.subr.bf16.mxu0 %v7243
    %12734 = vmatpush1.bf16.msra.mxu0 %v7242
    %12735 = vmatprep.subr.bf16.mxu0 %v7275
    %12736 = vmatpush1.bf16.msra.mxu0 %v7274
    %12737 = vmatprep.subr.bf16.mxu0 %v7307
    %12738 = vmatpush1.bf16.msra.mxu0 %v7306
    %12739 = vmatprep.subr.bf16.mxu0 %v7339
    %12740 = vmatpush1.bf16.msra.mxu0 %v7338
    %12741 = vmatprep.subr.bf16.mxu0 %v7371
    %12742 = vmatpush1.bf16.msra.mxu0 %v7370
    %12743 = vmatprep.subr.bf16.mxu0 %v7403
    %12744 = vmatpush1.bf16.msra.mxu0 %v7402
    %12745 = vmatprep.subr.bf16.mxu0 %v7435
    %12746 = vmatpush1.bf16.msra.mxu0 %v7434
    %12747 = vmatprep.subr.bf16.mxu0 %v7467
    %12748 = vmatpush1.bf16.msra.mxu0 %v7466
    %12749 = vmatprep.subr.bf16.mxu0 %v7499
    %12750 = vmatpush1.bf16.msra.mxu0 %v7498
    %12751 = vmatprep.subr.bf16.mxu0 %v7531
    %12752 = vmatpush1.bf16.msra.mxu0 %v7530
    %12753 = vmatprep.mubr.bf16.mxu0 %v1857
    %12754 = vmatmul.mubr.bf16.gmra.mrb[0].mxu0 %v1856
    %v12755 = vpop.f32.mrb[0].mxu0
    %v12756 = vadd.f32 %v12683, %v12755
    %v12757 = vpop.f32.mrb[0].mxu0
    %v12758 = vadd.f32 %v12685, %v12757
    %v12759 = vpop.f32.mrb[0].mxu0
    %v12760 = vadd.f32 %v12687, %v12759
    %v12761 = vpop.f32.mrb[0].mxu0
    %v12762 = vadd.f32 %v12689, %v12761
    %12763 = vmatprep.mubr.bf16.mxu0 %v1863
    %12764 = vmatmul.mubr.bf16.gmra.mrb[0].mxu0 %v1862
    %v12765 = vpop.f32.mrb[0].mxu0
    %v12766 = vadd.f32 %v12693, %v12765
    %v12767 = vpop.f32.mrb[0].mxu0
    %v12768 = vadd.f32 %v12695, %v12767
    %v12769 = vpop.f32.mrb[0].mxu0
    %v12770 = vadd.f32 %v12697, %v12769
    %v12771 = vpop.f32.mrb[0].mxu0
    %v12772 = vadd.f32 %v12699, %v12771
    %12773 = vmatprep.mubr.bf16.mxu0 %v1869
    %12774 = vmatmul.mubr.bf16.gmra.mrb[0].mxu0 %v1868
    %v12775 = vpop.f32.mrb[0].mxu0
    %v12776 = vadd.f32 %v12703, %v12775
    %v12777 = vpop.f32.mrb[0].mxu0
    %v12778 = vadd.f32 %v12705, %v12777
    %v12779 = vpop.f32.mrb[0].mxu0
    %v12780 = vadd.f32 %v12707, %v12779
    %v12781 = vpop.f32.mrb[0].mxu0
    %v12782 = vadd.f32 %v12709, %v12781
    %12783 = vmatprep.mubr.bf16.mxu0 %v1875
    %12784 = vmatmul.mubr.bf16.gmra.mrb[0].mxu0 %v1874
    %v12785 = vpop.f32.mrb[0].mxu0
    %v12786 = vadd.f32 %v12713, %v12785
    %v12787 = vpop.f32.mrb[0].mxu0
    %v12788 = vadd.f32 %v12715, %v12787
    %v12789 = vpop.f32.mrb[0].mxu0
    %v12790 = vadd.f32 %v12717, %v12789
    %v12791 = vpop.f32.mrb[0].mxu0
    %v12792 = vadd.f32 %v12719, %v12791
    %12793 = vdwg.mxu0
    %12794 = vmatprep.subr.bf16.mxu0 %v7563
    %12795 = vmatpush1.bf16.msra.mxu0 %v7562
    %12796 = vmatprep.subr.bf16.mxu0 %v7595
    %12797 = vmatpush1.bf16.msra.mxu0 %v7594
    %12798 = vmatprep.subr.bf16.mxu0 %v7627
    %12799 = vmatpush1.bf16.msra.mxu0 %v7626
    %12800 = vmatprep.subr.bf16.mxu0 %v7659
    %12801 = vmatpush1.bf16.msra.mxu0 %v7658
    %12802 = vmatprep.subr.bf16.mxu0 %v7691
    %12803 = vmatpush1.bf16.msra.mxu0 %v7690
    %12804 = vmatprep.subr.bf16.mxu0 %v7723
    %12805 = vmatpush1.bf16.msra.mxu0 %v7722
    %12806 = vmatprep.subr.bf16.mxu0 %v7755
    %12807 = vmatpush1.bf16.msra.mxu0 %v7754
    %12808 = vmatprep.subr.bf16.mxu0 %v7787
    %12809 = vmatpush1.bf16.msra.mxu0 %v7786
    %12810 = vmatprep.subr.bf16.mxu0 %v7819
    %12811 = vmatpush1.bf16.msra.mxu0 %v7818
    %12812 = vmatprep.subr.bf16.mxu0 %v7851
    %12813 = vmatpush1.bf16.msra.mxu0 %v7850
    %12814 = vmatprep.subr.bf16.mxu0 %v7883
    %12815 = vmatpush1.bf16.msra.mxu0 %v7882
    %12816 = vmatprep.subr.bf16.mxu0 %v7915
    %12817 = vmatpush1.bf16.msra.mxu0 %v7914
    %12818 = vmatprep.subr.bf16.mxu0 %v7947
    %12819 = vmatpush1.bf16.msra.mxu0 %v7946
    %12820 = vmatprep.subr.bf16.mxu0 %v7979
    %12821 = vmatpush1.bf16.msra.mxu0 %v7978
    %12822 = vmatprep.subr.bf16.mxu0 %v8011
    %12823 = vmatpush1.bf16.msra.mxu0 %v8010
    %12824 = vmatprep.subr.bf16.mxu0 %v8043
    %12825 = vmatpush1.bf16.msra.mxu0 %v8042
    %12826 = vmatprep.mubr.bf16.mxu0 %v1859
    %12827 = vmatmul.mubr.bf16.gmra.mrb[0].mxu0 %v1858
    %v12828 = vpop.f32.mrb[0].mxu0
    %v12829 = vadd.f32 %v12756, %v12828
    %v12830 = vpop.f32.mrb[0].mxu0
    %v12831 = vadd.f32 %v12758, %v12830
    %v12832 = vpop.f32.mrb[0].mxu0
    %v12833 = vadd.f32 %v12760, %v12832
    %v12834 = vpop.f32.mrb[0].mxu0
    %v12835 = vadd.f32 %v12762, %v12834
    %12836 = vmatprep.mubr.bf16.mxu0 %v1865
    %12837 = vmatmul.mubr.bf16.gmra.mrb[0].mxu0 %v1864
    %v12838 = vpop.f32.mrb[0].mxu0
    %v12839 = vadd.f32 %v12766, %v12838
    %v12840 = vpop.f32.mrb[0].mxu0
    %v12841 = vadd.f32 %v12768, %v12840
    %v12842 = vpop.f32.mrb[0].mxu0
    %v12843 = vadd.f32 %v12770, %v12842
    %v12844 = vpop.f32.mrb[0].mxu0
    %v12845 = vadd.f32 %v12772, %v12844
    %12846 = vmatprep.mubr.bf16.mxu0 %v1871
    %12847 = vmatmul.mubr.bf16.gmra.mrb[0].mxu0 %v1870
    %v12848 = vpop.f32.mrb[0].mxu0
    %v12849 = vadd.f32 %v12776, %v12848
    %v12850 = vpop.f32.mrb[0].mxu0
    %v12851 = vadd.f32 %v12778, %v12850
    %v12852 = vpop.f32.mrb[0].mxu0
    %v12853 = vadd.f32 %v12780, %v12852
    %v12854 = vpop.f32.mrb[0].mxu0
    %v12855 = vadd.f32 %v12782, %v12854
    %12856 = vmatprep.mubr.bf16.mxu0 %v1877
    %12857 = vmatmul.mubr.bf16.gmra.mrb[0].mxu0 %v1876
    %v12858 = vpop.f32.mrb[0].mxu0
    %v12859 = vadd.f32 %v12786, %v12858
    %v12860 = vpop.f32.mrb[0].mxu0
    %v12861 = vadd.f32 %v12788, %v12860
    %v12862 = vpop.f32.mrb[0].mxu0
    %v12863 = vadd.f32 %v12790, %v12862
    %v12864 = vpop.f32.mrb[0].mxu0
    %v12865 = vadd.f32 %v12792, %v12864
    %12866 = vdwg.mxu0
    %12867 = vmatprep.subr.bf16.mxu0 %v6541
    %12868 = vmatpush1.bf16.msra.mxu0 %v6540
    %12869 = vmatprep.subr.bf16.mxu0 %v6573
    %12870 = vmatpush1.bf16.msra.mxu0 %v6572
    %12871 = vmatprep.subr.bf16.mxu0 %v6605
    %12872 = vmatpush1.bf16.msra.mxu0 %v6604
    %12873 = vmatprep.subr.bf16.mxu0 %v6637
    %12874 = vmatpush1.bf16.msra.mxu0 %v6636
    %12875 = vmatprep.subr.bf16.mxu0 %v6669
    %12876 = vmatpush1.bf16.msra.mxu0 %v6668
    %12877 = vmatprep.subr.bf16.mxu0 %v6701
    %12878 = vmatpush1.bf16.msra.mxu0 %v6700
    %12879 = vmatprep.subr.bf16.mxu0 %v6733
    %12880 = vmatpush1.bf16.msra.mxu0 %v6732
    %12881 = vmatprep.subr.bf16.mxu0 %v6765
    %12882 = vmatpush1.bf16.msra.mxu0 %v6764
    %12883 = vmatprep.subr.bf16.mxu0 %v6797
    %12884 = vmatpush1.bf16.msra.mxu0 %v6796
    %12885 = vmatprep.subr.bf16.mxu0 %v6829
    %12886 = vmatpush1.bf16.msra.mxu0 %v6828
    %12887 = vmatprep.subr.bf16.mxu0 %v6861
    %12888 = vmatpush1.bf16.msra.mxu0 %v6860
    %12889 = vmatprep.subr.bf16.mxu0 %v6893
    %12890 = vmatpush1.bf16.msra.mxu0 %v6892
    %12891 = vmatprep.subr.bf16.mxu0 %v6925
    %12892 = vmatpush1.bf16.msra.mxu0 %v6924
    %12893 = vmatprep.subr.bf16.mxu0 %v6957
    %12894 = vmatpush1.bf16.msra.mxu0 %v6956
    %12895 = vmatprep.subr.bf16.mxu0 %v6989
    %12896 = vmatpush1.bf16.msra.mxu0 %v6988
    %12897 = vmatprep.subr.bf16.mxu0 %v7021
    %12898 = vmatpush1.bf16.msra.mxu0 %v7020
    %12899 = vmatprep.mubr.bf16.mxu0 %v1855
    %12900 = vmatmul.mubr.bf16.gmra.mrb[0].mxu0 %v1854
    %v12901 = vpop.f32.mrb[0].mxu0
    %v12902 = vadd.f32 %v1745, %v12901
    %v12903 = vpop.f32.mrb[0].mxu0
    %v12904 = vadd.f32 %v1749, %v12903
    %v12905 = vpop.f32.mrb[0].mxu0
    %v12906 = vadd.f32 %v1745, %v12905
    %v12907 = vpop.f32.mrb[0].mxu0
    %v12908 = vadd.f32 %v1749, %v12907
    %12909 = vmatprep.mubr.bf16.mxu0 %v1861
    %12910 = vmatmul.mubr.bf16.gmra.mrb[0].mxu0 %v1860
    %v12911 = vpop.f32.mrb[0].mxu0
    %v12912 = vadd.f32 %v1745, %v12911
    %v12913 = vpop.f32.mrb[0].mxu0
    %v12914 = vadd.f32 %v1749, %v12913
    %v12915 = vpop.f32.mrb[0].mxu0
    %v12916 = vadd.f32 %v1745, %v12915
    %v12917 = vpop.f32.mrb[0].mxu0
    %v12918 = vadd.f32 %v1749, %v12917
    %12919 = vmatprep.mubr.bf16.mxu0 %v1867
    %12920 = vmatmul.mubr.bf16.gmra.mrb[0].mxu0 %v1866
    %v12921 = vpop.f32.mrb[0].mxu0
    %v12922 = vadd.f32 %v1745, %v12921
    %v12923 = vpop.f32.mrb[0].mxu0
    %v12924 = vadd.f32 %v1749, %v12923
    %v12925 = vpop.f32.mrb[0].mxu0
    %v12926 = vadd.f32 %v1745, %v12925
    %v12927 = vpop.f32.mrb[0].mxu0
    %v12928 = vadd.f32 %v1749, %v12927
    %12929 = vmatprep.mubr.bf16.mxu0 %v1873
    %12930 = vmatmul.mubr.bf16.gmra.mrb[0].mxu0 %v1872
    %v12931 = vpop.f32.mrb[0].mxu0
    %v12932 = vadd.f32 %v1745, %v12931
    %v12933 = vpop.f32.mrb[0].mxu0
    %v12934 = vadd.f32 %v1749, %v12933
    %v12935 = vpop.f32.mrb[0].mxu0
    %v12936 = vadd.f32 %v1745, %v12935
    %v12937 = vpop.f32.mrb[0].mxu0
    %v12938 = vadd.f32 %v1749, %v12937
    %12939 = vdwg.mxu0
    %12940 = vmatprep.subr.bf16.mxu0 %v7053
    %12941 = vmatpush1.bf16.msra.mxu0 %v7052
    %12942 = vmatprep.subr.bf16.mxu0 %v7085
    %12943 = vmatpush1.bf16.msra.mxu0 %v7084
    %12944 = vmatprep.subr.bf16.mxu0 %v7117
    %12945 = vmatpush1.bf16.msra.mxu0 %v7116
    %12946 = vmatprep.subr.bf16.mxu0 %v7149
    %12947 = vmatpush1.bf16.msra.mxu0 %v7148
    %12948 = vmatprep.subr.bf16.mxu0 %v7181
    %12949 = vmatpush1.bf16.msra.mxu0 %v7180
    %12950 = vmatprep.subr.bf16.mxu0 %v7213
    %12951 = vmatpush1.bf16.msra.mxu0 %v7212
    %12952 = vmatprep.subr.bf16.mxu0 %v7245
    %12953 = vmatpush1.bf16.msra.mxu0 %v7244
    %12954 = vmatprep.subr.bf16.mxu0 %v7277
    %12955 = vmatpush1.bf16.msra.mxu0 %v7276
    %12956 = vmatprep.subr.bf16.mxu0 %v7309
    %12957 = vmatpush1.bf16.msra.mxu0 %v7308
    %12958 = vmatprep.subr.bf16.mxu0 %v7341
    %12959 = vmatpush1.bf16.msra.mxu0 %v7340
    %12960 = vmatprep.subr.bf16.mxu0 %v7373
    %12961 = vmatpush1.bf16.msra.mxu0 %v7372
    %12962 = vmatprep.subr.bf16.mxu0 %v7405
    %12963 = vmatpush1.bf16.msra.mxu0 %v7404
    %12964 = vmatprep.subr.bf16.mxu0 %v7437
    %12965 = vmatpush1.bf16.msra.mxu0 %v7436
    %12966 = vmatprep.subr.bf16.mxu0 %v7469
    %12967 = vmatpush1.bf16.msra.mxu0 %v7468
    %12968 = vmatprep.subr.bf16.mxu0 %v7501
    %12969 = vmatpush1.bf16.msra.mxu0 %v7500
    %12970 = vmatprep.subr.bf16.mxu0 %v7533
    %12971 = vmatpush1.bf16.msra.mxu0 %v7532
    %12972 = vmatprep.mubr.bf16.mxu0 %v1857
    %12973 = vmatmul.mubr.bf16.gmra.mrb[0].mxu0 %v1856
    %v12974 = vpop.f32.mrb[0].mxu0
    %v12975 = vadd.f32 %v12902, %v12974
    %v12976 = vpop.f32.mrb[0].mxu0
    %v12977 = vadd.f32 %v12904, %v12976
    %v12978 = vpop.f32.mrb[0].mxu0
    %v12979 = vadd.f32 %v12906, %v12978
    %v12980 = vpop.f32.mrb[0].mxu0
    %v12981 = vadd.f32 %v12908, %v12980
    %12982 = vmatprep.mubr.bf16.mxu0 %v1863
    %12983 = vmatmul.mubr.bf16.gmra.mrb[0].mxu0 %v1862
    %v12984 = vpop.f32.mrb[0].mxu0
    %v12985 = vadd.f32 %v12912, %v12984
    %v12986 = vpop.f32.mrb[0].mxu0
    %v12987 = vadd.f32 %v12914, %v12986
    %v12988 = vpop.f32.mrb[0].mxu0
    %v12989 = vadd.f32 %v12916, %v12988
    %v12990 = vpop.f32.mrb[0].mxu0
    %v12991 = vadd.f32 %v12918, %v12990
    %12992 = vmatprep.mubr.bf16.mxu0 %v1869
    %12993 = vmatmul.mubr.bf16.gmra.mrb[0].mxu0 %v1868
    %v12994 = vpop.f32.mrb[0].mxu0
    %v12995 = vadd.f32 %v12922, %v12994
    %v12996 = vpop.f32.mrb[0].mxu0
    %v12997 = vadd.f32 %v12924, %v12996
    %v12998 = vpop.f32.mrb[0].mxu0
    %v12999 = vadd.f32 %v12926, %v12998
    %v13000 = vpop.f32.mrb[0].mxu0
    %v13001 = vadd.f32 %v12928, %v13000
    %13002 = vmatprep.mubr.bf16.mxu0 %v1875
    %13003 = vmatmul.mubr.bf16.gmra.mrb[0].mxu0 %v1874
    %v13004 = vpop.f32.mrb[0].mxu0
    %v13005 = vadd.f32 %v12932, %v13004
    %v13006 = vpop.f32.mrb[0].mxu0
    %v13007 = vadd.f32 %v12934, %v13006
    %v13008 = vpop.f32.mrb[0].mxu0
    %v13009 = vadd.f32 %v12936, %v13008
    %v13010 = vpop.f32.mrb[0].mxu0
    %v13011 = vadd.f32 %v12938, %v13010
    %13012 = vdwg.mxu0
    %13013 = vmatprep.subr.bf16.mxu0 %v7565
    %13014 = vmatpush1.bf16.msra.mxu0 %v7564
    %13015 = vmatprep.subr.bf16.mxu0 %v7597
    %13016 = vmatpush1.bf16.msra.mxu0 %v7596
    %13017 = vmatprep.subr.bf16.mxu0 %v7629
    %13018 = vmatpush1.bf16.msra.mxu0 %v7628
    %13019 = vmatprep.subr.bf16.mxu0 %v7661
    %13020 = vmatpush1.bf16.msra.mxu0 %v7660
    %13021 = vmatprep.subr.bf16.mxu0 %v7693
    %13022 = vmatpush1.bf16.msra.mxu0 %v7692
    %13023 = vmatprep.subr.bf16.mxu0 %v7725
    %13024 = vmatpush1.bf16.msra.mxu0 %v7724
    %13025 = vmatprep.subr.bf16.mxu0 %v7757
    %13026 = vmatpush1.bf16.msra.mxu0 %v7756
    %13027 = vmatprep.subr.bf16.mxu0 %v7789
    %13028 = vmatpush1.bf16.msra.mxu0 %v7788
    %13029 = vmatprep.subr.bf16.mxu0 %v7821
    %13030 = vmatpush1.bf16.msra.mxu0 %v7820
    %13031 = vmatprep.subr.bf16.mxu0 %v7853
    %13032 = vmatpush1.bf16.msra.mxu0 %v7852
    %13033 = vmatprep.subr.bf16.mxu0 %v7885
    %13034 = vmatpush1.bf16.msra.mxu0 %v7884
    %13035 = vmatprep.subr.bf16.mxu0 %v7917
    %13036 = vmatpush1.bf16.msra.mxu0 %v7916
    %13037 = vmatprep.subr.bf16.mxu0 %v7949
    %13038 = vmatpush1.bf16.msra.mxu0 %v7948
    %13039 = vmatprep.subr.bf16.mxu0 %v7981
    %13040 = vmatpush1.bf16.msra.mxu0 %v7980
    %13041 = vmatprep.subr.bf16.mxu0 %v8013
    %13042 = vmatpush1.bf16.msra.mxu0 %v8012
    %13043 = vmatprep.subr.bf16.mxu0 %v8045
    %13044 = vmatpush1.bf16.msra.mxu0 %v8044
    %13045 = vmatprep.mubr.bf16.mxu0 %v1859
    %13046 = vmatmul.mubr.bf16.gmra.mrb[0].mxu0 %v1858
    %v13047 = vpop.f32.mrb[0].mxu0
    %v13048 = vadd.f32 %v12975, %v13047
    %v13049 = vpop.f32.mrb[0].mxu0
    %v13050 = vadd.f32 %v12977, %v13049
    %v13051 = vpop.f32.mrb[0].mxu0
    %v13052 = vadd.f32 %v12979, %v13051
    %v13053 = vpop.f32.mrb[0].mxu0
    %v13054 = vadd.f32 %v12981, %v13053
    %13055 = vmatprep.mubr.bf16.mxu0 %v1865
    %13056 = vmatmul.mubr.bf16.gmra.mrb[0].mxu0 %v1864
    %v13057 = vpop.f32.mrb[0].mxu0
    %v13058 = vadd.f32 %v12985, %v13057
    %v13059 = vpop.f32.mrb[0].mxu0
    %v13060 = vadd.f32 %v12987, %v13059
    %v13061 = vpop.f32.mrb[0].mxu0
    %v13062 = vadd.f32 %v12989, %v13061
    %v13063 = vpop.f32.mrb[0].mxu0
    %v13064 = vadd.f32 %v12991, %v13063
    %13065 = vmatprep.mubr.bf16.mxu0 %v1871
    %13066 = vmatmul.mubr.bf16.gmra.mrb[0].mxu0 %v1870
    %v13067 = vpop.f32.mrb[0].mxu0
    %v13068 = vadd.f32 %v12995, %v13067
    %v13069 = vpop.f32.mrb[0].mxu0
    %v13070 = vadd.f32 %v12997, %v13069
    %v13071 = vpop.f32.mrb[0].mxu0
    %v13072 = vadd.f32 %v12999, %v13071
    %v13073 = vpop.f32.mrb[0].mxu0
    %v13074 = vadd.f32 %v13001, %v13073
    %13075 = vmatprep.mubr.bf16.mxu0 %v1877
    %13076 = vmatmul.mubr.bf16.gmra.mrb[0].mxu0 %v1876
    %v13077 = vpop.f32.mrb[0].mxu0
    %v13078 = vadd.f32 %v13005, %v13077
    %v13079 = vpop.f32.mrb[0].mxu0
    %v13080 = vadd.f32 %v13007, %v13079
    %v13081 = vpop.f32.mrb[0].mxu0
    %v13082 = vadd.f32 %v13009, %v13081
    %v13083 = vpop.f32.mrb[0].mxu0
    %v13084 = vadd.f32 %v13011, %v13083
    %13085 = vdwg.mxu0
    %v13086 = vpack.c.bf16 %v9767, %v9763
    %v13087 = vpack.c.bf16 %v9769, %v9765
    %v13088 = vpack.c.bf16 %v9986, %v9982
    %v13089 = vpack.c.bf16 %v9988, %v9984
    %v13090 = vpack.c.bf16 %v10205, %v10201
    %v13091 = vpack.c.bf16 %v10207, %v10203
    %v13092 = vpack.c.bf16 %v10424, %v10420
    %v13093 = vpack.c.bf16 %v10426, %v10422
    %v13094 = vpack.c.bf16 %v10643, %v10639
    %v13095 = vpack.c.bf16 %v10645, %v10641
    %v13096 = vpack.c.bf16 %v10862, %v10858
    %v13097 = vpack.c.bf16 %v10864, %v10860
    %v13098 = vpack.c.bf16 %v11081, %v11077
    %v13099 = vpack.c.bf16 %v11083, %v11079
    %v13100 = vpack.c.bf16 %v11300, %v11296
    %v13101 = vpack.c.bf16 %v11302, %v11298
    %v13102 = vpack.c.bf16 %v11519, %v11515
    %v13103 = vpack.c.bf16 %v11521, %v11517
    %v13104 = vpack.c.bf16 %v11738, %v11734
    %v13105 = vpack.c.bf16 %v11740, %v11736
    %v13106 = vpack.c.bf16 %v11957, %v11953
    %v13107 = vpack.c.bf16 %v11959, %v11955
    %v13108 = vpack.c.bf16 %v12176, %v12172
    %v13109 = vpack.c.bf16 %v12178, %v12174
    %v13110 = vpack.c.bf16 %v12395, %v12391
    %v13111 = vpack.c.bf16 %v12397, %v12393
    %v13112 = vpack.c.bf16 %v12614, %v12610
    %v13113 = vpack.c.bf16 %v12616, %v12612
    %v13114 = vpack.c.bf16 %v12833, %v12829
    %v13115 = vpack.c.bf16 %v12835, %v12831
    %v13116 = vpack.c.bf16 %v13052, %v13048
    %v13117 = vpack.c.bf16 %v13054, %v13050
    %v13118 = vpack.c.bf16 %v9777, %v9773
    %v13119 = vpack.c.bf16 %v9779, %v9775
    %v13120 = vpack.c.bf16 %v9996, %v9992
    %v13121 = vpack.c.bf16 %v9998, %v9994
    %v13122 = vpack.c.bf16 %v10215, %v10211
    %v13123 = vpack.c.bf16 %v10217, %v10213
    %v13124 = vpack.c.bf16 %v10434, %v10430
    %v13125 = vpack.c.bf16 %v10436, %v10432
    %v13126 = vpack.c.bf16 %v10653, %v10649
    %v13127 = vpack.c.bf16 %v10655, %v10651
    %v13128 = vpack.c.bf16 %v10872, %v10868
    %v13129 = vpack.c.bf16 %v10874, %v10870
    %v13130 = vpack.c.bf16 %v11091, %v11087
    %v13131 = vpack.c.bf16 %v11093, %v11089
    %v13132 = vpack.c.bf16 %v11310, %v11306
    %v13133 = vpack.c.bf16 %v11312, %v11308
    %v13134 = vpack.c.bf16 %v11529, %v11525
    %v13135 = vpack.c.bf16 %v11531, %v11527
    %v13136 = vpack.c.bf16 %v11748, %v11744
    %v13137 = vpack.c.bf16 %v11750, %v11746
    %v13138 = vpack.c.bf16 %v11967, %v11963
    %v13139 = vpack.c.bf16 %v11969, %v11965
    %v13140 = vpack.c.bf16 %v12186, %v12182
    %v13141 = vpack.c.bf16 %v12188, %v12184
    %v13142 = vpack.c.bf16 %v12405, %v12401
    %v13143 = vpack.c.bf16 %v12407, %v12403
    %v13144 = vpack.c.bf16 %v12624, %v12620
    %v13145 = vpack.c.bf16 %v12626, %v12622
    %v13146 = vpack.c.bf16 %v12843, %v12839
    %v13147 = vpack.c.bf16 %v12845, %v12841
    %v13148 = vpack.c.bf16 %v13062, %v13058
    %v13149 = vpack.c.bf16 %v13064, %v13060
    %v13150 = vpack.c.bf16 %v9787, %v9783
    %v13151 = vpack.c.bf16 %v9789, %v9785
    %v13152 = vpack.c.bf16 %v10006, %v10002
    %v13153 = vpack.c.bf16 %v10008, %v10004
    %v13154 = vpack.c.bf16 %v10225, %v10221
    %v13155 = vpack.c.bf16 %v10227, %v10223
    %v13156 = vpack.c.bf16 %v10444, %v10440
    %v13157 = vpack.c.bf16 %v10446, %v10442
    %v13158 = vpack.c.bf16 %v10663, %v10659
    %v13159 = vpack.c.bf16 %v10665, %v10661
    %v13160 = vpack.c.bf16 %v10882, %v10878
    %v13161 = vpack.c.bf16 %v10884, %v10880
    %v13162 = vpack.c.bf16 %v11101, %v11097
    %v13163 = vpack.c.bf16 %v11103, %v11099
    %v13164 = vpack.c.bf16 %v11320, %v11316
    %v13165 = vpack.c.bf16 %v11322, %v11318
    %v13166 = vpack.c.bf16 %v11539, %v11535
    %v13167 = vpack.c.bf16 %v11541, %v11537
    %v13168 = vpack.c.bf16 %v11758, %v11754
    %v13169 = vpack.c.bf16 %v11760, %v11756
    %v13170 = vpack.c.bf16 %v11977, %v11973
    %v13171 = vpack.c.bf16 %v11979, %v11975
    %v13172 = vpack.c.bf16 %v12196, %v12192
    %v13173 = vpack.c.bf16 %v12198, %v12194
    %v13174 = vpack.c.bf16 %v12415, %v12411
    %v13175 = vpack.c.bf16 %v12417, %v12413
    %v13176 = vpack.c.bf16 %v12634, %v12630
    %v13177 = vpack.c.bf16 %v12636, %v12632
    %v13178 = vpack.c.bf16 %v12853, %v12849
    %v13179 = vpack.c.bf16 %v12855, %v12851
    %v13180 = vpack.c.bf16 %v13072, %v13068
    %v13181 = vpack.c.bf16 %v13074, %v13070
    %v13182 = vpack.c.bf16 %v9797, %v9793
    %v13183 = vpack.c.bf16 %v9799, %v9795
    %v13184 = vpack.c.bf16 %v10016, %v10012
    %v13185 = vpack.c.bf16 %v10018, %v10014
    %v13186 = vpack.c.bf16 %v10235, %v10231
    %v13187 = vpack.c.bf16 %v10237, %v10233
    %v13188 = vpack.c.bf16 %v10454, %v10450
    %v13189 = vpack.c.bf16 %v10456, %v10452
    %v13190 = vpack.c.bf16 %v10673, %v10669
    %v13191 = vpack.c.bf16 %v10675, %v10671
    %v13192 = vpack.c.bf16 %v10892, %v10888
    %v13193 = vpack.c.bf16 %v10894, %v10890
    %v13194 = vpack.c.bf16 %v11111, %v11107
    %v13195 = vpack.c.bf16 %v11113, %v11109
    %v13196 = vpack.c.bf16 %v11330, %v11326
    %v13197 = vpack.c.bf16 %v11332, %v11328
    %v13198 = vpack.c.bf16 %v11549, %v11545
    %v13199 = vpack.c.bf16 %v11551, %v11547
    %v13200 = vpack.c.bf16 %v11768, %v11764
    %v13201 = vpack.c.bf16 %v11770, %v11766
    %v13202 = vpack.c.bf16 %v11987, %v11983
    %v13203 = vpack.c.bf16 %v11989, %v11985
    %v13204 = vpack.c.bf16 %v12206, %v12202
    %v13205 = vpack.c.bf16 %v12208, %v12204
    %v13206 = vpack.c.bf16 %v12425, %v12421
    %v13207 = vpack.c.bf16 %v12427, %v12423
    %v13208 = vpack.c.bf16 %v12644, %v12640
    %v13209 = vpack.c.bf16 %v12646, %v12642
    %v13210 = vpack.c.bf16 %v12863, %v12859
    %v13211 = vpack.c.bf16 %v12865, %v12861
    %v13212 = vpack.c.bf16 %v13082, %v13078
    %v13213 = vpack.c.bf16 %v13084, %v13080
    %v13342 = vunpack.c.l.b16 %v13086
    %v13343 = vunpack.c.l.b16 %v13087
    %v13344 = vunpack.c.l.b16 %v13088
    %v13345 = vunpack.c.l.b16 %v13089
    %v13346 = vunpack.c.l.b16 %v13090
    %v13347 = vunpack.c.l.b16 %v13091
    %v13348 = vunpack.c.l.b16 %v13092
    %v13349 = vunpack.c.l.b16 %v13093
    %v13350 = vunpack.c.l.b16 %v13094
    %v13351 = vunpack.c.l.b16 %v13095
    %v13352 = vunpack.c.l.b16 %v13096
    %v13353 = vunpack.c.l.b16 %v13097
    %v13354 = vunpack.c.l.b16 %v13098
    %v13355 = vunpack.c.l.b16 %v13099
    %v13356 = vunpack.c.l.b16 %v13100
    %v13357 = vunpack.c.l.b16 %v13101
    %v13358 = vunpack.c.l.b16 %v13102
    %v13359 = vunpack.c.l.b16 %v13103
    %v13360 = vunpack.c.l.b16 %v13104
    %v13361 = vunpack.c.l.b16 %v13105
    %v13362 = vunpack.c.l.b16 %v13106
    %v13363 = vunpack.c.l.b16 %v13107
    %v13364 = vunpack.c.l.b16 %v13108
    %v13365 = vunpack.c.l.b16 %v13109
    %v13366 = vunpack.c.l.b16 %v13110
    %v13367 = vunpack.c.l.b16 %v13111
    %v13368 = vunpack.c.l.b16 %v13112
    %v13369 = vunpack.c.l.b16 %v13113
    %v13370 = vunpack.c.l.b16 %v13114
    %v13371 = vunpack.c.l.b16 %v13115
    %v13372 = vunpack.c.l.b16 %v13116
    %v13373 = vunpack.c.l.b16 %v13117
    %v13374 = vunpack.c.h.b16 %v13086
    %v13375 = vunpack.c.h.b16 %v13087
    %v13376 = vunpack.c.h.b16 %v13088
    %v13377 = vunpack.c.h.b16 %v13089
    %v13378 = vunpack.c.h.b16 %v13090
    %v13379 = vunpack.c.h.b16 %v13091
    %v13380 = vunpack.c.h.b16 %v13092
    %v13381 = vunpack.c.h.b16 %v13093
    %v13382 = vunpack.c.h.b16 %v13094
    %v13383 = vunpack.c.h.b16 %v13095
    %v13384 = vunpack.c.h.b16 %v13096
    %v13385 = vunpack.c.h.b16 %v13097
    %v13386 = vunpack.c.h.b16 %v13098
    %v13387 = vunpack.c.h.b16 %v13099
    %v13388 = vunpack.c.h.b16 %v13100
    %v13389 = vunpack.c.h.b16 %v13101
    %v13390 = vunpack.c.h.b16 %v13102
    %v13391 = vunpack.c.h.b16 %v13103
    %v13392 = vunpack.c.h.b16 %v13104
    %v13393 = vunpack.c.h.b16 %v13105
    %v13394 = vunpack.c.h.b16 %v13106
    %v13395 = vunpack.c.h.b16 %v13107
    %v13396 = vunpack.c.h.b16 %v13108
    %v13397 = vunpack.c.h.b16 %v13109
    %v13398 = vunpack.c.h.b16 %v13110
    %v13399 = vunpack.c.h.b16 %v13111
    %v13400 = vunpack.c.h.b16 %v13112
    %v13401 = vunpack.c.h.b16 %v13113
    %v13402 = vunpack.c.h.b16 %v13114
    %v13403 = vunpack.c.h.b16 %v13115
    %v13404 = vunpack.c.h.b16 %v13116
    %v13405 = vunpack.c.h.b16 %v13117
    %v13406 = vunpack.c.l.b16 %v13118
    %v13407 = vunpack.c.l.b16 %v13119
    %v13408 = vunpack.c.l.b16 %v13120
    %v13409 = vunpack.c.l.b16 %v13121
    %v13410 = vunpack.c.l.b16 %v13122
    %v13411 = vunpack.c.l.b16 %v13123
    %v13412 = vunpack.c.l.b16 %v13124
    %v13413 = vunpack.c.l.b16 %v13125
    %v13414 = vunpack.c.l.b16 %v13126
    %v13415 = vunpack.c.l.b16 %v13127
    %v13416 = vunpack.c.l.b16 %v13128
    %v13417 = vunpack.c.l.b16 %v13129
    %v13418 = vunpack.c.l.b16 %v13130
    %v13419 = vunpack.c.l.b16 %v13131
    %v13420 = vunpack.c.l.b16 %v13132
    %v13421 = vunpack.c.l.b16 %v13133
    %v13422 = vunpack.c.l.b16 %v13134
    %v13423 = vunpack.c.l.b16 %v13135
    %v13424 = vunpack.c.l.b16 %v13136
    %v13425 = vunpack.c.l.b16 %v13137
    %v13426 = vunpack.c.l.b16 %v13138
    %v13427 = vunpack.c.l.b16 %v13139
    %v13428 = vunpack.c.l.b16 %v13140
    %v13429 = vunpack.c.l.b16 %v13141
    %v13430 = vunpack.c.l.b16 %v13142
    %v13431 = vunpack.c.l.b16 %v13143
    %v13432 = vunpack.c.l.b16 %v13144
    %v13433 = vunpack.c.l.b16 %v13145
    %v13434 = vunpack.c.l.b16 %v13146
    %v13435 = vunpack.c.l.b16 %v13147
    %v13436 = vunpack.c.l.b16 %v13148
    %v13437 = vunpack.c.l.b16 %v13149
    %v13438 = vunpack.c.h.b16 %v13118
    %v13439 = vunpack.c.h.b16 %v13119
    %v13440 = vunpack.c.h.b16 %v13120
    %v13441 = vunpack.c.h.b16 %v13121
    %v13442 = vunpack.c.h.b16 %v13122
    %v13443 = vunpack.c.h.b16 %v13123
    %v13444 = vunpack.c.h.b16 %v13124
    %v13445 = vunpack.c.h.b16 %v13125
    %v13446 = vunpack.c.h.b16 %v13126
    %v13447 = vunpack.c.h.b16 %v13127
    %v13448 = vunpack.c.h.b16 %v13128
    %v13449 = vunpack.c.h.b16 %v13129
    %v13450 = vunpack.c.h.b16 %v13130
    %v13451 = vunpack.c.h.b16 %v13131
    %v13452 = vunpack.c.h.b16 %v13132
    %v13453 = vunpack.c.h.b16 %v13133
    %v13454 = vunpack.c.h.b16 %v13134
    %v13455 = vunpack.c.h.b16 %v13135
    %v13456 = vunpack.c.h.b16 %v13136
    %v13457 = vunpack.c.h.b16 %v13137
    %v13458 = vunpack.c.h.b16 %v13138
    %v13459 = vunpack.c.h.b16 %v13139
    %v13460 = vunpack.c.h.b16 %v13140
    %v13461 = vunpack.c.h.b16 %v13141
    %v13462 = vunpack.c.h.b16 %v13142
    %v13463 = vunpack.c.h.b16 %v13143
    %v13464 = vunpack.c.h.b16 %v13144
    %v13465 = vunpack.c.h.b16 %v13145
    %v13466 = vunpack.c.h.b16 %v13146
    %v13467 = vunpack.c.h.b16 %v13147
    %v13468 = vunpack.c.h.b16 %v13148
    %v13469 = vunpack.c.h.b16 %v13149
    %v13470 = vunpack.c.l.b16 %v13150
    %v13471 = vunpack.c.l.b16 %v13151
    %v13472 = vunpack.c.l.b16 %v13152
    %v13473 = vunpack.c.l.b16 %v13153
    %v13474 = vunpack.c.l.b16 %v13154
    %v13475 = vunpack.c.l.b16 %v13155
    %v13476 = vunpack.c.l.b16 %v13156
    %v13477 = vunpack.c.l.b16 %v13157
    %v13478 = vunpack.c.l.b16 %v13158
    %v13479 = vunpack.c.l.b16 %v13159
    %v13480 = vunpack.c.l.b16 %v13160
    %v13481 = vunpack.c.l.b16 %v13161
    %v13482 = vunpack.c.l.b16 %v13162
    %v13483 = vunpack.c.l.b16 %v13163
    %v13484 = vunpack.c.l.b16 %v13164
    %v13485 = vunpack.c.l.b16 %v13165
    %v13486 = vunpack.c.l.b16 %v13166
    %v13487 = vunpack.c.l.b16 %v13167
    %v13488 = vunpack.c.l.b16 %v13168
    %v13489 = vunpack.c.l.b16 %v13169
    %v13490 = vunpack.c.l.b16 %v13170
    %v13491 = vunpack.c.l.b16 %v13171
    %v13492 = vunpack.c.l.b16 %v13172
    %v13493 = vunpack.c.l.b16 %v13173
    %v13494 = vunpack.c.l.b16 %v13174
    %v13495 = vunpack.c.l.b16 %v13175
    %v13496 = vunpack.c.l.b16 %v13176
    %v13497 = vunpack.c.l.b16 %v13177
    %v13498 = vunpack.c.l.b16 %v13178
    %v13499 = vunpack.c.l.b16 %v13179
    %v13500 = vunpack.c.l.b16 %v13180
    %v13501 = vunpack.c.l.b16 %v13181
    %v13502 = vunpack.c.h.b16 %v13150
    %v13503 = vunpack.c.h.b16 %v13151
    %v13504 = vunpack.c.h.b16 %v13152
    %v13505 = vunpack.c.h.b16 %v13153
    %v13506 = vunpack.c.h.b16 %v13154
    %v13507 = vunpack.c.h.b16 %v13155
    %v13508 = vunpack.c.h.b16 %v13156
    %v13509 = vunpack.c.h.b16 %v13157
    %v13510 = vunpack.c.h.b16 %v13158
    %v13511 = vunpack.c.h.b16 %v13159
    %v13512 = vunpack.c.h.b16 %v13160
    %v13513 = vunpack.c.h.b16 %v13161
    %v13514 = vunpack.c.h.b16 %v13162
    %v13515 = vunpack.c.h.b16 %v13163
    %v13516 = vunpack.c.h.b16 %v13164
    %v13517 = vunpack.c.h.b16 %v13165
    %v13518 = vunpack.c.h.b16 %v13166
    %v13519 = vunpack.c.h.b16 %v13167
    %v13520 = vunpack.c.h.b16 %v13168
    %v13521 = vunpack.c.h.b16 %v13169
    %v13522 = vunpack.c.h.b16 %v13170
    %v13523 = vunpack.c.h.b16 %v13171
    %v13524 = vunpack.c.h.b16 %v13172
    %v13525 = vunpack.c.h.b16 %v13173
    %v13526 = vunpack.c.h.b16 %v13174
    %v13527 = vunpack.c.h.b16 %v13175
    %v13528 = vunpack.c.h.b16 %v13176
    %v13529 = vunpack.c.h.b16 %v13177
    %v13530 = vunpack.c.h.b16 %v13178
    %v13531 = vunpack.c.h.b16 %v13179
    %v13532 = vunpack.c.h.b16 %v13180
    %v13533 = vunpack.c.h.b16 %v13181
    %v13534 = vunpack.c.l.b16 %v13182
    %v13535 = vunpack.c.l.b16 %v13183
    %v13536 = vunpack.c.l.b16 %v13184
    %v13537 = vunpack.c.l.b16 %v13185
    %v13538 = vunpack.c.l.b16 %v13186
    %v13539 = vunpack.c.l.b16 %v13187
    %v13540 = vunpack.c.l.b16 %v13188
    %v13541 = vunpack.c.l.b16 %v13189
    %v13542 = vunpack.c.l.b16 %v13190
    %v13543 = vunpack.c.l.b16 %v13191
    %v13544 = vunpack.c.l.b16 %v13192
    %v13545 = vunpack.c.l.b16 %v13193
    %v13546 = vunpack.c.l.b16 %v13194
    %v13547 = vunpack.c.l.b16 %v13195
    %v13548 = vunpack.c.l.b16 %v13196
    %v13549 = vunpack.c.l.b16 %v13197
    %v13550 = vunpack.c.l.b16 %v13198
    %v13551 = vunpack.c.l.b16 %v13199
    %v13552 = vunpack.c.l.b16 %v13200
    %v13553 = vunpack.c.l.b16 %v13201
    %v13554 = vunpack.c.l.b16 %v13202
    %v13555 = vunpack.c.l.b16 %v13203
    %v13556 = vunpack.c.l.b16 %v13204
    %v13557 = vunpack.c.l.b16 %v13205
    %v13558 = vunpack.c.l.b16 %v13206
    %v13559 = vunpack.c.l.b16 %v13207
    %v13560 = vunpack.c.l.b16 %v13208
    %v13561 = vunpack.c.l.b16 %v13209
    %v13562 = vunpack.c.l.b16 %v13210
    %v13563 = vunpack.c.l.b16 %v13211
    %v13564 = vunpack.c.l.b16 %v13212
    %v13565 = vunpack.c.l.b16 %v13213
    %v13566 = vunpack.c.h.b16 %v13182
    %v13567 = vunpack.c.h.b16 %v13183
    %v13568 = vunpack.c.h.b16 %v13184
    %v13569 = vunpack.c.h.b16 %v13185
    %v13570 = vunpack.c.h.b16 %v13186
    %v13571 = vunpack.c.h.b16 %v13187
    %v13572 = vunpack.c.h.b16 %v13188
    %v13573 = vunpack.c.h.b16 %v13189
    %v13574 = vunpack.c.h.b16 %v13190
    %v13575 = vunpack.c.h.b16 %v13191
    %v13576 = vunpack.c.h.b16 %v13192
    %v13577 = vunpack.c.h.b16 %v13193
    %v13578 = vunpack.c.h.b16 %v13194
    %v13579 = vunpack.c.h.b16 %v13195
    %v13580 = vunpack.c.h.b16 %v13196
    %v13581 = vunpack.c.h.b16 %v13197
    %v13582 = vunpack.c.h.b16 %v13198
    %v13583 = vunpack.c.h.b16 %v13199
    %v13584 = vunpack.c.h.b16 %v13200
    %v13585 = vunpack.c.h.b16 %v13201
    %v13586 = vunpack.c.h.b16 %v13202
    %v13587 = vunpack.c.h.b16 %v13203
    %v13588 = vunpack.c.h.b16 %v13204
    %v13589 = vunpack.c.h.b16 %v13205
    %v13590 = vunpack.c.h.b16 %v13206
    %v13591 = vunpack.c.h.b16 %v13207
    %v13592 = vunpack.c.h.b16 %v13208
    %v13593 = vunpack.c.h.b16 %v13209
    %v13594 = vunpack.c.h.b16 %v13210
    %v13595 = vunpack.c.h.b16 %v13211
    %v13596 = vunpack.c.h.b16 %v13212
    %v13597 = vunpack.c.h.b16 %v13213
    %v13598 = vpack.c.b16 %v13343, %v13342
    %v13599 = vpack.c.b16 %v13345, %v13344
    %v13600 = vpack.c.b16 %v13347, %v13346
    %v13601 = vpack.c.b16 %v13349, %v13348
    %v13602 = vpack.c.b16 %v13351, %v13350
    %v13603 = vpack.c.b16 %v13353, %v13352
    %v13604 = vpack.c.b16 %v13355, %v13354
    %v13605 = vpack.c.b16 %v13357, %v13356
    %v13606 = vpack.c.b16 %v13359, %v13358
    %v13607 = vpack.c.b16 %v13361, %v13360
    %v13608 = vpack.c.b16 %v13363, %v13362
    %v13609 = vpack.c.b16 %v13365, %v13364
    %v13610 = vpack.c.b16 %v13367, %v13366
    %v13611 = vpack.c.b16 %v13369, %v13368
    %v13612 = vpack.c.b16 %v13371, %v13370
    %v13613 = vpack.c.b16 %v13373, %v13372
    %v13614 = vpack.c.b16 %v13375, %v13374
    %v13615 = vpack.c.b16 %v13377, %v13376
    %v13616 = vpack.c.b16 %v13379, %v13378
    %v13617 = vpack.c.b16 %v13381, %v13380
    %v13618 = vpack.c.b16 %v13383, %v13382
    %v13619 = vpack.c.b16 %v13385, %v13384
    %v13620 = vpack.c.b16 %v13387, %v13386
    %v13621 = vpack.c.b16 %v13389, %v13388
    %v13622 = vpack.c.b16 %v13391, %v13390
    %v13623 = vpack.c.b16 %v13393, %v13392
    %v13624 = vpack.c.b16 %v13395, %v13394
    %v13625 = vpack.c.b16 %v13397, %v13396
    %v13626 = vpack.c.b16 %v13399, %v13398
    %v13627 = vpack.c.b16 %v13401, %v13400
    %v13628 = vpack.c.b16 %v13403, %v13402
    %v13629 = vpack.c.b16 %v13405, %v13404
    %v13630 = vpack.c.b16 %v13407, %v13406
    %v13631 = vpack.c.b16 %v13409, %v13408
    %v13632 = vpack.c.b16 %v13411, %v13410
    %v13633 = vpack.c.b16 %v13413, %v13412
    %v13634 = vpack.c.b16 %v13415, %v13414
    %v13635 = vpack.c.b16 %v13417, %v13416
    %v13636 = vpack.c.b16 %v13419, %v13418
    %v13637 = vpack.c.b16 %v13421, %v13420
    %v13638 = vpack.c.b16 %v13423, %v13422
    %v13639 = vpack.c.b16 %v13425, %v13424
    %v13640 = vpack.c.b16 %v13427, %v13426
    %v13641 = vpack.c.b16 %v13429, %v13428
    %v13642 = vpack.c.b16 %v13431, %v13430
    %v13643 = vpack.c.b16 %v13433, %v13432
    %v13644 = vpack.c.b16 %v13435, %v13434
    %v13645 = vpack.c.b16 %v13437, %v13436
    %v13646 = vpack.c.b16 %v13439, %v13438
    %v13647 = vpack.c.b16 %v13441, %v13440
    %v13648 = vpack.c.b16 %v13443, %v13442
    %v13649 = vpack.c.b16 %v13445, %v13444
    %v13650 = vpack.c.b16 %v13447, %v13446
    %v13651 = vpack.c.b16 %v13449, %v13448
    %v13652 = vpack.c.b16 %v13451, %v13450
    %v13653 = vpack.c.b16 %v13453, %v13452
    %v13654 = vpack.c.b16 %v13455, %v13454
    %v13655 = vpack.c.b16 %v13457, %v13456
    %v13656 = vpack.c.b16 %v13459, %v13458
    %v13657 = vpack.c.b16 %v13461, %v13460
    %v13658 = vpack.c.b16 %v13463, %v13462
    %v13659 = vpack.c.b16 %v13465, %v13464
    %v13660 = vpack.c.b16 %v13467, %v13466
    %v13661 = vpack.c.b16 %v13469, %v13468
    %v13662 = vpack.c.b16 %v13471, %v13470
    %v13663 = vpack.c.b16 %v13473, %v13472
    %v13664 = vpack.c.b16 %v13475, %v13474
    %v13665 = vpack.c.b16 %v13477, %v13476
    %v13666 = vpack.c.b16 %v13479, %v13478
    %v13667 = vpack.c.b16 %v13481, %v13480
    %v13668 = vpack.c.b16 %v13483, %v13482
    %v13669 = vpack.c.b16 %v13485, %v13484
    %v13670 = vpack.c.b16 %v13487, %v13486
    %v13671 = vpack.c.b16 %v13489, %v13488
    %v13672 = vpack.c.b16 %v13491, %v13490
    %v13673 = vpack.c.b16 %v13493, %v13492
    %v13674 = vpack.c.b16 %v13495, %v13494
    %v13675 = vpack.c.b16 %v13497, %v13496
    %v13676 = vpack.c.b16 %v13499, %v13498
    %v13677 = vpack.c.b16 %v13501, %v13500
    %v13678 = vpack.c.b16 %v13503, %v13502
    %v13679 = vpack.c.b16 %v13505, %v13504
    %v13680 = vpack.c.b16 %v13507, %v13506
    %v13681 = vpack.c.b16 %v13509, %v13508
    %v13682 = vpack.c.b16 %v13511, %v13510
    %v13683 = vpack.c.b16 %v13513, %v13512
    %v13684 = vpack.c.b16 %v13515, %v13514
    %v13685 = vpack.c.b16 %v13517, %v13516
    %v13686 = vpack.c.b16 %v13519, %v13518
    %v13687 = vpack.c.b16 %v13521, %v13520
    %v13688 = vpack.c.b16 %v13523, %v13522
    %v13689 = vpack.c.b16 %v13525, %v13524
    %v13690 = vpack.c.b16 %v13527, %v13526
    %v13691 = vpack.c.b16 %v13529, %v13528
    %v13692 = vpack.c.b16 %v13531, %v13530
    %v13693 = vpack.c.b16 %v13533, %v13532
    %v13694 = vpack.c.b16 %v13535, %v13534
    %v13695 = vpack.c.b16 %v13537, %v13536
    %v13696 = vpack.c.b16 %v13539, %v13538
    %v13697 = vpack.c.b16 %v13541, %v13540
    %v13698 = vpack.c.b16 %v13543, %v13542
    %v13699 = vpack.c.b16 %v13545, %v13544
    %v13700 = vpack.c.b16 %v13547, %v13546
    %v13701 = vpack.c.b16 %v13549, %v13548
    %v13702 = vpack.c.b16 %v13551, %v13550
    %v13703 = vpack.c.b16 %v13553, %v13552
    %v13704 = vpack.c.b16 %v13555, %v13554
    %v13705 = vpack.c.b16 %v13557, %v13556
    %v13706 = vpack.c.b16 %v13559, %v13558
    %v13707 = vpack.c.b16 %v13561, %v13560
    %v13708 = vpack.c.b16 %v13563, %v13562
    %v13709 = vpack.c.b16 %v13565, %v13564
    %v13710 = vpack.c.b16 %v13567, %v13566
    %v13711 = vpack.c.b16 %v13569, %v13568
    %v13712 = vpack.c.b16 %v13571, %v13570
    %v13713 = vpack.c.b16 %v13573, %v13572
    %v13714 = vpack.c.b16 %v13575, %v13574
    %v13715 = vpack.c.b16 %v13577, %v13576
    %v13716 = vpack.c.b16 %v13579, %v13578
    %v13717 = vpack.c.b16 %v13581, %v13580
    %v13718 = vpack.c.b16 %v13583, %v13582
    %v13719 = vpack.c.b16 %v13585, %v13584
    %v13720 = vpack.c.b16 %v13587, %v13586
    %v13721 = vpack.c.b16 %v13589, %v13588
    %v13722 = vpack.c.b16 %v13591, %v13590
    %v13723 = vpack.c.b16 %v13593, %v13592
    %v13724 = vpack.c.b16 %v13595, %v13594
    %v13725 = vpack.c.b16 %v13597, %v13596
    %13854 = vst [vmem:[#allocation8] sm:$0xff] %v13598
    %13855 = vst [vmem:[#allocation8 + $0x8] sm:$0xff] %v13599
    %13856 = vst [vmem:[#allocation8 + $0x10] sm:$0xff] %v13600
    %13857 = vst [vmem:[#allocation8 + $0x18] sm:$0xff] %v13601
    %13858 = vst [vmem:[#allocation8 + $0x20] sm:$0xff] %v13602
    %13859 = vst [vmem:[#allocation8 + $0x28] sm:$0xff] %v13603
    %13860 = vst [vmem:[#allocation8 + $0x30] sm:$0xff] %v13604
    %13861 = vst [vmem:[#allocation8 + $0x38] sm:$0xff] %v13605
    %13862 = vst [vmem:[#allocation8 + $0x40] sm:$0xff] %v13606
    %13863 = vst [vmem:[#allocation8 + $0x48] sm:$0xff] %v13607
    %13864 = vst [vmem:[#allocation8 + $0x50] sm:$0xff] %v13608
    %13865 = vst [vmem:[#allocation8 + $0x58] sm:$0xff] %v13609
    %13866 = vst [vmem:[#allocation8 + $0x60] sm:$0xff] %v13610
    %13867 = vst [vmem:[#allocation8 + $0x68] sm:$0xff] %v13611
    %13868 = vst [vmem:[#allocation8 + $0x70] sm:$0xff] %v13612
    %13869 = vst [vmem:[#allocation8 + $0x78] sm:$0xff] %v13613
    %13870 = vst [vmem:[#allocation8 + $0x80] sm:$0xff] %v13614
    %13871 = vst [vmem:[#allocation8 + $0x88] sm:$0xff] %v13615
    %13872 = vst [vmem:[#allocation8 + $0x90] sm:$0xff] %v13616
    %13873 = vst [vmem:[#allocation8 + $0x98] sm:$0xff] %v13617
    %13874 = vst [vmem:[#allocation8 + $0xa0] sm:$0xff] %v13618
    %13875 = vst [vmem:[#allocation8 + $0xa8] sm:$0xff] %v13619
    %13876 = vst [vmem:[#allocation8 + $0xb0] sm:$0xff] %v13620
    %13877 = vst [vmem:[#allocation8 + $0xb8] sm:$0xff] %v13621
    %13878 = vst [vmem:[#allocation8 + $0xc0] sm:$0xff] %v13622
    %13879 = vst [vmem:[#allocation8 + $0xc8] sm:$0xff] %v13623
    %13880 = vst [vmem:[#allocation8 + $0xd0] sm:$0xff] %v13624
    %13881 = vst [vmem:[#allocation8 + $0xd8] sm:$0xff] %v13625
    %13882 = vst [vmem:[#allocation8 + $0xe0] sm:$0xff] %v13626
    %13883 = vst [vmem:[#allocation8 + $0xe8] sm:$0xff] %v13627
    %13884 = vst [vmem:[#allocation8 + $0xf0] sm:$0xff] %v13628
    %13885 = vst [vmem:[#allocation8 + $0xf8] sm:$0xff] %v13629
    %13886 = vst [vmem:[#allocation8 + $0x100] sm:$0xff] %v13630
    %13887 = vst [vmem:[#allocation8 + $0x108] sm:$0xff] %v13631
    %13888 = vst [vmem:[#allocation8 + $0x110] sm:$0xff] %v13632
    %13889 = vst [vmem:[#allocation8 + $0x118] sm:$0xff] %v13633
    %13890 = vst [vmem:[#allocation8 + $0x120] sm:$0xff] %v13634
    %13891 = vst [vmem:[#allocation8 + $0x128] sm:$0xff] %v13635
    %13892 = vst [vmem:[#allocation8 + $0x130] sm:$0xff] %v13636
    %13893 = vst [vmem:[#allocation8 + $0x138] sm:$0xff] %v13637
    %13894 = vst [vmem:[#allocation8 + $0x140] sm:$0xff] %v13638
    %13895 = vst [vmem:[#allocation8 + $0x148] sm:$0xff] %v13639
    %13896 = vst [vmem:[#allocation8 + $0x150] sm:$0xff] %v13640
    %13897 = vst [vmem:[#allocation8 + $0x158] sm:$0xff] %v13641
    %13898 = vst [vmem:[#allocation8 + $0x160] sm:$0xff] %v13642
    %13899 = vst [vmem:[#allocation8 + $0x168] sm:$0xff] %v13643
    %13900 = vst [vmem:[#allocation8 + $0x170] sm:$0xff] %v13644
    %13901 = vst [vmem:[#allocation8 + $0x178] sm:$0xff] %v13645
    %13902 = vst [vmem:[#allocation8 + $0x180] sm:$0xff] %v13646
    %13903 = vst [vmem:[#allocation8 + $0x188] sm:$0xff] %v13647
    %13904 = vst [vmem:[#allocation8 + $0x190] sm:$0xff] %v13648
    %13905 = vst [vmem:[#allocation8 + $0x198] sm:$0xff] %v13649
    %13906 = vst [vmem:[#allocation8 + $0x1a0] sm:$0xff] %v13650
    %13907 = vst [vmem:[#allocation8 + $0x1a8] sm:$0xff] %v13651
    %13908 = vst [vmem:[#allocation8 + $0x1b0] sm:$0xff] %v13652
    %13909 = vst [vmem:[#allocation8 + $0x1b8] sm:$0xff] %v13653
    %13910 = vst [vmem:[#allocation8 + $0x1c0] sm:$0xff] %v13654
    %13911 = vst [vmem:[#allocation8 + $0x1c8] sm:$0xff] %v13655
    %13912 = vst [vmem:[#allocation8 + $0x1d0] sm:$0xff] %v13656
    %13913 = vst [vmem:[#allocation8 + $0x1d8] sm:$0xff] %v13657
    %13914 = vst [vmem:[#allocation8 + $0x1e0] sm:$0xff] %v13658
    %13915 = vst [vmem:[#allocation8 + $0x1e8] sm:$0xff] %v13659
    %13916 = vst [vmem:[#allocation8 + $0x1f0] sm:$0xff] %v13660
    %13917 = vst [vmem:[#allocation8 + $0x1f8] sm:$0xff] %v13661
    %13918 = vst [vmem:[#allocation8 + $0x200] sm:$0xff] %v13662
    %13919 = vst [vmem:[#allocation8 + $0x208] sm:$0xff] %v13663
    %13920 = vst [vmem:[#allocation8 + $0x210] sm:$0xff] %v13664
    %13921 = vst [vmem:[#allocation8 + $0x218] sm:$0xff] %v13665
    %13922 = vst [vmem:[#allocation8 + $0x220] sm:$0xff] %v13666
    %13923 = vst [vmem:[#allocation8 + $0x228] sm:$0xff] %v13667
    %13924 = vst [vmem:[#allocation8 + $0x230] sm:$0xff] %v13668
    %13925 = vst [vmem:[#allocation8 + $0x238] sm:$0xff] %v13669
    %13926 = vst [vmem:[#allocation8 + $0x240] sm:$0xff] %v13670
    %13927 = vst [vmem:[#allocation8 + $0x248] sm:$0xff] %v13671
    %13928 = vst [vmem:[#allocation8 + $0x250] sm:$0xff] %v13672
    %13929 = vst [vmem:[#allocation8 + $0x258] sm:$0xff] %v13673
    %13930 = vst [vmem:[#allocation8 + $0x260] sm:$0xff] %v13674
    %13931 = vst [vmem:[#allocation8 + $0x268] sm:$0xff] %v13675
    %13932 = vst [vmem:[#allocation8 + $0x270] sm:$0xff] %v13676
    %13933 = vst [vmem:[#allocation8 + $0x278] sm:$0xff] %v13677
    %13934 = vst [vmem:[#allocation8 + $0x280] sm:$0xff] %v13678
    %13935 = vst [vmem:[#allocation8 + $0x288] sm:$0xff] %v13679
    %13936 = vst [vmem:[#allocation8 + $0x290] sm:$0xff] %v13680
    %13937 = vst [vmem:[#allocation8 + $0x298] sm:$0xff] %v13681
    %13938 = vst [vmem:[#allocation8 + $0x2a0] sm:$0xff] %v13682
    %13939 = vst [vmem:[#allocation8 + $0x2a8] sm:$0xff] %v13683
    %13940 = vst [vmem:[#allocation8 + $0x2b0] sm:$0xff] %v13684
    %13941 = vst [vmem:[#allocation8 + $0x2b8] sm:$0xff] %v13685
    %13942 = vst [vmem:[#allocation8 + $0x2c0] sm:$0xff] %v13686
    %13943 = vst [vmem:[#allocation8 + $0x2c8] sm:$0xff] %v13687
    %13944 = vst [vmem:[#allocation8 + $0x2d0] sm:$0xff] %v13688
    %13945 = vst [vmem:[#allocation8 + $0x2d8] sm:$0xff] %v13689
    %13946 = vst [vmem:[#allocation8 + $0x2e0] sm:$0xff] %v13690
    %13947 = vst [vmem:[#allocation8 + $0x2e8] sm:$0xff] %v13691
    %13948 = vst [vmem:[#allocation8 + $0x2f0] sm:$0xff] %v13692
    %13949 = vst [vmem:[#allocation8 + $0x2f8] sm:$0xff] %v13693
    %13950 = vst [vmem:[#allocation8 + $0x300] sm:$0xff] %v13694
    %13951 = vst [vmem:[#allocation8 + $0x308] sm:$0xff] %v13695
    %13952 = vst [vmem:[#allocation8 + $0x310] sm:$0xff] %v13696
    %13953 = vst [vmem:[#allocation8 + $0x318] sm:$0xff] %v13697
    %13954 = vst [vmem:[#allocation8 + $0x320] sm:$0xff] %v13698
    %13955 = vst [vmem:[#allocation8 + $0x328] sm:$0xff] %v13699
    %13956 = vst [vmem:[#allocation8 + $0x330] sm:$0xff] %v13700
    %13957 = vst [vmem:[#allocation8 + $0x338] sm:$0xff] %v13701
    %13958 = vst [vmem:[#allocation8 + $0x340] sm:$0xff] %v13702
    %13959 = vst [vmem:[#allocation8 + $0x348] sm:$0xff] %v13703
    %13960 = vst [vmem:[#allocation8 + $0x350] sm:$0xff] %v13704
    %13961 = vst [vmem:[#allocation8 + $0x358] sm:$0xff] %v13705
    %13962 = vst [vmem:[#allocation8 + $0x360] sm:$0xff] %v13706
    %13963 = vst [vmem:[#allocation8 + $0x368] sm:$0xff] %v13707
    %13964 = vst [vmem:[#allocation8 + $0x370] sm:$0xff] %v13708
    %13965 = vst [vmem:[#allocation8 + $0x378] sm:$0xff] %v13709
    %13966 = vst [vmem:[#allocation8 + $0x380] sm:$0xff] %v13710
    %13967 = vst [vmem:[#allocation8 + $0x388] sm:$0xff] %v13711
    %13968 = vst [vmem:[#allocation8 + $0x390] sm:$0xff] %v13712
    %13969 = vst [vmem:[#allocation8 + $0x398] sm:$0xff] %v13713
    %13970 = vst [vmem:[#allocation8 + $0x3a0] sm:$0xff] %v13714
    %13971 = vst [vmem:[#allocation8 + $0x3a8] sm:$0xff] %v13715
    %13972 = vst [vmem:[#allocation8 + $0x3b0] sm:$0xff] %v13716
    %13973 = vst [vmem:[#allocation8 + $0x3b8] sm:$0xff] %v13717
    %13974 = vst [vmem:[#allocation8 + $0x3c0] sm:$0xff] %v13718
    %13975 = vst [vmem:[#allocation8 + $0x3c8] sm:$0xff] %v13719
    %13976 = vst [vmem:[#allocation8 + $0x3d0] sm:$0xff] %v13720
    %13977 = vst [vmem:[#allocation8 + $0x3d8] sm:$0xff] %v13721
    %13978 = vst [vmem:[#allocation8 + $0x3e0] sm:$0xff] %v13722
    %13979 = vst [vmem:[#allocation8 + $0x3e8] sm:$0xff] %v13723
    %13980 = vst [vmem:[#allocation8 + $0x3f0] sm:$0xff] %v13724
    %13981 = vst [vmem:[#allocation8 + $0x3f8] sm:$0xff] %v13725
    // Predicated region
    $region26: #{tpu_custom_call.1} parent=1 // pred_check
      _
    $region27: #{tpu_custom_call.1} parent=1 // pred_check_branch
      %13983 = sbr.rel (0) target = $region29
    $region28: #{tpu_custom_call.1} parent=1 // pred_region
      %s13985 = ssub.s32 16384, 16384
      %13986 = vsyncadd [#allocation4], %s13985
      %s13987 = sshll.u32 [#allocation8], 4
      %s13988 = int_to_ptr.vmem [resolvable:$true] %s13987
      %13993 = dma.vmem_to_hbm [thread:$0]  %s13988, 16384, %s3, [#allocation4], 2048, 2048, 128
    $region29: #{tpu_custom_call.1} parent=1 // pred_fallthru
      _
    // Predicated region
    $region30: #{tpu_custom_call.1} parent=1 // pred_check
      _
    $region31: #{tpu_custom_call.1} parent=1 // pred_check_branch
      %13995 = sbr.rel (0) target = $region33
    $region32: #{tpu_custom_call.1} parent=1 // pred_region
      %13996 = dma.done [#allocation4], 16384
    $region33: #{tpu_custom_call.1} parent=1 // pred_fallthru
      _
    %13997 = vsyncpa [#allocation3], 1
    %13998 = vsyncpa [#allocation6], 1
    %13999 = vsyncpa [#allocation4], 1

</llo_original>
